<compile_context>
chip_gen: v6e
topology: v6e:2x2x1
jax: 0.10.0
libtpu: 0.0.40
codegen_flags: <defaults>
</compile_context>

<pallas_src>
import numpy as np

import jax
import jax.numpy as jnp
from jax.experimental import pallas as pl
from jax.experimental.pallas import tpu as pltpu


BLOCK_B = 8   # images per grid step (multiple of 8)


# ----------------------------------------------------------------------------
# One-time weight repacking (numpy / host side; hoisted out of the traced fwd)
# ----------------------------------------------------------------------------
def _banded_taps(w_oihw, *, w_out, w_in_logical, w_in_blocks, pad, dilate_in):
    """Per-kernel-row banded weights for the packed (H, W*C) activation layout.

    Returns (kh, w_in_blocks*cin, w_out*cout).  Output width m, horizontal tap
    j reads logical input width p = m + j - pad (dropped when outside
    [0, w_in_logical) -> exact zero padding), which lives at packed width block
    u = p * dilate_in of the slab fed to the matmul.  dilate_in=2 folds the
    preceding max-pool / stride-2 even-column selection into the weights."""
    w = np.asarray(w_oihw, np.float32)            # torch OIHW
    cout, cin, kh, kw = w.shape
    bands = np.zeros((kh, w_in_blocks * cin, w_out * cout), np.float32)
    for i in range(kh):
        for m in range(w_out):
            for j in range(kw):
                p = m + j - pad
                if 0 <= p < w_in_logical:
                    u = p * dilate_in
                    bands[i, u * cin:(u + 1) * cin,
                          m * cout:(m + 1) * cout] = w[:, :, i, j].T
    return jnp.asarray(bands)


def _tile_bias(b, w_out):
    b = np.asarray(b, np.float32)
    return jnp.asarray(np.tile(b, (w_out,)).reshape(1, w_out * b.shape[0]))


def _pool_row_select(h_pool, h_pre):
    """(h_pool+2, h_pre) 0/1 matrix: row r+1 picks pre-pool row 2r; rows 0 and
    h_pool+1 are zero and provide the NEXT conv's vertical zero padding."""
    s = np.zeros((h_pool + 2, h_pre), np.float32)
    s[1 + np.arange(h_pool), 2 * np.arange(h_pool)] = 1.0
    return jnp.asarray(s)


def init_params(key):
    shapes = [
        ("conv1", (4, 1, 3, 3)),
        ("conv2", (8, 4, 3, 3)),
        ("conv3", (16, 8, 3, 3)),
        ("conv4", (32, 16, 3, 3)),
        ("conv5", (32, 32, 2, 2)),
        ("fc", (10, 32)),
    ]
    params = {}
    for name, wshape in shapes:
        key, kw, kb = jax.random.split(key, 3)
        params[name + "_w"] = 0.1 * jax.random.normal(kw, wshape, jnp.float32)
        params[name + "_b"] = 0.1 * jax.random.normal(kb, (wshape[0],), jnp.float32)
    return params


def prepare_params(params):
    return {
        # conv1: 1->4, k3, p1 (rows pre-padded in the wrapper)
        "band1": _banded_taps(params["conv1_w"], w_out=28, w_in_logical=28,
                              w_in_blocks=28, pad=1, dilate_in=1),
        "b1": _tile_bias(params["conv1_b"], 28),
        # conv2: 4->8, k3, p1; pool1 even-column selection folded in (dilate 2)
        "band2": _banded_taps(params["conv2_w"], w_out=14, w_in_logical=14,
                              w_in_blocks=27, pad=1, dilate_in=2),
        "b2": _tile_bias(params["conv2_b"], 14),
        # conv3: 8->16, k3, p1, run at stride 1; pool2 column selection folded in
        "band3": _banded_taps(params["conv3_w"], w_out=7, w_in_logical=7,
                              w_in_blocks=13, pad=1, dilate_in=2),
        "b3": _tile_bias(params["conv3_b"], 7),
        # conv4: 16->32, k3, valid; conv3's stride-2 column selection folded in
        "band4": _banded_taps(params["conv4_w"], w_out=2, w_in_logical=4,
                              w_in_blocks=7, pad=0, dilate_in=2),
        "b4": _tile_bias(params["conv4_b"], 2),
        # conv5: 32->32, k2, valid  (its (1, 32) output == flatten)
        "band5": _banded_taps(params["conv5_w"], w_out=1, w_in_logical=2,
                              w_in_blocks=2, pad=0, dilate_in=1),
        "b5": _tile_bias(params["conv5_b"], 1),
        "wfc": params["fc_w"].astype(jnp.float32).T,   # PyTorch Linear: x @ W.T + b
        "bfc": params["fc_b"].astype(jnp.float32).reshape(1, 10),
        "s1": _pool_row_select(14, 27),                # pool1 rows (+ conv2 row pad)
        "s2": _pool_row_select(7, 13),                 # pool2 rows (+ conv3 row pad)
    }


# ----------------------------------------------------------------------------
# In-kernel helpers (traced; operate on packed (H, W*C) slabs)
# ----------------------------------------------------------------------------
def _conv_rows(x, bands, bias, *, h_out, relu):
    """Stride-1 conv as row taps over full-lane slabs: sum_i x[i:i+h_out,:] @ bands[i]."""
    acc = jnp.dot(x[0:h_out, :], bands[0], preferred_element_type=jnp.float32)
    for i in range(1, len(bands)):
        acc = acc + jnp.dot(x[i:i + h_out, :], bands[i],
                            preferred_element_type=jnp.float32)
    acc = acc + bias
    if relu:
        acc = jnp.maximum(acc, 0.0)
    return acc


def _image_head(x_img, w):
    """conv1..conv3 for one image; returns the 4 stride-2-selected conv3 rows."""
    # conv1 + ReLU: (30, 28) -> (28, 112)
    x1 = _conv_rows(x_img, w["band1"], w["b1"], h_out=28, relu=True)
    # pool1: row-pair max, padded row select, column-pair max -> (16, 108)
    m = jnp.maximum(x1[:-1, :], x1[1:, :])                                 # (27, 112)
    rh = jnp.dot(w["s1"], m, preferred_element_type=jnp.float32)           # (16, 112)
    m2 = jnp.maximum(rh[:, :-4], rh[:, 4:])                                # (16, 108)
    # conv2 + ReLU (pool1 column selection folded into band2): -> (14, 112)
    x2 = _conv_rows(m2, w["band2"], w["b2"], h_out=14, relu=True)
    # pool2 -> (9, 104)
    m = jnp.maximum(x2[:-1, :], x2[1:, :])                                 # (13, 112)
    rh = jnp.dot(w["s2"], m, preferred_element_type=jnp.float32)           # (9, 112)
    m2 = jnp.maximum(rh[:, :-8], rh[:, 8:])                                # (9, 104)
    # conv3 + ReLU, run at stride 1 (pool2 column selection folded): -> (7, 112)
    y3 = _conv_rows(m2, w["band3"], w["b3"], h_out=7, relu=True)
    # stride-2 row selection (its column selection is folded into band4)
    return [y3[2 * k:2 * k + 1, :] for k in range(4)]                      # 4 x (1, 112)


# ----------------------------------------------------------------------------
# The fused kernel: B images per grid step, everything VMEM-resident
# ----------------------------------------------------------------------------
def _mnist_kernel(x_ref,
                  band1_ref, b1_ref, band2_ref, b2_ref, band3_ref, b3_ref,
                  band4_ref, b4_ref, band5_ref, b5_ref, wfc_ref, bfc_ref,
                  s1_ref, s2_ref, out_ref):
    bsz = x_ref.shape[0]

    # Hoist all weight loads out of the per-image loop (JAX does not CSE them).
    w = {
        "band1": [band1_ref[i] for i in range(3)], "b1": b1_ref[...],
        "band2": [band2_ref[i] for i in range(3)], "b2": b2_ref[...],
        "band3": [band3_ref[i] for i in range(3)], "b3": b3_ref[...],
        "s1": s1_ref[...], "s2": s2_ref[...],
    }
    band4 = [band4_ref[i] for i in range(3)]
    band5 = [band5_ref[i] for i in range(2)]

    # Per-image head (conv1..conv3): independent chains, interleaved by the scheduler.
    rows = [[], [], [], []]
    for b in range(bsz):
        r = _image_head(x_ref[b], w)
        for k in range(4):
            rows[k].append(r[k])

    # Batched tail: stack the B images along sublanes so conv4/conv5/fc become a
    # handful of (B,K)@(K,N) matmuls per block instead of per-image ones.
    R = [jnp.concatenate(rows[k], axis=0) for k in range(4)]               # 4 x (B, 112)

    h4 = []
    for r in range(2):                                                     # conv4 (k3, valid)
        acc = jnp.dot(R[r], band4[0], preferred_element_type=jnp.float32)
        acc = acc + jnp.dot(R[r + 1], band4[1], preferred_element_type=jnp.float32)
        acc = acc + jnp.dot(R[r + 2], band4[2], preferred_element_type=jnp.float32)
        h4.append(jnp.maximum(acc + b4_ref[...], 0.0))                     # (B, 64)

    feat = (jnp.dot(h4[0], band5[0], preferred_element_type=jnp.float32)   # conv5 (k2, valid)
            + jnp.dot(h4[1], band5[1], preferred_element_type=jnp.float32)
            + b5_ref[...])                                                 # (B, 32) == flatten

    logits = jnp.dot(feat, wfc_ref[...], preferred_element_type=jnp.float32)
    out_ref[...] = logits + bfc_ref[...]                                   # (B, 10)


# ----------------------------------------------------------------------------
# Forward wrapper: one pallas_call for the whole network
# ----------------------------------------------------------------------------
def mnist_forward(kp, x_nchw, *, block_b=BLOCK_B):
    x = x_nchw[:, 0, :, :].astype(jnp.float32)            # (N, 28, 28), Cin == 1
    x = jnp.pad(x, ((0, 0), (1, 1), (0, 0)))              # conv1 row padding -> (N, 30, 28)
    n = x.shape[0]
    nb = (n + block_b - 1) // block_b
    n_pad = nb * block_b
    if n_pad != n:
        x = jnp.pad(x, ((0, n_pad - n), (0, 0), (0, 0)))

    operands = [
        x,
        kp["band1"], kp["b1"], kp["band2"], kp["b2"], kp["band3"], kp["b3"],
        kp["band4"], kp["b4"], kp["band5"], kp["b5"], kp["wfc"], kp["bfc"],
        kp["s1"], kp["s2"],
    ]

    def _rep_spec(shape):
        zeros = (0,) * len(shape)
        return pl.BlockSpec(shape, lambda i, z=zeros: z)   # replicated, VMEM-resident

    in_specs = [pl.BlockSpec((block_b, 30, 28), lambda i: (i, 0, 0))]
    in_specs += [_rep_spec(op.shape) for op in operands[1:]]

    out = pl.pallas_call(
        _mnist_kernel,
        out_shape=jax.ShapeDtypeStruct((n_pad, 10), jnp.float32),
        grid=(nb,),
        in_specs=in_specs,
        out_specs=pl.BlockSpec((block_b, 10), lambda i: (i, 0)),
        compiler_params=pltpu.CompilerParams(
            dimension_semantics=("parallel",)),            # image blocks across cores
    )(*operands)
    return out[:n]


# ----------------------------------------------------------------------------
# Pure-JAX reference (for correctness checking only)
# ----------------------------------------------------------------------------
def _ref_forward(params, x_nchw):
    dn = ("NCHW", "OIHW", "NCHW")
    x = x_nchw.astype(jnp.float32)

    def conv(x, w, b, stride, pad):
        y = jax.lax.conv_general_dilated(x, w, (stride, stride),
                                         [(pad, pad), (pad, pad)],
                                         dimension_numbers=dn)
        return y + b.reshape(1, -1, 1, 1)

    def maxpool2(x):
        return jax.lax.reduce_window(x, -jnp.inf, jax.lax.max,
                                     (1, 1, 2, 2), (1, 1, 2, 2), "VALID")

    x = jax.nn.relu(conv(x, params["conv1_w"], params["conv1_b"], 1, 1))
    x = maxpool2(x)
    x = jax.nn.relu(conv(x, params["conv2_w"], params["conv2_b"], 1, 1))
    x = maxpool2(x)
    x = jax.nn.relu(conv(x, params["conv3_w"], params["conv3_b"], 2, 1))
    x = jax.nn.relu(conv(x, params["conv4_w"], params["conv4_b"], 1, 0))
    x = conv(x, params["conv5_w"], params["conv5_b"], 1, 0)
    x = x.reshape(x.shape[0], -1)
    return x @ params["fc_w"].T + params["fc_b"]


if __name__ == "__main__":
    key = jax.random.PRNGKey(0)
    key, kx = jax.random.split(key)
    params = init_params(key)
    kparams = prepare_params(params)

    # 28x28 is the spatial size the module implies (flatten must yield 32 feats)
    x = jax.random.normal(kx, (2, 1, 28, 28), jnp.float32)

    out = jax.jit(mnist_forward)(kparams, x)
    out = jax.block_until_ready(out)
    assert out.shape == (2, 10) and out.dtype == jnp.float32

    ref = _ref_forward(params, x)
    np.testing.assert_allclose(np.asarray(out), np.asarray(ref), rtol=1e-3, atol=1e-3)
    print("KERNEL_OK")
</pallas_src>

<mosaic_0001>
module attributes {stable_mosaic.version = 11 : i64} {
  func.func @_mnist_kernel(%arg0: i32, %arg1: memref<8x30x28xf32, #tpu.memory_space<vmem>>, %arg2: memref<3x28x112xf32, #tpu.memory_space<vmem>>, %arg3: memref<1x112xf32, #tpu.memory_space<vmem>>, %arg4: memref<3x108x112xf32, #tpu.memory_space<vmem>>, %arg5: memref<1x112xf32, #tpu.memory_space<vmem>>, %arg6: memref<3x104x112xf32, #tpu.memory_space<vmem>>, %arg7: memref<1x112xf32, #tpu.memory_space<vmem>>, %arg8: memref<3x112x64xf32, #tpu.memory_space<vmem>>, %arg9: memref<1x64xf32, #tpu.memory_space<vmem>>, %arg10: memref<2x64x32xf32, #tpu.memory_space<vmem>>, %arg11: memref<1x32xf32, #tpu.memory_space<vmem>>, %arg12: memref<32x10xf32, #tpu.memory_space<vmem>>, %arg13: memref<1x10xf32, #tpu.memory_space<vmem>>, %arg14: memref<16x27xf32, #tpu.memory_space<vmem>>, %arg15: memref<9x13xf32, #tpu.memory_space<vmem>>, %arg16: memref<8x10xf32, #tpu.memory_space<vmem>>) attributes {dimension_semantics = [#tpu.dimension_semantics<parallel>], iteration_bounds = array<i64: 1>, scalar_prefetch = 0 : i64, scratch_operands = 0 : i64, tpu.core_type = #tpu.core_type<tc>, window_params = [{transform_indices = @transform_0, window_bounds = array<i64: 8, 30, 28>}, {pipeline_mode = #tpu.pipeline_mode<synchronous>, transform_indices = @transform_1, window_bounds = array<i64: 3, 28, 112>}, {pipeline_mode = #tpu.pipeline_mode<synchronous>, transform_indices = @transform_2, window_bounds = array<i64: 1, 112>}, {pipeline_mode = #tpu.pipeline_mode<synchronous>, transform_indices = @transform_3, window_bounds = array<i64: 3, 108, 112>}, {pipeline_mode = #tpu.pipeline_mode<synchronous>, transform_indices = @transform_4, window_bounds = array<i64: 1, 112>}, {pipeline_mode = #tpu.pipeline_mode<synchronous>, transform_indices = @transform_5, window_bounds = array<i64: 3, 104, 112>}, {pipeline_mode = #tpu.pipeline_mode<synchronous>, transform_indices = @transform_6, window_bounds = array<i64: 1, 112>}, {pipeline_mode = #tpu.pipeline_mode<synchronous>, transform_indices = @transform_7, window_bounds = array<i64: 3, 112, 64>}, {pipeline_mode = #tpu.pipeline_mode<synchronous>, transform_indices = @transform_8, window_bounds = array<i64: 1, 64>}, {pipeline_mode = #tpu.pipeline_mode<synchronous>, transform_indices = @transform_9, window_bounds = array<i64: 2, 64, 32>}, {pipeline_mode = #tpu.pipeline_mode<synchronous>, transform_indices = @transform_10, window_bounds = array<i64: 1, 32>}, {pipeline_mode = #tpu.pipeline_mode<synchronous>, transform_indices = @transform_11, window_bounds = array<i64: 32, 10>}, {pipeline_mode = #tpu.pipeline_mode<synchronous>, transform_indices = @transform_12, window_bounds = array<i64: 1, 10>}, {pipeline_mode = #tpu.pipeline_mode<synchronous>, transform_indices = @transform_13, window_bounds = array<i64: 16, 27>}, {pipeline_mode = #tpu.pipeline_mode<synchronous>, transform_indices = @transform_14, window_bounds = array<i64: 9, 13>}, {transform_indices = @transform_15, window_bounds = array<i64: 8, 10>}]} {
    %c0 = arith.constant 0 : index
    %c0_0 = arith.constant 0 : index
    %c0_1 = arith.constant 0 : index
    %0 = vector.load %arg2[%c0, %c0_0, %c0_1] : memref<3x28x112xf32, #tpu.memory_space<vmem>>, vector<1x28x112xf32>
    %1 = vector.shape_cast %0 : vector<1x28x112xf32> to vector<28x112xf32>
    %c1 = arith.constant 1 : index
    %c0_2 = arith.constant 0 : index
    %c0_3 = arith.constant 0 : index
    %2 = vector.load %arg2[%c1, %c0_2, %c0_3] : memref<3x28x112xf32, #tpu.memory_space<vmem>>, vector<1x28x112xf32>
    %3 = vector.shape_cast %2 : vector<1x28x112xf32> to vector<28x112xf32>
    %c2 = arith.constant 2 : index
    %c0_4 = arith.constant 0 : index
    %c0_5 = arith.constant 0 : index
    %4 = vector.load %arg2[%c2, %c0_4, %c0_5] : memref<3x28x112xf32, #tpu.memory_space<vmem>>, vector<1x28x112xf32>
    %5 = vector.shape_cast %4 : vector<1x28x112xf32> to vector<28x112xf32>
    %c0_6 = arith.constant 0 : index
    %c0_7 = arith.constant 0 : index
    %6 = vector.load %arg3[%c0_6, %c0_7] : memref<1x112xf32, #tpu.memory_space<vmem>>, vector<1x112xf32>
    %c0_8 = arith.constant 0 : index
    %c0_9 = arith.constant 0 : index
    %c0_10 = arith.constant 0 : index
    %7 = vector.load %arg4[%c0_8, %c0_9, %c0_10] : memref<3x108x112xf32, #tpu.memory_space<vmem>>, vector<1x108x112xf32>
    %8 = vector.shape_cast %7 : vector<1x108x112xf32> to vector<108x112xf32>
    %c1_11 = arith.constant 1 : index
    %c0_12 = arith.constant 0 : index
    %c0_13 = arith.constant 0 : index
    %9 = vector.load %arg4[%c1_11, %c0_12, %c0_13] : memref<3x108x112xf32, #tpu.memory_space<vmem>>, vector<1x108x112xf32>
    %10 = vector.shape_cast %9 : vector<1x108x112xf32> to vector<108x112xf32>
    %c2_14 = arith.constant 2 : index
    %c0_15 = arith.constant 0 : index
    %c0_16 = arith.constant 0 : index
    %11 = vector.load %arg4[%c2_14, %c0_15, %c0_16] : memref<3x108x112xf32, #tpu.memory_space<vmem>>, vector<1x108x112xf32>
    %12 = vector.shape_cast %11 : vector<1x108x112xf32> to vector<108x112xf32>
    %c0_17 = arith.constant 0 : index
    %c0_18 = arith.constant 0 : index
    %13 = vector.load %arg5[%c0_17, %c0_18] : memref<1x112xf32, #tpu.memory_space<vmem>>, vector<1x112xf32>
    %c0_19 = arith.constant 0 : index
    %c0_20 = arith.constant 0 : index
    %c0_21 = arith.constant 0 : index
    %14 = vector.load %arg6[%c0_19, %c0_20, %c0_21] : memref<3x104x112xf32, #tpu.memory_space<vmem>>, vector<1x104x112xf32>
    %15 = vector.shape_cast %14 : vector<1x104x112xf32> to vector<104x112xf32>
    %c1_22 = arith.constant 1 : index
    %c0_23 = arith.constant 0 : index
    %c0_24 = arith.constant 0 : index
    %16 = vector.load %arg6[%c1_22, %c0_23, %c0_24] : memref<3x104x112xf32, #tpu.memory_space<vmem>>, vector<1x104x112xf32>
    %17 = vector.shape_cast %16 : vector<1x104x112xf32> to vector<104x112xf32>
    %c2_25 = arith.constant 2 : index
    %c0_26 = arith.constant 0 : index
    %c0_27 = arith.constant 0 : index
    %18 = vector.load %arg6[%c2_25, %c0_26, %c0_27] : memref<3x104x112xf32, #tpu.memory_space<vmem>>, vector<1x104x112xf32>
    %19 = vector.shape_cast %18 : vector<1x104x112xf32> to vector<104x112xf32>
    %c0_28 = arith.constant 0 : index
    %c0_29 = arith.constant 0 : index
    %20 = vector.load %arg7[%c0_28, %c0_29] : memref<1x112xf32, #tpu.memory_space<vmem>>, vector<1x112xf32>
    %c0_30 = arith.constant 0 : index
    %c0_31 = arith.constant 0 : index
    %21 = vector.load %arg14[%c0_30, %c0_31] : memref<16x27xf32, #tpu.memory_space<vmem>>, vector<16x27xf32>
    %c0_32 = arith.constant 0 : index
    %c0_33 = arith.constant 0 : index
    %22 = vector.load %arg15[%c0_32, %c0_33] : memref<9x13xf32, #tpu.memory_space<vmem>>, vector<9x13xf32>
    %c0_34 = arith.constant 0 : index
    %c0_35 = arith.constant 0 : index
    %c0_36 = arith.constant 0 : index
    %23 = vector.load %arg8[%c0_34, %c0_35, %c0_36] : memref<3x112x64xf32, #tpu.memory_space<vmem>>, vector<1x112x64xf32>
    %24 = vector.shape_cast %23 : vector<1x112x64xf32> to vector<112x64xf32>
    %c1_37 = arith.constant 1 : index
    %c0_38 = arith.constant 0 : index
    %c0_39 = arith.constant 0 : index
    %25 = vector.load %arg8[%c1_37, %c0_38, %c0_39] : memref<3x112x64xf32, #tpu.memory_space<vmem>>, vector<1x112x64xf32>
    %26 = vector.shape_cast %25 : vector<1x112x64xf32> to vector<112x64xf32>
    %c2_40 = arith.constant 2 : index
    %c0_41 = arith.constant 0 : index
    %c0_42 = arith.constant 0 : index
    %27 = vector.load %arg8[%c2_40, %c0_41, %c0_42] : memref<3x112x64xf32, #tpu.memory_space<vmem>>, vector<1x112x64xf32>
    %28 = vector.shape_cast %27 : vector<1x112x64xf32> to vector<112x64xf32>
    %c0_43 = arith.constant 0 : index
    %c0_44 = arith.constant 0 : index
    %c0_45 = arith.constant 0 : index
    %29 = vector.load %arg10[%c0_43, %c0_44, %c0_45] : memref<2x64x32xf32, #tpu.memory_space<vmem>>, vector<1x64x32xf32>
    %30 = vector.shape_cast %29 : vector<1x64x32xf32> to vector<64x32xf32>
    %c1_46 = arith.constant 1 : index
    %c0_47 = arith.constant 0 : index
    %c0_48 = arith.constant 0 : index
    %31 = vector.load %arg10[%c1_46, %c0_47, %c0_48] : memref<2x64x32xf32, #tpu.memory_space<vmem>>, vector<1x64x32xf32>
    %32 = vector.shape_cast %31 : vector<1x64x32xf32> to vector<64x32xf32>
    %c0_49 = arith.constant 0 : index
    %c0_50 = arith.constant 0 : index
    %c0_51 = arith.constant 0 : index
    %33 = vector.load %arg1[%c0_49, %c0_50, %c0_51] : memref<8x30x28xf32, #tpu.memory_space<vmem>>, vector<1x30x28xf32>
    %34 = vector.shape_cast %33 : vector<1x30x28xf32> to vector<30x28xf32>
    %35 = vector.extract_strided_slice %34 {offsets = [0, 0], sizes = [28, 28], strides = [1, 1]} : vector<30x28xf32> to vector<28x28xf32>
    %cst = arith.constant dense<0.000000e+00> : vector<28x112xf32>
    %36 = tpu.matmul %35, %1, %cst {dimension_numbers = #tpu.dot_dimension_numbers<[1], [0], [0], [1], [0, 0, 1, 1], [], []>} : vector<28x28xf32>, vector<28x112xf32>, vector<28x112xf32> -> vector<28x112xf32>
    %37 = vector.extract_strided_slice %34 {offsets = [1, 0], sizes = [28, 28], strides = [1, 1]} : vector<30x28xf32> to vector<28x28xf32>
    %cst_52 = arith.constant dense<0.000000e+00> : vector<28x112xf32>
    %38 = tpu.matmul %37, %3, %cst_52 {dimension_numbers = #tpu.dot_dimension_numbers<[1], [0], [0], [1], [0, 0, 1, 1], [], []>} : vector<28x28xf32>, vector<28x112xf32>, vector<28x112xf32> -> vector<28x112xf32>
    %39 = arith.addf %36, %38 : vector<28x112xf32>
    %40 = vector.extract_strided_slice %34 {offsets = [2, 0], sizes = [28, 28], strides = [1, 1]} : vector<30x28xf32> to vector<28x28xf32>
    %cst_53 = arith.constant dense<0.000000e+00> : vector<28x112xf32>
    %41 = tpu.matmul %40, %5, %cst_53 {dimension_numbers = #tpu.dot_dimension_numbers<[1], [0], [0], [1], [0, 0, 1, 1], [], []>} : vector<28x28xf32>, vector<28x112xf32>, vector<28x112xf32> -> vector<28x112xf32>
    %42 = arith.addf %39, %41 : vector<28x112xf32>
    %43 = vector.broadcast %6 : vector<1x112xf32> to vector<28x112xf32>
    %44 = arith.addf %42, %43 : vector<28x112xf32>
    %cst_54 = arith.constant 0.000000e+00 : f32
    %45 = vector.broadcast %cst_54 : f32 to vector<28x112xf32>
    %46 = arith.maximumf %44, %45 : vector<28x112xf32>
    %47 = vector.extract_strided_slice %46 {offsets = [0, 0], sizes = [27, 112], strides = [1, 1]} : vector<28x112xf32> to vector<27x112xf32>
    %48 = vector.extract_strided_slice %46 {offsets = [1, 0], sizes = [27, 112], strides = [1, 1]} : vector<28x112xf32> to vector<27x112xf32>
    %49 = arith.maximumf %47, %48 : vector<27x112xf32>
    %cst_55 = arith.constant dense<0.000000e+00> : vector<16x112xf32>
    %50 = tpu.matmul %21, %49, %cst_55 {dimension_numbers = #tpu.dot_dimension_numbers<[1], [0], [0], [1], [0, 0, 1, 1], [], []>} : vector<16x27xf32>, vector<27x112xf32>, vector<16x112xf32> -> vector<16x112xf32>
    %51 = vector.extract_strided_slice %50 {offsets = [0, 0], sizes = [16, 108], strides = [1, 1]} : vector<16x112xf32> to vector<16x108xf32>
    %52 = vector.extract_strided_slice %50 {offsets = [0, 4], sizes = [16, 108], strides = [1, 1]} : vector<16x112xf32> to vector<16x108xf32>
    %53 = arith.maximumf %51, %52 : vector<16x108xf32>
    %54 = vector.extract_strided_slice %53 {offsets = [0, 0], sizes = [14, 108], strides = [1, 1]} : vector<16x108xf32> to vector<14x108xf32>
    %cst_56 = arith.constant dense<0.000000e+00> : vector<14x112xf32>
    %55 = tpu.matmul %54, %8, %cst_56 {dimension_numbers = #tpu.dot_dimension_numbers<[1], [0], [0], [1], [0, 0, 1, 1], [], []>} : vector<14x108xf32>, vector<108x112xf32>, vector<14x112xf32> -> vector<14x112xf32>
    %56 = vector.extract_strided_slice %53 {offsets = [1, 0], sizes = [14, 108], strides = [1, 1]} : vector<16x108xf32> to vector<14x108xf32>
    %cst_57 = arith.constant dense<0.000000e+00> : vector<14x112xf32>
    %57 = tpu.matmul %56, %10, %cst_57 {dimension_numbers = #tpu.dot_dimension_numbers<[1], [0], [0], [1], [0, 0, 1, 1], [], []>} : vector<14x108xf32>, vector<108x112xf32>, vector<14x112xf32> -> vector<14x112xf32>
    %58 = arith.addf %55, %57 : vector<14x112xf32>
    %59 = vector.extract_strided_slice %53 {offsets = [2, 0], sizes = [14, 108], strides = [1, 1]} : vector<16x108xf32> to vector<14x108xf32>
    %cst_58 = arith.constant dense<0.000000e+00> : vector<14x112xf32>
    %60 = tpu.matmul %59, %12, %cst_58 {dimension_numbers = #tpu.dot_dimension_numbers<[1], [0], [0], [1], [0, 0, 1, 1], [], []>} : vector<14x108xf32>, vector<108x112xf32>, vector<14x112xf32> -> vector<14x112xf32>
    %61 = arith.addf %58, %60 : vector<14x112xf32>
    %62 = vector.broadcast %13 : vector<1x112xf32> to vector<14x112xf32>
    %63 = arith.addf %61, %62 : vector<14x112xf32>
    %cst_59 = arith.constant 0.000000e+00 : f32
    %64 = vector.broadcast %cst_59 : f32 to vector<14x112xf32>
    %65 = arith.maximumf %63, %64 : vector<14x112xf32>
    %66 = vector.extract_strided_slice %65 {offsets = [0, 0], sizes = [13, 112], strides = [1, 1]} : vector<14x112xf32> to vector<13x112xf32>
    %67 = vector.extract_strided_slice %65 {offsets = [1, 0], sizes = [13, 112], strides = [1, 1]} : vector<14x112xf32> to vector<13x112xf32>
    %68 = arith.maximumf %66, %67 : vector<13x112xf32>
    %cst_60 = arith.constant dense<0.000000e+00> : vector<9x112xf32>
    %69 = tpu.matmul %22, %68, %cst_60 {dimension_numbers = #tpu.dot_dimension_numbers<[1], [0], [0], [1], [0, 0, 1, 1], [], []>} : vector<9x13xf32>, vector<13x112xf32>, vector<9x112xf32> -> vector<9x112xf32>
    %70 = vector.extract_strided_slice %69 {offsets = [0, 0], sizes = [9, 104], strides = [1, 1]} : vector<9x112xf32> to vector<9x104xf32>
    %71 = vector.extract_strided_slice %69 {offsets = [0, 8], sizes = [9, 104], strides = [1, 1]} : vector<9x112xf32> to vector<9x104xf32>
    %72 = arith.maximumf %70, %71 : vector<9x104xf32>
    %73 = vector.extract_strided_slice %72 {offsets = [0, 0], sizes = [7, 104], strides = [1, 1]} : vector<9x104xf32> to vector<7x104xf32>
    %cst_61 = arith.constant dense<0.000000e+00> : vector<7x112xf32>
    %74 = tpu.matmul %73, %15, %cst_61 {dimension_numbers = #tpu.dot_dimension_numbers<[1], [0], [0], [1], [0, 0, 1, 1], [], []>} : vector<7x104xf32>, vector<104x112xf32>, vector<7x112xf32> -> vector<7x112xf32>
    %75 = vector.extract_strided_slice %72 {offsets = [1, 0], sizes = [7, 104], strides = [1, 1]} : vector<9x104xf32> to vector<7x104xf32>
    %cst_62 = arith.constant dense<0.000000e+00> : vector<7x112xf32>
    %76 = tpu.matmul %75, %17, %cst_62 {dimension_numbers = #tpu.dot_dimension_numbers<[1], [0], [0], [1], [0, 0, 1, 1], [], []>} : vector<7x104xf32>, vector<104x112xf32>, vector<7x112xf32> -> vector<7x112xf32>
    %77 = arith.addf %74, %76 : vector<7x112xf32>
    %78 = vector.extract_strided_slice %72 {offsets = [2, 0], sizes = [7, 104], strides = [1, 1]} : vector<9x104xf32> to vector<7x104xf32>
    %cst_63 = arith.constant dense<0.000000e+00> : vector<7x112xf32>
    %79 = tpu.matmul %78, %19, %cst_63 {dimension_numbers = #tpu.dot_dimension_numbers<[1], [0], [0], [1], [0, 0, 1, 1], [], []>} : vector<7x104xf32>, vector<104x112xf32>, vector<7x112xf32> -> vector<7x112xf32>
    %80 = arith.addf %77, %79 : vector<7x112xf32>
    %81 = vector.broadcast %20 : vector<1x112xf32> to vector<7x112xf32>
    %82 = arith.addf %80, %81 : vector<7x112xf32>
    %cst_64 = arith.constant 0.000000e+00 : f32
    %83 = vector.broadcast %cst_64 : f32 to vector<7x112xf32>
    %84 = arith.maximumf %82, %83 : vector<7x112xf32>
    %85 = vector.extract_strided_slice %84 {offsets = [0, 0], sizes = [1, 112], strides = [1, 1]} : vector<7x112xf32> to vector<1x112xf32>
    %86 = vector.extract_strided_slice %84 {offsets = [2, 0], sizes = [1, 112], strides = [1, 1]} : vector<7x112xf32> to vector<1x112xf32>
    %87 = vector.extract_strided_slice %84 {offsets = [4, 0], sizes = [1, 112], strides = [1, 1]} : vector<7x112xf32> to vector<1x112xf32>
    %88 = vector.extract_strided_slice %84 {offsets = [6, 0], sizes = [1, 112], strides = [1, 1]} : vector<7x112xf32> to vector<1x112xf32>
    %c1_65 = arith.constant 1 : index
    %c0_66 = arith.constant 0 : index
    %c0_67 = arith.constant 0 : index
    %89 = vector.load %arg1[%c1_65, %c0_66, %c0_67] : memref<8x30x28xf32, #tpu.memory_space<vmem>>, vector<1x30x28xf32>
    %90 = vector.shape_cast %89 : vector<1x30x28xf32> to vector<30x28xf32>
    %91 = vector.extract_strided_slice %90 {offsets = [0, 0], sizes = [28, 28], strides = [1, 1]} : vector<30x28xf32> to vector<28x28xf32>
    %cst_68 = arith.constant dense<0.000000e+00> : vector<28x112xf32>
    %92 = tpu.matmul %91, %1, %cst_68 {dimension_numbers = #tpu.dot_dimension_numbers<[1], [0], [0], [1], [0, 0, 1, 1], [], []>} : vector<28x28xf32>, vector<28x112xf32>, vector<28x112xf32> -> vector<28x112xf32>
    %93 = vector.extract_strided_slice %90 {offsets = [1, 0], sizes = [28, 28], strides = [1, 1]} : vector<30x28xf32> to vector<28x28xf32>
    %cst_69 = arith.constant dense<0.000000e+00> : vector<28x112xf32>
    %94 = tpu.matmul %93, %3, %cst_69 {dimension_numbers = #tpu.dot_dimension_numbers<[1], [0], [0], [1], [0, 0, 1, 1], [], []>} : vector<28x28xf32>, vector<28x112xf32>, vector<28x112xf32> -> vector<28x112xf32>
    %95 = arith.addf %92, %94 : vector<28x112xf32>
    %96 = vector.extract_strided_slice %90 {offsets = [2, 0], sizes = [28, 28], strides = [1, 1]} : vector<30x28xf32> to vector<28x28xf32>
    %cst_70 = arith.constant dense<0.000000e+00> : vector<28x112xf32>
    %97 = tpu.matmul %96, %5, %cst_70 {dimension_numbers = #tpu.dot_dimension_numbers<[1], [0], [0], [1], [0, 0, 1, 1], [], []>} : vector<28x28xf32>, vector<28x112xf32>, vector<28x112xf32> -> vector<28x112xf32>
    %98 = arith.addf %95, %97 : vector<28x112xf32>
    %99 = vector.broadcast %6 : vector<1x112xf32> to vector<28x112xf32>
    %100 = arith.addf %98, %99 : vector<28x112xf32>
    %cst_71 = arith.constant 0.000000e+00 : f32
    %101 = vector.broadcast %cst_71 : f32 to vector<28x112xf32>
    %102 = arith.maximumf %100, %101 : vector<28x112xf32>
    %103 = vector.extract_strided_slice %102 {offsets = [0, 0], sizes = [27, 112], strides = [1, 1]} : vector<28x112xf32> to vector<27x112xf32>
    %104 = vector.extract_strided_slice %102 {offsets = [1, 0], sizes = [27, 112], strides = [1, 1]} : vector<28x112xf32> to vector<27x112xf32>
    %105 = arith.maximumf %103, %104 : vector<27x112xf32>
    %cst_72 = arith.constant dense<0.000000e+00> : vector<16x112xf32>
    %106 = tpu.matmul %21, %105, %cst_72 {dimension_numbers = #tpu.dot_dimension_numbers<[1], [0], [0], [1], [0, 0, 1, 1], [], []>} : vector<16x27xf32>, vector<27x112xf32>, vector<16x112xf32> -> vector<16x112xf32>
    %107 = vector.extract_strided_slice %106 {offsets = [0, 0], sizes = [16, 108], strides = [1, 1]} : vector<16x112xf32> to vector<16x108xf32>
    %108 = vector.extract_strided_slice %106 {offsets = [0, 4], sizes = [16, 108], strides = [1, 1]} : vector<16x112xf32> to vector<16x108xf32>
    %109 = arith.maximumf %107, %108 : vector<16x108xf32>
    %110 = vector.extract_strided_slice %109 {offsets = [0, 0], sizes = [14, 108], strides = [1, 1]} : vector<16x108xf32> to vector<14x108xf32>
    %cst_73 = arith.constant dense<0.000000e+00> : vector<14x112xf32>
    %111 = tpu.matmul %110, %8, %cst_73 {dimension_numbers = #tpu.dot_dimension_numbers<[1], [0], [0], [1], [0, 0, 1, 1], [], []>} : vector<14x108xf32>, vector<108x112xf32>, vector<14x112xf32> -> vector<14x112xf32>
    %112 = vector.extract_strided_slice %109 {offsets = [1, 0], sizes = [14, 108], strides = [1, 1]} : vector<16x108xf32> to vector<14x108xf32>
    %cst_74 = arith.constant dense<0.000000e+00> : vector<14x112xf32>
    %113 = tpu.matmul %112, %10, %cst_74 {dimension_numbers = #tpu.dot_dimension_numbers<[1], [0], [0], [1], [0, 0, 1, 1], [], []>} : vector<14x108xf32>, vector<108x112xf32>, vector<14x112xf32> -> vector<14x112xf32>
    %114 = arith.addf %111, %113 : vector<14x112xf32>
    %115 = vector.extract_strided_slice %109 {offsets = [2, 0], sizes = [14, 108], strides = [1, 1]} : vector<16x108xf32> to vector<14x108xf32>
    %cst_75 = arith.constant dense<0.000000e+00> : vector<14x112xf32>
    %116 = tpu.matmul %115, %12, %cst_75 {dimension_numbers = #tpu.dot_dimension_numbers<[1], [0], [0], [1], [0, 0, 1, 1], [], []>} : vector<14x108xf32>, vector<108x112xf32>, vector<14x112xf32> -> vector<14x112xf32>
    %117 = arith.addf %114, %116 : vector<14x112xf32>
    %118 = vector.broadcast %13 : vector<1x112xf32> to vector<14x112xf32>
    %119 = arith.addf %117, %118 : vector<14x112xf32>
    %cst_76 = arith.constant 0.000000e+00 : f32
    %120 = vector.broadcast %cst_76 : f32 to vector<14x112xf32>
    %121 = arith.maximumf %119, %120 : vector<14x112xf32>
    %122 = vector.extract_strided_slice %121 {offsets = [0, 0], sizes = [13, 112], strides = [1, 1]} : vector<14x112xf32> to vector<13x112xf32>
    %123 = vector.extract_strided_slice %121 {offsets = [1, 0], sizes = [13, 112], strides = [1, 1]} : vector<14x112xf32> to vector<13x112xf32>
    %124 = arith.maximumf %122, %123 : vector<13x112xf32>
    %cst_77 = arith.constant dense<0.000000e+00> : vector<9x112xf32>
    %125 = tpu.matmul %22, %124, %cst_77 {dimension_numbers = #tpu.dot_dimension_numbers<[1], [0], [0], [1], [0, 0, 1, 1], [], []>} : vector<9x13xf32>, vector<13x112xf32>, vector<9x112xf32> -> vector<9x112xf32>
    %126 = vector.extract_strided_slice %125 {offsets = [0, 0], sizes = [9, 104], strides = [1, 1]} : vector<9x112xf32> to vector<9x104xf32>
    %127 = vector.extract_strided_slice %125 {offsets = [0, 8], sizes = [9, 104], strides = [1, 1]} : vector<9x112xf32> to vector<9x104xf32>
    %128 = arith.maximumf %126, %127 : vector<9x104xf32>
    %129 = vector.extract_strided_slice %128 {offsets = [0, 0], sizes = [7, 104], strides = [1, 1]} : vector<9x104xf32> to vector<7x104xf32>
    %cst_78 = arith.constant dense<0.000000e+00> : vector<7x112xf32>
    %130 = tpu.matmul %129, %15, %cst_78 {dimension_numbers = #tpu.dot_dimension_numbers<[1], [0], [0], [1], [0, 0, 1, 1], [], []>} : vector<7x104xf32>, vector<104x112xf32>, vector<7x112xf32> -> vector<7x112xf32>
    %131 = vector.extract_strided_slice %128 {offsets = [1, 0], sizes = [7, 104], strides = [1, 1]} : vector<9x104xf32> to vector<7x104xf32>
    %cst_79 = arith.constant dense<0.000000e+00> : vector<7x112xf32>
    %132 = tpu.matmul %131, %17, %cst_79 {dimension_numbers = #tpu.dot_dimension_numbers<[1], [0], [0], [1], [0, 0, 1, 1], [], []>} : vector<7x104xf32>, vector<104x112xf32>, vector<7x112xf32> -> vector<7x112xf32>
    %133 = arith.addf %130, %132 : vector<7x112xf32>
    %134 = vector.extract_strided_slice %128 {offsets = [2, 0], sizes = [7, 104], strides = [1, 1]} : vector<9x104xf32> to vector<7x104xf32>
    %cst_80 = arith.constant dense<0.000000e+00> : vector<7x112xf32>
    %135 = tpu.matmul %134, %19, %cst_80 {dimension_numbers = #tpu.dot_dimension_numbers<[1], [0], [0], [1], [0, 0, 1, 1], [], []>} : vector<7x104xf32>, vector<104x112xf32>, vector<7x112xf32> -> vector<7x112xf32>
    %136 = arith.addf %133, %135 : vector<7x112xf32>
    %137 = vector.broadcast %20 : vector<1x112xf32> to vector<7x112xf32>
    %138 = arith.addf %136, %137 : vector<7x112xf32>
    %cst_81 = arith.constant 0.000000e+00 : f32
    %139 = vector.broadcast %cst_81 : f32 to vector<7x112xf32>
    %140 = arith.maximumf %138, %139 : vector<7x112xf32>
    %141 = vector.extract_strided_slice %140 {offsets = [0, 0], sizes = [1, 112], strides = [1, 1]} : vector<7x112xf32> to vector<1x112xf32>
    %142 = vector.extract_strided_slice %140 {offsets = [2, 0], sizes = [1, 112], strides = [1, 1]} : vector<7x112xf32> to vector<1x112xf32>
    %143 = vector.extract_strided_slice %140 {offsets = [4, 0], sizes = [1, 112], strides = [1, 1]} : vector<7x112xf32> to vector<1x112xf32>
    %144 = vector.extract_strided_slice %140 {offsets = [6, 0], sizes = [1, 112], strides = [1, 1]} : vector<7x112xf32> to vector<1x112xf32>
    %c2_82 = arith.constant 2 : index
    %c0_83 = arith.constant 0 : index
    %c0_84 = arith.constant 0 : index
    %145 = vector.load %arg1[%c2_82, %c0_83, %c0_84] : memref<8x30x28xf32, #tpu.memory_space<vmem>>, vector<1x30x28xf32>
    %146 = vector.shape_cast %145 : vector<1x30x28xf32> to vector<30x28xf32>
    %147 = vector.extract_strided_slice %146 {offsets = [0, 0], sizes = [28, 28], strides = [1, 1]} : vector<30x28xf32> to vector<28x28xf32>
    %cst_85 = arith.constant dense<0.000000e+00> : vector<28x112xf32>
    %148 = tpu.matmul %147, %1, %cst_85 {dimension_numbers = #tpu.dot_dimension_numbers<[1], [0], [0], [1], [0, 0, 1, 1], [], []>} : vector<28x28xf32>, vector<28x112xf32>, vector<28x112xf32> -> vector<28x112xf32>
    %149 = vector.extract_strided_slice %146 {offsets = [1, 0], sizes = [28, 28], strides = [1, 1]} : vector<30x28xf32> to vector<28x28xf32>
    %cst_86 = arith.constant dense<0.000000e+00> : vector<28x112xf32>
    %150 = tpu.matmul %149, %3, %cst_86 {dimension_numbers = #tpu.dot_dimension_numbers<[1], [0], [0], [1], [0, 0, 1, 1], [], []>} : vector<28x28xf32>, vector<28x112xf32>, vector<28x112xf32> -> vector<28x112xf32>
    %151 = arith.addf %148, %150 : vector<28x112xf32>
    %152 = vector.extract_strided_slice %146 {offsets = [2, 0], sizes = [28, 28], strides = [1, 1]} : vector<30x28xf32> to vector<28x28xf32>
    %cst_87 = arith.constant dense<0.000000e+00> : vector<28x112xf32>
    %153 = tpu.matmul %152, %5, %cst_87 {dimension_numbers = #tpu.dot_dimension_numbers<[1], [0], [0], [1], [0, 0, 1, 1], [], []>} : vector<28x28xf32>, vector<28x112xf32>, vector<28x112xf32> -> vector<28x112xf32>
    %154 = arith.addf %151, %153 : vector<28x112xf32>
    %155 = vector.broadcast %6 : vector<1x112xf32> to vector<28x112xf32>
    %156 = arith.addf %154, %155 : vector<28x112xf32>
    %cst_88 = arith.constant 0.000000e+00 : f32
    %157 = vector.broadcast %cst_88 : f32 to vector<28x112xf32>
    %158 = arith.maximumf %156, %157 : vector<28x112xf32>
    %159 = vector.extract_strided_slice %158 {offsets = [0, 0], sizes = [27, 112], strides = [1, 1]} : vector<28x112xf32> to vector<27x112xf32>
    %160 = vector.extract_strided_slice %158 {offsets = [1, 0], sizes = [27, 112], strides = [1, 1]} : vector<28x112xf32> to vector<27x112xf32>
    %161 = arith.maximumf %159, %160 : vector<27x112xf32>
    %cst_89 = arith.constant dense<0.000000e+00> : vector<16x112xf32>
    %162 = tpu.matmul %21, %161, %cst_89 {dimension_numbers = #tpu.dot_dimension_numbers<[1], [0], [0], [1], [0, 0, 1, 1], [], []>} : vector<16x27xf32>, vector<27x112xf32>, vector<16x112xf32> -> vector<16x112xf32>
    %163 = vector.extract_strided_slice %162 {offsets = [0, 0], sizes = [16, 108], strides = [1, 1]} : vector<16x112xf32> to vector<16x108xf32>
    %164 = vector.extract_strided_slice %162 {offsets = [0, 4], sizes = [16, 108], strides = [1, 1]} : vector<16x112xf32> to vector<16x108xf32>
    %165 = arith.maximumf %163, %164 : vector<16x108xf32>
    %166 = vector.extract_strided_slice %165 {offsets = [0, 0], sizes = [14, 108], strides = [1, 1]} : vector<16x108xf32> to vector<14x108xf32>
    %cst_90 = arith.constant dense<0.000000e+00> : vector<14x112xf32>
    %167 = tpu.matmul %166, %8, %cst_90 {dimension_numbers = #tpu.dot_dimension_numbers<[1], [0], [0], [1], [0, 0, 1, 1], [], []>} : vector<14x108xf32>, vector<108x112xf32>, vector<14x112xf32> -> vector<14x112xf32>
    %168 = vector.extract_strided_slice %165 {offsets = [1, 0], sizes = [14, 108], strides = [1, 1]} : vector<16x108xf32> to vector<14x108xf32>
    %cst_91 = arith.constant dense<0.000000e+00> : vector<14x112xf32>
    %169 = tpu.matmul %168, %10, %cst_91 {dimension_numbers = #tpu.dot_dimension_numbers<[1], [0], [0], [1], [0, 0, 1, 1], [], []>} : vector<14x108xf32>, vector<108x112xf32>, vector<14x112xf32> -> vector<14x112xf32>
    %170 = arith.addf %167, %169 : vector<14x112xf32>
    %171 = vector.extract_strided_slice %165 {offsets = [2, 0], sizes = [14, 108], strides = [1, 1]} : vector<16x108xf32> to vector<14x108xf32>
    %cst_92 = arith.constant dense<0.000000e+00> : vector<14x112xf32>
    %172 = tpu.matmul %171, %12, %cst_92 {dimension_numbers = #tpu.dot_dimension_numbers<[1], [0], [0], [1], [0, 0, 1, 1], [], []>} : vector<14x108xf32>, vector<108x112xf32>, vector<14x112xf32> -> vector<14x112xf32>
    %173 = arith.addf %170, %172 : vector<14x112xf32>
    %174 = vector.broadcast %13 : vector<1x112xf32> to vector<14x112xf32>
    %175 = arith.addf %173, %174 : vector<14x112xf32>
    %cst_93 = arith.constant 0.000000e+00 : f32
    %176 = vector.broadcast %cst_93 : f32 to vector<14x112xf32>
    %177 = arith.maximumf %175, %176 : vector<14x112xf32>
    %178 = vector.extract_strided_slice %177 {offsets = [0, 0], sizes = [13, 112], strides = [1, 1]} : vector<14x112xf32> to vector<13x112xf32>
    %179 = vector.extract_strided_slice %177 {offsets = [1, 0], sizes = [13, 112], strides = [1, 1]} : vector<14x112xf32> to vector<13x112xf32>
    %180 = arith.maximumf %178, %179 : vector<13x112xf32>
    %cst_94 = arith.constant dense<0.000000e+00> : vector<9x112xf32>
    %181 = tpu.matmul %22, %180, %cst_94 {dimension_numbers = #tpu.dot_dimension_numbers<[1], [0], [0], [1], [0, 0, 1, 1], [], []>} : vector<9x13xf32>, vector<13x112xf32>, vector<9x112xf32> -> vector<9x112xf32>
    %182 = vector.extract_strided_slice %181 {offsets = [0, 0], sizes = [9, 104], strides = [1, 1]} : vector<9x112xf32> to vector<9x104xf32>
    %183 = vector.extract_strided_slice %181 {offsets = [0, 8], sizes = [9, 104], strides = [1, 1]} : vector<9x112xf32> to vector<9x104xf32>
    %184 = arith.maximumf %182, %183 : vector<9x104xf32>
    %185 = vector.extract_strided_slice %184 {offsets = [0, 0], sizes = [7, 104], strides = [1, 1]} : vector<9x104xf32> to vector<7x104xf32>
    %cst_95 = arith.constant dense<0.000000e+00> : vector<7x112xf32>
    %186 = tpu.matmul %185, %15, %cst_95 {dimension_numbers = #tpu.dot_dimension_numbers<[1], [0], [0], [1], [0, 0, 1, 1], [], []>} : vector<7x104xf32>, vector<104x112xf32>, vector<7x112xf32> -> vector<7x112xf32>
    %187 = vector.extract_strided_slice %184 {offsets = [1, 0], sizes = [7, 104], strides = [1, 1]} : vector<9x104xf32> to vector<7x104xf32>
    %cst_96 = arith.constant dense<0.000000e+00> : vector<7x112xf32>
    %188 = tpu.matmul %187, %17, %cst_96 {dimension_numbers = #tpu.dot_dimension_numbers<[1], [0], [0], [1], [0, 0, 1, 1], [], []>} : vector<7x104xf32>, vector<104x112xf32>, vector<7x112xf32> -> vector<7x112xf32>
    %189 = arith.addf %186, %188 : vector<7x112xf32>
    %190 = vector.extract_strided_slice %184 {offsets = [2, 0], sizes = [7, 104], strides = [1, 1]} : vector<9x104xf32> to vector<7x104xf32>
    %cst_97 = arith.constant dense<0.000000e+00> : vector<7x112xf32>
    %191 = tpu.matmul %190, %19, %cst_97 {dimension_numbers = #tpu.dot_dimension_numbers<[1], [0], [0], [1], [0, 0, 1, 1], [], []>} : vector<7x104xf32>, vector<104x112xf32>, vector<7x112xf32> -> vector<7x112xf32>
    %192 = arith.addf %189, %191 : vector<7x112xf32>
    %193 = vector.broadcast %20 : vector<1x112xf32> to vector<7x112xf32>
    %194 = arith.addf %192, %193 : vector<7x112xf32>
    %cst_98 = arith.constant 0.000000e+00 : f32
    %195 = vector.broadcast %cst_98 : f32 to vector<7x112xf32>
    %196 = arith.maximumf %194, %195 : vector<7x112xf32>
    %197 = vector.extract_strided_slice %196 {offsets = [0, 0], sizes = [1, 112], strides = [1, 1]} : vector<7x112xf32> to vector<1x112xf32>
    %198 = vector.extract_strided_slice %196 {offsets = [2, 0], sizes = [1, 112], strides = [1, 1]} : vector<7x112xf32> to vector<1x112xf32>
    %199 = vector.extract_strided_slice %196 {offsets = [4, 0], sizes = [1, 112], strides = [1, 1]} : vector<7x112xf32> to vector<1x112xf32>
    %200 = vector.extract_strided_slice %196 {offsets = [6, 0], sizes = [1, 112], strides = [1, 1]} : vector<7x112xf32> to vector<1x112xf32>
    %c3 = arith.constant 3 : index
    %c0_99 = arith.constant 0 : index
    %c0_100 = arith.constant 0 : index
    %201 = vector.load %arg1[%c3, %c0_99, %c0_100] : memref<8x30x28xf32, #tpu.memory_space<vmem>>, vector<1x30x28xf32>
    %202 = vector.shape_cast %201 : vector<1x30x28xf32> to vector<30x28xf32>
    %203 = vector.extract_strided_slice %202 {offsets = [0, 0], sizes = [28, 28], strides = [1, 1]} : vector<30x28xf32> to vector<28x28xf32>
    %cst_101 = arith.constant dense<0.000000e+00> : vector<28x112xf32>
    %204 = tpu.matmul %203, %1, %cst_101 {dimension_numbers = #tpu.dot_dimension_numbers<[1], [0], [0], [1], [0, 0, 1, 1], [], []>} : vector<28x28xf32>, vector<28x112xf32>, vector<28x112xf32> -> vector<28x112xf32>
    %205 = vector.extract_strided_slice %202 {offsets = [1, 0], sizes = [28, 28], strides = [1, 1]} : vector<30x28xf32> to vector<28x28xf32>
    %cst_102 = arith.constant dense<0.000000e+00> : vector<28x112xf32>
    %206 = tpu.matmul %205, %3, %cst_102 {dimension_numbers = #tpu.dot_dimension_numbers<[1], [0], [0], [1], [0, 0, 1, 1], [], []>} : vector<28x28xf32>, vector<28x112xf32>, vector<28x112xf32> -> vector<28x112xf32>
    %207 = arith.addf %204, %206 : vector<28x112xf32>
    %208 = vector.extract_strided_slice %202 {offsets = [2, 0], sizes = [28, 28], strides = [1, 1]} : vector<30x28xf32> to vector<28x28xf32>
    %cst_103 = arith.constant dense<0.000000e+00> : vector<28x112xf32>
    %209 = tpu.matmul %208, %5, %cst_103 {dimension_numbers = #tpu.dot_dimension_numbers<[1], [0], [0], [1], [0, 0, 1, 1], [], []>} : vector<28x28xf32>, vector<28x112xf32>, vector<28x112xf32> -> vector<28x112xf32>
    %210 = arith.addf %207, %209 : vector<28x112xf32>
    %211 = vector.broadcast %6 : vector<1x112xf32> to vector<28x112xf32>
    %212 = arith.addf %210, %211 : vector<28x112xf32>
    %cst_104 = arith.constant 0.000000e+00 : f32
    %213 = vector.broadcast %cst_104 : f32 to vector<28x112xf32>
    %214 = arith.maximumf %212, %213 : vector<28x112xf32>
    %215 = vector.extract_strided_slice %214 {offsets = [0, 0], sizes = [27, 112], strides = [1, 1]} : vector<28x112xf32> to vector<27x112xf32>
    %216 = vector.extract_strided_slice %214 {offsets = [1, 0], sizes = [27, 112], strides = [1, 1]} : vector<28x112xf32> to vector<27x112xf32>
    %217 = arith.maximumf %215, %216 : vector<27x112xf32>
    %cst_105 = arith.constant dense<0.000000e+00> : vector<16x112xf32>
    %218 = tpu.matmul %21, %217, %cst_105 {dimension_numbers = #tpu.dot_dimension_numbers<[1], [0], [0], [1], [0, 0, 1, 1], [], []>} : vector<16x27xf32>, vector<27x112xf32>, vector<16x112xf32> -> vector<16x112xf32>
    %219 = vector.extract_strided_slice %218 {offsets = [0, 0], sizes = [16, 108], strides = [1, 1]} : vector<16x112xf32> to vector<16x108xf32>
    %220 = vector.extract_strided_slice %218 {offsets = [0, 4], sizes = [16, 108], strides = [1, 1]} : vector<16x112xf32> to vector<16x108xf32>
    %221 = arith.maximumf %219, %220 : vector<16x108xf32>
    %222 = vector.extract_strided_slice %221 {offsets = [0, 0], sizes = [14, 108], strides = [1, 1]} : vector<16x108xf32> to vector<14x108xf32>
    %cst_106 = arith.constant dense<0.000000e+00> : vector<14x112xf32>
    %223 = tpu.matmul %222, %8, %cst_106 {dimension_numbers = #tpu.dot_dimension_numbers<[1], [0], [0], [1], [0, 0, 1, 1], [], []>} : vector<14x108xf32>, vector<108x112xf32>, vector<14x112xf32> -> vector<14x112xf32>
    %224 = vector.extract_strided_slice %221 {offsets = [1, 0], sizes = [14, 108], strides = [1, 1]} : vector<16x108xf32> to vector<14x108xf32>
    %cst_107 = arith.constant dense<0.000000e+00> : vector<14x112xf32>
    %225 = tpu.matmul %224, %10, %cst_107 {dimension_numbers = #tpu.dot_dimension_numbers<[1], [0], [0], [1], [0, 0, 1, 1], [], []>} : vector<14x108xf32>, vector<108x112xf32>, vector<14x112xf32> -> vector<14x112xf32>
    %226 = arith.addf %223, %225 : vector<14x112xf32>
    %227 = vector.extract_strided_slice %221 {offsets = [2, 0], sizes = [14, 108], strides = [1, 1]} : vector<16x108xf32> to vector<14x108xf32>
    %cst_108 = arith.constant dense<0.000000e+00> : vector<14x112xf32>
    %228 = tpu.matmul %227, %12, %cst_108 {dimension_numbers = #tpu.dot_dimension_numbers<[1], [0], [0], [1], [0, 0, 1, 1], [], []>} : vector<14x108xf32>, vector<108x112xf32>, vector<14x112xf32> -> vector<14x112xf32>
    %229 = arith.addf %226, %228 : vector<14x112xf32>
    %230 = vector.broadcast %13 : vector<1x112xf32> to vector<14x112xf32>
    %231 = arith.addf %229, %230 : vector<14x112xf32>
    %cst_109 = arith.constant 0.000000e+00 : f32
    %232 = vector.broadcast %cst_109 : f32 to vector<14x112xf32>
    %233 = arith.maximumf %231, %232 : vector<14x112xf32>
    %234 = vector.extract_strided_slice %233 {offsets = [0, 0], sizes = [13, 112], strides = [1, 1]} : vector<14x112xf32> to vector<13x112xf32>
    %235 = vector.extract_strided_slice %233 {offsets = [1, 0], sizes = [13, 112], strides = [1, 1]} : vector<14x112xf32> to vector<13x112xf32>
    %236 = arith.maximumf %234, %235 : vector<13x112xf32>
    %cst_110 = arith.constant dense<0.000000e+00> : vector<9x112xf32>
    %237 = tpu.matmul %22, %236, %cst_110 {dimension_numbers = #tpu.dot_dimension_numbers<[1], [0], [0], [1], [0, 0, 1, 1], [], []>} : vector<9x13xf32>, vector<13x112xf32>, vector<9x112xf32> -> vector<9x112xf32>
    %238 = vector.extract_strided_slice %237 {offsets = [0, 0], sizes = [9, 104], strides = [1, 1]} : vector<9x112xf32> to vector<9x104xf32>
    %239 = vector.extract_strided_slice %237 {offsets = [0, 8], sizes = [9, 104], strides = [1, 1]} : vector<9x112xf32> to vector<9x104xf32>
    %240 = arith.maximumf %238, %239 : vector<9x104xf32>
    %241 = vector.extract_strided_slice %240 {offsets = [0, 0], sizes = [7, 104], strides = [1, 1]} : vector<9x104xf32> to vector<7x104xf32>
    %cst_111 = arith.constant dense<0.000000e+00> : vector<7x112xf32>
    %242 = tpu.matmul %241, %15, %cst_111 {dimension_numbers = #tpu.dot_dimension_numbers<[1], [0], [0], [1], [0, 0, 1, 1], [], []>} : vector<7x104xf32>, vector<104x112xf32>, vector<7x112xf32> -> vector<7x112xf32>
    %243 = vector.extract_strided_slice %240 {offsets = [1, 0], sizes = [7, 104], strides = [1, 1]} : vector<9x104xf32> to vector<7x104xf32>
    %cst_112 = arith.constant dense<0.000000e+00> : vector<7x112xf32>
    %244 = tpu.matmul %243, %17, %cst_112 {dimension_numbers = #tpu.dot_dimension_numbers<[1], [0], [0], [1], [0, 0, 1, 1], [], []>} : vector<7x104xf32>, vector<104x112xf32>, vector<7x112xf32> -> vector<7x112xf32>
    %245 = arith.addf %242, %244 : vector<7x112xf32>
    %246 = vector.extract_strided_slice %240 {offsets = [2, 0], sizes = [7, 104], strides = [1, 1]} : vector<9x104xf32> to vector<7x104xf32>
    %cst_113 = arith.constant dense<0.000000e+00> : vector<7x112xf32>
    %247 = tpu.matmul %246, %19, %cst_113 {dimension_numbers = #tpu.dot_dimension_numbers<[1], [0], [0], [1], [0, 0, 1, 1], [], []>} : vector<7x104xf32>, vector<104x112xf32>, vector<7x112xf32> -> vector<7x112xf32>
    %248 = arith.addf %245, %247 : vector<7x112xf32>
    %249 = vector.broadcast %20 : vector<1x112xf32> to vector<7x112xf32>
    %250 = arith.addf %248, %249 : vector<7x112xf32>
    %cst_114 = arith.constant 0.000000e+00 : f32
    %251 = vector.broadcast %cst_114 : f32 to vector<7x112xf32>
    %252 = arith.maximumf %250, %251 : vector<7x112xf32>
    %253 = vector.extract_strided_slice %252 {offsets = [0, 0], sizes = [1, 112], strides = [1, 1]} : vector<7x112xf32> to vector<1x112xf32>
    %254 = vector.extract_strided_slice %252 {offsets = [2, 0], sizes = [1, 112], strides = [1, 1]} : vector<7x112xf32> to vector<1x112xf32>
    %255 = vector.extract_strided_slice %252 {offsets = [4, 0], sizes = [1, 112], strides = [1, 1]} : vector<7x112xf32> to vector<1x112xf32>
    %256 = vector.extract_strided_slice %252 {offsets = [6, 0], sizes = [1, 112], strides = [1, 1]} : vector<7x112xf32> to vector<1x112xf32>
    %c4 = arith.constant 4 : index
    %c0_115 = arith.constant 0 : index
    %c0_116 = arith.constant 0 : index
    %257 = vector.load %arg1[%c4, %c0_115, %c0_116] : memref<8x30x28xf32, #tpu.memory_space<vmem>>, vector<1x30x28xf32>
    %258 = vector.shape_cast %257 : vector<1x30x28xf32> to vector<30x28xf32>
    %259 = vector.extract_strided_slice %258 {offsets = [0, 0], sizes = [28, 28], strides = [1, 1]} : vector<30x28xf32> to vector<28x28xf32>
    %cst_117 = arith.constant dense<0.000000e+00> : vector<28x112xf32>
    %260 = tpu.matmul %259, %1, %cst_117 {dimension_numbers = #tpu.dot_dimension_numbers<[1], [0], [0], [1], [0, 0, 1, 1], [], []>} : vector<28x28xf32>, vector<28x112xf32>, vector<28x112xf32> -> vector<28x112xf32>
    %261 = vector.extract_strided_slice %258 {offsets = [1, 0], sizes = [28, 28], strides = [1, 1]} : vector<30x28xf32> to vector<28x28xf32>
    %cst_118 = arith.constant dense<0.000000e+00> : vector<28x112xf32>
    %262 = tpu.matmul %261, %3, %cst_118 {dimension_numbers = #tpu.dot_dimension_numbers<[1], [0], [0], [1], [0, 0, 1, 1], [], []>} : vector<28x28xf32>, vector<28x112xf32>, vector<28x112xf32> -> vector<28x112xf32>
    %263 = arith.addf %260, %262 : vector<28x112xf32>
    %264 = vector.extract_strided_slice %258 {offsets = [2, 0], sizes = [28, 28], strides = [1, 1]} : vector<30x28xf32> to vector<28x28xf32>
    %cst_119 = arith.constant dense<0.000000e+00> : vector<28x112xf32>
    %265 = tpu.matmul %264, %5, %cst_119 {dimension_numbers = #tpu.dot_dimension_numbers<[1], [0], [0], [1], [0, 0, 1, 1], [], []>} : vector<28x28xf32>, vector<28x112xf32>, vector<28x112xf32> -> vector<28x112xf32>
    %266 = arith.addf %263, %265 : vector<28x112xf32>
    %267 = vector.broadcast %6 : vector<1x112xf32> to vector<28x112xf32>
    %268 = arith.addf %266, %267 : vector<28x112xf32>
    %cst_120 = arith.constant 0.000000e+00 : f32
    %269 = vector.broadcast %cst_120 : f32 to vector<28x112xf32>
    %270 = arith.maximumf %268, %269 : vector<28x112xf32>
    %271 = vector.extract_strided_slice %270 {offsets = [0, 0], sizes = [27, 112], strides = [1, 1]} : vector<28x112xf32> to vector<27x112xf32>
    %272 = vector.extract_strided_slice %270 {offsets = [1, 0], sizes = [27, 112], strides = [1, 1]} : vector<28x112xf32> to vector<27x112xf32>
    %273 = arith.maximumf %271, %272 : vector<27x112xf32>
    %cst_121 = arith.constant dense<0.000000e+00> : vector<16x112xf32>
    %274 = tpu.matmul %21, %273, %cst_121 {dimension_numbers = #tpu.dot_dimension_numbers<[1], [0], [0], [1], [0, 0, 1, 1], [], []>} : vector<16x27xf32>, vector<27x112xf32>, vector<16x112xf32> -> vector<16x112xf32>
    %275 = vector.extract_strided_slice %274 {offsets = [0, 0], sizes = [16, 108], strides = [1, 1]} : vector<16x112xf32> to vector<16x108xf32>
    %276 = vector.extract_strided_slice %274 {offsets = [0, 4], sizes = [16, 108], strides = [1, 1]} : vector<16x112xf32> to vector<16x108xf32>
    %277 = arith.maximumf %275, %276 : vector<16x108xf32>
    %278 = vector.extract_strided_slice %277 {offsets = [0, 0], sizes = [14, 108], strides = [1, 1]} : vector<16x108xf32> to vector<14x108xf32>
    %cst_122 = arith.constant dense<0.000000e+00> : vector<14x112xf32>
    %279 = tpu.matmul %278, %8, %cst_122 {dimension_numbers = #tpu.dot_dimension_numbers<[1], [0], [0], [1], [0, 0, 1, 1], [], []>} : vector<14x108xf32>, vector<108x112xf32>, vector<14x112xf32> -> vector<14x112xf32>
    %280 = vector.extract_strided_slice %277 {offsets = [1, 0], sizes = [14, 108], strides = [1, 1]} : vector<16x108xf32> to vector<14x108xf32>
    %cst_123 = arith.constant dense<0.000000e+00> : vector<14x112xf32>
    %281 = tpu.matmul %280, %10, %cst_123 {dimension_numbers = #tpu.dot_dimension_numbers<[1], [0], [0], [1], [0, 0, 1, 1], [], []>} : vector<14x108xf32>, vector<108x112xf32>, vector<14x112xf32> -> vector<14x112xf32>
    %282 = arith.addf %279, %281 : vector<14x112xf32>
    %283 = vector.extract_strided_slice %277 {offsets = [2, 0], sizes = [14, 108], strides = [1, 1]} : vector<16x108xf32> to vector<14x108xf32>
    %cst_124 = arith.constant dense<0.000000e+00> : vector<14x112xf32>
    %284 = tpu.matmul %283, %12, %cst_124 {dimension_numbers = #tpu.dot_dimension_numbers<[1], [0], [0], [1], [0, 0, 1, 1], [], []>} : vector<14x108xf32>, vector<108x112xf32>, vector<14x112xf32> -> vector<14x112xf32>
    %285 = arith.addf %282, %284 : vector<14x112xf32>
    %286 = vector.broadcast %13 : vector<1x112xf32> to vector<14x112xf32>
    %287 = arith.addf %285, %286 : vector<14x112xf32>
    %cst_125 = arith.constant 0.000000e+00 : f32
    %288 = vector.broadcast %cst_125 : f32 to vector<14x112xf32>
    %289 = arith.maximumf %287, %288 : vector<14x112xf32>
    %290 = vector.extract_strided_slice %289 {offsets = [0, 0], sizes = [13, 112], strides = [1, 1]} : vector<14x112xf32> to vector<13x112xf32>
    %291 = vector.extract_strided_slice %289 {offsets = [1, 0], sizes = [13, 112], strides = [1, 1]} : vector<14x112xf32> to vector<13x112xf32>
    %292 = arith.maximumf %290, %291 : vector<13x112xf32>
    %cst_126 = arith.constant dense<0.000000e+00> : vector<9x112xf32>
    %293 = tpu.matmul %22, %292, %cst_126 {dimension_numbers = #tpu.dot_dimension_numbers<[1], [0], [0], [1], [0, 0, 1, 1], [], []>} : vector<9x13xf32>, vector<13x112xf32>, vector<9x112xf32> -> vector<9x112xf32>
    %294 = vector.extract_strided_slice %293 {offsets = [0, 0], sizes = [9, 104], strides = [1, 1]} : vector<9x112xf32> to vector<9x104xf32>
    %295 = vector.extract_strided_slice %293 {offsets = [0, 8], sizes = [9, 104], strides = [1, 1]} : vector<9x112xf32> to vector<9x104xf32>
    %296 = arith.maximumf %294, %295 : vector<9x104xf32>
    %297 = vector.extract_strided_slice %296 {offsets = [0, 0], sizes = [7, 104], strides = [1, 1]} : vector<9x104xf32> to vector<7x104xf32>
    %cst_127 = arith.constant dense<0.000000e+00> : vector<7x112xf32>
    %298 = tpu.matmul %297, %15, %cst_127 {dimension_numbers = #tpu.dot_dimension_numbers<[1], [0], [0], [1], [0, 0, 1, 1], [], []>} : vector<7x104xf32>, vector<104x112xf32>, vector<7x112xf32> -> vector<7x112xf32>
    %299 = vector.extract_strided_slice %296 {offsets = [1, 0], sizes = [7, 104], strides = [1, 1]} : vector<9x104xf32> to vector<7x104xf32>
    %cst_128 = arith.constant dense<0.000000e+00> : vector<7x112xf32>
    %300 = tpu.matmul %299, %17, %cst_128 {dimension_numbers = #tpu.dot_dimension_numbers<[1], [0], [0], [1], [0, 0, 1, 1], [], []>} : vector<7x104xf32>, vector<104x112xf32>, vector<7x112xf32> -> vector<7x112xf32>
    %301 = arith.addf %298, %300 : vector<7x112xf32>
    %302 = vector.extract_strided_slice %296 {offsets = [2, 0], sizes = [7, 104], strides = [1, 1]} : vector<9x104xf32> to vector<7x104xf32>
    %cst_129 = arith.constant dense<0.000000e+00> : vector<7x112xf32>
    %303 = tpu.matmul %302, %19, %cst_129 {dimension_numbers = #tpu.dot_dimension_numbers<[1], [0], [0], [1], [0, 0, 1, 1], [], []>} : vector<7x104xf32>, vector<104x112xf32>, vector<7x112xf32> -> vector<7x112xf32>
    %304 = arith.addf %301, %303 : vector<7x112xf32>
    %305 = vector.broadcast %20 : vector<1x112xf32> to vector<7x112xf32>
    %306 = arith.addf %304, %305 : vector<7x112xf32>
    %cst_130 = arith.constant 0.000000e+00 : f32
    %307 = vector.broadcast %cst_130 : f32 to vector<7x112xf32>
    %308 = arith.maximumf %306, %307 : vector<7x112xf32>
    %309 = vector.extract_strided_slice %308 {offsets = [0, 0], sizes = [1, 112], strides = [1, 1]} : vector<7x112xf32> to vector<1x112xf32>
    %310 = vector.extract_strided_slice %308 {offsets = [2, 0], sizes = [1, 112], strides = [1, 1]} : vector<7x112xf32> to vector<1x112xf32>
    %311 = vector.extract_strided_slice %308 {offsets = [4, 0], sizes = [1, 112], strides = [1, 1]} : vector<7x112xf32> to vector<1x112xf32>
    %312 = vector.extract_strided_slice %308 {offsets = [6, 0], sizes = [1, 112], strides = [1, 1]} : vector<7x112xf32> to vector<1x112xf32>
    %c5 = arith.constant 5 : index
    %c0_131 = arith.constant 0 : index
    %c0_132 = arith.constant 0 : index
    %313 = vector.load %arg1[%c5, %c0_131, %c0_132] : memref<8x30x28xf32, #tpu.memory_space<vmem>>, vector<1x30x28xf32>
    %314 = vector.shape_cast %313 : vector<1x30x28xf32> to vector<30x28xf32>
    %315 = vector.extract_strided_slice %314 {offsets = [0, 0], sizes = [28, 28], strides = [1, 1]} : vector<30x28xf32> to vector<28x28xf32>
    %cst_133 = arith.constant dense<0.000000e+00> : vector<28x112xf32>
    %316 = tpu.matmul %315, %1, %cst_133 {dimension_numbers = #tpu.dot_dimension_numbers<[1], [0], [0], [1], [0, 0, 1, 1], [], []>} : vector<28x28xf32>, vector<28x112xf32>, vector<28x112xf32> -> vector<28x112xf32>
    %317 = vector.extract_strided_slice %314 {offsets = [1, 0], sizes = [28, 28], strides = [1, 1]} : vector<30x28xf32> to vector<28x28xf32>
    %cst_134 = arith.constant dense<0.000000e+00> : vector<28x112xf32>
    %318 = tpu.matmul %317, %3, %cst_134 {dimension_numbers = #tpu.dot_dimension_numbers<[1], [0], [0], [1], [0, 0, 1, 1], [], []>} : vector<28x28xf32>, vector<28x112xf32>, vector<28x112xf32> -> vector<28x112xf32>
    %319 = arith.addf %316, %318 : vector<28x112xf32>
    %320 = vector.extract_strided_slice %314 {offsets = [2, 0], sizes = [28, 28], strides = [1, 1]} : vector<30x28xf32> to vector<28x28xf32>
    %cst_135 = arith.constant dense<0.000000e+00> : vector<28x112xf32>
    %321 = tpu.matmul %320, %5, %cst_135 {dimension_numbers = #tpu.dot_dimension_numbers<[1], [0], [0], [1], [0, 0, 1, 1], [], []>} : vector<28x28xf32>, vector<28x112xf32>, vector<28x112xf32> -> vector<28x112xf32>
    %322 = arith.addf %319, %321 : vector<28x112xf32>
    %323 = vector.broadcast %6 : vector<1x112xf32> to vector<28x112xf32>
    %324 = arith.addf %322, %323 : vector<28x112xf32>
    %cst_136 = arith.constant 0.000000e+00 : f32
    %325 = vector.broadcast %cst_136 : f32 to vector<28x112xf32>
    %326 = arith.maximumf %324, %325 : vector<28x112xf32>
    %327 = vector.extract_strided_slice %326 {offsets = [0, 0], sizes = [27, 112], strides = [1, 1]} : vector<28x112xf32> to vector<27x112xf32>
    %328 = vector.extract_strided_slice %326 {offsets = [1, 0], sizes = [27, 112], strides = [1, 1]} : vector<28x112xf32> to vector<27x112xf32>
    %329 = arith.maximumf %327, %328 : vector<27x112xf32>
    %cst_137 = arith.constant dense<0.000000e+00> : vector<16x112xf32>
    %330 = tpu.matmul %21, %329, %cst_137 {dimension_numbers = #tpu.dot_dimension_numbers<[1], [0], [0], [1], [0, 0, 1, 1], [], []>} : vector<16x27xf32>, vector<27x112xf32>, vector<16x112xf32> -> vector<16x112xf32>
    %331 = vector.extract_strided_slice %330 {offsets = [0, 0], sizes = [16, 108], strides = [1, 1]} : vector<16x112xf32> to vector<16x108xf32>
    %332 = vector.extract_strided_slice %330 {offsets = [0, 4], sizes = [16, 108], strides = [1, 1]} : vector<16x112xf32> to vector<16x108xf32>
    %333 = arith.maximumf %331, %332 : vector<16x108xf32>
    %334 = vector.extract_strided_slice %333 {offsets = [0, 0], sizes = [14, 108], strides = [1, 1]} : vector<16x108xf32> to vector<14x108xf32>
    %cst_138 = arith.constant dense<0.000000e+00> : vector<14x112xf32>
    %335 = tpu.matmul %334, %8, %cst_138 {dimension_numbers = #tpu.dot_dimension_numbers<[1], [0], [0], [1], [0, 0, 1, 1], [], []>} : vector<14x108xf32>, vector<108x112xf32>, vector<14x112xf32> -> vector<14x112xf32>
    %336 = vector.extract_strided_slice %333 {offsets = [1, 0], sizes = [14, 108], strides = [1, 1]} : vector<16x108xf32> to vector<14x108xf32>
    %cst_139 = arith.constant dense<0.000000e+00> : vector<14x112xf32>
    %337 = tpu.matmul %336, %10, %cst_139 {dimension_numbers = #tpu.dot_dimension_numbers<[1], [0], [0], [1], [0, 0, 1, 1], [], []>} : vector<14x108xf32>, vector<108x112xf32>, vector<14x112xf32> -> vector<14x112xf32>
    %338 = arith.addf %335, %337 : vector<14x112xf32>
    %339 = vector.extract_strided_slice %333 {offsets = [2, 0], sizes = [14, 108], strides = [1, 1]} : vector<16x108xf32> to vector<14x108xf32>
    %cst_140 = arith.constant dense<0.000000e+00> : vector<14x112xf32>
    %340 = tpu.matmul %339, %12, %cst_140 {dimension_numbers = #tpu.dot_dimension_numbers<[1], [0], [0], [1], [0, 0, 1, 1], [], []>} : vector<14x108xf32>, vector<108x112xf32>, vector<14x112xf32> -> vector<14x112xf32>
    %341 = arith.addf %338, %340 : vector<14x112xf32>
    %342 = vector.broadcast %13 : vector<1x112xf32> to vector<14x112xf32>
    %343 = arith.addf %341, %342 : vector<14x112xf32>
    %cst_141 = arith.constant 0.000000e+00 : f32
    %344 = vector.broadcast %cst_141 : f32 to vector<14x112xf32>
    %345 = arith.maximumf %343, %344 : vector<14x112xf32>
    %346 = vector.extract_strided_slice %345 {offsets = [0, 0], sizes = [13, 112], strides = [1, 1]} : vector<14x112xf32> to vector<13x112xf32>
    %347 = vector.extract_strided_slice %345 {offsets = [1, 0], sizes = [13, 112], strides = [1, 1]} : vector<14x112xf32> to vector<13x112xf32>
    %348 = arith.maximumf %346, %347 : vector<13x112xf32>
    %cst_142 = arith.constant dense<0.000000e+00> : vector<9x112xf32>
    %349 = tpu.matmul %22, %348, %cst_142 {dimension_numbers = #tpu.dot_dimension_numbers<[1], [0], [0], [1], [0, 0, 1, 1], [], []>} : vector<9x13xf32>, vector<13x112xf32>, vector<9x112xf32> -> vector<9x112xf32>
    %350 = vector.extract_strided_slice %349 {offsets = [0, 0], sizes = [9, 104], strides = [1, 1]} : vector<9x112xf32> to vector<9x104xf32>
    %351 = vector.extract_strided_slice %349 {offsets = [0, 8], sizes = [9, 104], strides = [1, 1]} : vector<9x112xf32> to vector<9x104xf32>
    %352 = arith.maximumf %350, %351 : vector<9x104xf32>
    %353 = vector.extract_strided_slice %352 {offsets = [0, 0], sizes = [7, 104], strides = [1, 1]} : vector<9x104xf32> to vector<7x104xf32>
    %cst_143 = arith.constant dense<0.000000e+00> : vector<7x112xf32>
    %354 = tpu.matmul %353, %15, %cst_143 {dimension_numbers = #tpu.dot_dimension_numbers<[1], [0], [0], [1], [0, 0, 1, 1], [], []>} : vector<7x104xf32>, vector<104x112xf32>, vector<7x112xf32> -> vector<7x112xf32>
    %355 = vector.extract_strided_slice %352 {offsets = [1, 0], sizes = [7, 104], strides = [1, 1]} : vector<9x104xf32> to vector<7x104xf32>
    %cst_144 = arith.constant dense<0.000000e+00> : vector<7x112xf32>
    %356 = tpu.matmul %355, %17, %cst_144 {dimension_numbers = #tpu.dot_dimension_numbers<[1], [0], [0], [1], [0, 0, 1, 1], [], []>} : vector<7x104xf32>, vector<104x112xf32>, vector<7x112xf32> -> vector<7x112xf32>
    %357 = arith.addf %354, %356 : vector<7x112xf32>
    %358 = vector.extract_strided_slice %352 {offsets = [2, 0], sizes = [7, 104], strides = [1, 1]} : vector<9x104xf32> to vector<7x104xf32>
    %cst_145 = arith.constant dense<0.000000e+00> : vector<7x112xf32>
    %359 = tpu.matmul %358, %19, %cst_145 {dimension_numbers = #tpu.dot_dimension_numbers<[1], [0], [0], [1], [0, 0, 1, 1], [], []>} : vector<7x104xf32>, vector<104x112xf32>, vector<7x112xf32> -> vector<7x112xf32>
    %360 = arith.addf %357, %359 : vector<7x112xf32>
    %361 = vector.broadcast %20 : vector<1x112xf32> to vector<7x112xf32>
    %362 = arith.addf %360, %361 : vector<7x112xf32>
    %cst_146 = arith.constant 0.000000e+00 : f32
    %363 = vector.broadcast %cst_146 : f32 to vector<7x112xf32>
    %364 = arith.maximumf %362, %363 : vector<7x112xf32>
    %365 = vector.extract_strided_slice %364 {offsets = [0, 0], sizes = [1, 112], strides = [1, 1]} : vector<7x112xf32> to vector<1x112xf32>
    %366 = vector.extract_strided_slice %364 {offsets = [2, 0], sizes = [1, 112], strides = [1, 1]} : vector<7x112xf32> to vector<1x112xf32>
    %367 = vector.extract_strided_slice %364 {offsets = [4, 0], sizes = [1, 112], strides = [1, 1]} : vector<7x112xf32> to vector<1x112xf32>
    %368 = vector.extract_strided_slice %364 {offsets = [6, 0], sizes = [1, 112], strides = [1, 1]} : vector<7x112xf32> to vector<1x112xf32>
    %c6 = arith.constant 6 : index
    %c0_147 = arith.constant 0 : index
    %c0_148 = arith.constant 0 : index
    %369 = vector.load %arg1[%c6, %c0_147, %c0_148] : memref<8x30x28xf32, #tpu.memory_space<vmem>>, vector<1x30x28xf32>
    %370 = vector.shape_cast %369 : vector<1x30x28xf32> to vector<30x28xf32>
    %371 = vector.extract_strided_slice %370 {offsets = [0, 0], sizes = [28, 28], strides = [1, 1]} : vector<30x28xf32> to vector<28x28xf32>
    %cst_149 = arith.constant dense<0.000000e+00> : vector<28x112xf32>
    %372 = tpu.matmul %371, %1, %cst_149 {dimension_numbers = #tpu.dot_dimension_numbers<[1], [0], [0], [1], [0, 0, 1, 1], [], []>} : vector<28x28xf32>, vector<28x112xf32>, vector<28x112xf32> -> vector<28x112xf32>
    %373 = vector.extract_strided_slice %370 {offsets = [1, 0], sizes = [28, 28], strides = [1, 1]} : vector<30x28xf32> to vector<28x28xf32>
    %cst_150 = arith.constant dense<0.000000e+00> : vector<28x112xf32>
    %374 = tpu.matmul %373, %3, %cst_150 {dimension_numbers = #tpu.dot_dimension_numbers<[1], [0], [0], [1], [0, 0, 1, 1], [], []>} : vector<28x28xf32>, vector<28x112xf32>, vector<28x112xf32> -> vector<28x112xf32>
    %375 = arith.addf %372, %374 : vector<28x112xf32>
    %376 = vector.extract_strided_slice %370 {offsets = [2, 0], sizes = [28, 28], strides = [1, 1]} : vector<30x28xf32> to vector<28x28xf32>
    %cst_151 = arith.constant dense<0.000000e+00> : vector<28x112xf32>
    %377 = tpu.matmul %376, %5, %cst_151 {dimension_numbers = #tpu.dot_dimension_numbers<[1], [0], [0], [1], [0, 0, 1, 1], [], []>} : vector<28x28xf32>, vector<28x112xf32>, vector<28x112xf32> -> vector<28x112xf32>
    %378 = arith.addf %375, %377 : vector<28x112xf32>
    %379 = vector.broadcast %6 : vector<1x112xf32> to vector<28x112xf32>
    %380 = arith.addf %378, %379 : vector<28x112xf32>
    %cst_152 = arith.constant 0.000000e+00 : f32
    %381 = vector.broadcast %cst_152 : f32 to vector<28x112xf32>
    %382 = arith.maximumf %380, %381 : vector<28x112xf32>
    %383 = vector.extract_strided_slice %382 {offsets = [0, 0], sizes = [27, 112], strides = [1, 1]} : vector<28x112xf32> to vector<27x112xf32>
    %384 = vector.extract_strided_slice %382 {offsets = [1, 0], sizes = [27, 112], strides = [1, 1]} : vector<28x112xf32> to vector<27x112xf32>
    %385 = arith.maximumf %383, %384 : vector<27x112xf32>
    %cst_153 = arith.constant dense<0.000000e+00> : vector<16x112xf32>
    %386 = tpu.matmul %21, %385, %cst_153 {dimension_numbers = #tpu.dot_dimension_numbers<[1], [0], [0], [1], [0, 0, 1, 1], [], []>} : vector<16x27xf32>, vector<27x112xf32>, vector<16x112xf32> -> vector<16x112xf32>
    %387 = vector.extract_strided_slice %386 {offsets = [0, 0], sizes = [16, 108], strides = [1, 1]} : vector<16x112xf32> to vector<16x108xf32>
    %388 = vector.extract_strided_slice %386 {offsets = [0, 4], sizes = [16, 108], strides = [1, 1]} : vector<16x112xf32> to vector<16x108xf32>
    %389 = arith.maximumf %387, %388 : vector<16x108xf32>
    %390 = vector.extract_strided_slice %389 {offsets = [0, 0], sizes = [14, 108], strides = [1, 1]} : vector<16x108xf32> to vector<14x108xf32>
    %cst_154 = arith.constant dense<0.000000e+00> : vector<14x112xf32>
    %391 = tpu.matmul %390, %8, %cst_154 {dimension_numbers = #tpu.dot_dimension_numbers<[1], [0], [0], [1], [0, 0, 1, 1], [], []>} : vector<14x108xf32>, vector<108x112xf32>, vector<14x112xf32> -> vector<14x112xf32>
    %392 = vector.extract_strided_slice %389 {offsets = [1, 0], sizes = [14, 108], strides = [1, 1]} : vector<16x108xf32> to vector<14x108xf32>
    %cst_155 = arith.constant dense<0.000000e+00> : vector<14x112xf32>
    %393 = tpu.matmul %392, %10, %cst_155 {dimension_numbers = #tpu.dot_dimension_numbers<[1], [0], [0], [1], [0, 0, 1, 1], [], []>} : vector<14x108xf32>, vector<108x112xf32>, vector<14x112xf32> -> vector<14x112xf32>
    %394 = arith.addf %391, %393 : vector<14x112xf32>
    %395 = vector.extract_strided_slice %389 {offsets = [2, 0], sizes = [14, 108], strides = [1, 1]} : vector<16x108xf32> to vector<14x108xf32>
    %cst_156 = arith.constant dense<0.000000e+00> : vector<14x112xf32>
    %396 = tpu.matmul %395, %12, %cst_156 {dimension_numbers = #tpu.dot_dimension_numbers<[1], [0], [0], [1], [0, 0, 1, 1], [], []>} : vector<14x108xf32>, vector<108x112xf32>, vector<14x112xf32> -> vector<14x112xf32>
    %397 = arith.addf %394, %396 : vector<14x112xf32>
    %398 = vector.broadcast %13 : vector<1x112xf32> to vector<14x112xf32>
    %399 = arith.addf %397, %398 : vector<14x112xf32>
    %cst_157 = arith.constant 0.000000e+00 : f32
    %400 = vector.broadcast %cst_157 : f32 to vector<14x112xf32>
    %401 = arith.maximumf %399, %400 : vector<14x112xf32>
    %402 = vector.extract_strided_slice %401 {offsets = [0, 0], sizes = [13, 112], strides = [1, 1]} : vector<14x112xf32> to vector<13x112xf32>
    %403 = vector.extract_strided_slice %401 {offsets = [1, 0], sizes = [13, 112], strides = [1, 1]} : vector<14x112xf32> to vector<13x112xf32>
    %404 = arith.maximumf %402, %403 : vector<13x112xf32>
    %cst_158 = arith.constant dense<0.000000e+00> : vector<9x112xf32>
    %405 = tpu.matmul %22, %404, %cst_158 {dimension_numbers = #tpu.dot_dimension_numbers<[1], [0], [0], [1], [0, 0, 1, 1], [], []>} : vector<9x13xf32>, vector<13x112xf32>, vector<9x112xf32> -> vector<9x112xf32>
    %406 = vector.extract_strided_slice %405 {offsets = [0, 0], sizes = [9, 104], strides = [1, 1]} : vector<9x112xf32> to vector<9x104xf32>
    %407 = vector.extract_strided_slice %405 {offsets = [0, 8], sizes = [9, 104], strides = [1, 1]} : vector<9x112xf32> to vector<9x104xf32>
    %408 = arith.maximumf %406, %407 : vector<9x104xf32>
    %409 = vector.extract_strided_slice %408 {offsets = [0, 0], sizes = [7, 104], strides = [1, 1]} : vector<9x104xf32> to vector<7x104xf32>
    %cst_159 = arith.constant dense<0.000000e+00> : vector<7x112xf32>
    %410 = tpu.matmul %409, %15, %cst_159 {dimension_numbers = #tpu.dot_dimension_numbers<[1], [0], [0], [1], [0, 0, 1, 1], [], []>} : vector<7x104xf32>, vector<104x112xf32>, vector<7x112xf32> -> vector<7x112xf32>
    %411 = vector.extract_strided_slice %408 {offsets = [1, 0], sizes = [7, 104], strides = [1, 1]} : vector<9x104xf32> to vector<7x104xf32>
    %cst_160 = arith.constant dense<0.000000e+00> : vector<7x112xf32>
    %412 = tpu.matmul %411, %17, %cst_160 {dimension_numbers = #tpu.dot_dimension_numbers<[1], [0], [0], [1], [0, 0, 1, 1], [], []>} : vector<7x104xf32>, vector<104x112xf32>, vector<7x112xf32> -> vector<7x112xf32>
    %413 = arith.addf %410, %412 : vector<7x112xf32>
    %414 = vector.extract_strided_slice %408 {offsets = [2, 0], sizes = [7, 104], strides = [1, 1]} : vector<9x104xf32> to vector<7x104xf32>
    %cst_161 = arith.constant dense<0.000000e+00> : vector<7x112xf32>
    %415 = tpu.matmul %414, %19, %cst_161 {dimension_numbers = #tpu.dot_dimension_numbers<[1], [0], [0], [1], [0, 0, 1, 1], [], []>} : vector<7x104xf32>, vector<104x112xf32>, vector<7x112xf32> -> vector<7x112xf32>
    %416 = arith.addf %413, %415 : vector<7x112xf32>
    %417 = vector.broadcast %20 : vector<1x112xf32> to vector<7x112xf32>
    %418 = arith.addf %416, %417 : vector<7x112xf32>
    %cst_162 = arith.constant 0.000000e+00 : f32
    %419 = vector.broadcast %cst_162 : f32 to vector<7x112xf32>
    %420 = arith.maximumf %418, %419 : vector<7x112xf32>
    %421 = vector.extract_strided_slice %420 {offsets = [0, 0], sizes = [1, 112], strides = [1, 1]} : vector<7x112xf32> to vector<1x112xf32>
    %422 = vector.extract_strided_slice %420 {offsets = [2, 0], sizes = [1, 112], strides = [1, 1]} : vector<7x112xf32> to vector<1x112xf32>
    %423 = vector.extract_strided_slice %420 {offsets = [4, 0], sizes = [1, 112], strides = [1, 1]} : vector<7x112xf32> to vector<1x112xf32>
    %424 = vector.extract_strided_slice %420 {offsets = [6, 0], sizes = [1, 112], strides = [1, 1]} : vector<7x112xf32> to vector<1x112xf32>
    %c7 = arith.constant 7 : index
    %c0_163 = arith.constant 0 : index
    %c0_164 = arith.constant 0 : index
    %425 = vector.load %arg1[%c7, %c0_163, %c0_164] : memref<8x30x28xf32, #tpu.memory_space<vmem>>, vector<1x30x28xf32>
    %426 = vector.shape_cast %425 : vector<1x30x28xf32> to vector<30x28xf32>
    %427 = vector.extract_strided_slice %426 {offsets = [0, 0], sizes = [28, 28], strides = [1, 1]} : vector<30x28xf32> to vector<28x28xf32>
    %cst_165 = arith.constant dense<0.000000e+00> : vector<28x112xf32>
    %428 = tpu.matmul %427, %1, %cst_165 {dimension_numbers = #tpu.dot_dimension_numbers<[1], [0], [0], [1], [0, 0, 1, 1], [], []>} : vector<28x28xf32>, vector<28x112xf32>, vector<28x112xf32> -> vector<28x112xf32>
    %429 = vector.extract_strided_slice %426 {offsets = [1, 0], sizes = [28, 28], strides = [1, 1]} : vector<30x28xf32> to vector<28x28xf32>
    %cst_166 = arith.constant dense<0.000000e+00> : vector<28x112xf32>
    %430 = tpu.matmul %429, %3, %cst_166 {dimension_numbers = #tpu.dot_dimension_numbers<[1], [0], [0], [1], [0, 0, 1, 1], [], []>} : vector<28x28xf32>, vector<28x112xf32>, vector<28x112xf32> -> vector<28x112xf32>
    %431 = arith.addf %428, %430 : vector<28x112xf32>
    %432 = vector.extract_strided_slice %426 {offsets = [2, 0], sizes = [28, 28], strides = [1, 1]} : vector<30x28xf32> to vector<28x28xf32>
    %cst_167 = arith.constant dense<0.000000e+00> : vector<28x112xf32>
    %433 = tpu.matmul %432, %5, %cst_167 {dimension_numbers = #tpu.dot_dimension_numbers<[1], [0], [0], [1], [0, 0, 1, 1], [], []>} : vector<28x28xf32>, vector<28x112xf32>, vector<28x112xf32> -> vector<28x112xf32>
    %434 = arith.addf %431, %433 : vector<28x112xf32>
    %435 = vector.broadcast %6 : vector<1x112xf32> to vector<28x112xf32>
    %436 = arith.addf %434, %435 : vector<28x112xf32>
    %cst_168 = arith.constant 0.000000e+00 : f32
    %437 = vector.broadcast %cst_168 : f32 to vector<28x112xf32>
    %438 = arith.maximumf %436, %437 : vector<28x112xf32>
    %439 = vector.extract_strided_slice %438 {offsets = [0, 0], sizes = [27, 112], strides = [1, 1]} : vector<28x112xf32> to vector<27x112xf32>
    %440 = vector.extract_strided_slice %438 {offsets = [1, 0], sizes = [27, 112], strides = [1, 1]} : vector<28x112xf32> to vector<27x112xf32>
    %441 = arith.maximumf %439, %440 : vector<27x112xf32>
    %cst_169 = arith.constant dense<0.000000e+00> : vector<16x112xf32>
    %442 = tpu.matmul %21, %441, %cst_169 {dimension_numbers = #tpu.dot_dimension_numbers<[1], [0], [0], [1], [0, 0, 1, 1], [], []>} : vector<16x27xf32>, vector<27x112xf32>, vector<16x112xf32> -> vector<16x112xf32>
    %443 = vector.extract_strided_slice %442 {offsets = [0, 0], sizes = [16, 108], strides = [1, 1]} : vector<16x112xf32> to vector<16x108xf32>
    %444 = vector.extract_strided_slice %442 {offsets = [0, 4], sizes = [16, 108], strides = [1, 1]} : vector<16x112xf32> to vector<16x108xf32>
    %445 = arith.maximumf %443, %444 : vector<16x108xf32>
    %446 = vector.extract_strided_slice %445 {offsets = [0, 0], sizes = [14, 108], strides = [1, 1]} : vector<16x108xf32> to vector<14x108xf32>
    %cst_170 = arith.constant dense<0.000000e+00> : vector<14x112xf32>
    %447 = tpu.matmul %446, %8, %cst_170 {dimension_numbers = #tpu.dot_dimension_numbers<[1], [0], [0], [1], [0, 0, 1, 1], [], []>} : vector<14x108xf32>, vector<108x112xf32>, vector<14x112xf32> -> vector<14x112xf32>
    %448 = vector.extract_strided_slice %445 {offsets = [1, 0], sizes = [14, 108], strides = [1, 1]} : vector<16x108xf32> to vector<14x108xf32>
    %cst_171 = arith.constant dense<0.000000e+00> : vector<14x112xf32>
    %449 = tpu.matmul %448, %10, %cst_171 {dimension_numbers = #tpu.dot_dimension_numbers<[1], [0], [0], [1], [0, 0, 1, 1], [], []>} : vector<14x108xf32>, vector<108x112xf32>, vector<14x112xf32> -> vector<14x112xf32>
    %450 = arith.addf %447, %449 : vector<14x112xf32>
    %451 = vector.extract_strided_slice %445 {offsets = [2, 0], sizes = [14, 108], strides = [1, 1]} : vector<16x108xf32> to vector<14x108xf32>
    %cst_172 = arith.constant dense<0.000000e+00> : vector<14x112xf32>
    %452 = tpu.matmul %451, %12, %cst_172 {dimension_numbers = #tpu.dot_dimension_numbers<[1], [0], [0], [1], [0, 0, 1, 1], [], []>} : vector<14x108xf32>, vector<108x112xf32>, vector<14x112xf32> -> vector<14x112xf32>
    %453 = arith.addf %450, %452 : vector<14x112xf32>
    %454 = vector.broadcast %13 : vector<1x112xf32> to vector<14x112xf32>
    %455 = arith.addf %453, %454 : vector<14x112xf32>
    %cst_173 = arith.constant 0.000000e+00 : f32
    %456 = vector.broadcast %cst_173 : f32 to vector<14x112xf32>
    %457 = arith.maximumf %455, %456 : vector<14x112xf32>
    %458 = vector.extract_strided_slice %457 {offsets = [0, 0], sizes = [13, 112], strides = [1, 1]} : vector<14x112xf32> to vector<13x112xf32>
    %459 = vector.extract_strided_slice %457 {offsets = [1, 0], sizes = [13, 112], strides = [1, 1]} : vector<14x112xf32> to vector<13x112xf32>
    %460 = arith.maximumf %458, %459 : vector<13x112xf32>
    %cst_174 = arith.constant dense<0.000000e+00> : vector<9x112xf32>
    %461 = tpu.matmul %22, %460, %cst_174 {dimension_numbers = #tpu.dot_dimension_numbers<[1], [0], [0], [1], [0, 0, 1, 1], [], []>} : vector<9x13xf32>, vector<13x112xf32>, vector<9x112xf32> -> vector<9x112xf32>
    %462 = vector.extract_strided_slice %461 {offsets = [0, 0], sizes = [9, 104], strides = [1, 1]} : vector<9x112xf32> to vector<9x104xf32>
    %463 = vector.extract_strided_slice %461 {offsets = [0, 8], sizes = [9, 104], strides = [1, 1]} : vector<9x112xf32> to vector<9x104xf32>
    %464 = arith.maximumf %462, %463 : vector<9x104xf32>
    %465 = vector.extract_strided_slice %464 {offsets = [0, 0], sizes = [7, 104], strides = [1, 1]} : vector<9x104xf32> to vector<7x104xf32>
    %cst_175 = arith.constant dense<0.000000e+00> : vector<7x112xf32>
    %466 = tpu.matmul %465, %15, %cst_175 {dimension_numbers = #tpu.dot_dimension_numbers<[1], [0], [0], [1], [0, 0, 1, 1], [], []>} : vector<7x104xf32>, vector<104x112xf32>, vector<7x112xf32> -> vector<7x112xf32>
    %467 = vector.extract_strided_slice %464 {offsets = [1, 0], sizes = [7, 104], strides = [1, 1]} : vector<9x104xf32> to vector<7x104xf32>
    %cst_176 = arith.constant dense<0.000000e+00> : vector<7x112xf32>
    %468 = tpu.matmul %467, %17, %cst_176 {dimension_numbers = #tpu.dot_dimension_numbers<[1], [0], [0], [1], [0, 0, 1, 1], [], []>} : vector<7x104xf32>, vector<104x112xf32>, vector<7x112xf32> -> vector<7x112xf32>
    %469 = arith.addf %466, %468 : vector<7x112xf32>
    %470 = vector.extract_strided_slice %464 {offsets = [2, 0], sizes = [7, 104], strides = [1, 1]} : vector<9x104xf32> to vector<7x104xf32>
    %cst_177 = arith.constant dense<0.000000e+00> : vector<7x112xf32>
    %471 = tpu.matmul %470, %19, %cst_177 {dimension_numbers = #tpu.dot_dimension_numbers<[1], [0], [0], [1], [0, 0, 1, 1], [], []>} : vector<7x104xf32>, vector<104x112xf32>, vector<7x112xf32> -> vector<7x112xf32>
    %472 = arith.addf %469, %471 : vector<7x112xf32>
    %473 = vector.broadcast %20 : vector<1x112xf32> to vector<7x112xf32>
    %474 = arith.addf %472, %473 : vector<7x112xf32>
    %cst_178 = arith.constant 0.000000e+00 : f32
    %475 = vector.broadcast %cst_178 : f32 to vector<7x112xf32>
    %476 = arith.maximumf %474, %475 : vector<7x112xf32>
    %477 = vector.extract_strided_slice %476 {offsets = [0, 0], sizes = [1, 112], strides = [1, 1]} : vector<7x112xf32> to vector<1x112xf32>
    %478 = vector.extract_strided_slice %476 {offsets = [2, 0], sizes = [1, 112], strides = [1, 1]} : vector<7x112xf32> to vector<1x112xf32>
    %479 = vector.extract_strided_slice %476 {offsets = [4, 0], sizes = [1, 112], strides = [1, 1]} : vector<7x112xf32> to vector<1x112xf32>
    %480 = vector.extract_strided_slice %476 {offsets = [6, 0], sizes = [1, 112], strides = [1, 1]} : vector<7x112xf32> to vector<1x112xf32>
    %481 = tpu.concatenate %85, %141, %197, %253, %309, %365, %421, %477 in 0 : vector<1x112xf32>, vector<1x112xf32>, vector<1x112xf32>, vector<1x112xf32>, vector<1x112xf32>, vector<1x112xf32>, vector<1x112xf32>, vector<1x112xf32> -> vector<8x112xf32>
    %482 = tpu.concatenate %86, %142, %198, %254, %310, %366, %422, %478 in 0 : vector<1x112xf32>, vector<1x112xf32>, vector<1x112xf32>, vector<1x112xf32>, vector<1x112xf32>, vector<1x112xf32>, vector<1x112xf32>, vector<1x112xf32> -> vector<8x112xf32>
    %483 = tpu.concatenate %87, %143, %199, %255, %311, %367, %423, %479 in 0 : vector<1x112xf32>, vector<1x112xf32>, vector<1x112xf32>, vector<1x112xf32>, vector<1x112xf32>, vector<1x112xf32>, vector<1x112xf32>, vector<1x112xf32> -> vector<8x112xf32>
    %484 = tpu.concatenate %88, %144, %200, %256, %312, %368, %424, %480 in 0 : vector<1x112xf32>, vector<1x112xf32>, vector<1x112xf32>, vector<1x112xf32>, vector<1x112xf32>, vector<1x112xf32>, vector<1x112xf32>, vector<1x112xf32> -> vector<8x112xf32>
    %cst_179 = arith.constant dense<0.000000e+00> : vector<8x64xf32>
    %485 = tpu.matmul %481, %24, %cst_179 {dimension_numbers = #tpu.dot_dimension_numbers<[1], [0], [0], [1], [0, 0, 1, 1], [], []>} : vector<8x112xf32>, vector<112x64xf32>, vector<8x64xf32> -> vector<8x64xf32>
    %cst_180 = arith.constant dense<0.000000e+00> : vector<8x64xf32>
    %486 = tpu.matmul %482, %26, %cst_180 {dimension_numbers = #tpu.dot_dimension_numbers<[1], [0], [0], [1], [0, 0, 1, 1], [], []>} : vector<8x112xf32>, vector<112x64xf32>, vector<8x64xf32> -> vector<8x64xf32>
    %487 = arith.addf %485, %486 : vector<8x64xf32>
    %cst_181 = arith.constant dense<0.000000e+00> : vector<8x64xf32>
    %488 = tpu.matmul %483, %28, %cst_181 {dimension_numbers = #tpu.dot_dimension_numbers<[1], [0], [0], [1], [0, 0, 1, 1], [], []>} : vector<8x112xf32>, vector<112x64xf32>, vector<8x64xf32> -> vector<8x64xf32>
    %489 = arith.addf %487, %488 : vector<8x64xf32>
    %c0_182 = arith.constant 0 : index
    %c0_183 = arith.constant 0 : index
    %490 = vector.load %arg9[%c0_182, %c0_183] : memref<1x64xf32, #tpu.memory_space<vmem>>, vector<1x64xf32>
    %491 = vector.broadcast %490 : vector<1x64xf32> to vector<8x64xf32>
    %492 = arith.addf %489, %491 : vector<8x64xf32>
    %cst_184 = arith.constant 0.000000e+00 : f32
    %493 = vector.broadcast %cst_184 : f32 to vector<8x64xf32>
    %494 = arith.maximumf %492, %493 : vector<8x64xf32>
    %cst_185 = arith.constant dense<0.000000e+00> : vector<8x64xf32>
    %495 = tpu.matmul %482, %24, %cst_185 {dimension_numbers = #tpu.dot_dimension_numbers<[1], [0], [0], [1], [0, 0, 1, 1], [], []>} : vector<8x112xf32>, vector<112x64xf32>, vector<8x64xf32> -> vector<8x64xf32>
    %cst_186 = arith.constant dense<0.000000e+00> : vector<8x64xf32>
    %496 = tpu.matmul %483, %26, %cst_186 {dimension_numbers = #tpu.dot_dimension_numbers<[1], [0], [0], [1], [0, 0, 1, 1], [], []>} : vector<8x112xf32>, vector<112x64xf32>, vector<8x64xf32> -> vector<8x64xf32>
    %497 = arith.addf %495, %496 : vector<8x64xf32>
    %cst_187 = arith.constant dense<0.000000e+00> : vector<8x64xf32>
    %498 = tpu.matmul %484, %28, %cst_187 {dimension_numbers = #tpu.dot_dimension_numbers<[1], [0], [0], [1], [0, 0, 1, 1], [], []>} : vector<8x112xf32>, vector<112x64xf32>, vector<8x64xf32> -> vector<8x64xf32>
    %499 = arith.addf %497, %498 : vector<8x64xf32>
    %c0_188 = arith.constant 0 : index
    %c0_189 = arith.constant 0 : index
    %500 = vector.load %arg9[%c0_188, %c0_189] : memref<1x64xf32, #tpu.memory_space<vmem>>, vector<1x64xf32>
    %501 = vector.broadcast %500 : vector<1x64xf32> to vector<8x64xf32>
    %502 = arith.addf %499, %501 : vector<8x64xf32>
    %cst_190 = arith.constant 0.000000e+00 : f32
    %503 = vector.broadcast %cst_190 : f32 to vector<8x64xf32>
    %504 = arith.maximumf %502, %503 : vector<8x64xf32>
    %cst_191 = arith.constant dense<0.000000e+00> : vector<8x32xf32>
    %505 = tpu.matmul %494, %30, %cst_191 {dimension_numbers = #tpu.dot_dimension_numbers<[1], [0], [0], [1], [0, 0, 1, 1], [], []>} : vector<8x64xf32>, vector<64x32xf32>, vector<8x32xf32> -> vector<8x32xf32>
    %cst_192 = arith.constant dense<0.000000e+00> : vector<8x32xf32>
    %506 = tpu.matmul %504, %32, %cst_192 {dimension_numbers = #tpu.dot_dimension_numbers<[1], [0], [0], [1], [0, 0, 1, 1], [], []>} : vector<8x64xf32>, vector<64x32xf32>, vector<8x32xf32> -> vector<8x32xf32>
    %507 = arith.addf %505, %506 : vector<8x32xf32>
    %c0_193 = arith.constant 0 : index
    %c0_194 = arith.constant 0 : index
    %508 = vector.load %arg11[%c0_193, %c0_194] : memref<1x32xf32, #tpu.memory_space<vmem>>, vector<1x32xf32>
    %509 = vector.broadcast %508 : vector<1x32xf32> to vector<8x32xf32>
    %510 = arith.addf %507, %509 : vector<8x32xf32>
    %c0_195 = arith.constant 0 : index
    %c0_196 = arith.constant 0 : index
    %511 = vector.load %arg12[%c0_195, %c0_196] : memref<32x10xf32, #tpu.memory_space<vmem>>, vector<32x10xf32>
    %cst_197 = arith.constant dense<0.000000e+00> : vector<8x10xf32>
    %512 = tpu.matmul %510, %511, %cst_197 {dimension_numbers = #tpu.dot_dimension_numbers<[1], [0], [0], [1], [0, 0, 1, 1], [], []>} : vector<8x32xf32>, vector<32x10xf32>, vector<8x10xf32> -> vector<8x10xf32>
    %c0_198 = arith.constant 0 : index
    %c0_199 = arith.constant 0 : index
    %513 = vector.load %arg13[%c0_198, %c0_199] : memref<1x10xf32, #tpu.memory_space<vmem>>, vector<1x10xf32>
    %514 = vector.broadcast %513 : vector<1x10xf32> to vector<8x10xf32>
    %515 = arith.addf %512, %514 : vector<8x10xf32>
    %c0_200 = arith.constant 0 : index
    %c0_201 = arith.constant 0 : index
    %516 = vector.load %arg16[%c0_200, %c0_201] : memref<8x10xf32, #tpu.memory_space<vmem>>, vector<8x10xf32>
    tpu.vector_store %arg16[%c0_200, %c0_201], %515 {strides = array<i32>} : memref<8x10xf32, #tpu.memory_space<vmem>>, vector<8x10xf32>,
    return
  }
  func.func @transform_0(%arg0: i32) -> (i32, i32, i32) {
    %c0_i32 = arith.constant 0 : i32
    %c0_i32_0 = arith.constant 0 : i32
    %c0_i32_1 = arith.constant 0 : i32
    return %arg0, %c0_i32, %c0_i32_0 : i32, i32, i32
  }
  func.func @transform_1(%arg0: i32) -> (i32, i32, i32) {
    %c0_i32 = arith.constant 0 : i32
    %c0_i32_0 = arith.constant 0 : i32
    %c0_i32_1 = arith.constant 0 : i32
    %c0_i32_2 = arith.constant 0 : i32
    return %c0_i32, %c0_i32_0, %c0_i32_1 : i32, i32, i32
  }
  func.func @transform_2(%arg0: i32) -> (i32, i32) {
    %c0_i32 = arith.constant 0 : i32
    %c0_i32_0 = arith.constant 0 : i32
    %c0_i32_1 = arith.constant 0 : i32
    return %c0_i32, %c0_i32_0 : i32, i32
  }
  func.func @transform_3(%arg0: i32) -> (i32, i32, i32) {
    %c0_i32 = arith.constant 0 : i32
    %c0_i32_0 = arith.constant 0 : i32
    %c0_i32_1 = arith.constant 0 : i32
    %c0_i32_2 = arith.constant 0 : i32
    return %c0_i32, %c0_i32_0, %c0_i32_1 : i32, i32, i32
  }
  func.func @transform_4(%arg0: i32) -> (i32, i32) {
    %c0_i32 = arith.constant 0 : i32
    %c0_i32_0 = arith.constant 0 : i32
    %c0_i32_1 = arith.constant 0 : i32
    return %c0_i32, %c0_i32_0 : i32, i32
  }
  func.func @transform_5(%arg0: i32) -> (i32, i32, i32) {
    %c0_i32 = arith.constant 0 : i32
    %c0_i32_0 = arith.constant 0 : i32
    %c0_i32_1 = arith.constant 0 : i32
    %c0_i32_2 = arith.constant 0 : i32
    return %c0_i32, %c0_i32_0, %c0_i32_1 : i32, i32, i32
  }
  func.func @transform_6(%arg0: i32) -> (i32, i32) {
    %c0_i32 = arith.constant 0 : i32
    %c0_i32_0 = arith.constant 0 : i32
    %c0_i32_1 = arith.constant 0 : i32
    return %c0_i32, %c0_i32_0 : i32, i32
  }
  func.func @transform_7(%arg0: i32) -> (i32, i32, i32) {
    %c0_i32 = arith.constant 0 : i32
    %c0_i32_0 = arith.constant 0 : i32
    %c0_i32_1 = arith.constant 0 : i32
    %c0_i32_2 = arith.constant 0 : i32
    return %c0_i32, %c0_i32_0, %c0_i32_1 : i32, i32, i32
  }
  func.func @transform_8(%arg0: i32) -> (i32, i32) {
    %c0_i32 = arith.constant 0 : i32
    %c0_i32_0 = arith.constant 0 : i32
    %c0_i32_1 = arith.constant 0 : i32
    return %c0_i32, %c0_i32_0 : i32, i32
  }
  func.func @transform_9(%arg0: i32) -> (i32, i32, i32) {
    %c0_i32 = arith.constant 0 : i32
    %c0_i32_0 = arith.constant 0 : i32
    %c0_i32_1 = arith.constant 0 : i32
    %c0_i32_2 = arith.constant 0 : i32
    return %c0_i32, %c0_i32_0, %c0_i32_1 : i32, i32, i32
  }
  func.func @transform_10(%arg0: i32) -> (i32, i32) {
    %c0_i32 = arith.constant 0 : i32
    %c0_i32_0 = arith.constant 0 : i32
    %c0_i32_1 = arith.constant 0 : i32
    return %c0_i32, %c0_i32_0 : i32, i32
  }
  func.func @transform_11(%arg0: i32) -> (i32, i32) {
    %c0_i32 = arith.constant 0 : i32
    %c0_i32_0 = arith.constant 0 : i32
    %c0_i32_1 = arith.constant 0 : i32
    return %c0_i32, %c0_i32_0 : i32, i32
  }
  func.func @transform_12(%arg0: i32) -> (i32, i32) {
    %c0_i32 = arith.constant 0 : i32
    %c0_i32_0 = arith.constant 0 : i32
    %c0_i32_1 = arith.constant 0 : i32
    return %c0_i32, %c0_i32_0 : i32, i32
  }
  func.func @transform_13(%arg0: i32) -> (i32, i32) {
    %c0_i32 = arith.constant 0 : i32
    %c0_i32_0 = arith.constant 0 : i32
    %c0_i32_1 = arith.constant 0 : i32
    return %c0_i32, %c0_i32_0 : i32, i32
  }
  func.func @transform_14(%arg0: i32) -> (i32, i32) {
    %c0_i32 = arith.constant 0 : i32
    %c0_i32_0 = arith.constant 0 : i32
    %c0_i32_1 = arith.constant 0 : i32
    return %c0_i32, %c0_i32_0 : i32, i32
  }
  func.func @transform_15(%arg0: i32) -> (i32, i32) {
    %c0_i32 = arith.constant 0 : i32
    %c0_i32_0 = arith.constant 0 : i32
    return %arg0, %c0_i32 : i32, i32
  }
}

</mosaic_0001>

<llo_original>
// kernel: mnist_forward.1
$region0: #{mnist_forward.1}
  #allocation0 [shape = 'u32[]', space=smem, size = 0x4, offset = 0x4, fixed_abs, tag = 'smem constant byte address 0x4 - core index']
  #allocation1 [shape = 'u32[144,128]{1,0:T(1,128)}', space=vmem, size = 0x12000, scoped, tag = 'internal scratch']
  %s0 = inlined_call_operand.vmem [shape: f32[8,30,28], index: 0, kind: input, shape index: {}]
  %s1 = inlined_call_operand.vmem [shape: f32[3,28,112], index: 1, kind: input, shape index: {}]
  %s2 = inlined_call_operand.vmem [shape: f32[1,112], index: 2, kind: input, shape index: {}]
  %s3 = inlined_call_operand.vmem [shape: f32[3,108,112], index: 3, kind: input, shape index: {}]
  %s4 = inlined_call_operand.vmem [shape: f32[1,112], index: 4, kind: input, shape index: {}]
  %s5 = inlined_call_operand.vmem [shape: f32[3,104,112], index: 5, kind: input, shape index: {}]
  %s6 = inlined_call_operand.vmem [shape: f32[1,112], index: 6, kind: input, shape index: {}]
  %s7 = inlined_call_operand.vmem [shape: f32[3,112,64], index: 7, kind: input, shape index: {}]
  %s8 = inlined_call_operand.vmem [shape: f32[1,64], index: 8, kind: input, shape index: {}]
  %s9 = inlined_call_operand.vmem [shape: f32[2,64,32], index: 9, kind: input, shape index: {}]
  %s10 = inlined_call_operand.vmem [shape: f32[1,32], index: 10, kind: input, shape index: {}]
  %s11 = inlined_call_operand.vmem [shape: f32[32,10], index: 11, kind: input, shape index: {}]
  %s12 = inlined_call_operand.vmem [shape: f32[1,10], index: 12, kind: input, shape index: {}]
  %s13 = inlined_call_operand.vmem [shape: f32[16,27], index: 13, kind: input, shape index: {}]
  %s14 = inlined_call_operand.vmem [shape: f32[9,13], index: 14, kind: input, shape index: {}]
  %s15 = inlined_call_operand.vmem [shape: f32[8,10], index: 15, kind: output, shape index: {}]
  %s16 = sld [smem:[#allocation0]]
  $region70: #{mnist_forward.1} parent=0
    _
  %s18 = ssub.s32 1, %s16
  %s19 = scalar_select 0, %s18, %s16
  // Predicated region
  $region2: #{mnist_forward.1} parent=0 // pred_check
    _
  $region3: #{mnist_forward.1} parent=0 // pred_check_branch
    %21 = sbr.rel (0) target = $region5
  $region4: #{mnist_forward.1} parent=0 // pred_region
    _
  $region5: #{mnist_forward.1} parent=0 // pred_fallthru
    _
  // Predicated region
  $region6: #{mnist_forward.1} parent=0 // pred_check
    _
  $region7: #{mnist_forward.1} parent=0 // pred_check_branch
    %23 = sbr.rel (0) target = $region9
  $region8: #{mnist_forward.1} parent=0 // pred_region
    _
  $region9: #{mnist_forward.1} parent=0 // pred_fallthru
    _
  // Predicated region
  $region10: #{mnist_forward.1} parent=0 // pred_check
    _
  $region11: #{mnist_forward.1} parent=0 // pred_check_branch
    %25 = sbr.rel (0) target = $region13
  $region12: #{mnist_forward.1} parent=0 // pred_region
    _
  $region13: #{mnist_forward.1} parent=0 // pred_fallthru
    _
  // Predicated region
  $region14: #{mnist_forward.1} parent=0 // pred_check
    _
  $region15: #{mnist_forward.1} parent=0 // pred_check_branch
    %27 = sbr.rel (0) target = $region17
  $region16: #{mnist_forward.1} parent=0 // pred_region
    _
  $region17: #{mnist_forward.1} parent=0 // pred_fallthru
    _
  // Predicated region
  $region18: #{mnist_forward.1} parent=0 // pred_check
    _
  $region19: #{mnist_forward.1} parent=0 // pred_check_branch
    %29 = sbr.rel (0) target = $region21
  $region20: #{mnist_forward.1} parent=0 // pred_region
    _
  $region21: #{mnist_forward.1} parent=0 // pred_fallthru
    _
  // Predicated region
  $region22: #{mnist_forward.1} parent=0 // pred_check
    _
  $region23: #{mnist_forward.1} parent=0 // pred_check_branch
    %31 = sbr.rel (0) target = $region25
  $region24: #{mnist_forward.1} parent=0 // pred_region
    _
  $region25: #{mnist_forward.1} parent=0 // pred_fallthru
    _
  // Predicated region
  $region26: #{mnist_forward.1} parent=0 // pred_check
    _
  $region27: #{mnist_forward.1} parent=0 // pred_check_branch
    %33 = sbr.rel (0) target = $region29
  $region28: #{mnist_forward.1} parent=0 // pred_region
    _
  $region29: #{mnist_forward.1} parent=0 // pred_fallthru
    _
  // Predicated region
  $region30: #{mnist_forward.1} parent=0 // pred_check
    _
  $region31: #{mnist_forward.1} parent=0 // pred_check_branch
    %35 = sbr.rel (0) target = $region33
  $region32: #{mnist_forward.1} parent=0 // pred_region
    _
  $region33: #{mnist_forward.1} parent=0 // pred_fallthru
    _
  // Predicated region
  $region34: #{mnist_forward.1} parent=0 // pred_check
    _
  $region35: #{mnist_forward.1} parent=0 // pred_check_branch
    %37 = sbr.rel (0) target = $region37
  $region36: #{mnist_forward.1} parent=0 // pred_region
    _
  $region37: #{mnist_forward.1} parent=0 // pred_fallthru
    _
  // Predicated region
  $region38: #{mnist_forward.1} parent=0 // pred_check
    _
  $region39: #{mnist_forward.1} parent=0 // pred_check_branch
    %39 = sbr.rel (0) target = $region41
  $region40: #{mnist_forward.1} parent=0 // pred_region
    _
  $region41: #{mnist_forward.1} parent=0 // pred_fallthru
    _
  // Predicated region
  $region42: #{mnist_forward.1} parent=0 // pred_check
    _
  $region43: #{mnist_forward.1} parent=0 // pred_check_branch
    %41 = sbr.rel (0) target = $region45
  $region44: #{mnist_forward.1} parent=0 // pred_region
    _
  $region45: #{mnist_forward.1} parent=0 // pred_fallthru
    _
  // Predicated region
  $region46: #{mnist_forward.1} parent=0 // pred_check
    _
  $region47: #{mnist_forward.1} parent=0 // pred_check_branch
    %43 = sbr.rel (0) target = $region49
  $region48: #{mnist_forward.1} parent=0 // pred_region
    _
  $region49: #{mnist_forward.1} parent=0 // pred_fallthru
    _
  // Predicated region
  $region50: #{mnist_forward.1} parent=0 // pred_check
    _
  $region51: #{mnist_forward.1} parent=0 // pred_check_branch
    %45 = sbr.rel (0) target = $region53
  $region52: #{mnist_forward.1} parent=0 // pred_region
    _
  $region53: #{mnist_forward.1} parent=0 // pred_fallthru
    _
  // Predicated region
  $region54: #{mnist_forward.1} parent=0 // pred_check
    _
  $region55: #{mnist_forward.1} parent=0 // pred_check_branch
    %47 = sbr.rel (0) target = $region57
  $region56: #{mnist_forward.1} parent=0 // pred_region
    _
  $region57: #{mnist_forward.1} parent=0 // pred_fallthru
    _
  // Predicated region
  $region58: #{mnist_forward.1} parent=0 // pred_check
    _
  $region59: #{mnist_forward.1} parent=0 // pred_check_branch
    %49 = sbr.rel (0) target = $region61
  $region60: #{mnist_forward.1} parent=0 // pred_region
    _
  $region61: #{mnist_forward.1} parent=0 // pred_fallthru
    _
  %v50 = vld [vmem:[%s1] sm:$0xff]
  %v51 = vld [vmem:[%s1 + $0x8] sm:$0xff]
  %v52 = vld [vmem:[%s1 + $0x10] sm:$0xff]
  %v53 = vld [vmem:[%s1 + $0x18] sm:$0xf]
  %s54 = scalar_lea.vmem %s1, 32
  %v55 = vld [vmem:[%s54] sm:$0xff]
  %v56 = vld [vmem:[%s54 + $0x8] sm:$0xff]
  %v57 = vld [vmem:[%s54 + $0x10] sm:$0xff]
  %v58 = vld [vmem:[%s54 + $0x18] sm:$0xf]
  %s59 = scalar_lea.vmem %s1, 64
  %v60 = vld [vmem:[%s59] sm:$0xff]
  %v61 = vld [vmem:[%s59 + $0x8] sm:$0xff]
  %v62 = vld [vmem:[%s59 + $0x10] sm:$0xff]
  %v63 = vld [vmem:[%s59 + $0x18] sm:$0xf]
  %v64 = vld [vmem:[%s2] sm:$0x1]
  %v65 = vld [vmem:[%s3] sm:$0xff]
  %v66 = vld [vmem:[%s3 + $0x8] sm:$0xff]
  %v67 = vld [vmem:[%s3 + $0x10] sm:$0xff]
  %v68 = vld [vmem:[%s3 + $0x18] sm:$0xff]
  %v69 = vld [vmem:[%s3 + $0x20] sm:$0xff]
  %v70 = vld [vmem:[%s3 + $0x28] sm:$0xff]
  %v71 = vld [vmem:[%s3 + $0x30] sm:$0xff]
  %v72 = vld [vmem:[%s3 + $0x38] sm:$0xff]
  %v73 = vld [vmem:[%s3 + $0x40] sm:$0xff]
  %v74 = vld [vmem:[%s3 + $0x48] sm:$0xff]
  %v75 = vld [vmem:[%s3 + $0x50] sm:$0xff]
  %v76 = vld [vmem:[%s3 + $0x58] sm:$0xff]
  %v77 = vld [vmem:[%s3 + $0x60] sm:$0xff]
  %v78 = vld [vmem:[%s3 + $0x68] sm:$0xf]
  %s79 = scalar_lea.vmem %s3, 112
  %v80 = vld [vmem:[%s79] sm:$0xff]
  %v81 = vld [vmem:[%s79 + $0x8] sm:$0xff]
  %v82 = vld [vmem:[%s79 + $0x10] sm:$0xff]
  %v83 = vld [vmem:[%s79 + $0x18] sm:$0xff]
  %v84 = vld [vmem:[%s79 + $0x20] sm:$0xff]
  %v85 = vld [vmem:[%s79 + $0x28] sm:$0xff]
  %v86 = vld [vmem:[%s79 + $0x30] sm:$0xff]
  %v87 = vld [vmem:[%s79 + $0x38] sm:$0xff]
  %v88 = vld [vmem:[%s79 + $0x40] sm:$0xff]
  %v89 = vld [vmem:[%s79 + $0x48] sm:$0xff]
  %v90 = vld [vmem:[%s79 + $0x50] sm:$0xff]
  %v91 = vld [vmem:[%s79 + $0x58] sm:$0xff]
  %v92 = vld [vmem:[%s79 + $0x60] sm:$0xff]
  %v93 = vld [vmem:[%s79 + $0x68] sm:$0xf]
  %s94 = scalar_lea.vmem %s3, 224
  %v95 = vld [vmem:[%s94] sm:$0xff]
  %v96 = vld [vmem:[%s94 + $0x8] sm:$0xff]
  %v97 = vld [vmem:[%s94 + $0x10] sm:$0xff]
  %v98 = vld [vmem:[%s94 + $0x18] sm:$0xff]
  %v99 = vld [vmem:[%s94 + $0x20] sm:$0xff]
  %v100 = vld [vmem:[%s94 + $0x28] sm:$0xff]
  %v101 = vld [vmem:[%s94 + $0x30] sm:$0xff]
  %v102 = vld [vmem:[%s94 + $0x38] sm:$0xff]
  %v103 = vld [vmem:[%s94 + $0x40] sm:$0xff]
  %v104 = vld [vmem:[%s94 + $0x48] sm:$0xff]
  %v105 = vld [vmem:[%s94 + $0x50] sm:$0xff]
  %v106 = vld [vmem:[%s94 + $0x58] sm:$0xff]
  %v107 = vld [vmem:[%s94 + $0x60] sm:$0xff]
  %v108 = vld [vmem:[%s94 + $0x68] sm:$0xf]
  %v109 = vld [vmem:[%s4] sm:$0x1]
  %v110 = vld [vmem:[%s5] sm:$0xff]
  %v111 = vld [vmem:[%s5 + $0x8] sm:$0xff]
  %v112 = vld [vmem:[%s5 + $0x10] sm:$0xff]
  %v113 = vld [vmem:[%s5 + $0x18] sm:$0xff]
  %v114 = vld [vmem:[%s5 + $0x20] sm:$0xff]
  %v115 = vld [vmem:[%s5 + $0x28] sm:$0xff]
  %v116 = vld [vmem:[%s5 + $0x30] sm:$0xff]
  %v117 = vld [vmem:[%s5 + $0x38] sm:$0xff]
  %v118 = vld [vmem:[%s5 + $0x40] sm:$0xff]
  %v119 = vld [vmem:[%s5 + $0x48] sm:$0xff]
  %v120 = vld [vmem:[%s5 + $0x50] sm:$0xff]
  %v121 = vld [vmem:[%s5 + $0x58] sm:$0xff]
  %v122 = vld [vmem:[%s5 + $0x60] sm:$0xff]
  %s123 = scalar_lea.vmem %s5, 104
  %v124 = vld [vmem:[%s123] sm:$0xff]
  %v125 = vld [vmem:[%s123 + $0x8] sm:$0xff]
  %v126 = vld [vmem:[%s123 + $0x10] sm:$0xff]
  %v127 = vld [vmem:[%s123 + $0x18] sm:$0xff]
  %v128 = vld [vmem:[%s123 + $0x20] sm:$0xff]
  %v129 = vld [vmem:[%s123 + $0x28] sm:$0xff]
  %v130 = vld [vmem:[%s123 + $0x30] sm:$0xff]
  %v131 = vld [vmem:[%s123 + $0x38] sm:$0xff]
  %v132 = vld [vmem:[%s123 + $0x40] sm:$0xff]
  %v133 = vld [vmem:[%s123 + $0x48] sm:$0xff]
  %v134 = vld [vmem:[%s123 + $0x50] sm:$0xff]
  %v135 = vld [vmem:[%s123 + $0x58] sm:$0xff]
  %v136 = vld [vmem:[%s123 + $0x60] sm:$0xff]
  %s137 = scalar_lea.vmem %s5, 208
  %v138 = vld [vmem:[%s137] sm:$0xff]
  %v139 = vld [vmem:[%s137 + $0x8] sm:$0xff]
  %v140 = vld [vmem:[%s137 + $0x10] sm:$0xff]
  %v141 = vld [vmem:[%s137 + $0x18] sm:$0xff]
  %v142 = vld [vmem:[%s137 + $0x20] sm:$0xff]
  %v143 = vld [vmem:[%s137 + $0x28] sm:$0xff]
  %v144 = vld [vmem:[%s137 + $0x30] sm:$0xff]
  %v145 = vld [vmem:[%s137 + $0x38] sm:$0xff]
  %v146 = vld [vmem:[%s137 + $0x40] sm:$0xff]
  %v147 = vld [vmem:[%s137 + $0x48] sm:$0xff]
  %v148 = vld [vmem:[%s137 + $0x50] sm:$0xff]
  %v149 = vld [vmem:[%s137 + $0x58] sm:$0xff]
  %v150 = vld [vmem:[%s137 + $0x60] sm:$0xff]
  %v151 = vld [vmem:[%s6] sm:$0x1]
  %v152 = vld [vmem:[%s13] sm:$0xff]
  %v153 = vld [vmem:[%s13 + $0x8] sm:$0xff]
  %v154 = vld [vmem:[%s14] sm:$0xff]
  %v155 = vld [vmem:[%s14 + $0x8] sm:$0x1]
  %v156 = vld [vmem:[%s7] sm:$0xff]
  %v157 = vld [vmem:[%s7 + $0x8] sm:$0xff]
  %v158 = vld [vmem:[%s7 + $0x10] sm:$0xff]
  %v159 = vld [vmem:[%s7 + $0x18] sm:$0xff]
  %v160 = vld [vmem:[%s7 + $0x20] sm:$0xff]
  %v161 = vld [vmem:[%s7 + $0x28] sm:$0xff]
  %v162 = vld [vmem:[%s7 + $0x30] sm:$0xff]
  %v163 = vld [vmem:[%s7 + $0x38] sm:$0xff]
  %v164 = vld [vmem:[%s7 + $0x40] sm:$0xff]
  %v165 = vld [vmem:[%s7 + $0x48] sm:$0xff]
  %v166 = vld [vmem:[%s7 + $0x50] sm:$0xff]
  %v167 = vld [vmem:[%s7 + $0x58] sm:$0xff]
  %v168 = vld [vmem:[%s7 + $0x60] sm:$0xff]
  %v169 = vld [vmem:[%s7 + $0x68] sm:$0xff]
  %s170 = scalar_lea.vmem %s7, 112
  %v171 = vld [vmem:[%s170] sm:$0xff]
  %v172 = vld [vmem:[%s170 + $0x8] sm:$0xff]
  %v173 = vld [vmem:[%s170 + $0x10] sm:$0xff]
  %v174 = vld [vmem:[%s170 + $0x18] sm:$0xff]
  %v175 = vld [vmem:[%s170 + $0x20] sm:$0xff]
  %v176 = vld [vmem:[%s170 + $0x28] sm:$0xff]
  %v177 = vld [vmem:[%s170 + $0x30] sm:$0xff]
  %v178 = vld [vmem:[%s170 + $0x38] sm:$0xff]
  %v179 = vld [vmem:[%s170 + $0x40] sm:$0xff]
  %v180 = vld [vmem:[%s170 + $0x48] sm:$0xff]
  %v181 = vld [vmem:[%s170 + $0x50] sm:$0xff]
  %v182 = vld [vmem:[%s170 + $0x58] sm:$0xff]
  %v183 = vld [vmem:[%s170 + $0x60] sm:$0xff]
  %v184 = vld [vmem:[%s170 + $0x68] sm:$0xff]
  %s185 = scalar_lea.vmem %s7, 224
  %v186 = vld [vmem:[%s185] sm:$0xff]
  %v187 = vld [vmem:[%s185 + $0x8] sm:$0xff]
  %v188 = vld [vmem:[%s185 + $0x10] sm:$0xff]
  %v189 = vld [vmem:[%s185 + $0x18] sm:$0xff]
  %v190 = vld [vmem:[%s185 + $0x20] sm:$0xff]
  %v191 = vld [vmem:[%s185 + $0x28] sm:$0xff]
  %v192 = vld [vmem:[%s185 + $0x30] sm:$0xff]
  %v193 = vld [vmem:[%s185 + $0x38] sm:$0xff]
  %v194 = vld [vmem:[%s185 + $0x40] sm:$0xff]
  %v195 = vld [vmem:[%s185 + $0x48] sm:$0xff]
  %v196 = vld [vmem:[%s185 + $0x50] sm:$0xff]
  %v197 = vld [vmem:[%s185 + $0x58] sm:$0xff]
  %v198 = vld [vmem:[%s185 + $0x60] sm:$0xff]
  %v199 = vld [vmem:[%s185 + $0x68] sm:$0xff]
  %v200 = vld [vmem:[%s9] sm:$0xff]
  %v201 = vld [vmem:[%s9 + $0x8] sm:$0xff]
  %v202 = vld [vmem:[%s9 + $0x10] sm:$0xff]
  %v203 = vld [vmem:[%s9 + $0x18] sm:$0xff]
  %v204 = vld [vmem:[%s9 + $0x20] sm:$0xff]
  %v205 = vld [vmem:[%s9 + $0x28] sm:$0xff]
  %v206 = vld [vmem:[%s9 + $0x30] sm:$0xff]
  %v207 = vld [vmem:[%s9 + $0x38] sm:$0xff]
  %s208 = scalar_lea.vmem %s9, 64
  %v209 = vld [vmem:[%s208] sm:$0xff]
  %v210 = vld [vmem:[%s208 + $0x8] sm:$0xff]
  %v211 = vld [vmem:[%s208 + $0x10] sm:$0xff]
  %v212 = vld [vmem:[%s208 + $0x18] sm:$0xff]
  %v213 = vld [vmem:[%s208 + $0x20] sm:$0xff]
  %v214 = vld [vmem:[%s208 + $0x28] sm:$0xff]
  %v215 = vld [vmem:[%s208 + $0x30] sm:$0xff]
  %v216 = vld [vmem:[%s208 + $0x38] sm:$0xff]
  %v217 = vld [vmem:[%s0] sm:$0xff]
  %v218 = vld [vmem:[%s0 + $0x8] sm:$0xff]
  %v219 = vld [vmem:[%s0 + $0x10] sm:$0xff]
  %v220 = vld [vmem:[%s0 + $0x18] sm:$0x3f]
  %vm225 = vcmask 1046528
  %v226 = vrot.slane %v217, 1
  %v227 = vrot.slane %v218, 1
  %v228 = vsel %vm225, %v226, %v227
  %v229 = vrot.slane %v219, 1
  %v230 = vsel %vm225, %v227, %v229
  %v231 = vrot.slane %v220, 1
  %v232 = vsel %vm225, %v229, %v231
  %vm233 = vcmask 228352
  %v234 = vsel %vm233, %v228, 0
  %v236 = vsel %vm233, %v230, 0
  %v238 = vsel %vm233, %v232, 0
  %v240 = vsel %vm233, %v231, 0
  %vm242 = vcmask 1043456
  %v244 = vsel %vm242, %v58, 0
  %246 = vmatprep.subr.mxu0 0.0
  %247 = vmatpush1.msra.mxu0 0.0
  %248 = vmatprep.subr.mxu0 0.0
  %249 = vmatpush1.msra.mxu0 0.0
  %250 = vmatprep.subr.mxu0 0.0
  %251 = vmatpush1.msra.mxu0 0.0
  %252 = vmatprep.subr.mxu0 0.0
  %253 = vmatpush1.msra.mxu0 0.0
  %254 = vmatprep.subr.mxu0 0.0
  %255 = vmatpush1.msra.mxu0 0.0
  %256 = vmatprep.subr.mxu0 0.0
  %257 = vmatpush1.msra.mxu0 0.0
  %258 = vmatprep.subr.mxu0 0.0
  %259 = vmatpush1.msra.mxu0 0.0
  %260 = vmatprep.subr.mxu0 0.0
  %261 = vmatpush1.msra.mxu0 0.0
  %262 = vmatprep.subr.mxu0 0.0
  %263 = vmatpush1.msra.mxu0 0.0
  %264 = vmatprep.subr.mxu0 0.0
  %265 = vmatpush1.msra.mxu0 0.0
  %266 = vmatprep.subr.mxu0 0.0
  %267 = vmatpush1.msra.mxu0 0.0
  %268 = vmatprep.subr.mxu0 0.0
  %269 = vmatpush1.msra.mxu0 0.0
  %270 = vmatprep.subr.mxu0 0.0
  %271 = vmatpush1.msra.mxu0 %v244
  %272 = vmatprep.subr.mxu0 0.0
  %273 = vmatpush1.msra.mxu0 %v57
  %274 = vmatprep.subr.mxu0 0.0
  %275 = vmatpush1.msra.mxu0 %v56
  %276 = vmatprep.subr.mxu0 0.0
  %277 = vmatpush1.msra.mxu0 %v55
  %278 = vmatprep.subr.mxu0 0.0
  %279 = vmatpush2.msra.mxu0 0.0
  %280 = vmatprep.subr.mxu0 0.0
  %281 = vmatpush2.msra.mxu0 0.0
  %282 = vmatprep.subr.mxu0 0.0
  %283 = vmatpush2.msra.mxu0 0.0
  %284 = vmatprep.subr.mxu0 0.0
  %285 = vmatpush2.msra.mxu0 0.0
  %286 = vmatprep.subr.mxu0 0.0
  %287 = vmatpush2.msra.mxu0 0.0
  %288 = vmatprep.subr.mxu0 0.0
  %289 = vmatpush2.msra.mxu0 0.0
  %290 = vmatprep.subr.mxu0 0.0
  %291 = vmatpush2.msra.mxu0 0.0
  %292 = vmatprep.subr.mxu0 0.0
  %293 = vmatpush2.msra.mxu0 0.0
  %294 = vmatprep.subr.mxu0 0.0
  %295 = vmatpush2.msra.mxu0 0.0
  %296 = vmatprep.subr.mxu0 0.0
  %297 = vmatpush2.msra.mxu0 0.0
  %298 = vmatprep.subr.mxu0 0.0
  %299 = vmatpush2.msra.mxu0 0.0
  %300 = vmatprep.subr.mxu0 0.0
  %301 = vmatpush2.msra.mxu0 0.0
  %302 = vmatprep.subr.mxu0 0.0
  %303 = vmatpush2.msra.mxu0 0.0
  %304 = vmatprep.subr.mxu0 0.0
  %305 = vmatpush2.msra.mxu0 0.0
  %306 = vmatprep.subr.mxu0 0.0
  %307 = vmatpush2.msra.mxu0 0.0
  %308 = vmatprep.subr.mxu0 0.0
  %309 = vmatpush2.msra.mxu0 0.0
  %310 = vmatprep.mubr.f32.mxu0 0.0
  %311 = vmatmul.mubr.f32.gmra.mxu0 %v234
  %v312 = vpop.f32.mrf.mxu0
  %v313 = vadd.f32 0.0, %v312
  %v314 = vpop.f32.mrf.mxu0
  %315 = vmatprep.mubr.f32.mxu0 0.0
  %316 = vmatmul.mubr.f32.gmra.mxu0 %v236
  %v317 = vpop.f32.mrf.mxu0
  %v318 = vadd.f32 0.0, %v317
  %v319 = vpop.f32.mrf.mxu0
  %320 = vmatprep.mubr.f32.mxu0 0.0
  %321 = vmatmul.mubr.f32.gmra.mxu0 %v238
  %v322 = vpop.f32.mrf.mxu0
  %v323 = vadd.f32 0.0, %v322
  %v324 = vpop.f32.mrf.mxu0
  %325 = vmatprep.mubr.f32.mxu0 0.0
  %326 = vmatmul.mubr.f32.gmra.mxu0 %v240
  %v327 = vpop.f32.mrf.mxu0
  %v328 = vadd.f32 0.0, %v327
  %v329 = vpop.f32.mrf.mxu0
  %330 = vdwg.mxu0
  %v331 = vsel %vm233, %v217, 0
  %v333 = vsel %vm233, %v218, 0
  %v335 = vsel %vm233, %v219, 0
  %v337 = vsel %vm233, %v220, 0
  %v340 = vsel %vm242, %v53, 0
  %342 = vmatprep.subr.mxu0 0.0
  %343 = vmatpush1.msra.mxu0 0.0
  %344 = vmatprep.subr.mxu0 0.0
  %345 = vmatpush1.msra.mxu0 0.0
  %346 = vmatprep.subr.mxu0 0.0
  %347 = vmatpush1.msra.mxu0 0.0
  %348 = vmatprep.subr.mxu0 0.0
  %349 = vmatpush1.msra.mxu0 0.0
  %350 = vmatprep.subr.mxu0 0.0
  %351 = vmatpush1.msra.mxu0 0.0
  %352 = vmatprep.subr.mxu0 0.0
  %353 = vmatpush1.msra.mxu0 0.0
  %354 = vmatprep.subr.mxu0 0.0
  %355 = vmatpush1.msra.mxu0 0.0
  %356 = vmatprep.subr.mxu0 0.0
  %357 = vmatpush1.msra.mxu0 0.0
  %358 = vmatprep.subr.mxu0 0.0
  %359 = vmatpush1.msra.mxu0 0.0
  %360 = vmatprep.subr.mxu0 0.0
  %361 = vmatpush1.msra.mxu0 0.0
  %362 = vmatprep.subr.mxu0 0.0
  %363 = vmatpush1.msra.mxu0 0.0
  %364 = vmatprep.subr.mxu0 0.0
  %365 = vmatpush1.msra.mxu0 0.0
  %366 = vmatprep.subr.mxu0 0.0
  %367 = vmatpush1.msra.mxu0 %v340
  %368 = vmatprep.subr.mxu0 0.0
  %369 = vmatpush1.msra.mxu0 %v52
  %370 = vmatprep.subr.mxu0 0.0
  %371 = vmatpush1.msra.mxu0 %v51
  %372 = vmatprep.subr.mxu0 0.0
  %373 = vmatpush1.msra.mxu0 %v50
  %374 = vmatprep.subr.mxu0 0.0
  %375 = vmatpush2.msra.mxu0 0.0
  %376 = vmatprep.subr.mxu0 0.0
  %377 = vmatpush2.msra.mxu0 0.0
  %378 = vmatprep.subr.mxu0 0.0
  %379 = vmatpush2.msra.mxu0 0.0
  %380 = vmatprep.subr.mxu0 0.0
  %381 = vmatpush2.msra.mxu0 0.0
  %382 = vmatprep.subr.mxu0 0.0
  %383 = vmatpush2.msra.mxu0 0.0
  %384 = vmatprep.subr.mxu0 0.0
  %385 = vmatpush2.msra.mxu0 0.0
  %386 = vmatprep.subr.mxu0 0.0
  %387 = vmatpush2.msra.mxu0 0.0
  %388 = vmatprep.subr.mxu0 0.0
  %389 = vmatpush2.msra.mxu0 0.0
  %390 = vmatprep.subr.mxu0 0.0
  %391 = vmatpush2.msra.mxu0 0.0
  %392 = vmatprep.subr.mxu0 0.0
  %393 = vmatpush2.msra.mxu0 0.0
  %394 = vmatprep.subr.mxu0 0.0
  %395 = vmatpush2.msra.mxu0 0.0
  %396 = vmatprep.subr.mxu0 0.0
  %397 = vmatpush2.msra.mxu0 0.0
  %398 = vmatprep.subr.mxu0 0.0
  %399 = vmatpush2.msra.mxu0 0.0
  %400 = vmatprep.subr.mxu0 0.0
  %401 = vmatpush2.msra.mxu0 0.0
  %402 = vmatprep.subr.mxu0 0.0
  %403 = vmatpush2.msra.mxu0 0.0
  %404 = vmatprep.subr.mxu0 0.0
  %405 = vmatpush2.msra.mxu0 0.0
  %406 = vmatprep.mubr.f32.mxu0 0.0
  %407 = vmatmul.mubr.f32.gmra.mxu0 %v331
  %v408 = vpop.f32.mrf.mxu0
  %v409 = vadd.f32 %v313, %v408
  %v410 = vpop.f32.mrf.mxu0
  %411 = vmatprep.mubr.f32.mxu0 0.0
  %412 = vmatmul.mubr.f32.gmra.mxu0 %v333
  %v413 = vpop.f32.mrf.mxu0
  %v414 = vadd.f32 %v318, %v413
  %v415 = vpop.f32.mrf.mxu0
  %416 = vmatprep.mubr.f32.mxu0 0.0
  %417 = vmatmul.mubr.f32.gmra.mxu0 %v335
  %v418 = vpop.f32.mrf.mxu0
  %v419 = vadd.f32 %v323, %v418
  %v420 = vpop.f32.mrf.mxu0
  %421 = vmatprep.mubr.f32.mxu0 0.0
  %422 = vmatmul.mubr.f32.gmra.mxu0 %v337
  %v423 = vpop.f32.mrf.mxu0
  %v424 = vadd.f32 %v328, %v423
  %v425 = vpop.f32.mrf.mxu0
  %426 = vdwg.mxu0
  %vm427 = vcmask 1045504
  %v428 = vrot.slane %v217, 2
  %v429 = vrot.slane %v218, 2
  %v430 = vsel %vm427, %v428, %v429
  %v431 = vrot.slane %v219, 2
  %v432 = vsel %vm427, %v429, %v431
  %v433 = vrot.slane %v220, 2
  %v434 = vsel %vm427, %v431, %v433
  %v435 = vsel %vm233, %v430, 0
  %v437 = vsel %vm233, %v432, 0
  %v439 = vsel %vm233, %v434, 0
  %v441 = vsel %vm233, %v433, 0
  %v444 = vsel %vm242, %v63, 0
  %446 = vmatprep.subr.mxu0 0.0
  %447 = vmatpush1.msra.mxu0 0.0
  %448 = vmatprep.subr.mxu0 0.0
  %449 = vmatpush1.msra.mxu0 0.0
  %450 = vmatprep.subr.mxu0 0.0
  %451 = vmatpush1.msra.mxu0 0.0
  %452 = vmatprep.subr.mxu0 0.0
  %453 = vmatpush1.msra.mxu0 0.0
  %454 = vmatprep.subr.mxu0 0.0
  %455 = vmatpush1.msra.mxu0 0.0
  %456 = vmatprep.subr.mxu0 0.0
  %457 = vmatpush1.msra.mxu0 0.0
  %458 = vmatprep.subr.mxu0 0.0
  %459 = vmatpush1.msra.mxu0 0.0
  %460 = vmatprep.subr.mxu0 0.0
  %461 = vmatpush1.msra.mxu0 0.0
  %462 = vmatprep.subr.mxu0 0.0
  %463 = vmatpush1.msra.mxu0 0.0
  %464 = vmatprep.subr.mxu0 0.0
  %465 = vmatpush1.msra.mxu0 0.0
  %466 = vmatprep.subr.mxu0 0.0
  %467 = vmatpush1.msra.mxu0 0.0
  %468 = vmatprep.subr.mxu0 0.0
  %469 = vmatpush1.msra.mxu0 0.0
  %470 = vmatprep.subr.mxu0 0.0
  %471 = vmatpush1.msra.mxu0 %v444
  %472 = vmatprep.subr.mxu0 0.0
  %473 = vmatpush1.msra.mxu0 %v62
  %474 = vmatprep.subr.mxu0 0.0
  %475 = vmatpush1.msra.mxu0 %v61
  %476 = vmatprep.subr.mxu0 0.0
  %477 = vmatpush1.msra.mxu0 %v60
  %478 = vmatprep.subr.mxu0 0.0
  %479 = vmatpush2.msra.mxu0 0.0
  %480 = vmatprep.subr.mxu0 0.0
  %481 = vmatpush2.msra.mxu0 0.0
  %482 = vmatprep.subr.mxu0 0.0
  %483 = vmatpush2.msra.mxu0 0.0
  %484 = vmatprep.subr.mxu0 0.0
  %485 = vmatpush2.msra.mxu0 0.0
  %486 = vmatprep.subr.mxu0 0.0
  %487 = vmatpush2.msra.mxu0 0.0
  %488 = vmatprep.subr.mxu0 0.0
  %489 = vmatpush2.msra.mxu0 0.0
  %490 = vmatprep.subr.mxu0 0.0
  %491 = vmatpush2.msra.mxu0 0.0
  %492 = vmatprep.subr.mxu0 0.0
  %493 = vmatpush2.msra.mxu0 0.0
  %494 = vmatprep.subr.mxu0 0.0
  %495 = vmatpush2.msra.mxu0 0.0
  %496 = vmatprep.subr.mxu0 0.0
  %497 = vmatpush2.msra.mxu0 0.0
  %498 = vmatprep.subr.mxu0 0.0
  %499 = vmatpush2.msra.mxu0 0.0
  %500 = vmatprep.subr.mxu0 0.0
  %501 = vmatpush2.msra.mxu0 0.0
  %502 = vmatprep.subr.mxu0 0.0
  %503 = vmatpush2.msra.mxu0 0.0
  %504 = vmatprep.subr.mxu0 0.0
  %505 = vmatpush2.msra.mxu0 0.0
  %506 = vmatprep.subr.mxu0 0.0
  %507 = vmatpush2.msra.mxu0 0.0
  %508 = vmatprep.subr.mxu0 0.0
  %509 = vmatpush2.msra.mxu0 0.0
  %510 = vmatprep.mubr.f32.mxu0 0.0
  %511 = vmatmul.mubr.f32.gmra.mxu0 %v435
  %v512 = vpop.f32.mrf.mxu0
  %v513 = vadd.f32 0.0, %v512
  %v514 = vpop.f32.mrf.mxu0
  %515 = vmatprep.mubr.f32.mxu0 0.0
  %516 = vmatmul.mubr.f32.gmra.mxu0 %v437
  %v517 = vpop.f32.mrf.mxu0
  %v518 = vadd.f32 0.0, %v517
  %v519 = vpop.f32.mrf.mxu0
  %520 = vmatprep.mubr.f32.mxu0 0.0
  %521 = vmatmul.mubr.f32.gmra.mxu0 %v439
  %v522 = vpop.f32.mrf.mxu0
  %v523 = vadd.f32 0.0, %v522
  %v524 = vpop.f32.mrf.mxu0
  %525 = vmatprep.mubr.f32.mxu0 0.0
  %526 = vmatmul.mubr.f32.gmra.mxu0 %v441
  %v527 = vpop.f32.mrf.mxu0
  %v528 = vadd.f32 0.0, %v527
  %v529 = vpop.f32.mrf.mxu0
  %530 = vdwg.mxu0
  %v531 = vadd.f32 %v409, %v513
  %v532 = vadd.f32 %v414, %v518
  %v533 = vadd.f32 %v419, %v523
  %v534 = vadd.f32 %v424, %v528
  %v536 = vlaneseq
  %v537 = vshrl.u32 %v536, 7
  %v538 = vsub.s32 0, %v537
  %v539 = vrot.slane %v64, %v538
  %v541 = vadd.f32 %v531, %v539
  %v542 = vadd.f32 %v532, %v539
  %v543 = vadd.f32 %v533, %v539
  %v544 = vadd.f32 %v534, %v539
  %v545 = vmax.f32 %v541, 0.0
  %v546 = vmax.f32 %v542, 0.0
  %v547 = vmax.f32 %v543, 0.0
  %v548 = vmax.f32 %v544, 0.0
  %v553 = vrot.slane %v545, 1
  %v554 = vrot.slane %v546, 1
  %v555 = vsel %vm225, %v553, %v554
  %v556 = vrot.slane %v547, 1
  %v557 = vsel %vm225, %v554, %v556
  %v558 = vrot.slane %v548, 1
  %v559 = vsel %vm225, %v556, %v558
  %v564 = vmax.f32 %v545, %v555
  %v565 = vmax.f32 %v546, %v557
  %v566 = vmax.f32 %v547, %v559
  %v567 = vmax.f32 %v548, %v558
  %vm568 = vcmask 220160
  %v570 = vsel %vm568, %v152, 0
  %v573 = vsel %vm568, %v153, 0
  %vm575 = vcmask 1042432
  %v577 = vsel %vm575, %v567, 0
  %579 = vmatprep.subr.mxu0 0.0
  %580 = vmatpush1.msra.mxu0 0.0
  %581 = vmatprep.subr.mxu0 0.0
  %582 = vmatpush1.msra.mxu0 0.0
  %583 = vmatprep.subr.mxu0 0.0
  %584 = vmatpush1.msra.mxu0 0.0
  %585 = vmatprep.subr.mxu0 0.0
  %586 = vmatpush1.msra.mxu0 0.0
  %587 = vmatprep.subr.mxu0 0.0
  %588 = vmatpush1.msra.mxu0 0.0
  %589 = vmatprep.subr.mxu0 0.0
  %590 = vmatpush1.msra.mxu0 0.0
  %591 = vmatprep.subr.mxu0 0.0
  %592 = vmatpush1.msra.mxu0 0.0
  %593 = vmatprep.subr.mxu0 0.0
  %594 = vmatpush1.msra.mxu0 0.0
  %595 = vmatprep.subr.mxu0 0.0
  %596 = vmatpush1.msra.mxu0 0.0
  %597 = vmatprep.subr.mxu0 0.0
  %598 = vmatpush1.msra.mxu0 0.0
  %599 = vmatprep.subr.mxu0 0.0
  %600 = vmatpush1.msra.mxu0 0.0
  %601 = vmatprep.subr.mxu0 0.0
  %602 = vmatpush1.msra.mxu0 0.0
  %603 = vmatprep.subr.mxu0 0.0
  %604 = vmatpush1.msra.mxu0 %v577
  %605 = vmatprep.subr.mxu0 0.0
  %606 = vmatpush1.msra.mxu0 %v566
  %607 = vmatprep.subr.mxu0 0.0
  %608 = vmatpush1.msra.mxu0 %v565
  %609 = vmatprep.subr.mxu0 0.0
  %610 = vmatpush1.msra.mxu0 %v564
  %611 = vmatprep.subr.mxu0 0.0
  %612 = vmatpush2.msra.mxu0 0.0
  %613 = vmatprep.subr.mxu0 0.0
  %614 = vmatpush2.msra.mxu0 0.0
  %615 = vmatprep.subr.mxu0 0.0
  %616 = vmatpush2.msra.mxu0 0.0
  %617 = vmatprep.subr.mxu0 0.0
  %618 = vmatpush2.msra.mxu0 0.0
  %619 = vmatprep.subr.mxu0 0.0
  %620 = vmatpush2.msra.mxu0 0.0
  %621 = vmatprep.subr.mxu0 0.0
  %622 = vmatpush2.msra.mxu0 0.0
  %623 = vmatprep.subr.mxu0 0.0
  %624 = vmatpush2.msra.mxu0 0.0
  %625 = vmatprep.subr.mxu0 0.0
  %626 = vmatpush2.msra.mxu0 0.0
  %627 = vmatprep.subr.mxu0 0.0
  %628 = vmatpush2.msra.mxu0 0.0
  %629 = vmatprep.subr.mxu0 0.0
  %630 = vmatpush2.msra.mxu0 0.0
  %631 = vmatprep.subr.mxu0 0.0
  %632 = vmatpush2.msra.mxu0 0.0
  %633 = vmatprep.subr.mxu0 0.0
  %634 = vmatpush2.msra.mxu0 0.0
  %635 = vmatprep.subr.mxu0 0.0
  %636 = vmatpush2.msra.mxu0 0.0
  %637 = vmatprep.subr.mxu0 0.0
  %638 = vmatpush2.msra.mxu0 0.0
  %639 = vmatprep.subr.mxu0 0.0
  %640 = vmatpush2.msra.mxu0 0.0
  %641 = vmatprep.subr.mxu0 0.0
  %642 = vmatpush2.msra.mxu0 0.0
  %643 = vmatprep.mubr.f32.mxu0 0.0
  %644 = vmatmul.mubr.f32.gmra.mxu0 %v570
  %v645 = vpop.f32.mrf.mxu0
  %v646 = vadd.f32 0.0, %v645
  %v647 = vpop.f32.mrf.mxu0
  %648 = vmatprep.mubr.f32.mxu0 0.0
  %649 = vmatmul.mubr.f32.gmra.mxu0 %v573
  %v650 = vpop.f32.mrf.mxu0
  %v651 = vadd.f32 0.0, %v650
  %v652 = vpop.f32.mrf.mxu0
  %653 = vdwg.mxu0
  %656 = vrot.lane.b32.xlu0 %v646, 124
  %v657 = vpop.permute.xlu0 %656
  %658 = vrot.lane.b32.xlu0 %v651, 124
  %v659 = vpop.permute.xlu0 %658
  %v662 = vmax.f32 %v646, %v657
  %v663 = vmax.f32 %v651, %v659
  %v666 = vrot.slane %v662, 1
  %v667 = vrot.slane %v663, 1
  %v668 = vsel %vm225, %v666, %v667
  %vm669 = vcmask 883712
  %v670 = vsel %vm669, %v668, 0
  %v672 = vsel %vm669, %v667, 0
  %v675 = vsel %vm242, %v93, 0
  %677 = vmatprep.subr.mxu0 0.0
  %678 = vmatpush1.msra.mxu0 0.0
  %679 = vmatprep.subr.mxu0 0.0
  %680 = vmatpush1.msra.mxu0 0.0
  %681 = vmatprep.subr.mxu0 0.0
  %682 = vmatpush1.msra.mxu0 %v675
  %683 = vmatprep.subr.mxu0 0.0
  %684 = vmatpush1.msra.mxu0 %v92
  %685 = vmatprep.subr.mxu0 0.0
  %686 = vmatpush1.msra.mxu0 %v91
  %687 = vmatprep.subr.mxu0 0.0
  %688 = vmatpush1.msra.mxu0 %v90
  %689 = vmatprep.subr.mxu0 0.0
  %690 = vmatpush1.msra.mxu0 %v89
  %691 = vmatprep.subr.mxu0 0.0
  %692 = vmatpush1.msra.mxu0 %v88
  %693 = vmatprep.subr.mxu0 0.0
  %694 = vmatpush1.msra.mxu0 %v87
  %695 = vmatprep.subr.mxu0 0.0
  %696 = vmatpush1.msra.mxu0 %v86
  %697 = vmatprep.subr.mxu0 0.0
  %698 = vmatpush1.msra.mxu0 %v85
  %699 = vmatprep.subr.mxu0 0.0
  %700 = vmatpush1.msra.mxu0 %v84
  %701 = vmatprep.subr.mxu0 0.0
  %702 = vmatpush1.msra.mxu0 %v83
  %703 = vmatprep.subr.mxu0 0.0
  %704 = vmatpush1.msra.mxu0 %v82
  %705 = vmatprep.subr.mxu0 0.0
  %706 = vmatpush1.msra.mxu0 %v81
  %707 = vmatprep.subr.mxu0 0.0
  %708 = vmatpush1.msra.mxu0 %v80
  %709 = vmatprep.subr.mxu0 0.0
  %710 = vmatpush2.msra.mxu0 0.0
  %711 = vmatprep.subr.mxu0 0.0
  %712 = vmatpush2.msra.mxu0 0.0
  %713 = vmatprep.subr.mxu0 0.0
  %714 = vmatpush2.msra.mxu0 0.0
  %715 = vmatprep.subr.mxu0 0.0
  %716 = vmatpush2.msra.mxu0 0.0
  %717 = vmatprep.subr.mxu0 0.0
  %718 = vmatpush2.msra.mxu0 0.0
  %719 = vmatprep.subr.mxu0 0.0
  %720 = vmatpush2.msra.mxu0 0.0
  %721 = vmatprep.subr.mxu0 0.0
  %722 = vmatpush2.msra.mxu0 0.0
  %723 = vmatprep.subr.mxu0 0.0
  %724 = vmatpush2.msra.mxu0 0.0
  %725 = vmatprep.subr.mxu0 0.0
  %726 = vmatpush2.msra.mxu0 0.0
  %727 = vmatprep.subr.mxu0 0.0
  %728 = vmatpush2.msra.mxu0 0.0
  %729 = vmatprep.subr.mxu0 0.0
  %730 = vmatpush2.msra.mxu0 0.0
  %731 = vmatprep.subr.mxu0 0.0
  %732 = vmatpush2.msra.mxu0 0.0
  %733 = vmatprep.subr.mxu0 0.0
  %734 = vmatpush2.msra.mxu0 0.0
  %735 = vmatprep.subr.mxu0 0.0
  %736 = vmatpush2.msra.mxu0 0.0
  %737 = vmatprep.subr.mxu0 0.0
  %738 = vmatpush2.msra.mxu0 0.0
  %739 = vmatprep.subr.mxu0 0.0
  %740 = vmatpush2.msra.mxu0 0.0
  %741 = vmatprep.mubr.f32.mxu0 0.0
  %742 = vmatmul.mubr.f32.gmra.mxu0 %v670
  %v743 = vpop.f32.mrf.mxu0
  %v744 = vadd.f32 0.0, %v743
  %v745 = vpop.f32.mrf.mxu0
  %746 = vmatprep.mubr.f32.mxu0 0.0
  %747 = vmatmul.mubr.f32.gmra.mxu0 %v672
  %v748 = vpop.f32.mrf.mxu0
  %v749 = vadd.f32 0.0, %v748
  %v750 = vpop.f32.mrf.mxu0
  %751 = vdwg.mxu0
  %v752 = vsel %vm669, %v662, 0
  %v754 = vsel %vm669, %v663, 0
  %v757 = vsel %vm242, %v78, 0
  %759 = vmatprep.subr.mxu0 0.0
  %760 = vmatpush1.msra.mxu0 0.0
  %761 = vmatprep.subr.mxu0 0.0
  %762 = vmatpush1.msra.mxu0 0.0
  %763 = vmatprep.subr.mxu0 0.0
  %764 = vmatpush1.msra.mxu0 %v757
  %765 = vmatprep.subr.mxu0 0.0
  %766 = vmatpush1.msra.mxu0 %v77
  %767 = vmatprep.subr.mxu0 0.0
  %768 = vmatpush1.msra.mxu0 %v76
  %769 = vmatprep.subr.mxu0 0.0
  %770 = vmatpush1.msra.mxu0 %v75
  %771 = vmatprep.subr.mxu0 0.0
  %772 = vmatpush1.msra.mxu0 %v74
  %773 = vmatprep.subr.mxu0 0.0
  %774 = vmatpush1.msra.mxu0 %v73
  %775 = vmatprep.subr.mxu0 0.0
  %776 = vmatpush1.msra.mxu0 %v72
  %777 = vmatprep.subr.mxu0 0.0
  %778 = vmatpush1.msra.mxu0 %v71
  %779 = vmatprep.subr.mxu0 0.0
  %780 = vmatpush1.msra.mxu0 %v70
  %781 = vmatprep.subr.mxu0 0.0
  %782 = vmatpush1.msra.mxu0 %v69
  %783 = vmatprep.subr.mxu0 0.0
  %784 = vmatpush1.msra.mxu0 %v68
  %785 = vmatprep.subr.mxu0 0.0
  %786 = vmatpush1.msra.mxu0 %v67
  %787 = vmatprep.subr.mxu0 0.0
  %788 = vmatpush1.msra.mxu0 %v66
  %789 = vmatprep.subr.mxu0 0.0
  %790 = vmatpush1.msra.mxu0 %v65
  %791 = vmatprep.subr.mxu0 0.0
  %792 = vmatpush2.msra.mxu0 0.0
  %793 = vmatprep.subr.mxu0 0.0
  %794 = vmatpush2.msra.mxu0 0.0
  %795 = vmatprep.subr.mxu0 0.0
  %796 = vmatpush2.msra.mxu0 0.0
  %797 = vmatprep.subr.mxu0 0.0
  %798 = vmatpush2.msra.mxu0 0.0
  %799 = vmatprep.subr.mxu0 0.0
  %800 = vmatpush2.msra.mxu0 0.0
  %801 = vmatprep.subr.mxu0 0.0
  %802 = vmatpush2.msra.mxu0 0.0
  %803 = vmatprep.subr.mxu0 0.0
  %804 = vmatpush2.msra.mxu0 0.0
  %805 = vmatprep.subr.mxu0 0.0
  %806 = vmatpush2.msra.mxu0 0.0
  %807 = vmatprep.subr.mxu0 0.0
  %808 = vmatpush2.msra.mxu0 0.0
  %809 = vmatprep.subr.mxu0 0.0
  %810 = vmatpush2.msra.mxu0 0.0
  %811 = vmatprep.subr.mxu0 0.0
  %812 = vmatpush2.msra.mxu0 0.0
  %813 = vmatprep.subr.mxu0 0.0
  %814 = vmatpush2.msra.mxu0 0.0
  %815 = vmatprep.subr.mxu0 0.0
  %816 = vmatpush2.msra.mxu0 0.0
  %817 = vmatprep.subr.mxu0 0.0
  %818 = vmatpush2.msra.mxu0 0.0
  %819 = vmatprep.subr.mxu0 0.0
  %820 = vmatpush2.msra.mxu0 0.0
  %821 = vmatprep.subr.mxu0 0.0
  %822 = vmatpush2.msra.mxu0 0.0
  %823 = vmatprep.mubr.f32.mxu0 0.0
  %824 = vmatmul.mubr.f32.gmra.mxu0 %v752
  %v825 = vpop.f32.mrf.mxu0
  %v826 = vadd.f32 %v744, %v825
  %v827 = vpop.f32.mrf.mxu0
  %828 = vmatprep.mubr.f32.mxu0 0.0
  %829 = vmatmul.mubr.f32.gmra.mxu0 %v754
  %v830 = vpop.f32.mrf.mxu0
  %v831 = vadd.f32 %v749, %v830
  %v832 = vpop.f32.mrf.mxu0
  %833 = vdwg.mxu0
  %v834 = vrot.slane %v662, 2
  %v835 = vrot.slane %v663, 2
  %v836 = vsel %vm427, %v834, %v835
  %v837 = vsel %vm669, %v836, 0
  %v839 = vsel %vm669, %v835, 0
  %v842 = vsel %vm242, %v108, 0
  %844 = vmatprep.subr.mxu0 0.0
  %845 = vmatpush1.msra.mxu0 0.0
  %846 = vmatprep.subr.mxu0 0.0
  %847 = vmatpush1.msra.mxu0 0.0
  %848 = vmatprep.subr.mxu0 0.0
  %849 = vmatpush1.msra.mxu0 %v842
  %850 = vmatprep.subr.mxu0 0.0
  %851 = vmatpush1.msra.mxu0 %v107
  %852 = vmatprep.subr.mxu0 0.0
  %853 = vmatpush1.msra.mxu0 %v106
  %854 = vmatprep.subr.mxu0 0.0
  %855 = vmatpush1.msra.mxu0 %v105
  %856 = vmatprep.subr.mxu0 0.0
  %857 = vmatpush1.msra.mxu0 %v104
  %858 = vmatprep.subr.mxu0 0.0
  %859 = vmatpush1.msra.mxu0 %v103
  %860 = vmatprep.subr.mxu0 0.0
  %861 = vmatpush1.msra.mxu0 %v102
  %862 = vmatprep.subr.mxu0 0.0
  %863 = vmatpush1.msra.mxu0 %v101
  %864 = vmatprep.subr.mxu0 0.0
  %865 = vmatpush1.msra.mxu0 %v100
  %866 = vmatprep.subr.mxu0 0.0
  %867 = vmatpush1.msra.mxu0 %v99
  %868 = vmatprep.subr.mxu0 0.0
  %869 = vmatpush1.msra.mxu0 %v98
  %870 = vmatprep.subr.mxu0 0.0
  %871 = vmatpush1.msra.mxu0 %v97
  %872 = vmatprep.subr.mxu0 0.0
  %873 = vmatpush1.msra.mxu0 %v96
  %874 = vmatprep.subr.mxu0 0.0
  %875 = vmatpush1.msra.mxu0 %v95
  %876 = vmatprep.subr.mxu0 0.0
  %877 = vmatpush2.msra.mxu0 0.0
  %878 = vmatprep.subr.mxu0 0.0
  %879 = vmatpush2.msra.mxu0 0.0
  %880 = vmatprep.subr.mxu0 0.0
  %881 = vmatpush2.msra.mxu0 0.0
  %882 = vmatprep.subr.mxu0 0.0
  %883 = vmatpush2.msra.mxu0 0.0
  %884 = vmatprep.subr.mxu0 0.0
  %885 = vmatpush2.msra.mxu0 0.0
  %886 = vmatprep.subr.mxu0 0.0
  %887 = vmatpush2.msra.mxu0 0.0
  %888 = vmatprep.subr.mxu0 0.0
  %889 = vmatpush2.msra.mxu0 0.0
  %890 = vmatprep.subr.mxu0 0.0
  %891 = vmatpush2.msra.mxu0 0.0
  %892 = vmatprep.subr.mxu0 0.0
  %893 = vmatpush2.msra.mxu0 0.0
  %894 = vmatprep.subr.mxu0 0.0
  %895 = vmatpush2.msra.mxu0 0.0
  %896 = vmatprep.subr.mxu0 0.0
  %897 = vmatpush2.msra.mxu0 0.0
  %898 = vmatprep.subr.mxu0 0.0
  %899 = vmatpush2.msra.mxu0 0.0
  %900 = vmatprep.subr.mxu0 0.0
  %901 = vmatpush2.msra.mxu0 0.0
  %902 = vmatprep.subr.mxu0 0.0
  %903 = vmatpush2.msra.mxu0 0.0
  %904 = vmatprep.subr.mxu0 0.0
  %905 = vmatpush2.msra.mxu0 0.0
  %906 = vmatprep.subr.mxu0 0.0
  %907 = vmatpush2.msra.mxu0 0.0
  %908 = vmatprep.mubr.f32.mxu0 0.0
  %909 = vmatmul.mubr.f32.gmra.mxu0 %v837
  %v910 = vpop.f32.mrf.mxu0
  %v911 = vadd.f32 0.0, %v910
  %v912 = vpop.f32.mrf.mxu0
  %913 = vmatprep.mubr.f32.mxu0 0.0
  %914 = vmatmul.mubr.f32.gmra.mxu0 %v839
  %v915 = vpop.f32.mrf.mxu0
  %v916 = vadd.f32 0.0, %v915
  %v917 = vpop.f32.mrf.mxu0
  %918 = vdwg.mxu0
  %v919 = vadd.f32 %v826, %v911
  %v920 = vadd.f32 %v831, %v916
  %v922 = vlaneseq
  %v923 = vshrl.u32 %v922, 7
  %v924 = vsub.s32 0, %v923
  %v925 = vrot.slane %v109, %v924
  %v927 = vadd.f32 %v919, %v925
  %v928 = vadd.f32 %v920, %v925
  %v929 = vmax.f32 %v927, 0.0
  %v930 = vmax.f32 %v928, 0.0
  %v933 = vrot.slane %v929, 1
  %v934 = vrot.slane %v930, 1
  %v935 = vsel %vm225, %v933, %v934
  %v938 = vmax.f32 %v929, %v935
  %v939 = vmax.f32 %v930, %v934
  %vm940 = vcmask 105472
  %v942 = vsel %vm940, %v154, 0
  %v945 = vsel %vm940, %v155, 0
  %vm947 = vcmask 1044480
  %v949 = vsel %vm947, %v939, 0
  %951 = vmatprep.subr.mxu0 0.0
  %952 = vmatpush1.msra.mxu0 0.0
  %953 = vmatprep.subr.mxu0 0.0
  %954 = vmatpush1.msra.mxu0 0.0
  %955 = vmatprep.subr.mxu0 0.0
  %956 = vmatpush1.msra.mxu0 0.0
  %957 = vmatprep.subr.mxu0 0.0
  %958 = vmatpush1.msra.mxu0 0.0
  %959 = vmatprep.subr.mxu0 0.0
  %960 = vmatpush1.msra.mxu0 0.0
  %961 = vmatprep.subr.mxu0 0.0
  %962 = vmatpush1.msra.mxu0 0.0
  %963 = vmatprep.subr.mxu0 0.0
  %964 = vmatpush1.msra.mxu0 0.0
  %965 = vmatprep.subr.mxu0 0.0
  %966 = vmatpush1.msra.mxu0 0.0
  %967 = vmatprep.subr.mxu0 0.0
  %968 = vmatpush1.msra.mxu0 0.0
  %969 = vmatprep.subr.mxu0 0.0
  %970 = vmatpush1.msra.mxu0 0.0
  %971 = vmatprep.subr.mxu0 0.0
  %972 = vmatpush1.msra.mxu0 0.0
  %973 = vmatprep.subr.mxu0 0.0
  %974 = vmatpush1.msra.mxu0 0.0
  %975 = vmatprep.subr.mxu0 0.0
  %976 = vmatpush1.msra.mxu0 0.0
  %977 = vmatprep.subr.mxu0 0.0
  %978 = vmatpush1.msra.mxu0 0.0
  %979 = vmatprep.subr.mxu0 0.0
  %980 = vmatpush1.msra.mxu0 %v949
  %981 = vmatprep.subr.mxu0 0.0
  %982 = vmatpush1.msra.mxu0 %v938
  %983 = vmatprep.subr.mxu0 0.0
  %984 = vmatpush2.msra.mxu0 0.0
  %985 = vmatprep.subr.mxu0 0.0
  %986 = vmatpush2.msra.mxu0 0.0
  %987 = vmatprep.subr.mxu0 0.0
  %988 = vmatpush2.msra.mxu0 0.0
  %989 = vmatprep.subr.mxu0 0.0
  %990 = vmatpush2.msra.mxu0 0.0
  %991 = vmatprep.subr.mxu0 0.0
  %992 = vmatpush2.msra.mxu0 0.0
  %993 = vmatprep.subr.mxu0 0.0
  %994 = vmatpush2.msra.mxu0 0.0
  %995 = vmatprep.subr.mxu0 0.0
  %996 = vmatpush2.msra.mxu0 0.0
  %997 = vmatprep.subr.mxu0 0.0
  %998 = vmatpush2.msra.mxu0 0.0
  %999 = vmatprep.subr.mxu0 0.0
  %1000 = vmatpush2.msra.mxu0 0.0
  %1001 = vmatprep.subr.mxu0 0.0
  %1002 = vmatpush2.msra.mxu0 0.0
  %1003 = vmatprep.subr.mxu0 0.0
  %1004 = vmatpush2.msra.mxu0 0.0
  %1005 = vmatprep.subr.mxu0 0.0
  %1006 = vmatpush2.msra.mxu0 0.0
  %1007 = vmatprep.subr.mxu0 0.0
  %1008 = vmatpush2.msra.mxu0 0.0
  %1009 = vmatprep.subr.mxu0 0.0
  %1010 = vmatpush2.msra.mxu0 0.0
  %1011 = vmatprep.subr.mxu0 0.0
  %1012 = vmatpush2.msra.mxu0 0.0
  %1013 = vmatprep.subr.mxu0 0.0
  %1014 = vmatpush2.msra.mxu0 0.0
  %1015 = vmatprep.mubr.f32.mxu0 0.0
  %1016 = vmatmul.mubr.f32.gmra.mxu0 %v942
  %v1017 = vpop.f32.mrf.mxu0
  %v1018 = vadd.f32 0.0, %v1017
  %v1019 = vpop.f32.mrf.mxu0
  %1020 = vmatprep.mubr.f32.mxu0 0.0
  %1021 = vmatmul.mubr.f32.gmra.mxu0 %v945
  %v1022 = vpop.f32.mrf.mxu0
  %v1023 = vadd.f32 0.0, %v1022
  %v1024 = vpop.f32.mrf.mxu0
  %1025 = vdwg.mxu0
  %1028 = vrot.lane.b32.xlu0 %v1018, 120
  %v1029 = vpop.permute.xlu0 %1028
  %1030 = vrot.lane.b32.xlu0 %v1023, 120
  %v1031 = vpop.permute.xlu0 %1030
  %v1034 = vmax.f32 %v1018, %v1029
  %v1035 = vmax.f32 %v1023, %v1031
  %v1037 = vrot.slane %v1034, 1
  %vm1038 = vcmask 850944
  %v1039 = vsel %vm1038, %v1037, 0
  %1041 = vmatprep.subr.mxu0 0.0
  %1042 = vmatpush1.msra.mxu0 0.0
  %1043 = vmatprep.subr.mxu0 0.0
  %1044 = vmatpush1.msra.mxu0 0.0
  %1045 = vmatprep.subr.mxu0 0.0
  %1046 = vmatpush1.msra.mxu0 0.0
  %1047 = vmatprep.subr.mxu0 0.0
  %1048 = vmatpush1.msra.mxu0 %v136
  %1049 = vmatprep.subr.mxu0 0.0
  %1050 = vmatpush1.msra.mxu0 %v135
  %1051 = vmatprep.subr.mxu0 0.0
  %1052 = vmatpush1.msra.mxu0 %v134
  %1053 = vmatprep.subr.mxu0 0.0
  %1054 = vmatpush1.msra.mxu0 %v133
  %1055 = vmatprep.subr.mxu0 0.0
  %1056 = vmatpush1.msra.mxu0 %v132
  %1057 = vmatprep.subr.mxu0 0.0
  %1058 = vmatpush1.msra.mxu0 %v131
  %1059 = vmatprep.subr.mxu0 0.0
  %1060 = vmatpush1.msra.mxu0 %v130
  %1061 = vmatprep.subr.mxu0 0.0
  %1062 = vmatpush1.msra.mxu0 %v129
  %1063 = vmatprep.subr.mxu0 0.0
  %1064 = vmatpush1.msra.mxu0 %v128
  %1065 = vmatprep.subr.mxu0 0.0
  %1066 = vmatpush1.msra.mxu0 %v127
  %1067 = vmatprep.subr.mxu0 0.0
  %1068 = vmatpush1.msra.mxu0 %v126
  %1069 = vmatprep.subr.mxu0 0.0
  %1070 = vmatpush1.msra.mxu0 %v125
  %1071 = vmatprep.subr.mxu0 0.0
  %1072 = vmatpush1.msra.mxu0 %v124
  %1073 = vmatprep.subr.mxu0 0.0
  %1074 = vmatpush2.msra.mxu0 0.0
  %1075 = vmatprep.subr.mxu0 0.0
  %1076 = vmatpush2.msra.mxu0 0.0
  %1077 = vmatprep.subr.mxu0 0.0
  %1078 = vmatpush2.msra.mxu0 0.0
  %1079 = vmatprep.subr.mxu0 0.0
  %1080 = vmatpush2.msra.mxu0 0.0
  %1081 = vmatprep.subr.mxu0 0.0
  %1082 = vmatpush2.msra.mxu0 0.0
  %1083 = vmatprep.subr.mxu0 0.0
  %1084 = vmatpush2.msra.mxu0 0.0
  %1085 = vmatprep.subr.mxu0 0.0
  %1086 = vmatpush2.msra.mxu0 0.0
  %1087 = vmatprep.subr.mxu0 0.0
  %1088 = vmatpush2.msra.mxu0 0.0
  %1089 = vmatprep.subr.mxu0 0.0
  %1090 = vmatpush2.msra.mxu0 0.0
  %1091 = vmatprep.subr.mxu0 0.0
  %1092 = vmatpush2.msra.mxu0 0.0
  %1093 = vmatprep.subr.mxu0 0.0
  %1094 = vmatpush2.msra.mxu0 0.0
  %1095 = vmatprep.subr.mxu0 0.0
  %1096 = vmatpush2.msra.mxu0 0.0
  %1097 = vmatprep.subr.mxu0 0.0
  %1098 = vmatpush2.msra.mxu0 0.0
  %1099 = vmatprep.subr.mxu0 0.0
  %1100 = vmatpush2.msra.mxu0 0.0
  %1101 = vmatprep.subr.mxu0 0.0
  %1102 = vmatpush2.msra.mxu0 0.0
  %1103 = vmatprep.subr.mxu0 0.0
  %1104 = vmatpush2.msra.mxu0 0.0
  %1105 = vmatprep.mubr.f32.mxu0 0.0
  %1106 = vmatmul.mubr.f32.gmra.mxu0 %v1039
  %v1107 = vpop.f32.mrf.mxu0
  %v1108 = vadd.f32 0.0, %v1107
  %v1109 = vpop.f32.mrf.mxu0
  %1110 = vdwg.mxu0
  %v1111 = vsel %vm1038, %v1034, 0
  %1113 = vmatprep.subr.mxu0 0.0
  %1114 = vmatpush1.msra.mxu0 0.0
  %1115 = vmatprep.subr.mxu0 0.0
  %1116 = vmatpush1.msra.mxu0 0.0
  %1117 = vmatprep.subr.mxu0 0.0
  %1118 = vmatpush1.msra.mxu0 0.0
  %1119 = vmatprep.subr.mxu0 0.0
  %1120 = vmatpush1.msra.mxu0 %v122
  %1121 = vmatprep.subr.mxu0 0.0
  %1122 = vmatpush1.msra.mxu0 %v121
  %1123 = vmatprep.subr.mxu0 0.0
  %1124 = vmatpush1.msra.mxu0 %v120
  %1125 = vmatprep.subr.mxu0 0.0
  %1126 = vmatpush1.msra.mxu0 %v119
  %1127 = vmatprep.subr.mxu0 0.0
  %1128 = vmatpush1.msra.mxu0 %v118
  %1129 = vmatprep.subr.mxu0 0.0
  %1130 = vmatpush1.msra.mxu0 %v117
  %1131 = vmatprep.subr.mxu0 0.0
  %1132 = vmatpush1.msra.mxu0 %v116
  %1133 = vmatprep.subr.mxu0 0.0
  %1134 = vmatpush1.msra.mxu0 %v115
  %1135 = vmatprep.subr.mxu0 0.0
  %1136 = vmatpush1.msra.mxu0 %v114
  %1137 = vmatprep.subr.mxu0 0.0
  %1138 = vmatpush1.msra.mxu0 %v113
  %1139 = vmatprep.subr.mxu0 0.0
  %1140 = vmatpush1.msra.mxu0 %v112
  %1141 = vmatprep.subr.mxu0 0.0
  %1142 = vmatpush1.msra.mxu0 %v111
  %1143 = vmatprep.subr.mxu0 0.0
  %1144 = vmatpush1.msra.mxu0 %v110
  %1145 = vmatprep.subr.mxu0 0.0
  %1146 = vmatpush2.msra.mxu0 0.0
  %1147 = vmatprep.subr.mxu0 0.0
  %1148 = vmatpush2.msra.mxu0 0.0
  %1149 = vmatprep.subr.mxu0 0.0
  %1150 = vmatpush2.msra.mxu0 0.0
  %1151 = vmatprep.subr.mxu0 0.0
  %1152 = vmatpush2.msra.mxu0 0.0
  %1153 = vmatprep.subr.mxu0 0.0
  %1154 = vmatpush2.msra.mxu0 0.0
  %1155 = vmatprep.subr.mxu0 0.0
  %1156 = vmatpush2.msra.mxu0 0.0
  %1157 = vmatprep.subr.mxu0 0.0
  %1158 = vmatpush2.msra.mxu0 0.0
  %1159 = vmatprep.subr.mxu0 0.0
  %1160 = vmatpush2.msra.mxu0 0.0
  %1161 = vmatprep.subr.mxu0 0.0
  %1162 = vmatpush2.msra.mxu0 0.0
  %1163 = vmatprep.subr.mxu0 0.0
  %1164 = vmatpush2.msra.mxu0 0.0
  %1165 = vmatprep.subr.mxu0 0.0
  %1166 = vmatpush2.msra.mxu0 0.0
  %1167 = vmatprep.subr.mxu0 0.0
  %1168 = vmatpush2.msra.mxu0 0.0
  %1169 = vmatprep.subr.mxu0 0.0
  %1170 = vmatpush2.msra.mxu0 0.0
  %1171 = vmatprep.subr.mxu0 0.0
  %1172 = vmatpush2.msra.mxu0 0.0
  %1173 = vmatprep.subr.mxu0 0.0
  %1174 = vmatpush2.msra.mxu0 0.0
  %1175 = vmatprep.subr.mxu0 0.0
  %1176 = vmatpush2.msra.mxu0 0.0
  %1177 = vmatprep.mubr.f32.mxu0 0.0
  %1178 = vmatmul.mubr.f32.gmra.mxu0 %v1111
  %v1179 = vpop.f32.mrf.mxu0
  %v1180 = vadd.f32 %v1108, %v1179
  %v1181 = vpop.f32.mrf.mxu0
  %1182 = vdwg.mxu0
  %v1184 = vrot.slane %v1034, 2
  %v1185 = vrot.slane %v1035, 2
  %v1186 = vsel %vm427, %v1184, %v1185
  %v1187 = vsel %vm1038, %v1186, 0
  %1189 = vmatprep.subr.mxu0 0.0
  %1190 = vmatpush1.msra.mxu0 0.0
  %1191 = vmatprep.subr.mxu0 0.0
  %1192 = vmatpush1.msra.mxu0 0.0
  %1193 = vmatprep.subr.mxu0 0.0
  %1194 = vmatpush1.msra.mxu0 0.0
  %1195 = vmatprep.subr.mxu0 0.0
  %1196 = vmatpush1.msra.mxu0 %v150
  %1197 = vmatprep.subr.mxu0 0.0
  %1198 = vmatpush1.msra.mxu0 %v149
  %1199 = vmatprep.subr.mxu0 0.0
  %1200 = vmatpush1.msra.mxu0 %v148
  %1201 = vmatprep.subr.mxu0 0.0
  %1202 = vmatpush1.msra.mxu0 %v147
  %1203 = vmatprep.subr.mxu0 0.0
  %1204 = vmatpush1.msra.mxu0 %v146
  %1205 = vmatprep.subr.mxu0 0.0
  %1206 = vmatpush1.msra.mxu0 %v145
  %1207 = vmatprep.subr.mxu0 0.0
  %1208 = vmatpush1.msra.mxu0 %v144
  %1209 = vmatprep.subr.mxu0 0.0
  %1210 = vmatpush1.msra.mxu0 %v143
  %1211 = vmatprep.subr.mxu0 0.0
  %1212 = vmatpush1.msra.mxu0 %v142
  %1213 = vmatprep.subr.mxu0 0.0
  %1214 = vmatpush1.msra.mxu0 %v141
  %1215 = vmatprep.subr.mxu0 0.0
  %1216 = vmatpush1.msra.mxu0 %v140
  %1217 = vmatprep.subr.mxu0 0.0
  %1218 = vmatpush1.msra.mxu0 %v139
  %1219 = vmatprep.subr.mxu0 0.0
  %1220 = vmatpush1.msra.mxu0 %v138
  %1221 = vmatprep.subr.mxu0 0.0
  %1222 = vmatpush2.msra.mxu0 0.0
  %1223 = vmatprep.subr.mxu0 0.0
  %1224 = vmatpush2.msra.mxu0 0.0
  %1225 = vmatprep.subr.mxu0 0.0
  %1226 = vmatpush2.msra.mxu0 0.0
  %1227 = vmatprep.subr.mxu0 0.0
  %1228 = vmatpush2.msra.mxu0 0.0
  %1229 = vmatprep.subr.mxu0 0.0
  %1230 = vmatpush2.msra.mxu0 0.0
  %1231 = vmatprep.subr.mxu0 0.0
  %1232 = vmatpush2.msra.mxu0 0.0
  %1233 = vmatprep.subr.mxu0 0.0
  %1234 = vmatpush2.msra.mxu0 0.0
  %1235 = vmatprep.subr.mxu0 0.0
  %1236 = vmatpush2.msra.mxu0 0.0
  %1237 = vmatprep.subr.mxu0 0.0
  %1238 = vmatpush2.msra.mxu0 0.0
  %1239 = vmatprep.subr.mxu0 0.0
  %1240 = vmatpush2.msra.mxu0 0.0
  %1241 = vmatprep.subr.mxu0 0.0
  %1242 = vmatpush2.msra.mxu0 0.0
  %1243 = vmatprep.subr.mxu0 0.0
  %1244 = vmatpush2.msra.mxu0 0.0
  %1245 = vmatprep.subr.mxu0 0.0
  %1246 = vmatpush2.msra.mxu0 0.0
  %1247 = vmatprep.subr.mxu0 0.0
  %1248 = vmatpush2.msra.mxu0 0.0
  %1249 = vmatprep.subr.mxu0 0.0
  %1250 = vmatpush2.msra.mxu0 0.0
  %1251 = vmatprep.subr.mxu0 0.0
  %1252 = vmatpush2.msra.mxu0 0.0
  %1253 = vmatprep.mubr.f32.mxu0 0.0
  %1254 = vmatmul.mubr.f32.gmra.mxu0 %v1187
  %v1255 = vpop.f32.mrf.mxu0
  %v1256 = vadd.f32 0.0, %v1255
  %v1257 = vpop.f32.mrf.mxu0
  %1258 = vdwg.mxu0
  %v1259 = vadd.f32 %v1180, %v1256
  %v1261 = vlaneseq
  %v1262 = vshrl.u32 %v1261, 7
  %v1263 = vsub.s32 0, %v1262
  %v1264 = vrot.slane %v151, %v1263
  %v1266 = vadd.f32 %v1259, %v1264
  %v1267 = vmax.f32 %v1266, 0.0
  %s1268 = scalar_lea.vmem %s0, 32
  %v1269 = vld [vmem:[%s1268] sm:$0xff]
  %v1270 = vld [vmem:[%s1268 + $0x8] sm:$0xff]
  %v1271 = vld [vmem:[%s1268 + $0x10] sm:$0xff]
  %v1272 = vld [vmem:[%s1268 + $0x18] sm:$0x3f]
  %v1277 = vrot.slane %v1269, 1
  %v1278 = vrot.slane %v1270, 1
  %v1279 = vsel %vm225, %v1277, %v1278
  %v1280 = vrot.slane %v1271, 1
  %v1281 = vsel %vm225, %v1278, %v1280
  %v1282 = vrot.slane %v1272, 1
  %v1283 = vsel %vm225, %v1280, %v1282
  %v1284 = vsel %vm233, %v1279, 0
  %v1286 = vsel %vm233, %v1281, 0
  %v1288 = vsel %vm233, %v1283, 0
  %v1290 = vsel %vm233, %v1282, 0
  %1292 = vmatprep.subr.mxu0 0.0
  %1293 = vmatpush1.msra.mxu0 0.0
  %1294 = vmatprep.subr.mxu0 0.0
  %1295 = vmatpush1.msra.mxu0 0.0
  %1296 = vmatprep.subr.mxu0 0.0
  %1297 = vmatpush1.msra.mxu0 0.0
  %1298 = vmatprep.subr.mxu0 0.0
  %1299 = vmatpush1.msra.mxu0 0.0
  %1300 = vmatprep.subr.mxu0 0.0
  %1301 = vmatpush1.msra.mxu0 0.0
  %1302 = vmatprep.subr.mxu0 0.0
  %1303 = vmatpush1.msra.mxu0 0.0
  %1304 = vmatprep.subr.mxu0 0.0
  %1305 = vmatpush1.msra.mxu0 0.0
  %1306 = vmatprep.subr.mxu0 0.0
  %1307 = vmatpush1.msra.mxu0 0.0
  %1308 = vmatprep.subr.mxu0 0.0
  %1309 = vmatpush1.msra.mxu0 0.0
  %1310 = vmatprep.subr.mxu0 0.0
  %1311 = vmatpush1.msra.mxu0 0.0
  %1312 = vmatprep.subr.mxu0 0.0
  %1313 = vmatpush1.msra.mxu0 0.0
  %1314 = vmatprep.subr.mxu0 0.0
  %1315 = vmatpush1.msra.mxu0 0.0
  %1316 = vmatprep.subr.mxu0 0.0
  %1317 = vmatpush1.msra.mxu0 %v244
  %1318 = vmatprep.subr.mxu0 0.0
  %1319 = vmatpush1.msra.mxu0 %v57
  %1320 = vmatprep.subr.mxu0 0.0
  %1321 = vmatpush1.msra.mxu0 %v56
  %1322 = vmatprep.subr.mxu0 0.0
  %1323 = vmatpush1.msra.mxu0 %v55
  %1324 = vmatprep.subr.mxu0 0.0
  %1325 = vmatpush2.msra.mxu0 0.0
  %1326 = vmatprep.subr.mxu0 0.0
  %1327 = vmatpush2.msra.mxu0 0.0
  %1328 = vmatprep.subr.mxu0 0.0
  %1329 = vmatpush2.msra.mxu0 0.0
  %1330 = vmatprep.subr.mxu0 0.0
  %1331 = vmatpush2.msra.mxu0 0.0
  %1332 = vmatprep.subr.mxu0 0.0
  %1333 = vmatpush2.msra.mxu0 0.0
  %1334 = vmatprep.subr.mxu0 0.0
  %1335 = vmatpush2.msra.mxu0 0.0
  %1336 = vmatprep.subr.mxu0 0.0
  %1337 = vmatpush2.msra.mxu0 0.0
  %1338 = vmatprep.subr.mxu0 0.0
  %1339 = vmatpush2.msra.mxu0 0.0
  %1340 = vmatprep.subr.mxu0 0.0
  %1341 = vmatpush2.msra.mxu0 0.0
  %1342 = vmatprep.subr.mxu0 0.0
  %1343 = vmatpush2.msra.mxu0 0.0
  %1344 = vmatprep.subr.mxu0 0.0
  %1345 = vmatpush2.msra.mxu0 0.0
  %1346 = vmatprep.subr.mxu0 0.0
  %1347 = vmatpush2.msra.mxu0 0.0
  %1348 = vmatprep.subr.mxu0 0.0
  %1349 = vmatpush2.msra.mxu0 0.0
  %1350 = vmatprep.subr.mxu0 0.0
  %1351 = vmatpush2.msra.mxu0 0.0
  %1352 = vmatprep.subr.mxu0 0.0
  %1353 = vmatpush2.msra.mxu0 0.0
  %1354 = vmatprep.subr.mxu0 0.0
  %1355 = vmatpush2.msra.mxu0 0.0
  %1356 = vmatprep.mubr.f32.mxu0 0.0
  %1357 = vmatmul.mubr.f32.gmra.mxu0 %v1284
  %v1358 = vpop.f32.mrf.mxu0
  %v1359 = vadd.f32 0.0, %v1358
  %v1360 = vpop.f32.mrf.mxu0
  %1361 = vmatprep.mubr.f32.mxu0 0.0
  %1362 = vmatmul.mubr.f32.gmra.mxu0 %v1286
  %v1363 = vpop.f32.mrf.mxu0
  %v1364 = vadd.f32 0.0, %v1363
  %v1365 = vpop.f32.mrf.mxu0
  %1366 = vmatprep.mubr.f32.mxu0 0.0
  %1367 = vmatmul.mubr.f32.gmra.mxu0 %v1288
  %v1368 = vpop.f32.mrf.mxu0
  %v1369 = vadd.f32 0.0, %v1368
  %v1370 = vpop.f32.mrf.mxu0
  %1371 = vmatprep.mubr.f32.mxu0 0.0
  %1372 = vmatmul.mubr.f32.gmra.mxu0 %v1290
  %v1373 = vpop.f32.mrf.mxu0
  %v1374 = vadd.f32 0.0, %v1373
  %v1375 = vpop.f32.mrf.mxu0
  %1376 = vdwg.mxu0
  %v1377 = vsel %vm233, %v1269, 0
  %v1379 = vsel %vm233, %v1270, 0
  %v1381 = vsel %vm233, %v1271, 0
  %v1383 = vsel %vm233, %v1272, 0
  %1385 = vmatprep.subr.mxu0 0.0
  %1386 = vmatpush1.msra.mxu0 0.0
  %1387 = vmatprep.subr.mxu0 0.0
  %1388 = vmatpush1.msra.mxu0 0.0
  %1389 = vmatprep.subr.mxu0 0.0
  %1390 = vmatpush1.msra.mxu0 0.0
  %1391 = vmatprep.subr.mxu0 0.0
  %1392 = vmatpush1.msra.mxu0 0.0
  %1393 = vmatprep.subr.mxu0 0.0
  %1394 = vmatpush1.msra.mxu0 0.0
  %1395 = vmatprep.subr.mxu0 0.0
  %1396 = vmatpush1.msra.mxu0 0.0
  %1397 = vmatprep.subr.mxu0 0.0
  %1398 = vmatpush1.msra.mxu0 0.0
  %1399 = vmatprep.subr.mxu0 0.0
  %1400 = vmatpush1.msra.mxu0 0.0
  %1401 = vmatprep.subr.mxu0 0.0
  %1402 = vmatpush1.msra.mxu0 0.0
  %1403 = vmatprep.subr.mxu0 0.0
  %1404 = vmatpush1.msra.mxu0 0.0
  %1405 = vmatprep.subr.mxu0 0.0
  %1406 = vmatpush1.msra.mxu0 0.0
  %1407 = vmatprep.subr.mxu0 0.0
  %1408 = vmatpush1.msra.mxu0 0.0
  %1409 = vmatprep.subr.mxu0 0.0
  %1410 = vmatpush1.msra.mxu0 %v340
  %1411 = vmatprep.subr.mxu0 0.0
  %1412 = vmatpush1.msra.mxu0 %v52
  %1413 = vmatprep.subr.mxu0 0.0
  %1414 = vmatpush1.msra.mxu0 %v51
  %1415 = vmatprep.subr.mxu0 0.0
  %1416 = vmatpush1.msra.mxu0 %v50
  %1417 = vmatprep.subr.mxu0 0.0
  %1418 = vmatpush2.msra.mxu0 0.0
  %1419 = vmatprep.subr.mxu0 0.0
  %1420 = vmatpush2.msra.mxu0 0.0
  %1421 = vmatprep.subr.mxu0 0.0
  %1422 = vmatpush2.msra.mxu0 0.0
  %1423 = vmatprep.subr.mxu0 0.0
  %1424 = vmatpush2.msra.mxu0 0.0
  %1425 = vmatprep.subr.mxu0 0.0
  %1426 = vmatpush2.msra.mxu0 0.0
  %1427 = vmatprep.subr.mxu0 0.0
  %1428 = vmatpush2.msra.mxu0 0.0
  %1429 = vmatprep.subr.mxu0 0.0
  %1430 = vmatpush2.msra.mxu0 0.0
  %1431 = vmatprep.subr.mxu0 0.0
  %1432 = vmatpush2.msra.mxu0 0.0
  %1433 = vmatprep.subr.mxu0 0.0
  %1434 = vmatpush2.msra.mxu0 0.0
  %1435 = vmatprep.subr.mxu0 0.0
  %1436 = vmatpush2.msra.mxu0 0.0
  %1437 = vmatprep.subr.mxu0 0.0
  %1438 = vmatpush2.msra.mxu0 0.0
  %1439 = vmatprep.subr.mxu0 0.0
  %1440 = vmatpush2.msra.mxu0 0.0
  %1441 = vmatprep.subr.mxu0 0.0
  %1442 = vmatpush2.msra.mxu0 0.0
  %1443 = vmatprep.subr.mxu0 0.0
  %1444 = vmatpush2.msra.mxu0 0.0
  %1445 = vmatprep.subr.mxu0 0.0
  %1446 = vmatpush2.msra.mxu0 0.0
  %1447 = vmatprep.subr.mxu0 0.0
  %1448 = vmatpush2.msra.mxu0 0.0
  %1449 = vmatprep.mubr.f32.mxu0 0.0
  %1450 = vmatmul.mubr.f32.gmra.mxu0 %v1377
  %v1451 = vpop.f32.mrf.mxu0
  %v1452 = vadd.f32 %v1359, %v1451
  %v1453 = vpop.f32.mrf.mxu0
  %1454 = vmatprep.mubr.f32.mxu0 0.0
  %1455 = vmatmul.mubr.f32.gmra.mxu0 %v1379
  %v1456 = vpop.f32.mrf.mxu0
  %v1457 = vadd.f32 %v1364, %v1456
  %v1458 = vpop.f32.mrf.mxu0
  %1459 = vmatprep.mubr.f32.mxu0 0.0
  %1460 = vmatmul.mubr.f32.gmra.mxu0 %v1381
  %v1461 = vpop.f32.mrf.mxu0
  %v1462 = vadd.f32 %v1369, %v1461
  %v1463 = vpop.f32.mrf.mxu0
  %1464 = vmatprep.mubr.f32.mxu0 0.0
  %1465 = vmatmul.mubr.f32.gmra.mxu0 %v1383
  %v1466 = vpop.f32.mrf.mxu0
  %v1467 = vadd.f32 %v1374, %v1466
  %v1468 = vpop.f32.mrf.mxu0
  %1469 = vdwg.mxu0
  %v1470 = vrot.slane %v1269, 2
  %v1471 = vrot.slane %v1270, 2
  %v1472 = vsel %vm427, %v1470, %v1471
  %v1473 = vrot.slane %v1271, 2
  %v1474 = vsel %vm427, %v1471, %v1473
  %v1475 = vrot.slane %v1272, 2
  %v1476 = vsel %vm427, %v1473, %v1475
  %v1477 = vsel %vm233, %v1472, 0
  %v1479 = vsel %vm233, %v1474, 0
  %v1481 = vsel %vm233, %v1476, 0
  %v1483 = vsel %vm233, %v1475, 0
  %1485 = vmatprep.subr.mxu0 0.0
  %1486 = vmatpush1.msra.mxu0 0.0
  %1487 = vmatprep.subr.mxu0 0.0
  %1488 = vmatpush1.msra.mxu0 0.0
  %1489 = vmatprep.subr.mxu0 0.0
  %1490 = vmatpush1.msra.mxu0 0.0
  %1491 = vmatprep.subr.mxu0 0.0
  %1492 = vmatpush1.msra.mxu0 0.0
  %1493 = vmatprep.subr.mxu0 0.0
  %1494 = vmatpush1.msra.mxu0 0.0
  %1495 = vmatprep.subr.mxu0 0.0
  %1496 = vmatpush1.msra.mxu0 0.0
  %1497 = vmatprep.subr.mxu0 0.0
  %1498 = vmatpush1.msra.mxu0 0.0
  %1499 = vmatprep.subr.mxu0 0.0
  %1500 = vmatpush1.msra.mxu0 0.0
  %1501 = vmatprep.subr.mxu0 0.0
  %1502 = vmatpush1.msra.mxu0 0.0
  %1503 = vmatprep.subr.mxu0 0.0
  %1504 = vmatpush1.msra.mxu0 0.0
  %1505 = vmatprep.subr.mxu0 0.0
  %1506 = vmatpush1.msra.mxu0 0.0
  %1507 = vmatprep.subr.mxu0 0.0
  %1508 = vmatpush1.msra.mxu0 0.0
  %1509 = vmatprep.subr.mxu0 0.0
  %1510 = vmatpush1.msra.mxu0 %v444
  %1511 = vmatprep.subr.mxu0 0.0
  %1512 = vmatpush1.msra.mxu0 %v62
  %1513 = vmatprep.subr.mxu0 0.0
  %1514 = vmatpush1.msra.mxu0 %v61
  %1515 = vmatprep.subr.mxu0 0.0
  %1516 = vmatpush1.msra.mxu0 %v60
  %1517 = vmatprep.subr.mxu0 0.0
  %1518 = vmatpush2.msra.mxu0 0.0
  %1519 = vmatprep.subr.mxu0 0.0
  %1520 = vmatpush2.msra.mxu0 0.0
  %1521 = vmatprep.subr.mxu0 0.0
  %1522 = vmatpush2.msra.mxu0 0.0
  %1523 = vmatprep.subr.mxu0 0.0
  %1524 = vmatpush2.msra.mxu0 0.0
  %1525 = vmatprep.subr.mxu0 0.0
  %1526 = vmatpush2.msra.mxu0 0.0
  %1527 = vmatprep.subr.mxu0 0.0
  %1528 = vmatpush2.msra.mxu0 0.0
  %1529 = vmatprep.subr.mxu0 0.0
  %1530 = vmatpush2.msra.mxu0 0.0
  %1531 = vmatprep.subr.mxu0 0.0
  %1532 = vmatpush2.msra.mxu0 0.0
  %1533 = vmatprep.subr.mxu0 0.0
  %1534 = vmatpush2.msra.mxu0 0.0
  %1535 = vmatprep.subr.mxu0 0.0
  %1536 = vmatpush2.msra.mxu0 0.0
  %1537 = vmatprep.subr.mxu0 0.0
  %1538 = vmatpush2.msra.mxu0 0.0
  %1539 = vmatprep.subr.mxu0 0.0
  %1540 = vmatpush2.msra.mxu0 0.0
  %1541 = vmatprep.subr.mxu0 0.0
  %1542 = vmatpush2.msra.mxu0 0.0
  %1543 = vmatprep.subr.mxu0 0.0
  %1544 = vmatpush2.msra.mxu0 0.0
  %1545 = vmatprep.subr.mxu0 0.0
  %1546 = vmatpush2.msra.mxu0 0.0
  %1547 = vmatprep.subr.mxu0 0.0
  %1548 = vmatpush2.msra.mxu0 0.0
  %1549 = vmatprep.mubr.f32.mxu0 0.0
  %1550 = vmatmul.mubr.f32.gmra.mxu0 %v1477
  %v1551 = vpop.f32.mrf.mxu0
  %v1552 = vadd.f32 0.0, %v1551
  %v1553 = vpop.f32.mrf.mxu0
  %1554 = vmatprep.mubr.f32.mxu0 0.0
  %1555 = vmatmul.mubr.f32.gmra.mxu0 %v1479
  %v1556 = vpop.f32.mrf.mxu0
  %v1557 = vadd.f32 0.0, %v1556
  %v1558 = vpop.f32.mrf.mxu0
  %1559 = vmatprep.mubr.f32.mxu0 0.0
  %1560 = vmatmul.mubr.f32.gmra.mxu0 %v1481
  %v1561 = vpop.f32.mrf.mxu0
  %v1562 = vadd.f32 0.0, %v1561
  %v1563 = vpop.f32.mrf.mxu0
  %1564 = vmatprep.mubr.f32.mxu0 0.0
  %1565 = vmatmul.mubr.f32.gmra.mxu0 %v1483
  %v1566 = vpop.f32.mrf.mxu0
  %v1567 = vadd.f32 0.0, %v1566
  %v1568 = vpop.f32.mrf.mxu0
  %1569 = vdwg.mxu0
  %v1570 = vadd.f32 %v1452, %v1552
  %v1571 = vadd.f32 %v1457, %v1557
  %v1572 = vadd.f32 %v1462, %v1562
  %v1573 = vadd.f32 %v1467, %v1567
  %v1574 = vadd.f32 %v1570, %v539
  %v1575 = vadd.f32 %v1571, %v539
  %v1576 = vadd.f32 %v1572, %v539
  %v1577 = vadd.f32 %v1573, %v539
  %v1578 = vmax.f32 %v1574, 0.0
  %v1579 = vmax.f32 %v1575, 0.0
  %v1580 = vmax.f32 %v1576, 0.0
  %v1581 = vmax.f32 %v1577, 0.0
  %v1586 = vrot.slane %v1578, 1
  %v1587 = vrot.slane %v1579, 1
  %v1588 = vsel %vm225, %v1586, %v1587
  %v1589 = vrot.slane %v1580, 1
  %v1590 = vsel %vm225, %v1587, %v1589
  %v1591 = vrot.slane %v1581, 1
  %v1592 = vsel %vm225, %v1589, %v1591
  %v1597 = vmax.f32 %v1578, %v1588
  %v1598 = vmax.f32 %v1579, %v1590
  %v1599 = vmax.f32 %v1580, %v1592
  %v1600 = vmax.f32 %v1581, %v1591
  %v1602 = vsel %vm575, %v1600, 0
  %1604 = vmatprep.subr.mxu0 0.0
  %1605 = vmatpush1.msra.mxu0 0.0
  %1606 = vmatprep.subr.mxu0 0.0
  %1607 = vmatpush1.msra.mxu0 0.0
  %1608 = vmatprep.subr.mxu0 0.0
  %1609 = vmatpush1.msra.mxu0 0.0
  %1610 = vmatprep.subr.mxu0 0.0
  %1611 = vmatpush1.msra.mxu0 0.0
  %1612 = vmatprep.subr.mxu0 0.0
  %1613 = vmatpush1.msra.mxu0 0.0
  %1614 = vmatprep.subr.mxu0 0.0
  %1615 = vmatpush1.msra.mxu0 0.0
  %1616 = vmatprep.subr.mxu0 0.0
  %1617 = vmatpush1.msra.mxu0 0.0
  %1618 = vmatprep.subr.mxu0 0.0
  %1619 = vmatpush1.msra.mxu0 0.0
  %1620 = vmatprep.subr.mxu0 0.0
  %1621 = vmatpush1.msra.mxu0 0.0
  %1622 = vmatprep.subr.mxu0 0.0
  %1623 = vmatpush1.msra.mxu0 0.0
  %1624 = vmatprep.subr.mxu0 0.0
  %1625 = vmatpush1.msra.mxu0 0.0
  %1626 = vmatprep.subr.mxu0 0.0
  %1627 = vmatpush1.msra.mxu0 0.0
  %1628 = vmatprep.subr.mxu0 0.0
  %1629 = vmatpush1.msra.mxu0 %v1602
  %1630 = vmatprep.subr.mxu0 0.0
  %1631 = vmatpush1.msra.mxu0 %v1599
  %1632 = vmatprep.subr.mxu0 0.0
  %1633 = vmatpush1.msra.mxu0 %v1598
  %1634 = vmatprep.subr.mxu0 0.0
  %1635 = vmatpush1.msra.mxu0 %v1597
  %1636 = vmatprep.subr.mxu0 0.0
  %1637 = vmatpush2.msra.mxu0 0.0
  %1638 = vmatprep.subr.mxu0 0.0
  %1639 = vmatpush2.msra.mxu0 0.0
  %1640 = vmatprep.subr.mxu0 0.0
  %1641 = vmatpush2.msra.mxu0 0.0
  %1642 = vmatprep.subr.mxu0 0.0
  %1643 = vmatpush2.msra.mxu0 0.0
  %1644 = vmatprep.subr.mxu0 0.0
  %1645 = vmatpush2.msra.mxu0 0.0
  %1646 = vmatprep.subr.mxu0 0.0
  %1647 = vmatpush2.msra.mxu0 0.0
  %1648 = vmatprep.subr.mxu0 0.0
  %1649 = vmatpush2.msra.mxu0 0.0
  %1650 = vmatprep.subr.mxu0 0.0
  %1651 = vmatpush2.msra.mxu0 0.0
  %1652 = vmatprep.subr.mxu0 0.0
  %1653 = vmatpush2.msra.mxu0 0.0
  %1654 = vmatprep.subr.mxu0 0.0
  %1655 = vmatpush2.msra.mxu0 0.0
  %1656 = vmatprep.subr.mxu0 0.0
  %1657 = vmatpush2.msra.mxu0 0.0
  %1658 = vmatprep.subr.mxu0 0.0
  %1659 = vmatpush2.msra.mxu0 0.0
  %1660 = vmatprep.subr.mxu0 0.0
  %1661 = vmatpush2.msra.mxu0 0.0
  %1662 = vmatprep.subr.mxu0 0.0
  %1663 = vmatpush2.msra.mxu0 0.0
  %1664 = vmatprep.subr.mxu0 0.0
  %1665 = vmatpush2.msra.mxu0 0.0
  %1666 = vmatprep.subr.mxu0 0.0
  %1667 = vmatpush2.msra.mxu0 0.0
  %1668 = vmatprep.mubr.f32.mxu0 0.0
  %1669 = vmatmul.mubr.f32.gmra.mxu0 %v570
  %v1670 = vpop.f32.mrf.mxu0
  %v1671 = vadd.f32 0.0, %v1670
  %v1672 = vpop.f32.mrf.mxu0
  %1673 = vmatprep.mubr.f32.mxu0 0.0
  %1674 = vmatmul.mubr.f32.gmra.mxu0 %v573
  %v1675 = vpop.f32.mrf.mxu0
  %v1676 = vadd.f32 0.0, %v1675
  %v1677 = vpop.f32.mrf.mxu0
  %1678 = vdwg.mxu0
  %1681 = vrot.lane.b32.xlu0 %v1671, 124
  %v1682 = vpop.permute.xlu0 %1681
  %1683 = vrot.lane.b32.xlu0 %v1676, 124
  %v1684 = vpop.permute.xlu0 %1683
  %v1687 = vmax.f32 %v1671, %v1682
  %v1688 = vmax.f32 %v1676, %v1684
  %v1691 = vrot.slane %v1687, 1
  %v1692 = vrot.slane %v1688, 1
  %v1693 = vsel %vm225, %v1691, %v1692
  %v1694 = vsel %vm669, %v1693, 0
  %v1696 = vsel %vm669, %v1692, 0
  %1698 = vmatprep.subr.mxu0 0.0
  %1699 = vmatpush1.msra.mxu0 0.0
  %1700 = vmatprep.subr.mxu0 0.0
  %1701 = vmatpush1.msra.mxu0 0.0
  %1702 = vmatprep.subr.mxu0 0.0
  %1703 = vmatpush1.msra.mxu0 %v675
  %1704 = vmatprep.subr.mxu0 0.0
  %1705 = vmatpush1.msra.mxu0 %v92
  %1706 = vmatprep.subr.mxu0 0.0
  %1707 = vmatpush1.msra.mxu0 %v91
  %1708 = vmatprep.subr.mxu0 0.0
  %1709 = vmatpush1.msra.mxu0 %v90
  %1710 = vmatprep.subr.mxu0 0.0
  %1711 = vmatpush1.msra.mxu0 %v89
  %1712 = vmatprep.subr.mxu0 0.0
  %1713 = vmatpush1.msra.mxu0 %v88
  %1714 = vmatprep.subr.mxu0 0.0
  %1715 = vmatpush1.msra.mxu0 %v87
  %1716 = vmatprep.subr.mxu0 0.0
  %1717 = vmatpush1.msra.mxu0 %v86
  %1718 = vmatprep.subr.mxu0 0.0
  %1719 = vmatpush1.msra.mxu0 %v85
  %1720 = vmatprep.subr.mxu0 0.0
  %1721 = vmatpush1.msra.mxu0 %v84
  %1722 = vmatprep.subr.mxu0 0.0
  %1723 = vmatpush1.msra.mxu0 %v83
  %1724 = vmatprep.subr.mxu0 0.0
  %1725 = vmatpush1.msra.mxu0 %v82
  %1726 = vmatprep.subr.mxu0 0.0
  %1727 = vmatpush1.msra.mxu0 %v81
  %1728 = vmatprep.subr.mxu0 0.0
  %1729 = vmatpush1.msra.mxu0 %v80
  %1730 = vmatprep.subr.mxu0 0.0
  %1731 = vmatpush2.msra.mxu0 0.0
  %1732 = vmatprep.subr.mxu0 0.0
  %1733 = vmatpush2.msra.mxu0 0.0
  %1734 = vmatprep.subr.mxu0 0.0
  %1735 = vmatpush2.msra.mxu0 0.0
  %1736 = vmatprep.subr.mxu0 0.0
  %1737 = vmatpush2.msra.mxu0 0.0
  %1738 = vmatprep.subr.mxu0 0.0
  %1739 = vmatpush2.msra.mxu0 0.0
  %1740 = vmatprep.subr.mxu0 0.0
  %1741 = vmatpush2.msra.mxu0 0.0
  %1742 = vmatprep.subr.mxu0 0.0
  %1743 = vmatpush2.msra.mxu0 0.0
  %1744 = vmatprep.subr.mxu0 0.0
  %1745 = vmatpush2.msra.mxu0 0.0
  %1746 = vmatprep.subr.mxu0 0.0
  %1747 = vmatpush2.msra.mxu0 0.0
  %1748 = vmatprep.subr.mxu0 0.0
  %1749 = vmatpush2.msra.mxu0 0.0
  %1750 = vmatprep.subr.mxu0 0.0
  %1751 = vmatpush2.msra.mxu0 0.0
  %1752 = vmatprep.subr.mxu0 0.0
  %1753 = vmatpush2.msra.mxu0 0.0
  %1754 = vmatprep.subr.mxu0 0.0
  %1755 = vmatpush2.msra.mxu0 0.0
  %1756 = vmatprep.subr.mxu0 0.0
  %1757 = vmatpush2.msra.mxu0 0.0
  %1758 = vmatprep.subr.mxu0 0.0
  %1759 = vmatpush2.msra.mxu0 0.0
  %1760 = vmatprep.subr.mxu0 0.0
  %1761 = vmatpush2.msra.mxu0 0.0
  %1762 = vmatprep.mubr.f32.mxu0 0.0
  %1763 = vmatmul.mubr.f32.gmra.mxu0 %v1694
  %v1764 = vpop.f32.mrf.mxu0
  %v1765 = vadd.f32 0.0, %v1764
  %v1766 = vpop.f32.mrf.mxu0
  %1767 = vmatprep.mubr.f32.mxu0 0.0
  %1768 = vmatmul.mubr.f32.gmra.mxu0 %v1696
  %v1769 = vpop.f32.mrf.mxu0
  %v1770 = vadd.f32 0.0, %v1769
  %v1771 = vpop.f32.mrf.mxu0
  %1772 = vdwg.mxu0
  %v1773 = vsel %vm669, %v1687, 0
  %v1775 = vsel %vm669, %v1688, 0
  %1777 = vmatprep.subr.mxu0 0.0
  %1778 = vmatpush1.msra.mxu0 0.0
  %1779 = vmatprep.subr.mxu0 0.0
  %1780 = vmatpush1.msra.mxu0 0.0
  %1781 = vmatprep.subr.mxu0 0.0
  %1782 = vmatpush1.msra.mxu0 %v757
  %1783 = vmatprep.subr.mxu0 0.0
  %1784 = vmatpush1.msra.mxu0 %v77
  %1785 = vmatprep.subr.mxu0 0.0
  %1786 = vmatpush1.msra.mxu0 %v76
  %1787 = vmatprep.subr.mxu0 0.0
  %1788 = vmatpush1.msra.mxu0 %v75
  %1789 = vmatprep.subr.mxu0 0.0
  %1790 = vmatpush1.msra.mxu0 %v74
  %1791 = vmatprep.subr.mxu0 0.0
  %1792 = vmatpush1.msra.mxu0 %v73
  %1793 = vmatprep.subr.mxu0 0.0
  %1794 = vmatpush1.msra.mxu0 %v72
  %1795 = vmatprep.subr.mxu0 0.0
  %1796 = vmatpush1.msra.mxu0 %v71
  %1797 = vmatprep.subr.mxu0 0.0
  %1798 = vmatpush1.msra.mxu0 %v70
  %1799 = vmatprep.subr.mxu0 0.0
  %1800 = vmatpush1.msra.mxu0 %v69
  %1801 = vmatprep.subr.mxu0 0.0
  %1802 = vmatpush1.msra.mxu0 %v68
  %1803 = vmatprep.subr.mxu0 0.0
  %1804 = vmatpush1.msra.mxu0 %v67
  %1805 = vmatprep.subr.mxu0 0.0
  %1806 = vmatpush1.msra.mxu0 %v66
  %1807 = vmatprep.subr.mxu0 0.0
  %1808 = vmatpush1.msra.mxu0 %v65
  %1809 = vmatprep.subr.mxu0 0.0
  %1810 = vmatpush2.msra.mxu0 0.0
  %1811 = vmatprep.subr.mxu0 0.0
  %1812 = vmatpush2.msra.mxu0 0.0
  %1813 = vmatprep.subr.mxu0 0.0
  %1814 = vmatpush2.msra.mxu0 0.0
  %1815 = vmatprep.subr.mxu0 0.0
  %1816 = vmatpush2.msra.mxu0 0.0
  %1817 = vmatprep.subr.mxu0 0.0
  %1818 = vmatpush2.msra.mxu0 0.0
  %1819 = vmatprep.subr.mxu0 0.0
  %1820 = vmatpush2.msra.mxu0 0.0
  %1821 = vmatprep.subr.mxu0 0.0
  %1822 = vmatpush2.msra.mxu0 0.0
  %1823 = vmatprep.subr.mxu0 0.0
  %1824 = vmatpush2.msra.mxu0 0.0
  %1825 = vmatprep.subr.mxu0 0.0
  %1826 = vmatpush2.msra.mxu0 0.0
  %1827 = vmatprep.subr.mxu0 0.0
  %1828 = vmatpush2.msra.mxu0 0.0
  %1829 = vmatprep.subr.mxu0 0.0
  %1830 = vmatpush2.msra.mxu0 0.0
  %1831 = vmatprep.subr.mxu0 0.0
  %1832 = vmatpush2.msra.mxu0 0.0
  %1833 = vmatprep.subr.mxu0 0.0
  %1834 = vmatpush2.msra.mxu0 0.0
  %1835 = vmatprep.subr.mxu0 0.0
  %1836 = vmatpush2.msra.mxu0 0.0
  %1837 = vmatprep.subr.mxu0 0.0
  %1838 = vmatpush2.msra.mxu0 0.0
  %1839 = vmatprep.subr.mxu0 0.0
  %1840 = vmatpush2.msra.mxu0 0.0
  %1841 = vmatprep.mubr.f32.mxu0 0.0
  %1842 = vmatmul.mubr.f32.gmra.mxu0 %v1773
  %v1843 = vpop.f32.mrf.mxu0
  %v1844 = vadd.f32 %v1765, %v1843
  %v1845 = vpop.f32.mrf.mxu0
  %1846 = vmatprep.mubr.f32.mxu0 0.0
  %1847 = vmatmul.mubr.f32.gmra.mxu0 %v1775
  %v1848 = vpop.f32.mrf.mxu0
  %v1849 = vadd.f32 %v1770, %v1848
  %v1850 = vpop.f32.mrf.mxu0
  %1851 = vdwg.mxu0
  %v1852 = vrot.slane %v1687, 2
  %v1853 = vrot.slane %v1688, 2
  %v1854 = vsel %vm427, %v1852, %v1853
  %v1855 = vsel %vm669, %v1854, 0
  %v1857 = vsel %vm669, %v1853, 0
  %1859 = vmatprep.subr.mxu0 0.0
  %1860 = vmatpush1.msra.mxu0 0.0
  %1861 = vmatprep.subr.mxu0 0.0
  %1862 = vmatpush1.msra.mxu0 0.0
  %1863 = vmatprep.subr.mxu0 0.0
  %1864 = vmatpush1.msra.mxu0 %v842
  %1865 = vmatprep.subr.mxu0 0.0
  %1866 = vmatpush1.msra.mxu0 %v107
  %1867 = vmatprep.subr.mxu0 0.0
  %1868 = vmatpush1.msra.mxu0 %v106
  %1869 = vmatprep.subr.mxu0 0.0
  %1870 = vmatpush1.msra.mxu0 %v105
  %1871 = vmatprep.subr.mxu0 0.0
  %1872 = vmatpush1.msra.mxu0 %v104
  %1873 = vmatprep.subr.mxu0 0.0
  %1874 = vmatpush1.msra.mxu0 %v103
  %1875 = vmatprep.subr.mxu0 0.0
  %1876 = vmatpush1.msra.mxu0 %v102
  %1877 = vmatprep.subr.mxu0 0.0
  %1878 = vmatpush1.msra.mxu0 %v101
  %1879 = vmatprep.subr.mxu0 0.0
  %1880 = vmatpush1.msra.mxu0 %v100
  %1881 = vmatprep.subr.mxu0 0.0
  %1882 = vmatpush1.msra.mxu0 %v99
  %1883 = vmatprep.subr.mxu0 0.0
  %1884 = vmatpush1.msra.mxu0 %v98
  %1885 = vmatprep.subr.mxu0 0.0
  %1886 = vmatpush1.msra.mxu0 %v97
  %1887 = vmatprep.subr.mxu0 0.0
  %1888 = vmatpush1.msra.mxu0 %v96
  %1889 = vmatprep.subr.mxu0 0.0
  %1890 = vmatpush1.msra.mxu0 %v95
  %1891 = vmatprep.subr.mxu0 0.0
  %1892 = vmatpush2.msra.mxu0 0.0
  %1893 = vmatprep.subr.mxu0 0.0
  %1894 = vmatpush2.msra.mxu0 0.0
  %1895 = vmatprep.subr.mxu0 0.0
  %1896 = vmatpush2.msra.mxu0 0.0
  %1897 = vmatprep.subr.mxu0 0.0
  %1898 = vmatpush2.msra.mxu0 0.0
  %1899 = vmatprep.subr.mxu0 0.0
  %1900 = vmatpush2.msra.mxu0 0.0
  %1901 = vmatprep.subr.mxu0 0.0
  %1902 = vmatpush2.msra.mxu0 0.0
  %1903 = vmatprep.subr.mxu0 0.0
  %1904 = vmatpush2.msra.mxu0 0.0
  %1905 = vmatprep.subr.mxu0 0.0
  %1906 = vmatpush2.msra.mxu0 0.0
  %1907 = vmatprep.subr.mxu0 0.0
  %1908 = vmatpush2.msra.mxu0 0.0
  %1909 = vmatprep.subr.mxu0 0.0
  %1910 = vmatpush2.msra.mxu0 0.0
  %1911 = vmatprep.subr.mxu0 0.0
  %1912 = vmatpush2.msra.mxu0 0.0
  %1913 = vmatprep.subr.mxu0 0.0
  %1914 = vmatpush2.msra.mxu0 0.0
  %1915 = vmatprep.subr.mxu0 0.0
  %1916 = vmatpush2.msra.mxu0 0.0
  %1917 = vmatprep.subr.mxu0 0.0
  %1918 = vmatpush2.msra.mxu0 0.0
  %1919 = vmatprep.subr.mxu0 0.0
  %1920 = vmatpush2.msra.mxu0 0.0
  %1921 = vmatprep.subr.mxu0 0.0
  %1922 = vmatpush2.msra.mxu0 0.0
  %1923 = vmatprep.mubr.f32.mxu0 0.0
  %1924 = vmatmul.mubr.f32.gmra.mxu0 %v1855
  %v1925 = vpop.f32.mrf.mxu0
  %v1926 = vadd.f32 0.0, %v1925
  %v1927 = vpop.f32.mrf.mxu0
  %1928 = vmatprep.mubr.f32.mxu0 0.0
  %1929 = vmatmul.mubr.f32.gmra.mxu0 %v1857
  %v1930 = vpop.f32.mrf.mxu0
  %v1931 = vadd.f32 0.0, %v1930
  %v1932 = vpop.f32.mrf.mxu0
  %1933 = vdwg.mxu0
  %v1934 = vadd.f32 %v1844, %v1926
  %v1935 = vadd.f32 %v1849, %v1931
  %v1936 = vadd.f32 %v1934, %v925
  %v1937 = vadd.f32 %v1935, %v925
  %v1938 = vmax.f32 %v1936, 0.0
  %v1939 = vmax.f32 %v1937, 0.0
  %v1942 = vrot.slane %v1938, 1
  %v1943 = vrot.slane %v1939, 1
  %v1944 = vsel %vm225, %v1942, %v1943
  %v1947 = vmax.f32 %v1938, %v1944
  %v1948 = vmax.f32 %v1939, %v1943
  %v1950 = vsel %vm947, %v1948, 0
  %1952 = vmatprep.subr.mxu0 0.0
  %1953 = vmatpush1.msra.mxu0 0.0
  %1954 = vmatprep.subr.mxu0 0.0
  %1955 = vmatpush1.msra.mxu0 0.0
  %1956 = vmatprep.subr.mxu0 0.0
  %1957 = vmatpush1.msra.mxu0 0.0
  %1958 = vmatprep.subr.mxu0 0.0
  %1959 = vmatpush1.msra.mxu0 0.0
  %1960 = vmatprep.subr.mxu0 0.0
  %1961 = vmatpush1.msra.mxu0 0.0
  %1962 = vmatprep.subr.mxu0 0.0
  %1963 = vmatpush1.msra.mxu0 0.0
  %1964 = vmatprep.subr.mxu0 0.0
  %1965 = vmatpush1.msra.mxu0 0.0
  %1966 = vmatprep.subr.mxu0 0.0
  %1967 = vmatpush1.msra.mxu0 0.0
  %1968 = vmatprep.subr.mxu0 0.0
  %1969 = vmatpush1.msra.mxu0 0.0
  %1970 = vmatprep.subr.mxu0 0.0
  %1971 = vmatpush1.msra.mxu0 0.0
  %1972 = vmatprep.subr.mxu0 0.0
  %1973 = vmatpush1.msra.mxu0 0.0
  %1974 = vmatprep.subr.mxu0 0.0
  %1975 = vmatpush1.msra.mxu0 0.0
  %1976 = vmatprep.subr.mxu0 0.0
  %1977 = vmatpush1.msra.mxu0 0.0
  %1978 = vmatprep.subr.mxu0 0.0
  %1979 = vmatpush1.msra.mxu0 0.0
  %1980 = vmatprep.subr.mxu0 0.0
  %1981 = vmatpush1.msra.mxu0 %v1950
  %1982 = vmatprep.subr.mxu0 0.0
  %1983 = vmatpush1.msra.mxu0 %v1947
  %1984 = vmatprep.subr.mxu0 0.0
  %1985 = vmatpush2.msra.mxu0 0.0
  %1986 = vmatprep.subr.mxu0 0.0
  %1987 = vmatpush2.msra.mxu0 0.0
  %1988 = vmatprep.subr.mxu0 0.0
  %1989 = vmatpush2.msra.mxu0 0.0
  %1990 = vmatprep.subr.mxu0 0.0
  %1991 = vmatpush2.msra.mxu0 0.0
  %1992 = vmatprep.subr.mxu0 0.0
  %1993 = vmatpush2.msra.mxu0 0.0
  %1994 = vmatprep.subr.mxu0 0.0
  %1995 = vmatpush2.msra.mxu0 0.0
  %1996 = vmatprep.subr.mxu0 0.0
  %1997 = vmatpush2.msra.mxu0 0.0
  %1998 = vmatprep.subr.mxu0 0.0
  %1999 = vmatpush2.msra.mxu0 0.0
  %2000 = vmatprep.subr.mxu0 0.0
  %2001 = vmatpush2.msra.mxu0 0.0
  %2002 = vmatprep.subr.mxu0 0.0
  %2003 = vmatpush2.msra.mxu0 0.0
  %2004 = vmatprep.subr.mxu0 0.0
  %2005 = vmatpush2.msra.mxu0 0.0
  %2006 = vmatprep.subr.mxu0 0.0
  %2007 = vmatpush2.msra.mxu0 0.0
  %2008 = vmatprep.subr.mxu0 0.0
  %2009 = vmatpush2.msra.mxu0 0.0
  %2010 = vmatprep.subr.mxu0 0.0
  %2011 = vmatpush2.msra.mxu0 0.0
  %2012 = vmatprep.subr.mxu0 0.0
  %2013 = vmatpush2.msra.mxu0 0.0
  %2014 = vmatprep.subr.mxu0 0.0
  %2015 = vmatpush2.msra.mxu0 0.0
  %2016 = vmatprep.mubr.f32.mxu0 0.0
  %2017 = vmatmul.mubr.f32.gmra.mxu0 %v942
  %v2018 = vpop.f32.mrf.mxu0
  %v2019 = vadd.f32 0.0, %v2018
  %v2020 = vpop.f32.mrf.mxu0
  %2021 = vmatprep.mubr.f32.mxu0 0.0
  %2022 = vmatmul.mubr.f32.gmra.mxu0 %v945
  %v2023 = vpop.f32.mrf.mxu0
  %v2024 = vadd.f32 0.0, %v2023
  %v2025 = vpop.f32.mrf.mxu0
  %2026 = vdwg.mxu0
  %2029 = vrot.lane.b32.xlu0 %v2019, 120
  %v2030 = vpop.permute.xlu0 %2029
  %2031 = vrot.lane.b32.xlu0 %v2024, 120
  %v2032 = vpop.permute.xlu0 %2031
  %v2035 = vmax.f32 %v2019, %v2030
  %v2036 = vmax.f32 %v2024, %v2032
  %v2038 = vrot.slane %v2035, 1
  %v2039 = vsel %vm1038, %v2038, 0
  %2041 = vmatprep.subr.mxu0 0.0
  %2042 = vmatpush1.msra.mxu0 0.0
  %2043 = vmatprep.subr.mxu0 0.0
  %2044 = vmatpush1.msra.mxu0 0.0
  %2045 = vmatprep.subr.mxu0 0.0
  %2046 = vmatpush1.msra.mxu0 0.0
  %2047 = vmatprep.subr.mxu0 0.0
  %2048 = vmatpush1.msra.mxu0 %v136
  %2049 = vmatprep.subr.mxu0 0.0
  %2050 = vmatpush1.msra.mxu0 %v135
  %2051 = vmatprep.subr.mxu0 0.0
  %2052 = vmatpush1.msra.mxu0 %v134
  %2053 = vmatprep.subr.mxu0 0.0
  %2054 = vmatpush1.msra.mxu0 %v133
  %2055 = vmatprep.subr.mxu0 0.0
  %2056 = vmatpush1.msra.mxu0 %v132
  %2057 = vmatprep.subr.mxu0 0.0
  %2058 = vmatpush1.msra.mxu0 %v131
  %2059 = vmatprep.subr.mxu0 0.0
  %2060 = vmatpush1.msra.mxu0 %v130
  %2061 = vmatprep.subr.mxu0 0.0
  %2062 = vmatpush1.msra.mxu0 %v129
  %2063 = vmatprep.subr.mxu0 0.0
  %2064 = vmatpush1.msra.mxu0 %v128
  %2065 = vmatprep.subr.mxu0 0.0
  %2066 = vmatpush1.msra.mxu0 %v127
  %2067 = vmatprep.subr.mxu0 0.0
  %2068 = vmatpush1.msra.mxu0 %v126
  %2069 = vmatprep.subr.mxu0 0.0
  %2070 = vmatpush1.msra.mxu0 %v125
  %2071 = vmatprep.subr.mxu0 0.0
  %2072 = vmatpush1.msra.mxu0 %v124
  %2073 = vmatprep.subr.mxu0 0.0
  %2074 = vmatpush2.msra.mxu0 0.0
  %2075 = vmatprep.subr.mxu0 0.0
  %2076 = vmatpush2.msra.mxu0 0.0
  %2077 = vmatprep.subr.mxu0 0.0
  %2078 = vmatpush2.msra.mxu0 0.0
  %2079 = vmatprep.subr.mxu0 0.0
  %2080 = vmatpush2.msra.mxu0 0.0
  %2081 = vmatprep.subr.mxu0 0.0
  %2082 = vmatpush2.msra.mxu0 0.0
  %2083 = vmatprep.subr.mxu0 0.0
  %2084 = vmatpush2.msra.mxu0 0.0
  %2085 = vmatprep.subr.mxu0 0.0
  %2086 = vmatpush2.msra.mxu0 0.0
  %2087 = vmatprep.subr.mxu0 0.0
  %2088 = vmatpush2.msra.mxu0 0.0
  %2089 = vmatprep.subr.mxu0 0.0
  %2090 = vmatpush2.msra.mxu0 0.0
  %2091 = vmatprep.subr.mxu0 0.0
  %2092 = vmatpush2.msra.mxu0 0.0
  %2093 = vmatprep.subr.mxu0 0.0
  %2094 = vmatpush2.msra.mxu0 0.0
  %2095 = vmatprep.subr.mxu0 0.0
  %2096 = vmatpush2.msra.mxu0 0.0
  %2097 = vmatprep.subr.mxu0 0.0
  %2098 = vmatpush2.msra.mxu0 0.0
  %2099 = vmatprep.subr.mxu0 0.0
  %2100 = vmatpush2.msra.mxu0 0.0
  %2101 = vmatprep.subr.mxu0 0.0
  %2102 = vmatpush2.msra.mxu0 0.0
  %2103 = vmatprep.subr.mxu0 0.0
  %2104 = vmatpush2.msra.mxu0 0.0
  %2105 = vmatprep.mubr.f32.mxu0 0.0
  %2106 = vmatmul.mubr.f32.gmra.mxu0 %v2039
  %v2107 = vpop.f32.mrf.mxu0
  %v2108 = vadd.f32 0.0, %v2107
  %v2109 = vpop.f32.mrf.mxu0
  %2110 = vdwg.mxu0
  %v2111 = vsel %vm1038, %v2035, 0
  %2113 = vmatprep.subr.mxu0 0.0
  %2114 = vmatpush1.msra.mxu0 0.0
  %2115 = vmatprep.subr.mxu0 0.0
  %2116 = vmatpush1.msra.mxu0 0.0
  %2117 = vmatprep.subr.mxu0 0.0
  %2118 = vmatpush1.msra.mxu0 0.0
  %2119 = vmatprep.subr.mxu0 0.0
  %2120 = vmatpush1.msra.mxu0 %v122
  %2121 = vmatprep.subr.mxu0 0.0
  %2122 = vmatpush1.msra.mxu0 %v121
  %2123 = vmatprep.subr.mxu0 0.0
  %2124 = vmatpush1.msra.mxu0 %v120
  %2125 = vmatprep.subr.mxu0 0.0
  %2126 = vmatpush1.msra.mxu0 %v119
  %2127 = vmatprep.subr.mxu0 0.0
  %2128 = vmatpush1.msra.mxu0 %v118
  %2129 = vmatprep.subr.mxu0 0.0
  %2130 = vmatpush1.msra.mxu0 %v117
  %2131 = vmatprep.subr.mxu0 0.0
  %2132 = vmatpush1.msra.mxu0 %v116
  %2133 = vmatprep.subr.mxu0 0.0
  %2134 = vmatpush1.msra.mxu0 %v115
  %2135 = vmatprep.subr.mxu0 0.0
  %2136 = vmatpush1.msra.mxu0 %v114
  %2137 = vmatprep.subr.mxu0 0.0
  %2138 = vmatpush1.msra.mxu0 %v113
  %2139 = vmatprep.subr.mxu0 0.0
  %2140 = vmatpush1.msra.mxu0 %v112
  %2141 = vmatprep.subr.mxu0 0.0
  %2142 = vmatpush1.msra.mxu0 %v111
  %2143 = vmatprep.subr.mxu0 0.0
  %2144 = vmatpush1.msra.mxu0 %v110
  %2145 = vmatprep.subr.mxu0 0.0
  %2146 = vmatpush2.msra.mxu0 0.0
  %2147 = vmatprep.subr.mxu0 0.0
  %2148 = vmatpush2.msra.mxu0 0.0
  %2149 = vmatprep.subr.mxu0 0.0
  %2150 = vmatpush2.msra.mxu0 0.0
  %2151 = vmatprep.subr.mxu0 0.0
  %2152 = vmatpush2.msra.mxu0 0.0
  %2153 = vmatprep.subr.mxu0 0.0
  %2154 = vmatpush2.msra.mxu0 0.0
  %2155 = vmatprep.subr.mxu0 0.0
  %2156 = vmatpush2.msra.mxu0 0.0
  %2157 = vmatprep.subr.mxu0 0.0
  %2158 = vmatpush2.msra.mxu0 0.0
  %2159 = vmatprep.subr.mxu0 0.0
  %2160 = vmatpush2.msra.mxu0 0.0
  %2161 = vmatprep.subr.mxu0 0.0
  %2162 = vmatpush2.msra.mxu0 0.0
  %2163 = vmatprep.subr.mxu0 0.0
  %2164 = vmatpush2.msra.mxu0 0.0
  %2165 = vmatprep.subr.mxu0 0.0
  %2166 = vmatpush2.msra.mxu0 0.0
  %2167 = vmatprep.subr.mxu0 0.0
  %2168 = vmatpush2.msra.mxu0 0.0
  %2169 = vmatprep.subr.mxu0 0.0
  %2170 = vmatpush2.msra.mxu0 0.0
  %2171 = vmatprep.subr.mxu0 0.0
  %2172 = vmatpush2.msra.mxu0 0.0
  %2173 = vmatprep.subr.mxu0 0.0
  %2174 = vmatpush2.msra.mxu0 0.0
  %2175 = vmatprep.subr.mxu0 0.0
  %2176 = vmatpush2.msra.mxu0 0.0
  %2177 = vmatprep.mubr.f32.mxu0 0.0
  %2178 = vmatmul.mubr.f32.gmra.mxu0 %v2111
  %v2179 = vpop.f32.mrf.mxu0
  %v2180 = vadd.f32 %v2108, %v2179
  %v2181 = vpop.f32.mrf.mxu0
  %2182 = vdwg.mxu0
  %v2184 = vrot.slane %v2035, 2
  %v2185 = vrot.slane %v2036, 2
  %v2186 = vsel %vm427, %v2184, %v2185
  %v2187 = vsel %vm1038, %v2186, 0
  %2189 = vmatprep.subr.mxu0 0.0
  %2190 = vmatpush1.msra.mxu0 0.0
  %2191 = vmatprep.subr.mxu0 0.0
  %2192 = vmatpush1.msra.mxu0 0.0
  %2193 = vmatprep.subr.mxu0 0.0
  %2194 = vmatpush1.msra.mxu0 0.0
  %2195 = vmatprep.subr.mxu0 0.0
  %2196 = vmatpush1.msra.mxu0 %v150
  %2197 = vmatprep.subr.mxu0 0.0
  %2198 = vmatpush1.msra.mxu0 %v149
  %2199 = vmatprep.subr.mxu0 0.0
  %2200 = vmatpush1.msra.mxu0 %v148
  %2201 = vmatprep.subr.mxu0 0.0
  %2202 = vmatpush1.msra.mxu0 %v147
  %2203 = vmatprep.subr.mxu0 0.0
  %2204 = vmatpush1.msra.mxu0 %v146
  %2205 = vmatprep.subr.mxu0 0.0
  %2206 = vmatpush1.msra.mxu0 %v145
  %2207 = vmatprep.subr.mxu0 0.0
  %2208 = vmatpush1.msra.mxu0 %v144
  %2209 = vmatprep.subr.mxu0 0.0
  %2210 = vmatpush1.msra.mxu0 %v143
  %2211 = vmatprep.subr.mxu0 0.0
  %2212 = vmatpush1.msra.mxu0 %v142
  %2213 = vmatprep.subr.mxu0 0.0
  %2214 = vmatpush1.msra.mxu0 %v141
  %2215 = vmatprep.subr.mxu0 0.0
  %2216 = vmatpush1.msra.mxu0 %v140
  %2217 = vmatprep.subr.mxu0 0.0
  %2218 = vmatpush1.msra.mxu0 %v139
  %2219 = vmatprep.subr.mxu0 0.0
  %2220 = vmatpush1.msra.mxu0 %v138
  %2221 = vmatprep.subr.mxu0 0.0
  %2222 = vmatpush2.msra.mxu0 0.0
  %2223 = vmatprep.subr.mxu0 0.0
  %2224 = vmatpush2.msra.mxu0 0.0
  %2225 = vmatprep.subr.mxu0 0.0
  %2226 = vmatpush2.msra.mxu0 0.0
  %2227 = vmatprep.subr.mxu0 0.0
  %2228 = vmatpush2.msra.mxu0 0.0
  %2229 = vmatprep.subr.mxu0 0.0
  %2230 = vmatpush2.msra.mxu0 0.0
  %2231 = vmatprep.subr.mxu0 0.0
  %2232 = vmatpush2.msra.mxu0 0.0
  %2233 = vmatprep.subr.mxu0 0.0
  %2234 = vmatpush2.msra.mxu0 0.0
  %2235 = vmatprep.subr.mxu0 0.0
  %2236 = vmatpush2.msra.mxu0 0.0
  %2237 = vmatprep.subr.mxu0 0.0
  %2238 = vmatpush2.msra.mxu0 0.0
  %2239 = vmatprep.subr.mxu0 0.0
  %2240 = vmatpush2.msra.mxu0 0.0
  %2241 = vmatprep.subr.mxu0 0.0
  %2242 = vmatpush2.msra.mxu0 0.0
  %2243 = vmatprep.subr.mxu0 0.0
  %2244 = vmatpush2.msra.mxu0 0.0
  %2245 = vmatprep.subr.mxu0 0.0
  %2246 = vmatpush2.msra.mxu0 0.0
  %2247 = vmatprep.subr.mxu0 0.0
  %2248 = vmatpush2.msra.mxu0 0.0
  %2249 = vmatprep.subr.mxu0 0.0
  %2250 = vmatpush2.msra.mxu0 0.0
  %2251 = vmatprep.subr.mxu0 0.0
  %2252 = vmatpush2.msra.mxu0 0.0
  %2253 = vmatprep.mubr.f32.mxu0 0.0
  %2254 = vmatmul.mubr.f32.gmra.mxu0 %v2187
  %v2255 = vpop.f32.mrf.mxu0
  %v2256 = vadd.f32 0.0, %v2255
  %v2257 = vpop.f32.mrf.mxu0
  %2258 = vdwg.mxu0
  %v2259 = vadd.f32 %v2180, %v2256
  %v2260 = vadd.f32 %v2259, %v1264
  %v2261 = vmax.f32 %v2260, 0.0
  %s2262 = scalar_lea.vmem %s0, 64
  %v2263 = vld [vmem:[%s2262] sm:$0xff]
  %v2264 = vld [vmem:[%s2262 + $0x8] sm:$0xff]
  %v2265 = vld [vmem:[%s2262 + $0x10] sm:$0xff]
  %v2266 = vld [vmem:[%s2262 + $0x18] sm:$0x3f]
  %v2271 = vrot.slane %v2263, 1
  %v2272 = vrot.slane %v2264, 1
  %v2273 = vsel %vm225, %v2271, %v2272
  %v2274 = vrot.slane %v2265, 1
  %v2275 = vsel %vm225, %v2272, %v2274
  %v2276 = vrot.slane %v2266, 1
  %v2277 = vsel %vm225, %v2274, %v2276
  %v2278 = vsel %vm233, %v2273, 0
  %v2280 = vsel %vm233, %v2275, 0
  %v2282 = vsel %vm233, %v2277, 0
  %v2284 = vsel %vm233, %v2276, 0
  %2286 = vmatprep.subr.mxu0 0.0
  %2287 = vmatpush1.msra.mxu0 0.0
  %2288 = vmatprep.subr.mxu0 0.0
  %2289 = vmatpush1.msra.mxu0 0.0
  %2290 = vmatprep.subr.mxu0 0.0
  %2291 = vmatpush1.msra.mxu0 0.0
  %2292 = vmatprep.subr.mxu0 0.0
  %2293 = vmatpush1.msra.mxu0 0.0
  %2294 = vmatprep.subr.mxu0 0.0
  %2295 = vmatpush1.msra.mxu0 0.0
  %2296 = vmatprep.subr.mxu0 0.0
  %2297 = vmatpush1.msra.mxu0 0.0
  %2298 = vmatprep.subr.mxu0 0.0
  %2299 = vmatpush1.msra.mxu0 0.0
  %2300 = vmatprep.subr.mxu0 0.0
  %2301 = vmatpush1.msra.mxu0 0.0
  %2302 = vmatprep.subr.mxu0 0.0
  %2303 = vmatpush1.msra.mxu0 0.0
  %2304 = vmatprep.subr.mxu0 0.0
  %2305 = vmatpush1.msra.mxu0 0.0
  %2306 = vmatprep.subr.mxu0 0.0
  %2307 = vmatpush1.msra.mxu0 0.0
  %2308 = vmatprep.subr.mxu0 0.0
  %2309 = vmatpush1.msra.mxu0 0.0
  %2310 = vmatprep.subr.mxu0 0.0
  %2311 = vmatpush1.msra.mxu0 %v244
  %2312 = vmatprep.subr.mxu0 0.0
  %2313 = vmatpush1.msra.mxu0 %v57
  %2314 = vmatprep.subr.mxu0 0.0
  %2315 = vmatpush1.msra.mxu0 %v56
  %2316 = vmatprep.subr.mxu0 0.0
  %2317 = vmatpush1.msra.mxu0 %v55
  %2318 = vmatprep.subr.mxu0 0.0
  %2319 = vmatpush2.msra.mxu0 0.0
  %2320 = vmatprep.subr.mxu0 0.0
  %2321 = vmatpush2.msra.mxu0 0.0
  %2322 = vmatprep.subr.mxu0 0.0
  %2323 = vmatpush2.msra.mxu0 0.0
  %2324 = vmatprep.subr.mxu0 0.0
  %2325 = vmatpush2.msra.mxu0 0.0
  %2326 = vmatprep.subr.mxu0 0.0
  %2327 = vmatpush2.msra.mxu0 0.0
  %2328 = vmatprep.subr.mxu0 0.0
  %2329 = vmatpush2.msra.mxu0 0.0
  %2330 = vmatprep.subr.mxu0 0.0
  %2331 = vmatpush2.msra.mxu0 0.0
  %2332 = vmatprep.subr.mxu0 0.0
  %2333 = vmatpush2.msra.mxu0 0.0
  %2334 = vmatprep.subr.mxu0 0.0
  %2335 = vmatpush2.msra.mxu0 0.0
  %2336 = vmatprep.subr.mxu0 0.0
  %2337 = vmatpush2.msra.mxu0 0.0
  %2338 = vmatprep.subr.mxu0 0.0
  %2339 = vmatpush2.msra.mxu0 0.0
  %2340 = vmatprep.subr.mxu0 0.0
  %2341 = vmatpush2.msra.mxu0 0.0
  %2342 = vmatprep.subr.mxu0 0.0
  %2343 = vmatpush2.msra.mxu0 0.0
  %2344 = vmatprep.subr.mxu0 0.0
  %2345 = vmatpush2.msra.mxu0 0.0
  %2346 = vmatprep.subr.mxu0 0.0
  %2347 = vmatpush2.msra.mxu0 0.0
  %2348 = vmatprep.subr.mxu0 0.0
  %2349 = vmatpush2.msra.mxu0 0.0
  %2350 = vmatprep.mubr.f32.mxu0 0.0
  %2351 = vmatmul.mubr.f32.gmra.mxu0 %v2278
  %v2352 = vpop.f32.mrf.mxu0
  %v2353 = vadd.f32 0.0, %v2352
  %v2354 = vpop.f32.mrf.mxu0
  %2355 = vmatprep.mubr.f32.mxu0 0.0
  %2356 = vmatmul.mubr.f32.gmra.mxu0 %v2280
  %v2357 = vpop.f32.mrf.mxu0
  %v2358 = vadd.f32 0.0, %v2357
  %v2359 = vpop.f32.mrf.mxu0
  %2360 = vmatprep.mubr.f32.mxu0 0.0
  %2361 = vmatmul.mubr.f32.gmra.mxu0 %v2282
  %v2362 = vpop.f32.mrf.mxu0
  %v2363 = vadd.f32 0.0, %v2362
  %v2364 = vpop.f32.mrf.mxu0
  %2365 = vmatprep.mubr.f32.mxu0 0.0
  %2366 = vmatmul.mubr.f32.gmra.mxu0 %v2284
  %v2367 = vpop.f32.mrf.mxu0
  %v2368 = vadd.f32 0.0, %v2367
  %v2369 = vpop.f32.mrf.mxu0
  %2370 = vdwg.mxu0
  %v2371 = vsel %vm233, %v2263, 0
  %v2373 = vsel %vm233, %v2264, 0
  %v2375 = vsel %vm233, %v2265, 0
  %v2377 = vsel %vm233, %v2266, 0
  %2379 = vmatprep.subr.mxu0 0.0
  %2380 = vmatpush1.msra.mxu0 0.0
  %2381 = vmatprep.subr.mxu0 0.0
  %2382 = vmatpush1.msra.mxu0 0.0
  %2383 = vmatprep.subr.mxu0 0.0
  %2384 = vmatpush1.msra.mxu0 0.0
  %2385 = vmatprep.subr.mxu0 0.0
  %2386 = vmatpush1.msra.mxu0 0.0
  %2387 = vmatprep.subr.mxu0 0.0
  %2388 = vmatpush1.msra.mxu0 0.0
  %2389 = vmatprep.subr.mxu0 0.0
  %2390 = vmatpush1.msra.mxu0 0.0
  %2391 = vmatprep.subr.mxu0 0.0
  %2392 = vmatpush1.msra.mxu0 0.0
  %2393 = vmatprep.subr.mxu0 0.0
  %2394 = vmatpush1.msra.mxu0 0.0
  %2395 = vmatprep.subr.mxu0 0.0
  %2396 = vmatpush1.msra.mxu0 0.0
  %2397 = vmatprep.subr.mxu0 0.0
  %2398 = vmatpush1.msra.mxu0 0.0
  %2399 = vmatprep.subr.mxu0 0.0
  %2400 = vmatpush1.msra.mxu0 0.0
  %2401 = vmatprep.subr.mxu0 0.0
  %2402 = vmatpush1.msra.mxu0 0.0
  %2403 = vmatprep.subr.mxu0 0.0
  %2404 = vmatpush1.msra.mxu0 %v340
  %2405 = vmatprep.subr.mxu0 0.0
  %2406 = vmatpush1.msra.mxu0 %v52
  %2407 = vmatprep.subr.mxu0 0.0
  %2408 = vmatpush1.msra.mxu0 %v51
  %2409 = vmatprep.subr.mxu0 0.0
  %2410 = vmatpush1.msra.mxu0 %v50
  %2411 = vmatprep.subr.mxu0 0.0
  %2412 = vmatpush2.msra.mxu0 0.0
  %2413 = vmatprep.subr.mxu0 0.0
  %2414 = vmatpush2.msra.mxu0 0.0
  %2415 = vmatprep.subr.mxu0 0.0
  %2416 = vmatpush2.msra.mxu0 0.0
  %2417 = vmatprep.subr.mxu0 0.0
  %2418 = vmatpush2.msra.mxu0 0.0
  %2419 = vmatprep.subr.mxu0 0.0
  %2420 = vmatpush2.msra.mxu0 0.0
  %2421 = vmatprep.subr.mxu0 0.0
  %2422 = vmatpush2.msra.mxu0 0.0
  %2423 = vmatprep.subr.mxu0 0.0
  %2424 = vmatpush2.msra.mxu0 0.0
  %2425 = vmatprep.subr.mxu0 0.0
  %2426 = vmatpush2.msra.mxu0 0.0
  %2427 = vmatprep.subr.mxu0 0.0
  %2428 = vmatpush2.msra.mxu0 0.0
  %2429 = vmatprep.subr.mxu0 0.0
  %2430 = vmatpush2.msra.mxu0 0.0
  %2431 = vmatprep.subr.mxu0 0.0
  %2432 = vmatpush2.msra.mxu0 0.0
  %2433 = vmatprep.subr.mxu0 0.0
  %2434 = vmatpush2.msra.mxu0 0.0
  %2435 = vmatprep.subr.mxu0 0.0
  %2436 = vmatpush2.msra.mxu0 0.0
  %2437 = vmatprep.subr.mxu0 0.0
  %2438 = vmatpush2.msra.mxu0 0.0
  %2439 = vmatprep.subr.mxu0 0.0
  %2440 = vmatpush2.msra.mxu0 0.0
  %2441 = vmatprep.subr.mxu0 0.0
  %2442 = vmatpush2.msra.mxu0 0.0
  %2443 = vmatprep.mubr.f32.mxu0 0.0
  %2444 = vmatmul.mubr.f32.gmra.mxu0 %v2371
  %v2445 = vpop.f32.mrf.mxu0
  %v2446 = vadd.f32 %v2353, %v2445
  %v2447 = vpop.f32.mrf.mxu0
  %2448 = vmatprep.mubr.f32.mxu0 0.0
  %2449 = vmatmul.mubr.f32.gmra.mxu0 %v2373
  %v2450 = vpop.f32.mrf.mxu0
  %v2451 = vadd.f32 %v2358, %v2450
  %v2452 = vpop.f32.mrf.mxu0
  %2453 = vmatprep.mubr.f32.mxu0 0.0
  %2454 = vmatmul.mubr.f32.gmra.mxu0 %v2375
  %v2455 = vpop.f32.mrf.mxu0
  %v2456 = vadd.f32 %v2363, %v2455
  %v2457 = vpop.f32.mrf.mxu0
  %2458 = vmatprep.mubr.f32.mxu0 0.0
  %2459 = vmatmul.mubr.f32.gmra.mxu0 %v2377
  %v2460 = vpop.f32.mrf.mxu0
  %v2461 = vadd.f32 %v2368, %v2460
  %v2462 = vpop.f32.mrf.mxu0
  %2463 = vdwg.mxu0
  %v2464 = vrot.slane %v2263, 2
  %v2465 = vrot.slane %v2264, 2
  %v2466 = vsel %vm427, %v2464, %v2465
  %v2467 = vrot.slane %v2265, 2
  %v2468 = vsel %vm427, %v2465, %v2467
  %v2469 = vrot.slane %v2266, 2
  %v2470 = vsel %vm427, %v2467, %v2469
  %v2471 = vsel %vm233, %v2466, 0
  %v2473 = vsel %vm233, %v2468, 0
  %v2475 = vsel %vm233, %v2470, 0
  %v2477 = vsel %vm233, %v2469, 0
  %2479 = vmatprep.subr.mxu0 0.0
  %2480 = vmatpush1.msra.mxu0 0.0
  %2481 = vmatprep.subr.mxu0 0.0
  %2482 = vmatpush1.msra.mxu0 0.0
  %2483 = vmatprep.subr.mxu0 0.0
  %2484 = vmatpush1.msra.mxu0 0.0
  %2485 = vmatprep.subr.mxu0 0.0
  %2486 = vmatpush1.msra.mxu0 0.0
  %2487 = vmatprep.subr.mxu0 0.0
  %2488 = vmatpush1.msra.mxu0 0.0
  %2489 = vmatprep.subr.mxu0 0.0
  %2490 = vmatpush1.msra.mxu0 0.0
  %2491 = vmatprep.subr.mxu0 0.0
  %2492 = vmatpush1.msra.mxu0 0.0
  %2493 = vmatprep.subr.mxu0 0.0
  %2494 = vmatpush1.msra.mxu0 0.0
  %2495 = vmatprep.subr.mxu0 0.0
  %2496 = vmatpush1.msra.mxu0 0.0
  %2497 = vmatprep.subr.mxu0 0.0
  %2498 = vmatpush1.msra.mxu0 0.0
  %2499 = vmatprep.subr.mxu0 0.0
  %2500 = vmatpush1.msra.mxu0 0.0
  %2501 = vmatprep.subr.mxu0 0.0
  %2502 = vmatpush1.msra.mxu0 0.0
  %2503 = vmatprep.subr.mxu0 0.0
  %2504 = vmatpush1.msra.mxu0 %v444
  %2505 = vmatprep.subr.mxu0 0.0
  %2506 = vmatpush1.msra.mxu0 %v62
  %2507 = vmatprep.subr.mxu0 0.0
  %2508 = vmatpush1.msra.mxu0 %v61
  %2509 = vmatprep.subr.mxu0 0.0
  %2510 = vmatpush1.msra.mxu0 %v60
  %2511 = vmatprep.subr.mxu0 0.0
  %2512 = vmatpush2.msra.mxu0 0.0
  %2513 = vmatprep.subr.mxu0 0.0
  %2514 = vmatpush2.msra.mxu0 0.0
  %2515 = vmatprep.subr.mxu0 0.0
  %2516 = vmatpush2.msra.mxu0 0.0
  %2517 = vmatprep.subr.mxu0 0.0
  %2518 = vmatpush2.msra.mxu0 0.0
  %2519 = vmatprep.subr.mxu0 0.0
  %2520 = vmatpush2.msra.mxu0 0.0
  %2521 = vmatprep.subr.mxu0 0.0
  %2522 = vmatpush2.msra.mxu0 0.0
  %2523 = vmatprep.subr.mxu0 0.0
  %2524 = vmatpush2.msra.mxu0 0.0
  %2525 = vmatprep.subr.mxu0 0.0
  %2526 = vmatpush2.msra.mxu0 0.0
  %2527 = vmatprep.subr.mxu0 0.0
  %2528 = vmatpush2.msra.mxu0 0.0
  %2529 = vmatprep.subr.mxu0 0.0
  %2530 = vmatpush2.msra.mxu0 0.0
  %2531 = vmatprep.subr.mxu0 0.0
  %2532 = vmatpush2.msra.mxu0 0.0
  %2533 = vmatprep.subr.mxu0 0.0
  %2534 = vmatpush2.msra.mxu0 0.0
  %2535 = vmatprep.subr.mxu0 0.0
  %2536 = vmatpush2.msra.mxu0 0.0
  %2537 = vmatprep.subr.mxu0 0.0
  %2538 = vmatpush2.msra.mxu0 0.0
  %2539 = vmatprep.subr.mxu0 0.0
  %2540 = vmatpush2.msra.mxu0 0.0
  %2541 = vmatprep.subr.mxu0 0.0
  %2542 = vmatpush2.msra.mxu0 0.0
  %2543 = vmatprep.mubr.f32.mxu0 0.0
  %2544 = vmatmul.mubr.f32.gmra.mxu0 %v2471
  %v2545 = vpop.f32.mrf.mxu0
  %v2546 = vadd.f32 0.0, %v2545
  %v2547 = vpop.f32.mrf.mxu0
  %2548 = vmatprep.mubr.f32.mxu0 0.0
  %2549 = vmatmul.mubr.f32.gmra.mxu0 %v2473
  %v2550 = vpop.f32.mrf.mxu0
  %v2551 = vadd.f32 0.0, %v2550
  %v2552 = vpop.f32.mrf.mxu0
  %2553 = vmatprep.mubr.f32.mxu0 0.0
  %2554 = vmatmul.mubr.f32.gmra.mxu0 %v2475
  %v2555 = vpop.f32.mrf.mxu0
  %v2556 = vadd.f32 0.0, %v2555
  %v2557 = vpop.f32.mrf.mxu0
  %2558 = vmatprep.mubr.f32.mxu0 0.0
  %2559 = vmatmul.mubr.f32.gmra.mxu0 %v2477
  %v2560 = vpop.f32.mrf.mxu0
  %v2561 = vadd.f32 0.0, %v2560
  %v2562 = vpop.f32.mrf.mxu0
  %2563 = vdwg.mxu0
  %v2564 = vadd.f32 %v2446, %v2546
  %v2565 = vadd.f32 %v2451, %v2551
  %v2566 = vadd.f32 %v2456, %v2556
  %v2567 = vadd.f32 %v2461, %v2561
  %v2568 = vadd.f32 %v2564, %v539
  %v2569 = vadd.f32 %v2565, %v539
  %v2570 = vadd.f32 %v2566, %v539
  %v2571 = vadd.f32 %v2567, %v539
  %v2572 = vmax.f32 %v2568, 0.0
  %v2573 = vmax.f32 %v2569, 0.0
  %v2574 = vmax.f32 %v2570, 0.0
  %v2575 = vmax.f32 %v2571, 0.0
  %v2580 = vrot.slane %v2572, 1
  %v2581 = vrot.slane %v2573, 1
  %v2582 = vsel %vm225, %v2580, %v2581
  %v2583 = vrot.slane %v2574, 1
  %v2584 = vsel %vm225, %v2581, %v2583
  %v2585 = vrot.slane %v2575, 1
  %v2586 = vsel %vm225, %v2583, %v2585
  %v2591 = vmax.f32 %v2572, %v2582
  %v2592 = vmax.f32 %v2573, %v2584
  %v2593 = vmax.f32 %v2574, %v2586
  %v2594 = vmax.f32 %v2575, %v2585
  %v2596 = vsel %vm575, %v2594, 0
  %2598 = vmatprep.subr.mxu0 0.0
  %2599 = vmatpush1.msra.mxu0 0.0
  %2600 = vmatprep.subr.mxu0 0.0
  %2601 = vmatpush1.msra.mxu0 0.0
  %2602 = vmatprep.subr.mxu0 0.0
  %2603 = vmatpush1.msra.mxu0 0.0
  %2604 = vmatprep.subr.mxu0 0.0
  %2605 = vmatpush1.msra.mxu0 0.0
  %2606 = vmatprep.subr.mxu0 0.0
  %2607 = vmatpush1.msra.mxu0 0.0
  %2608 = vmatprep.subr.mxu0 0.0
  %2609 = vmatpush1.msra.mxu0 0.0
  %2610 = vmatprep.subr.mxu0 0.0
  %2611 = vmatpush1.msra.mxu0 0.0
  %2612 = vmatprep.subr.mxu0 0.0
  %2613 = vmatpush1.msra.mxu0 0.0
  %2614 = vmatprep.subr.mxu0 0.0
  %2615 = vmatpush1.msra.mxu0 0.0
  %2616 = vmatprep.subr.mxu0 0.0
  %2617 = vmatpush1.msra.mxu0 0.0
  %2618 = vmatprep.subr.mxu0 0.0
  %2619 = vmatpush1.msra.mxu0 0.0
  %2620 = vmatprep.subr.mxu0 0.0
  %2621 = vmatpush1.msra.mxu0 0.0
  %2622 = vmatprep.subr.mxu0 0.0
  %2623 = vmatpush1.msra.mxu0 %v2596
  %2624 = vmatprep.subr.mxu0 0.0
  %2625 = vmatpush1.msra.mxu0 %v2593
  %2626 = vmatprep.subr.mxu0 0.0
  %2627 = vmatpush1.msra.mxu0 %v2592
  %2628 = vmatprep.subr.mxu0 0.0
  %2629 = vmatpush1.msra.mxu0 %v2591
  %2630 = vmatprep.subr.mxu0 0.0
  %2631 = vmatpush2.msra.mxu0 0.0
  %2632 = vmatprep.subr.mxu0 0.0
  %2633 = vmatpush2.msra.mxu0 0.0
  %2634 = vmatprep.subr.mxu0 0.0
  %2635 = vmatpush2.msra.mxu0 0.0
  %2636 = vmatprep.subr.mxu0 0.0
  %2637 = vmatpush2.msra.mxu0 0.0
  %2638 = vmatprep.subr.mxu0 0.0
  %2639 = vmatpush2.msra.mxu0 0.0
  %2640 = vmatprep.subr.mxu0 0.0
  %2641 = vmatpush2.msra.mxu0 0.0
  %2642 = vmatprep.subr.mxu0 0.0
  %2643 = vmatpush2.msra.mxu0 0.0
  %2644 = vmatprep.subr.mxu0 0.0
  %2645 = vmatpush2.msra.mxu0 0.0
  %2646 = vmatprep.subr.mxu0 0.0
  %2647 = vmatpush2.msra.mxu0 0.0
  %2648 = vmatprep.subr.mxu0 0.0
  %2649 = vmatpush2.msra.mxu0 0.0
  %2650 = vmatprep.subr.mxu0 0.0
  %2651 = vmatpush2.msra.mxu0 0.0
  %2652 = vmatprep.subr.mxu0 0.0
  %2653 = vmatpush2.msra.mxu0 0.0
  %2654 = vmatprep.subr.mxu0 0.0
  %2655 = vmatpush2.msra.mxu0 0.0
  %2656 = vmatprep.subr.mxu0 0.0
  %2657 = vmatpush2.msra.mxu0 0.0
  %2658 = vmatprep.subr.mxu0 0.0
  %2659 = vmatpush2.msra.mxu0 0.0
  %2660 = vmatprep.subr.mxu0 0.0
  %2661 = vmatpush2.msra.mxu0 0.0
  %2662 = vmatprep.mubr.f32.mxu0 0.0
  %2663 = vmatmul.mubr.f32.gmra.mxu0 %v570
  %v2664 = vpop.f32.mrf.mxu0
  %v2665 = vadd.f32 0.0, %v2664
  %v2666 = vpop.f32.mrf.mxu0
  %2667 = vmatprep.mubr.f32.mxu0 0.0
  %2668 = vmatmul.mubr.f32.gmra.mxu0 %v573
  %v2669 = vpop.f32.mrf.mxu0
  %v2670 = vadd.f32 0.0, %v2669
  %v2671 = vpop.f32.mrf.mxu0
  %2672 = vdwg.mxu0
  %2675 = vrot.lane.b32.xlu0 %v2665, 124
  %v2676 = vpop.permute.xlu0 %2675
  %2677 = vrot.lane.b32.xlu0 %v2670, 124
  %v2678 = vpop.permute.xlu0 %2677
  %v2681 = vmax.f32 %v2665, %v2676
  %v2682 = vmax.f32 %v2670, %v2678
  %v2685 = vrot.slane %v2681, 1
  %v2686 = vrot.slane %v2682, 1
  %v2687 = vsel %vm225, %v2685, %v2686
  %v2688 = vsel %vm669, %v2687, 0
  %v2690 = vsel %vm669, %v2686, 0
  %2692 = vmatprep.subr.mxu0 0.0
  %2693 = vmatpush1.msra.mxu0 0.0
  %2694 = vmatprep.subr.mxu0 0.0
  %2695 = vmatpush1.msra.mxu0 0.0
  %2696 = vmatprep.subr.mxu0 0.0
  %2697 = vmatpush1.msra.mxu0 %v675
  %2698 = vmatprep.subr.mxu0 0.0
  %2699 = vmatpush1.msra.mxu0 %v92
  %2700 = vmatprep.subr.mxu0 0.0
  %2701 = vmatpush1.msra.mxu0 %v91
  %2702 = vmatprep.subr.mxu0 0.0
  %2703 = vmatpush1.msra.mxu0 %v90
  %2704 = vmatprep.subr.mxu0 0.0
  %2705 = vmatpush1.msra.mxu0 %v89
  %2706 = vmatprep.subr.mxu0 0.0
  %2707 = vmatpush1.msra.mxu0 %v88
  %2708 = vmatprep.subr.mxu0 0.0
  %2709 = vmatpush1.msra.mxu0 %v87
  %2710 = vmatprep.subr.mxu0 0.0
  %2711 = vmatpush1.msra.mxu0 %v86
  %2712 = vmatprep.subr.mxu0 0.0
  %2713 = vmatpush1.msra.mxu0 %v85
  %2714 = vmatprep.subr.mxu0 0.0
  %2715 = vmatpush1.msra.mxu0 %v84
  %2716 = vmatprep.subr.mxu0 0.0
  %2717 = vmatpush1.msra.mxu0 %v83
  %2718 = vmatprep.subr.mxu0 0.0
  %2719 = vmatpush1.msra.mxu0 %v82
  %2720 = vmatprep.subr.mxu0 0.0
  %2721 = vmatpush1.msra.mxu0 %v81
  %2722 = vmatprep.subr.mxu0 0.0
  %2723 = vmatpush1.msra.mxu0 %v80
  %2724 = vmatprep.subr.mxu0 0.0
  %2725 = vmatpush2.msra.mxu0 0.0
  %2726 = vmatprep.subr.mxu0 0.0
  %2727 = vmatpush2.msra.mxu0 0.0
  %2728 = vmatprep.subr.mxu0 0.0
  %2729 = vmatpush2.msra.mxu0 0.0
  %2730 = vmatprep.subr.mxu0 0.0
  %2731 = vmatpush2.msra.mxu0 0.0
  %2732 = vmatprep.subr.mxu0 0.0
  %2733 = vmatpush2.msra.mxu0 0.0
  %2734 = vmatprep.subr.mxu0 0.0
  %2735 = vmatpush2.msra.mxu0 0.0
  %2736 = vmatprep.subr.mxu0 0.0
  %2737 = vmatpush2.msra.mxu0 0.0
  %2738 = vmatprep.subr.mxu0 0.0
  %2739 = vmatpush2.msra.mxu0 0.0
  %2740 = vmatprep.subr.mxu0 0.0
  %2741 = vmatpush2.msra.mxu0 0.0
  %2742 = vmatprep.subr.mxu0 0.0
  %2743 = vmatpush2.msra.mxu0 0.0
  %2744 = vmatprep.subr.mxu0 0.0
  %2745 = vmatpush2.msra.mxu0 0.0
  %2746 = vmatprep.subr.mxu0 0.0
  %2747 = vmatpush2.msra.mxu0 0.0
  %2748 = vmatprep.subr.mxu0 0.0
  %2749 = vmatpush2.msra.mxu0 0.0
  %2750 = vmatprep.subr.mxu0 0.0
  %2751 = vmatpush2.msra.mxu0 0.0
  %2752 = vmatprep.subr.mxu0 0.0
  %2753 = vmatpush2.msra.mxu0 0.0
  %2754 = vmatprep.subr.mxu0 0.0
  %2755 = vmatpush2.msra.mxu0 0.0
  %2756 = vmatprep.mubr.f32.mxu0 0.0
  %2757 = vmatmul.mubr.f32.gmra.mxu0 %v2688
  %v2758 = vpop.f32.mrf.mxu0
  %v2759 = vadd.f32 0.0, %v2758
  %v2760 = vpop.f32.mrf.mxu0
  %2761 = vmatprep.mubr.f32.mxu0 0.0
  %2762 = vmatmul.mubr.f32.gmra.mxu0 %v2690
  %v2763 = vpop.f32.mrf.mxu0
  %v2764 = vadd.f32 0.0, %v2763
  %v2765 = vpop.f32.mrf.mxu0
  %2766 = vdwg.mxu0
  %v2767 = vsel %vm669, %v2681, 0
  %v2769 = vsel %vm669, %v2682, 0
  %2771 = vmatprep.subr.mxu0 0.0
  %2772 = vmatpush1.msra.mxu0 0.0
  %2773 = vmatprep.subr.mxu0 0.0
  %2774 = vmatpush1.msra.mxu0 0.0
  %2775 = vmatprep.subr.mxu0 0.0
  %2776 = vmatpush1.msra.mxu0 %v757
  %2777 = vmatprep.subr.mxu0 0.0
  %2778 = vmatpush1.msra.mxu0 %v77
  %2779 = vmatprep.subr.mxu0 0.0
  %2780 = vmatpush1.msra.mxu0 %v76
  %2781 = vmatprep.subr.mxu0 0.0
  %2782 = vmatpush1.msra.mxu0 %v75
  %2783 = vmatprep.subr.mxu0 0.0
  %2784 = vmatpush1.msra.mxu0 %v74
  %2785 = vmatprep.subr.mxu0 0.0
  %2786 = vmatpush1.msra.mxu0 %v73
  %2787 = vmatprep.subr.mxu0 0.0
  %2788 = vmatpush1.msra.mxu0 %v72
  %2789 = vmatprep.subr.mxu0 0.0
  %2790 = vmatpush1.msra.mxu0 %v71
  %2791 = vmatprep.subr.mxu0 0.0
  %2792 = vmatpush1.msra.mxu0 %v70
  %2793 = vmatprep.subr.mxu0 0.0
  %2794 = vmatpush1.msra.mxu0 %v69
  %2795 = vmatprep.subr.mxu0 0.0
  %2796 = vmatpush1.msra.mxu0 %v68
  %2797 = vmatprep.subr.mxu0 0.0
  %2798 = vmatpush1.msra.mxu0 %v67
  %2799 = vmatprep.subr.mxu0 0.0
  %2800 = vmatpush1.msra.mxu0 %v66
  %2801 = vmatprep.subr.mxu0 0.0
  %2802 = vmatpush1.msra.mxu0 %v65
  %2803 = vmatprep.subr.mxu0 0.0
  %2804 = vmatpush2.msra.mxu0 0.0
  %2805 = vmatprep.subr.mxu0 0.0
  %2806 = vmatpush2.msra.mxu0 0.0
  %2807 = vmatprep.subr.mxu0 0.0
  %2808 = vmatpush2.msra.mxu0 0.0
  %2809 = vmatprep.subr.mxu0 0.0
  %2810 = vmatpush2.msra.mxu0 0.0
  %2811 = vmatprep.subr.mxu0 0.0
  %2812 = vmatpush2.msra.mxu0 0.0
  %2813 = vmatprep.subr.mxu0 0.0
  %2814 = vmatpush2.msra.mxu0 0.0
  %2815 = vmatprep.subr.mxu0 0.0
  %2816 = vmatpush2.msra.mxu0 0.0
  %2817 = vmatprep.subr.mxu0 0.0
  %2818 = vmatpush2.msra.mxu0 0.0
  %2819 = vmatprep.subr.mxu0 0.0
  %2820 = vmatpush2.msra.mxu0 0.0
  %2821 = vmatprep.subr.mxu0 0.0
  %2822 = vmatpush2.msra.mxu0 0.0
  %2823 = vmatprep.subr.mxu0 0.0
  %2824 = vmatpush2.msra.mxu0 0.0
  %2825 = vmatprep.subr.mxu0 0.0
  %2826 = vmatpush2.msra.mxu0 0.0
  %2827 = vmatprep.subr.mxu0 0.0
  %2828 = vmatpush2.msra.mxu0 0.0
  %2829 = vmatprep.subr.mxu0 0.0
  %2830 = vmatpush2.msra.mxu0 0.0
  %2831 = vmatprep.subr.mxu0 0.0
  %2832 = vmatpush2.msra.mxu0 0.0
  %2833 = vmatprep.subr.mxu0 0.0
  %2834 = vmatpush2.msra.mxu0 0.0
  %2835 = vmatprep.mubr.f32.mxu0 0.0
  %2836 = vmatmul.mubr.f32.gmra.mxu0 %v2767
  %v2837 = vpop.f32.mrf.mxu0
  %v2838 = vadd.f32 %v2759, %v2837
  %v2839 = vpop.f32.mrf.mxu0
  %2840 = vmatprep.mubr.f32.mxu0 0.0
  %2841 = vmatmul.mubr.f32.gmra.mxu0 %v2769
  %v2842 = vpop.f32.mrf.mxu0
  %v2843 = vadd.f32 %v2764, %v2842
  %v2844 = vpop.f32.mrf.mxu0
  %2845 = vdwg.mxu0
  %v2846 = vrot.slane %v2681, 2
  %v2847 = vrot.slane %v2682, 2
  %v2848 = vsel %vm427, %v2846, %v2847
  %v2849 = vsel %vm669, %v2848, 0
  %v2851 = vsel %vm669, %v2847, 0
  %2853 = vmatprep.subr.mxu0 0.0
  %2854 = vmatpush1.msra.mxu0 0.0
  %2855 = vmatprep.subr.mxu0 0.0
  %2856 = vmatpush1.msra.mxu0 0.0
  %2857 = vmatprep.subr.mxu0 0.0
  %2858 = vmatpush1.msra.mxu0 %v842
  %2859 = vmatprep.subr.mxu0 0.0
  %2860 = vmatpush1.msra.mxu0 %v107
  %2861 = vmatprep.subr.mxu0 0.0
  %2862 = vmatpush1.msra.mxu0 %v106
  %2863 = vmatprep.subr.mxu0 0.0
  %2864 = vmatpush1.msra.mxu0 %v105
  %2865 = vmatprep.subr.mxu0 0.0
  %2866 = vmatpush1.msra.mxu0 %v104
  %2867 = vmatprep.subr.mxu0 0.0
  %2868 = vmatpush1.msra.mxu0 %v103
  %2869 = vmatprep.subr.mxu0 0.0
  %2870 = vmatpush1.msra.mxu0 %v102
  %2871 = vmatprep.subr.mxu0 0.0
  %2872 = vmatpush1.msra.mxu0 %v101
  %2873 = vmatprep.subr.mxu0 0.0
  %2874 = vmatpush1.msra.mxu0 %v100
  %2875 = vmatprep.subr.mxu0 0.0
  %2876 = vmatpush1.msra.mxu0 %v99
  %2877 = vmatprep.subr.mxu0 0.0
  %2878 = vmatpush1.msra.mxu0 %v98
  %2879 = vmatprep.subr.mxu0 0.0
  %2880 = vmatpush1.msra.mxu0 %v97
  %2881 = vmatprep.subr.mxu0 0.0
  %2882 = vmatpush1.msra.mxu0 %v96
  %2883 = vmatprep.subr.mxu0 0.0
  %2884 = vmatpush1.msra.mxu0 %v95
  %2885 = vmatprep.subr.mxu0 0.0
  %2886 = vmatpush2.msra.mxu0 0.0
  %2887 = vmatprep.subr.mxu0 0.0
  %2888 = vmatpush2.msra.mxu0 0.0
  %2889 = vmatprep.subr.mxu0 0.0
  %2890 = vmatpush2.msra.mxu0 0.0
  %2891 = vmatprep.subr.mxu0 0.0
  %2892 = vmatpush2.msra.mxu0 0.0
  %2893 = vmatprep.subr.mxu0 0.0
  %2894 = vmatpush2.msra.mxu0 0.0
  %2895 = vmatprep.subr.mxu0 0.0
  %2896 = vmatpush2.msra.mxu0 0.0
  %2897 = vmatprep.subr.mxu0 0.0
  %2898 = vmatpush2.msra.mxu0 0.0
  %2899 = vmatprep.subr.mxu0 0.0
  %2900 = vmatpush2.msra.mxu0 0.0
  %2901 = vmatprep.subr.mxu0 0.0
  %2902 = vmatpush2.msra.mxu0 0.0
  %2903 = vmatprep.subr.mxu0 0.0
  %2904 = vmatpush2.msra.mxu0 0.0
  %2905 = vmatprep.subr.mxu0 0.0
  %2906 = vmatpush2.msra.mxu0 0.0
  %2907 = vmatprep.subr.mxu0 0.0
  %2908 = vmatpush2.msra.mxu0 0.0
  %2909 = vmatprep.subr.mxu0 0.0
  %2910 = vmatpush2.msra.mxu0 0.0
  %2911 = vmatprep.subr.mxu0 0.0
  %2912 = vmatpush2.msra.mxu0 0.0
  %2913 = vmatprep.subr.mxu0 0.0
  %2914 = vmatpush2.msra.mxu0 0.0
  %2915 = vmatprep.subr.mxu0 0.0
  %2916 = vmatpush2.msra.mxu0 0.0
  %2917 = vmatprep.mubr.f32.mxu0 0.0
  %2918 = vmatmul.mubr.f32.gmra.mxu0 %v2849
  %v2919 = vpop.f32.mrf.mxu0
  %v2920 = vadd.f32 0.0, %v2919
  %v2921 = vpop.f32.mrf.mxu0
  %2922 = vmatprep.mubr.f32.mxu0 0.0
  %2923 = vmatmul.mubr.f32.gmra.mxu0 %v2851
  %v2924 = vpop.f32.mrf.mxu0
  %v2925 = vadd.f32 0.0, %v2924
  %v2926 = vpop.f32.mrf.mxu0
  %2927 = vdwg.mxu0
  %v2928 = vadd.f32 %v2838, %v2920
  %v2929 = vadd.f32 %v2843, %v2925
  %v2930 = vadd.f32 %v2928, %v925
  %v2931 = vadd.f32 %v2929, %v925
  %v2932 = vmax.f32 %v2930, 0.0
  %v2933 = vmax.f32 %v2931, 0.0
  %v2936 = vrot.slane %v2932, 1
  %v2937 = vrot.slane %v2933, 1
  %v2938 = vsel %vm225, %v2936, %v2937
  %v2941 = vmax.f32 %v2932, %v2938
  %v2942 = vmax.f32 %v2933, %v2937
  %v2944 = vsel %vm947, %v2942, 0
  %2946 = vmatprep.subr.mxu0 0.0
  %2947 = vmatpush1.msra.mxu0 0.0
  %2948 = vmatprep.subr.mxu0 0.0
  %2949 = vmatpush1.msra.mxu0 0.0
  %2950 = vmatprep.subr.mxu0 0.0
  %2951 = vmatpush1.msra.mxu0 0.0
  %2952 = vmatprep.subr.mxu0 0.0
  %2953 = vmatpush1.msra.mxu0 0.0
  %2954 = vmatprep.subr.mxu0 0.0
  %2955 = vmatpush1.msra.mxu0 0.0
  %2956 = vmatprep.subr.mxu0 0.0
  %2957 = vmatpush1.msra.mxu0 0.0
  %2958 = vmatprep.subr.mxu0 0.0
  %2959 = vmatpush1.msra.mxu0 0.0
  %2960 = vmatprep.subr.mxu0 0.0
  %2961 = vmatpush1.msra.mxu0 0.0
  %2962 = vmatprep.subr.mxu0 0.0
  %2963 = vmatpush1.msra.mxu0 0.0
  %2964 = vmatprep.subr.mxu0 0.0
  %2965 = vmatpush1.msra.mxu0 0.0
  %2966 = vmatprep.subr.mxu0 0.0
  %2967 = vmatpush1.msra.mxu0 0.0
  %2968 = vmatprep.subr.mxu0 0.0
  %2969 = vmatpush1.msra.mxu0 0.0
  %2970 = vmatprep.subr.mxu0 0.0
  %2971 = vmatpush1.msra.mxu0 0.0
  %2972 = vmatprep.subr.mxu0 0.0
  %2973 = vmatpush1.msra.mxu0 0.0
  %2974 = vmatprep.subr.mxu0 0.0
  %2975 = vmatpush1.msra.mxu0 %v2944
  %2976 = vmatprep.subr.mxu0 0.0
  %2977 = vmatpush1.msra.mxu0 %v2941
  %2978 = vmatprep.subr.mxu0 0.0
  %2979 = vmatpush2.msra.mxu0 0.0
  %2980 = vmatprep.subr.mxu0 0.0
  %2981 = vmatpush2.msra.mxu0 0.0
  %2982 = vmatprep.subr.mxu0 0.0
  %2983 = vmatpush2.msra.mxu0 0.0
  %2984 = vmatprep.subr.mxu0 0.0
  %2985 = vmatpush2.msra.mxu0 0.0
  %2986 = vmatprep.subr.mxu0 0.0
  %2987 = vmatpush2.msra.mxu0 0.0
  %2988 = vmatprep.subr.mxu0 0.0
  %2989 = vmatpush2.msra.mxu0 0.0
  %2990 = vmatprep.subr.mxu0 0.0
  %2991 = vmatpush2.msra.mxu0 0.0
  %2992 = vmatprep.subr.mxu0 0.0
  %2993 = vmatpush2.msra.mxu0 0.0
  %2994 = vmatprep.subr.mxu0 0.0
  %2995 = vmatpush2.msra.mxu0 0.0
  %2996 = vmatprep.subr.mxu0 0.0
  %2997 = vmatpush2.msra.mxu0 0.0
  %2998 = vmatprep.subr.mxu0 0.0
  %2999 = vmatpush2.msra.mxu0 0.0
  %3000 = vmatprep.subr.mxu0 0.0
  %3001 = vmatpush2.msra.mxu0 0.0
  %3002 = vmatprep.subr.mxu0 0.0
  %3003 = vmatpush2.msra.mxu0 0.0
  %3004 = vmatprep.subr.mxu0 0.0
  %3005 = vmatpush2.msra.mxu0 0.0
  %3006 = vmatprep.subr.mxu0 0.0
  %3007 = vmatpush2.msra.mxu0 0.0
  %3008 = vmatprep.subr.mxu0 0.0
  %3009 = vmatpush2.msra.mxu0 0.0
  %3010 = vmatprep.mubr.f32.mxu0 0.0
  %3011 = vmatmul.mubr.f32.gmra.mxu0 %v942
  %v3012 = vpop.f32.mrf.mxu0
  %v3013 = vadd.f32 0.0, %v3012
  %v3014 = vpop.f32.mrf.mxu0
  %3015 = vmatprep.mubr.f32.mxu0 0.0
  %3016 = vmatmul.mubr.f32.gmra.mxu0 %v945
  %v3017 = vpop.f32.mrf.mxu0
  %v3018 = vadd.f32 0.0, %v3017
  %v3019 = vpop.f32.mrf.mxu0
  %3020 = vdwg.mxu0
  %3023 = vrot.lane.b32.xlu0 %v3013, 120
  %v3024 = vpop.permute.xlu0 %3023
  %3025 = vrot.lane.b32.xlu0 %v3018, 120
  %v3026 = vpop.permute.xlu0 %3025
  %v3029 = vmax.f32 %v3013, %v3024
  %v3030 = vmax.f32 %v3018, %v3026
  %v3032 = vrot.slane %v3029, 1
  %v3033 = vsel %vm1038, %v3032, 0
  %3035 = vmatprep.subr.mxu0 0.0
  %3036 = vmatpush1.msra.mxu0 0.0
  %3037 = vmatprep.subr.mxu0 0.0
  %3038 = vmatpush1.msra.mxu0 0.0
  %3039 = vmatprep.subr.mxu0 0.0
  %3040 = vmatpush1.msra.mxu0 0.0
  %3041 = vmatprep.subr.mxu0 0.0
  %3042 = vmatpush1.msra.mxu0 %v136
  %3043 = vmatprep.subr.mxu0 0.0
  %3044 = vmatpush1.msra.mxu0 %v135
  %3045 = vmatprep.subr.mxu0 0.0
  %3046 = vmatpush1.msra.mxu0 %v134
  %3047 = vmatprep.subr.mxu0 0.0
  %3048 = vmatpush1.msra.mxu0 %v133
  %3049 = vmatprep.subr.mxu0 0.0
  %3050 = vmatpush1.msra.mxu0 %v132
  %3051 = vmatprep.subr.mxu0 0.0
  %3052 = vmatpush1.msra.mxu0 %v131
  %3053 = vmatprep.subr.mxu0 0.0
  %3054 = vmatpush1.msra.mxu0 %v130
  %3055 = vmatprep.subr.mxu0 0.0
  %3056 = vmatpush1.msra.mxu0 %v129
  %3057 = vmatprep.subr.mxu0 0.0
  %3058 = vmatpush1.msra.mxu0 %v128
  %3059 = vmatprep.subr.mxu0 0.0
  %3060 = vmatpush1.msra.mxu0 %v127
  %3061 = vmatprep.subr.mxu0 0.0
  %3062 = vmatpush1.msra.mxu0 %v126
  %3063 = vmatprep.subr.mxu0 0.0
  %3064 = vmatpush1.msra.mxu0 %v125
  %3065 = vmatprep.subr.mxu0 0.0
  %3066 = vmatpush1.msra.mxu0 %v124
  %3067 = vmatprep.subr.mxu0 0.0
  %3068 = vmatpush2.msra.mxu0 0.0
  %3069 = vmatprep.subr.mxu0 0.0
  %3070 = vmatpush2.msra.mxu0 0.0
  %3071 = vmatprep.subr.mxu0 0.0
  %3072 = vmatpush2.msra.mxu0 0.0
  %3073 = vmatprep.subr.mxu0 0.0
  %3074 = vmatpush2.msra.mxu0 0.0
  %3075 = vmatprep.subr.mxu0 0.0
  %3076 = vmatpush2.msra.mxu0 0.0
  %3077 = vmatprep.subr.mxu0 0.0
  %3078 = vmatpush2.msra.mxu0 0.0
  %3079 = vmatprep.subr.mxu0 0.0
  %3080 = vmatpush2.msra.mxu0 0.0
  %3081 = vmatprep.subr.mxu0 0.0
  %3082 = vmatpush2.msra.mxu0 0.0
  %3083 = vmatprep.subr.mxu0 0.0
  %3084 = vmatpush2.msra.mxu0 0.0
  %3085 = vmatprep.subr.mxu0 0.0
  %3086 = vmatpush2.msra.mxu0 0.0
  %3087 = vmatprep.subr.mxu0 0.0
  %3088 = vmatpush2.msra.mxu0 0.0
  %3089 = vmatprep.subr.mxu0 0.0
  %3090 = vmatpush2.msra.mxu0 0.0
  %3091 = vmatprep.subr.mxu0 0.0
  %3092 = vmatpush2.msra.mxu0 0.0
  %3093 = vmatprep.subr.mxu0 0.0
  %3094 = vmatpush2.msra.mxu0 0.0
  %3095 = vmatprep.subr.mxu0 0.0
  %3096 = vmatpush2.msra.mxu0 0.0
  %3097 = vmatprep.subr.mxu0 0.0
  %3098 = vmatpush2.msra.mxu0 0.0
  %3099 = vmatprep.mubr.f32.mxu0 0.0
  %3100 = vmatmul.mubr.f32.gmra.mxu0 %v3033
  %v3101 = vpop.f32.mrf.mxu0
  %v3102 = vadd.f32 0.0, %v3101
  %v3103 = vpop.f32.mrf.mxu0
  %3104 = vdwg.mxu0
  %v3105 = vsel %vm1038, %v3029, 0
  %3107 = vmatprep.subr.mxu0 0.0
  %3108 = vmatpush1.msra.mxu0 0.0
  %3109 = vmatprep.subr.mxu0 0.0
  %3110 = vmatpush1.msra.mxu0 0.0
  %3111 = vmatprep.subr.mxu0 0.0
  %3112 = vmatpush1.msra.mxu0 0.0
  %3113 = vmatprep.subr.mxu0 0.0
  %3114 = vmatpush1.msra.mxu0 %v122
  %3115 = vmatprep.subr.mxu0 0.0
  %3116 = vmatpush1.msra.mxu0 %v121
  %3117 = vmatprep.subr.mxu0 0.0
  %3118 = vmatpush1.msra.mxu0 %v120
  %3119 = vmatprep.subr.mxu0 0.0
  %3120 = vmatpush1.msra.mxu0 %v119
  %3121 = vmatprep.subr.mxu0 0.0
  %3122 = vmatpush1.msra.mxu0 %v118
  %3123 = vmatprep.subr.mxu0 0.0
  %3124 = vmatpush1.msra.mxu0 %v117
  %3125 = vmatprep.subr.mxu0 0.0
  %3126 = vmatpush1.msra.mxu0 %v116
  %3127 = vmatprep.subr.mxu0 0.0
  %3128 = vmatpush1.msra.mxu0 %v115
  %3129 = vmatprep.subr.mxu0 0.0
  %3130 = vmatpush1.msra.mxu0 %v114
  %3131 = vmatprep.subr.mxu0 0.0
  %3132 = vmatpush1.msra.mxu0 %v113
  %3133 = vmatprep.subr.mxu0 0.0
  %3134 = vmatpush1.msra.mxu0 %v112
  %3135 = vmatprep.subr.mxu0 0.0
  %3136 = vmatpush1.msra.mxu0 %v111
  %3137 = vmatprep.subr.mxu0 0.0
  %3138 = vmatpush1.msra.mxu0 %v110
  %3139 = vmatprep.subr.mxu0 0.0
  %3140 = vmatpush2.msra.mxu0 0.0
  %3141 = vmatprep.subr.mxu0 0.0
  %3142 = vmatpush2.msra.mxu0 0.0
  %3143 = vmatprep.subr.mxu0 0.0
  %3144 = vmatpush2.msra.mxu0 0.0
  %3145 = vmatprep.subr.mxu0 0.0
  %3146 = vmatpush2.msra.mxu0 0.0
  %3147 = vmatprep.subr.mxu0 0.0
  %3148 = vmatpush2.msra.mxu0 0.0
  %3149 = vmatprep.subr.mxu0 0.0
  %3150 = vmatpush2.msra.mxu0 0.0
  %3151 = vmatprep.subr.mxu0 0.0
  %3152 = vmatpush2.msra.mxu0 0.0
  %3153 = vmatprep.subr.mxu0 0.0
  %3154 = vmatpush2.msra.mxu0 0.0
  %3155 = vmatprep.subr.mxu0 0.0
  %3156 = vmatpush2.msra.mxu0 0.0
  %3157 = vmatprep.subr.mxu0 0.0
  %3158 = vmatpush2.msra.mxu0 0.0
  %3159 = vmatprep.subr.mxu0 0.0
  %3160 = vmatpush2.msra.mxu0 0.0
  %3161 = vmatprep.subr.mxu0 0.0
  %3162 = vmatpush2.msra.mxu0 0.0
  %3163 = vmatprep.subr.mxu0 0.0
  %3164 = vmatpush2.msra.mxu0 0.0
  %3165 = vmatprep.subr.mxu0 0.0
  %3166 = vmatpush2.msra.mxu0 0.0
  %3167 = vmatprep.subr.mxu0 0.0
  %3168 = vmatpush2.msra.mxu0 0.0
  %3169 = vmatprep.subr.mxu0 0.0
  %3170 = vmatpush2.msra.mxu0 0.0
  %3171 = vmatprep.mubr.f32.mxu0 0.0
  %3172 = vmatmul.mubr.f32.gmra.mxu0 %v3105
  %v3173 = vpop.f32.mrf.mxu0
  %v3174 = vadd.f32 %v3102, %v3173
  %v3175 = vpop.f32.mrf.mxu0
  %3176 = vdwg.mxu0
  %v3178 = vrot.slane %v3029, 2
  %v3179 = vrot.slane %v3030, 2
  %v3180 = vsel %vm427, %v3178, %v3179
  %v3181 = vsel %vm1038, %v3180, 0
  %3183 = vmatprep.subr.mxu0 0.0
  %3184 = vmatpush1.msra.mxu0 0.0
  %3185 = vmatprep.subr.mxu0 0.0
  %3186 = vmatpush1.msra.mxu0 0.0
  %3187 = vmatprep.subr.mxu0 0.0
  %3188 = vmatpush1.msra.mxu0 0.0
  %3189 = vmatprep.subr.mxu0 0.0
  %3190 = vmatpush1.msra.mxu0 %v150
  %3191 = vmatprep.subr.mxu0 0.0
  %3192 = vmatpush1.msra.mxu0 %v149
  %3193 = vmatprep.subr.mxu0 0.0
  %3194 = vmatpush1.msra.mxu0 %v148
  %3195 = vmatprep.subr.mxu0 0.0
  %3196 = vmatpush1.msra.mxu0 %v147
  %3197 = vmatprep.subr.mxu0 0.0
  %3198 = vmatpush1.msra.mxu0 %v146
  %3199 = vmatprep.subr.mxu0 0.0
  %3200 = vmatpush1.msra.mxu0 %v145
  %3201 = vmatprep.subr.mxu0 0.0
  %3202 = vmatpush1.msra.mxu0 %v144
  %3203 = vmatprep.subr.mxu0 0.0
  %3204 = vmatpush1.msra.mxu0 %v143
  %3205 = vmatprep.subr.mxu0 0.0
  %3206 = vmatpush1.msra.mxu0 %v142
  %3207 = vmatprep.subr.mxu0 0.0
  %3208 = vmatpush1.msra.mxu0 %v141
  %3209 = vmatprep.subr.mxu0 0.0
  %3210 = vmatpush1.msra.mxu0 %v140
  %3211 = vmatprep.subr.mxu0 0.0
  %3212 = vmatpush1.msra.mxu0 %v139
  %3213 = vmatprep.subr.mxu0 0.0
  %3214 = vmatpush1.msra.mxu0 %v138
  %3215 = vmatprep.subr.mxu0 0.0
  %3216 = vmatpush2.msra.mxu0 0.0
  %3217 = vmatprep.subr.mxu0 0.0
  %3218 = vmatpush2.msra.mxu0 0.0
  %3219 = vmatprep.subr.mxu0 0.0
  %3220 = vmatpush2.msra.mxu0 0.0
  %3221 = vmatprep.subr.mxu0 0.0
  %3222 = vmatpush2.msra.mxu0 0.0
  %3223 = vmatprep.subr.mxu0 0.0
  %3224 = vmatpush2.msra.mxu0 0.0
  %3225 = vmatprep.subr.mxu0 0.0
  %3226 = vmatpush2.msra.mxu0 0.0
  %3227 = vmatprep.subr.mxu0 0.0
  %3228 = vmatpush2.msra.mxu0 0.0
  %3229 = vmatprep.subr.mxu0 0.0
  %3230 = vmatpush2.msra.mxu0 0.0
  %3231 = vmatprep.subr.mxu0 0.0
  %3232 = vmatpush2.msra.mxu0 0.0
  %3233 = vmatprep.subr.mxu0 0.0
  %3234 = vmatpush2.msra.mxu0 0.0
  %3235 = vmatprep.subr.mxu0 0.0
  %3236 = vmatpush2.msra.mxu0 0.0
  %3237 = vmatprep.subr.mxu0 0.0
  %3238 = vmatpush2.msra.mxu0 0.0
  %3239 = vmatprep.subr.mxu0 0.0
  %3240 = vmatpush2.msra.mxu0 0.0
  %3241 = vmatprep.subr.mxu0 0.0
  %3242 = vmatpush2.msra.mxu0 0.0
  %3243 = vmatprep.subr.mxu0 0.0
  %3244 = vmatpush2.msra.mxu0 0.0
  %3245 = vmatprep.subr.mxu0 0.0
  %3246 = vmatpush2.msra.mxu0 0.0
  %3247 = vmatprep.mubr.f32.mxu0 0.0
  %3248 = vmatmul.mubr.f32.gmra.mxu0 %v3181
  %v3249 = vpop.f32.mrf.mxu0
  %v3250 = vadd.f32 0.0, %v3249
  %v3251 = vpop.f32.mrf.mxu0
  %3252 = vdwg.mxu0
  %v3253 = vadd.f32 %v3174, %v3250
  %v3254 = vadd.f32 %v3253, %v1264
  %v3255 = vmax.f32 %v3254, 0.0
  %s3256 = scalar_lea.vmem %s0, 96
  %v3257 = vld [vmem:[%s3256] sm:$0xff]
  %v3258 = vld [vmem:[%s3256 + $0x8] sm:$0xff]
  %v3259 = vld [vmem:[%s3256 + $0x10] sm:$0xff]
  %v3260 = vld [vmem:[%s3256 + $0x18] sm:$0x3f]
  %v3265 = vrot.slane %v3257, 1
  %v3266 = vrot.slane %v3258, 1
  %v3267 = vsel %vm225, %v3265, %v3266
  %v3268 = vrot.slane %v3259, 1
  %v3269 = vsel %vm225, %v3266, %v3268
  %v3270 = vrot.slane %v3260, 1
  %v3271 = vsel %vm225, %v3268, %v3270
  %v3272 = vsel %vm233, %v3267, 0
  %v3274 = vsel %vm233, %v3269, 0
  %v3276 = vsel %vm233, %v3271, 0
  %v3278 = vsel %vm233, %v3270, 0
  %3280 = vmatprep.subr.mxu0 0.0
  %3281 = vmatpush1.msra.mxu0 0.0
  %3282 = vmatprep.subr.mxu0 0.0
  %3283 = vmatpush1.msra.mxu0 0.0
  %3284 = vmatprep.subr.mxu0 0.0
  %3285 = vmatpush1.msra.mxu0 0.0
  %3286 = vmatprep.subr.mxu0 0.0
  %3287 = vmatpush1.msra.mxu0 0.0
  %3288 = vmatprep.subr.mxu0 0.0
  %3289 = vmatpush1.msra.mxu0 0.0
  %3290 = vmatprep.subr.mxu0 0.0
  %3291 = vmatpush1.msra.mxu0 0.0
  %3292 = vmatprep.subr.mxu0 0.0
  %3293 = vmatpush1.msra.mxu0 0.0
  %3294 = vmatprep.subr.mxu0 0.0
  %3295 = vmatpush1.msra.mxu0 0.0
  %3296 = vmatprep.subr.mxu0 0.0
  %3297 = vmatpush1.msra.mxu0 0.0
  %3298 = vmatprep.subr.mxu0 0.0
  %3299 = vmatpush1.msra.mxu0 0.0
  %3300 = vmatprep.subr.mxu0 0.0
  %3301 = vmatpush1.msra.mxu0 0.0
  %3302 = vmatprep.subr.mxu0 0.0
  %3303 = vmatpush1.msra.mxu0 0.0
  %3304 = vmatprep.subr.mxu0 0.0
  %3305 = vmatpush1.msra.mxu0 %v244
  %3306 = vmatprep.subr.mxu0 0.0
  %3307 = vmatpush1.msra.mxu0 %v57
  %3308 = vmatprep.subr.mxu0 0.0
  %3309 = vmatpush1.msra.mxu0 %v56
  %3310 = vmatprep.subr.mxu0 0.0
  %3311 = vmatpush1.msra.mxu0 %v55
  %3312 = vmatprep.subr.mxu0 0.0
  %3313 = vmatpush2.msra.mxu0 0.0
  %3314 = vmatprep.subr.mxu0 0.0
  %3315 = vmatpush2.msra.mxu0 0.0
  %3316 = vmatprep.subr.mxu0 0.0
  %3317 = vmatpush2.msra.mxu0 0.0
  %3318 = vmatprep.subr.mxu0 0.0
  %3319 = vmatpush2.msra.mxu0 0.0
  %3320 = vmatprep.subr.mxu0 0.0
  %3321 = vmatpush2.msra.mxu0 0.0
  %3322 = vmatprep.subr.mxu0 0.0
  %3323 = vmatpush2.msra.mxu0 0.0
  %3324 = vmatprep.subr.mxu0 0.0
  %3325 = vmatpush2.msra.mxu0 0.0
  %3326 = vmatprep.subr.mxu0 0.0
  %3327 = vmatpush2.msra.mxu0 0.0
  %3328 = vmatprep.subr.mxu0 0.0
  %3329 = vmatpush2.msra.mxu0 0.0
  %3330 = vmatprep.subr.mxu0 0.0
  %3331 = vmatpush2.msra.mxu0 0.0
  %3332 = vmatprep.subr.mxu0 0.0
  %3333 = vmatpush2.msra.mxu0 0.0
  %3334 = vmatprep.subr.mxu0 0.0
  %3335 = vmatpush2.msra.mxu0 0.0
  %3336 = vmatprep.subr.mxu0 0.0
  %3337 = vmatpush2.msra.mxu0 0.0
  %3338 = vmatprep.subr.mxu0 0.0
  %3339 = vmatpush2.msra.mxu0 0.0
  %3340 = vmatprep.subr.mxu0 0.0
  %3341 = vmatpush2.msra.mxu0 0.0
  %3342 = vmatprep.subr.mxu0 0.0
  %3343 = vmatpush2.msra.mxu0 0.0
  %3344 = vmatprep.mubr.f32.mxu0 0.0
  %3345 = vmatmul.mubr.f32.gmra.mxu0 %v3272
  %v3346 = vpop.f32.mrf.mxu0
  %v3347 = vadd.f32 0.0, %v3346
  %v3348 = vpop.f32.mrf.mxu0
  %3349 = vmatprep.mubr.f32.mxu0 0.0
  %3350 = vmatmul.mubr.f32.gmra.mxu0 %v3274
  %v3351 = vpop.f32.mrf.mxu0
  %v3352 = vadd.f32 0.0, %v3351
  %v3353 = vpop.f32.mrf.mxu0
  %3354 = vmatprep.mubr.f32.mxu0 0.0
  %3355 = vmatmul.mubr.f32.gmra.mxu0 %v3276
  %v3356 = vpop.f32.mrf.mxu0
  %v3357 = vadd.f32 0.0, %v3356
  %v3358 = vpop.f32.mrf.mxu0
  %3359 = vmatprep.mubr.f32.mxu0 0.0
  %3360 = vmatmul.mubr.f32.gmra.mxu0 %v3278
  %v3361 = vpop.f32.mrf.mxu0
  %v3362 = vadd.f32 0.0, %v3361
  %v3363 = vpop.f32.mrf.mxu0
  %3364 = vdwg.mxu0
  %v3365 = vsel %vm233, %v3257, 0
  %v3367 = vsel %vm233, %v3258, 0
  %v3369 = vsel %vm233, %v3259, 0
  %v3371 = vsel %vm233, %v3260, 0
  %3373 = vmatprep.subr.mxu0 0.0
  %3374 = vmatpush1.msra.mxu0 0.0
  %3375 = vmatprep.subr.mxu0 0.0
  %3376 = vmatpush1.msra.mxu0 0.0
  %3377 = vmatprep.subr.mxu0 0.0
  %3378 = vmatpush1.msra.mxu0 0.0
  %3379 = vmatprep.subr.mxu0 0.0
  %3380 = vmatpush1.msra.mxu0 0.0
  %3381 = vmatprep.subr.mxu0 0.0
  %3382 = vmatpush1.msra.mxu0 0.0
  %3383 = vmatprep.subr.mxu0 0.0
  %3384 = vmatpush1.msra.mxu0 0.0
  %3385 = vmatprep.subr.mxu0 0.0
  %3386 = vmatpush1.msra.mxu0 0.0
  %3387 = vmatprep.subr.mxu0 0.0
  %3388 = vmatpush1.msra.mxu0 0.0
  %3389 = vmatprep.subr.mxu0 0.0
  %3390 = vmatpush1.msra.mxu0 0.0
  %3391 = vmatprep.subr.mxu0 0.0
  %3392 = vmatpush1.msra.mxu0 0.0
  %3393 = vmatprep.subr.mxu0 0.0
  %3394 = vmatpush1.msra.mxu0 0.0
  %3395 = vmatprep.subr.mxu0 0.0
  %3396 = vmatpush1.msra.mxu0 0.0
  %3397 = vmatprep.subr.mxu0 0.0
  %3398 = vmatpush1.msra.mxu0 %v340
  %3399 = vmatprep.subr.mxu0 0.0
  %3400 = vmatpush1.msra.mxu0 %v52
  %3401 = vmatprep.subr.mxu0 0.0
  %3402 = vmatpush1.msra.mxu0 %v51
  %3403 = vmatprep.subr.mxu0 0.0
  %3404 = vmatpush1.msra.mxu0 %v50
  %3405 = vmatprep.subr.mxu0 0.0
  %3406 = vmatpush2.msra.mxu0 0.0
  %3407 = vmatprep.subr.mxu0 0.0
  %3408 = vmatpush2.msra.mxu0 0.0
  %3409 = vmatprep.subr.mxu0 0.0
  %3410 = vmatpush2.msra.mxu0 0.0
  %3411 = vmatprep.subr.mxu0 0.0
  %3412 = vmatpush2.msra.mxu0 0.0
  %3413 = vmatprep.subr.mxu0 0.0
  %3414 = vmatpush2.msra.mxu0 0.0
  %3415 = vmatprep.subr.mxu0 0.0
  %3416 = vmatpush2.msra.mxu0 0.0
  %3417 = vmatprep.subr.mxu0 0.0
  %3418 = vmatpush2.msra.mxu0 0.0
  %3419 = vmatprep.subr.mxu0 0.0
  %3420 = vmatpush2.msra.mxu0 0.0
  %3421 = vmatprep.subr.mxu0 0.0
  %3422 = vmatpush2.msra.mxu0 0.0
  %3423 = vmatprep.subr.mxu0 0.0
  %3424 = vmatpush2.msra.mxu0 0.0
  %3425 = vmatprep.subr.mxu0 0.0
  %3426 = vmatpush2.msra.mxu0 0.0
  %3427 = vmatprep.subr.mxu0 0.0
  %3428 = vmatpush2.msra.mxu0 0.0
  %3429 = vmatprep.subr.mxu0 0.0
  %3430 = vmatpush2.msra.mxu0 0.0
  %3431 = vmatprep.subr.mxu0 0.0
  %3432 = vmatpush2.msra.mxu0 0.0
  %3433 = vmatprep.subr.mxu0 0.0
  %3434 = vmatpush2.msra.mxu0 0.0
  %3435 = vmatprep.subr.mxu0 0.0
  %3436 = vmatpush2.msra.mxu0 0.0
  %3437 = vmatprep.mubr.f32.mxu0 0.0
  %3438 = vmatmul.mubr.f32.gmra.mxu0 %v3365
  %v3439 = vpop.f32.mrf.mxu0
  %v3440 = vadd.f32 %v3347, %v3439
  %v3441 = vpop.f32.mrf.mxu0
  %3442 = vmatprep.mubr.f32.mxu0 0.0
  %3443 = vmatmul.mubr.f32.gmra.mxu0 %v3367
  %v3444 = vpop.f32.mrf.mxu0
  %v3445 = vadd.f32 %v3352, %v3444
  %v3446 = vpop.f32.mrf.mxu0
  %3447 = vmatprep.mubr.f32.mxu0 0.0
  %3448 = vmatmul.mubr.f32.gmra.mxu0 %v3369
  %v3449 = vpop.f32.mrf.mxu0
  %v3450 = vadd.f32 %v3357, %v3449
  %v3451 = vpop.f32.mrf.mxu0
  %3452 = vmatprep.mubr.f32.mxu0 0.0
  %3453 = vmatmul.mubr.f32.gmra.mxu0 %v3371
  %v3454 = vpop.f32.mrf.mxu0
  %v3455 = vadd.f32 %v3362, %v3454
  %v3456 = vpop.f32.mrf.mxu0
  %3457 = vdwg.mxu0
  %v3458 = vrot.slane %v3257, 2
  %v3459 = vrot.slane %v3258, 2
  %v3460 = vsel %vm427, %v3458, %v3459
  %v3461 = vrot.slane %v3259, 2
  %v3462 = vsel %vm427, %v3459, %v3461
  %v3463 = vrot.slane %v3260, 2
  %v3464 = vsel %vm427, %v3461, %v3463
  %v3465 = vsel %vm233, %v3460, 0
  %v3467 = vsel %vm233, %v3462, 0
  %v3469 = vsel %vm233, %v3464, 0
  %v3471 = vsel %vm233, %v3463, 0
  %3473 = vmatprep.subr.mxu0 0.0
  %3474 = vmatpush1.msra.mxu0 0.0
  %3475 = vmatprep.subr.mxu0 0.0
  %3476 = vmatpush1.msra.mxu0 0.0
  %3477 = vmatprep.subr.mxu0 0.0
  %3478 = vmatpush1.msra.mxu0 0.0
  %3479 = vmatprep.subr.mxu0 0.0
  %3480 = vmatpush1.msra.mxu0 0.0
  %3481 = vmatprep.subr.mxu0 0.0
  %3482 = vmatpush1.msra.mxu0 0.0
  %3483 = vmatprep.subr.mxu0 0.0
  %3484 = vmatpush1.msra.mxu0 0.0
  %3485 = vmatprep.subr.mxu0 0.0
  %3486 = vmatpush1.msra.mxu0 0.0
  %3487 = vmatprep.subr.mxu0 0.0
  %3488 = vmatpush1.msra.mxu0 0.0
  %3489 = vmatprep.subr.mxu0 0.0
  %3490 = vmatpush1.msra.mxu0 0.0
  %3491 = vmatprep.subr.mxu0 0.0
  %3492 = vmatpush1.msra.mxu0 0.0
  %3493 = vmatprep.subr.mxu0 0.0
  %3494 = vmatpush1.msra.mxu0 0.0
  %3495 = vmatprep.subr.mxu0 0.0
  %3496 = vmatpush1.msra.mxu0 0.0
  %3497 = vmatprep.subr.mxu0 0.0
  %3498 = vmatpush1.msra.mxu0 %v444
  %3499 = vmatprep.subr.mxu0 0.0
  %3500 = vmatpush1.msra.mxu0 %v62
  %3501 = vmatprep.subr.mxu0 0.0
  %3502 = vmatpush1.msra.mxu0 %v61
  %3503 = vmatprep.subr.mxu0 0.0
  %3504 = vmatpush1.msra.mxu0 %v60
  %3505 = vmatprep.subr.mxu0 0.0
  %3506 = vmatpush2.msra.mxu0 0.0
  %3507 = vmatprep.subr.mxu0 0.0
  %3508 = vmatpush2.msra.mxu0 0.0
  %3509 = vmatprep.subr.mxu0 0.0
  %3510 = vmatpush2.msra.mxu0 0.0
  %3511 = vmatprep.subr.mxu0 0.0
  %3512 = vmatpush2.msra.mxu0 0.0
  %3513 = vmatprep.subr.mxu0 0.0
  %3514 = vmatpush2.msra.mxu0 0.0
  %3515 = vmatprep.subr.mxu0 0.0
  %3516 = vmatpush2.msra.mxu0 0.0
  %3517 = vmatprep.subr.mxu0 0.0
  %3518 = vmatpush2.msra.mxu0 0.0
  %3519 = vmatprep.subr.mxu0 0.0
  %3520 = vmatpush2.msra.mxu0 0.0
  %3521 = vmatprep.subr.mxu0 0.0
  %3522 = vmatpush2.msra.mxu0 0.0
  %3523 = vmatprep.subr.mxu0 0.0
  %3524 = vmatpush2.msra.mxu0 0.0
  %3525 = vmatprep.subr.mxu0 0.0
  %3526 = vmatpush2.msra.mxu0 0.0
  %3527 = vmatprep.subr.mxu0 0.0
  %3528 = vmatpush2.msra.mxu0 0.0
  %3529 = vmatprep.subr.mxu0 0.0
  %3530 = vmatpush2.msra.mxu0 0.0
  %3531 = vmatprep.subr.mxu0 0.0
  %3532 = vmatpush2.msra.mxu0 0.0
  %3533 = vmatprep.subr.mxu0 0.0
  %3534 = vmatpush2.msra.mxu0 0.0
  %3535 = vmatprep.subr.mxu0 0.0
  %3536 = vmatpush2.msra.mxu0 0.0
  %3537 = vmatprep.mubr.f32.mxu0 0.0
  %3538 = vmatmul.mubr.f32.gmra.mxu0 %v3465
  %v3539 = vpop.f32.mrf.mxu0
  %v3540 = vadd.f32 0.0, %v3539
  %v3541 = vpop.f32.mrf.mxu0
  %3542 = vmatprep.mubr.f32.mxu0 0.0
  %3543 = vmatmul.mubr.f32.gmra.mxu0 %v3467
  %v3544 = vpop.f32.mrf.mxu0
  %v3545 = vadd.f32 0.0, %v3544
  %v3546 = vpop.f32.mrf.mxu0
  %3547 = vmatprep.mubr.f32.mxu0 0.0
  %3548 = vmatmul.mubr.f32.gmra.mxu0 %v3469
  %v3549 = vpop.f32.mrf.mxu0
  %v3550 = vadd.f32 0.0, %v3549
  %v3551 = vpop.f32.mrf.mxu0
  %3552 = vmatprep.mubr.f32.mxu0 0.0
  %3553 = vmatmul.mubr.f32.gmra.mxu0 %v3471
  %v3554 = vpop.f32.mrf.mxu0
  %v3555 = vadd.f32 0.0, %v3554
  %v3556 = vpop.f32.mrf.mxu0
  %3557 = vdwg.mxu0
  %v3558 = vadd.f32 %v3440, %v3540
  %v3559 = vadd.f32 %v3445, %v3545
  %v3560 = vadd.f32 %v3450, %v3550
  %v3561 = vadd.f32 %v3455, %v3555
  %v3562 = vadd.f32 %v3558, %v539
  %v3563 = vadd.f32 %v3559, %v539
  %v3564 = vadd.f32 %v3560, %v539
  %v3565 = vadd.f32 %v3561, %v539
  %v3566 = vmax.f32 %v3562, 0.0
  %v3567 = vmax.f32 %v3563, 0.0
  %v3568 = vmax.f32 %v3564, 0.0
  %v3569 = vmax.f32 %v3565, 0.0
  %v3574 = vrot.slane %v3566, 1
  %v3575 = vrot.slane %v3567, 1
  %v3576 = vsel %vm225, %v3574, %v3575
  %v3577 = vrot.slane %v3568, 1
  %v3578 = vsel %vm225, %v3575, %v3577
  %v3579 = vrot.slane %v3569, 1
  %v3580 = vsel %vm225, %v3577, %v3579
  %v3585 = vmax.f32 %v3566, %v3576
  %v3586 = vmax.f32 %v3567, %v3578
  %v3587 = vmax.f32 %v3568, %v3580
  %v3588 = vmax.f32 %v3569, %v3579
  %v3590 = vsel %vm575, %v3588, 0
  %3592 = vmatprep.subr.mxu0 0.0
  %3593 = vmatpush1.msra.mxu0 0.0
  %3594 = vmatprep.subr.mxu0 0.0
  %3595 = vmatpush1.msra.mxu0 0.0
  %3596 = vmatprep.subr.mxu0 0.0
  %3597 = vmatpush1.msra.mxu0 0.0
  %3598 = vmatprep.subr.mxu0 0.0
  %3599 = vmatpush1.msra.mxu0 0.0
  %3600 = vmatprep.subr.mxu0 0.0
  %3601 = vmatpush1.msra.mxu0 0.0
  %3602 = vmatprep.subr.mxu0 0.0
  %3603 = vmatpush1.msra.mxu0 0.0
  %3604 = vmatprep.subr.mxu0 0.0
  %3605 = vmatpush1.msra.mxu0 0.0
  %3606 = vmatprep.subr.mxu0 0.0
  %3607 = vmatpush1.msra.mxu0 0.0
  %3608 = vmatprep.subr.mxu0 0.0
  %3609 = vmatpush1.msra.mxu0 0.0
  %3610 = vmatprep.subr.mxu0 0.0
  %3611 = vmatpush1.msra.mxu0 0.0
  %3612 = vmatprep.subr.mxu0 0.0
  %3613 = vmatpush1.msra.mxu0 0.0
  %3614 = vmatprep.subr.mxu0 0.0
  %3615 = vmatpush1.msra.mxu0 0.0
  %3616 = vmatprep.subr.mxu0 0.0
  %3617 = vmatpush1.msra.mxu0 %v3590
  %3618 = vmatprep.subr.mxu0 0.0
  %3619 = vmatpush1.msra.mxu0 %v3587
  %3620 = vmatprep.subr.mxu0 0.0
  %3621 = vmatpush1.msra.mxu0 %v3586
  %3622 = vmatprep.subr.mxu0 0.0
  %3623 = vmatpush1.msra.mxu0 %v3585
  %3624 = vmatprep.subr.mxu0 0.0
  %3625 = vmatpush2.msra.mxu0 0.0
  %3626 = vmatprep.subr.mxu0 0.0
  %3627 = vmatpush2.msra.mxu0 0.0
  %3628 = vmatprep.subr.mxu0 0.0
  %3629 = vmatpush2.msra.mxu0 0.0
  %3630 = vmatprep.subr.mxu0 0.0
  %3631 = vmatpush2.msra.mxu0 0.0
  %3632 = vmatprep.subr.mxu0 0.0
  %3633 = vmatpush2.msra.mxu0 0.0
  %3634 = vmatprep.subr.mxu0 0.0
  %3635 = vmatpush2.msra.mxu0 0.0
  %3636 = vmatprep.subr.mxu0 0.0
  %3637 = vmatpush2.msra.mxu0 0.0
  %3638 = vmatprep.subr.mxu0 0.0
  %3639 = vmatpush2.msra.mxu0 0.0
  %3640 = vmatprep.subr.mxu0 0.0
  %3641 = vmatpush2.msra.mxu0 0.0
  %3642 = vmatprep.subr.mxu0 0.0
  %3643 = vmatpush2.msra.mxu0 0.0
  %3644 = vmatprep.subr.mxu0 0.0
  %3645 = vmatpush2.msra.mxu0 0.0
  %3646 = vmatprep.subr.mxu0 0.0
  %3647 = vmatpush2.msra.mxu0 0.0
  %3648 = vmatprep.subr.mxu0 0.0
  %3649 = vmatpush2.msra.mxu0 0.0
  %3650 = vmatprep.subr.mxu0 0.0
  %3651 = vmatpush2.msra.mxu0 0.0
  %3652 = vmatprep.subr.mxu0 0.0
  %3653 = vmatpush2.msra.mxu0 0.0
  %3654 = vmatprep.subr.mxu0 0.0
  %3655 = vmatpush2.msra.mxu0 0.0
  %3656 = vmatprep.mubr.f32.mxu0 0.0
  %3657 = vmatmul.mubr.f32.gmra.mxu0 %v570
  %v3658 = vpop.f32.mrf.mxu0
  %v3659 = vadd.f32 0.0, %v3658
  %v3660 = vpop.f32.mrf.mxu0
  %3661 = vmatprep.mubr.f32.mxu0 0.0
  %3662 = vmatmul.mubr.f32.gmra.mxu0 %v573
  %v3663 = vpop.f32.mrf.mxu0
  %v3664 = vadd.f32 0.0, %v3663
  %v3665 = vpop.f32.mrf.mxu0
  %3666 = vdwg.mxu0
  %3669 = vrot.lane.b32.xlu0 %v3659, 124
  %v3670 = vpop.permute.xlu0 %3669
  %3671 = vrot.lane.b32.xlu0 %v3664, 124
  %v3672 = vpop.permute.xlu0 %3671
  %v3675 = vmax.f32 %v3659, %v3670
  %v3676 = vmax.f32 %v3664, %v3672
  %v3679 = vrot.slane %v3675, 1
  %v3680 = vrot.slane %v3676, 1
  %v3681 = vsel %vm225, %v3679, %v3680
  %v3682 = vsel %vm669, %v3681, 0
  %v3684 = vsel %vm669, %v3680, 0
  %3686 = vmatprep.subr.mxu0 0.0
  %3687 = vmatpush1.msra.mxu0 0.0
  %3688 = vmatprep.subr.mxu0 0.0
  %3689 = vmatpush1.msra.mxu0 0.0
  %3690 = vmatprep.subr.mxu0 0.0
  %3691 = vmatpush1.msra.mxu0 %v675
  %3692 = vmatprep.subr.mxu0 0.0
  %3693 = vmatpush1.msra.mxu0 %v92
  %3694 = vmatprep.subr.mxu0 0.0
  %3695 = vmatpush1.msra.mxu0 %v91
  %3696 = vmatprep.subr.mxu0 0.0
  %3697 = vmatpush1.msra.mxu0 %v90
  %3698 = vmatprep.subr.mxu0 0.0
  %3699 = vmatpush1.msra.mxu0 %v89
  %3700 = vmatprep.subr.mxu0 0.0
  %3701 = vmatpush1.msra.mxu0 %v88
  %3702 = vmatprep.subr.mxu0 0.0
  %3703 = vmatpush1.msra.mxu0 %v87
  %3704 = vmatprep.subr.mxu0 0.0
  %3705 = vmatpush1.msra.mxu0 %v86
  %3706 = vmatprep.subr.mxu0 0.0
  %3707 = vmatpush1.msra.mxu0 %v85
  %3708 = vmatprep.subr.mxu0 0.0
  %3709 = vmatpush1.msra.mxu0 %v84
  %3710 = vmatprep.subr.mxu0 0.0
  %3711 = vmatpush1.msra.mxu0 %v83
  %3712 = vmatprep.subr.mxu0 0.0
  %3713 = vmatpush1.msra.mxu0 %v82
  %3714 = vmatprep.subr.mxu0 0.0
  %3715 = vmatpush1.msra.mxu0 %v81
  %3716 = vmatprep.subr.mxu0 0.0
  %3717 = vmatpush1.msra.mxu0 %v80
  %3718 = vmatprep.subr.mxu0 0.0
  %3719 = vmatpush2.msra.mxu0 0.0
  %3720 = vmatprep.subr.mxu0 0.0
  %3721 = vmatpush2.msra.mxu0 0.0
  %3722 = vmatprep.subr.mxu0 0.0
  %3723 = vmatpush2.msra.mxu0 0.0
  %3724 = vmatprep.subr.mxu0 0.0
  %3725 = vmatpush2.msra.mxu0 0.0
  %3726 = vmatprep.subr.mxu0 0.0
  %3727 = vmatpush2.msra.mxu0 0.0
  %3728 = vmatprep.subr.mxu0 0.0
  %3729 = vmatpush2.msra.mxu0 0.0
  %3730 = vmatprep.subr.mxu0 0.0
  %3731 = vmatpush2.msra.mxu0 0.0
  %3732 = vmatprep.subr.mxu0 0.0
  %3733 = vmatpush2.msra.mxu0 0.0
  %3734 = vmatprep.subr.mxu0 0.0
  %3735 = vmatpush2.msra.mxu0 0.0
  %3736 = vmatprep.subr.mxu0 0.0
  %3737 = vmatpush2.msra.mxu0 0.0
  %3738 = vmatprep.subr.mxu0 0.0
  %3739 = vmatpush2.msra.mxu0 0.0
  %3740 = vmatprep.subr.mxu0 0.0
  %3741 = vmatpush2.msra.mxu0 0.0
  %3742 = vmatprep.subr.mxu0 0.0
  %3743 = vmatpush2.msra.mxu0 0.0
  %3744 = vmatprep.subr.mxu0 0.0
  %3745 = vmatpush2.msra.mxu0 0.0
  %3746 = vmatprep.subr.mxu0 0.0
  %3747 = vmatpush2.msra.mxu0 0.0
  %3748 = vmatprep.subr.mxu0 0.0
  %3749 = vmatpush2.msra.mxu0 0.0
  %3750 = vmatprep.mubr.f32.mxu0 0.0
  %3751 = vmatmul.mubr.f32.gmra.mxu0 %v3682
  %v3752 = vpop.f32.mrf.mxu0
  %v3753 = vadd.f32 0.0, %v3752
  %v3754 = vpop.f32.mrf.mxu0
  %3755 = vmatprep.mubr.f32.mxu0 0.0
  %3756 = vmatmul.mubr.f32.gmra.mxu0 %v3684
  %v3757 = vpop.f32.mrf.mxu0
  %v3758 = vadd.f32 0.0, %v3757
  %v3759 = vpop.f32.mrf.mxu0
  %3760 = vdwg.mxu0
  %v3761 = vsel %vm669, %v3675, 0
  %v3763 = vsel %vm669, %v3676, 0
  %3765 = vmatprep.subr.mxu0 0.0
  %3766 = vmatpush1.msra.mxu0 0.0
  %3767 = vmatprep.subr.mxu0 0.0
  %3768 = vmatpush1.msra.mxu0 0.0
  %3769 = vmatprep.subr.mxu0 0.0
  %3770 = vmatpush1.msra.mxu0 %v757
  %3771 = vmatprep.subr.mxu0 0.0
  %3772 = vmatpush1.msra.mxu0 %v77
  %3773 = vmatprep.subr.mxu0 0.0
  %3774 = vmatpush1.msra.mxu0 %v76
  %3775 = vmatprep.subr.mxu0 0.0
  %3776 = vmatpush1.msra.mxu0 %v75
  %3777 = vmatprep.subr.mxu0 0.0
  %3778 = vmatpush1.msra.mxu0 %v74
  %3779 = vmatprep.subr.mxu0 0.0
  %3780 = vmatpush1.msra.mxu0 %v73
  %3781 = vmatprep.subr.mxu0 0.0
  %3782 = vmatpush1.msra.mxu0 %v72
  %3783 = vmatprep.subr.mxu0 0.0
  %3784 = vmatpush1.msra.mxu0 %v71
  %3785 = vmatprep.subr.mxu0 0.0
  %3786 = vmatpush1.msra.mxu0 %v70
  %3787 = vmatprep.subr.mxu0 0.0
  %3788 = vmatpush1.msra.mxu0 %v69
  %3789 = vmatprep.subr.mxu0 0.0
  %3790 = vmatpush1.msra.mxu0 %v68
  %3791 = vmatprep.subr.mxu0 0.0
  %3792 = vmatpush1.msra.mxu0 %v67
  %3793 = vmatprep.subr.mxu0 0.0
  %3794 = vmatpush1.msra.mxu0 %v66
  %3795 = vmatprep.subr.mxu0 0.0
  %3796 = vmatpush1.msra.mxu0 %v65
  %3797 = vmatprep.subr.mxu0 0.0
  %3798 = vmatpush2.msra.mxu0 0.0
  %3799 = vmatprep.subr.mxu0 0.0
  %3800 = vmatpush2.msra.mxu0 0.0
  %3801 = vmatprep.subr.mxu0 0.0
  %3802 = vmatpush2.msra.mxu0 0.0
  %3803 = vmatprep.subr.mxu0 0.0
  %3804 = vmatpush2.msra.mxu0 0.0
  %3805 = vmatprep.subr.mxu0 0.0
  %3806 = vmatpush2.msra.mxu0 0.0
  %3807 = vmatprep.subr.mxu0 0.0
  %3808 = vmatpush2.msra.mxu0 0.0
  %3809 = vmatprep.subr.mxu0 0.0
  %3810 = vmatpush2.msra.mxu0 0.0
  %3811 = vmatprep.subr.mxu0 0.0
  %3812 = vmatpush2.msra.mxu0 0.0
  %3813 = vmatprep.subr.mxu0 0.0
  %3814 = vmatpush2.msra.mxu0 0.0
  %3815 = vmatprep.subr.mxu0 0.0
  %3816 = vmatpush2.msra.mxu0 0.0
  %3817 = vmatprep.subr.mxu0 0.0
  %3818 = vmatpush2.msra.mxu0 0.0
  %3819 = vmatprep.subr.mxu0 0.0
  %3820 = vmatpush2.msra.mxu0 0.0
  %3821 = vmatprep.subr.mxu0 0.0
  %3822 = vmatpush2.msra.mxu0 0.0
  %3823 = vmatprep.subr.mxu0 0.0
  %3824 = vmatpush2.msra.mxu0 0.0
  %3825 = vmatprep.subr.mxu0 0.0
  %3826 = vmatpush2.msra.mxu0 0.0
  %3827 = vmatprep.subr.mxu0 0.0
  %3828 = vmatpush2.msra.mxu0 0.0
  %3829 = vmatprep.mubr.f32.mxu0 0.0
  %3830 = vmatmul.mubr.f32.gmra.mxu0 %v3761
  %v3831 = vpop.f32.mrf.mxu0
  %v3832 = vadd.f32 %v3753, %v3831
  %v3833 = vpop.f32.mrf.mxu0
  %3834 = vmatprep.mubr.f32.mxu0 0.0
  %3835 = vmatmul.mubr.f32.gmra.mxu0 %v3763
  %v3836 = vpop.f32.mrf.mxu0
  %v3837 = vadd.f32 %v3758, %v3836
  %v3838 = vpop.f32.mrf.mxu0
  %3839 = vdwg.mxu0
  %v3840 = vrot.slane %v3675, 2
  %v3841 = vrot.slane %v3676, 2
  %v3842 = vsel %vm427, %v3840, %v3841
  %v3843 = vsel %vm669, %v3842, 0
  %v3845 = vsel %vm669, %v3841, 0
  %3847 = vmatprep.subr.mxu0 0.0
  %3848 = vmatpush1.msra.mxu0 0.0
  %3849 = vmatprep.subr.mxu0 0.0
  %3850 = vmatpush1.msra.mxu0 0.0
  %3851 = vmatprep.subr.mxu0 0.0
  %3852 = vmatpush1.msra.mxu0 %v842
  %3853 = vmatprep.subr.mxu0 0.0
  %3854 = vmatpush1.msra.mxu0 %v107
  %3855 = vmatprep.subr.mxu0 0.0
  %3856 = vmatpush1.msra.mxu0 %v106
  %3857 = vmatprep.subr.mxu0 0.0
  %3858 = vmatpush1.msra.mxu0 %v105
  %3859 = vmatprep.subr.mxu0 0.0
  %3860 = vmatpush1.msra.mxu0 %v104
  %3861 = vmatprep.subr.mxu0 0.0
  %3862 = vmatpush1.msra.mxu0 %v103
  %3863 = vmatprep.subr.mxu0 0.0
  %3864 = vmatpush1.msra.mxu0 %v102
  %3865 = vmatprep.subr.mxu0 0.0
  %3866 = vmatpush1.msra.mxu0 %v101
  %3867 = vmatprep.subr.mxu0 0.0
  %3868 = vmatpush1.msra.mxu0 %v100
  %3869 = vmatprep.subr.mxu0 0.0
  %3870 = vmatpush1.msra.mxu0 %v99
  %3871 = vmatprep.subr.mxu0 0.0
  %3872 = vmatpush1.msra.mxu0 %v98
  %3873 = vmatprep.subr.mxu0 0.0
  %3874 = vmatpush1.msra.mxu0 %v97
  %3875 = vmatprep.subr.mxu0 0.0
  %3876 = vmatpush1.msra.mxu0 %v96
  %3877 = vmatprep.subr.mxu0 0.0
  %3878 = vmatpush1.msra.mxu0 %v95
  %3879 = vmatprep.subr.mxu0 0.0
  %3880 = vmatpush2.msra.mxu0 0.0
  %3881 = vmatprep.subr.mxu0 0.0
  %3882 = vmatpush2.msra.mxu0 0.0
  %3883 = vmatprep.subr.mxu0 0.0
  %3884 = vmatpush2.msra.mxu0 0.0
  %3885 = vmatprep.subr.mxu0 0.0
  %3886 = vmatpush2.msra.mxu0 0.0
  %3887 = vmatprep.subr.mxu0 0.0
  %3888 = vmatpush2.msra.mxu0 0.0
  %3889 = vmatprep.subr.mxu0 0.0
  %3890 = vmatpush2.msra.mxu0 0.0
  %3891 = vmatprep.subr.mxu0 0.0
  %3892 = vmatpush2.msra.mxu0 0.0
  %3893 = vmatprep.subr.mxu0 0.0
  %3894 = vmatpush2.msra.mxu0 0.0
  %3895 = vmatprep.subr.mxu0 0.0
  %3896 = vmatpush2.msra.mxu0 0.0
  %3897 = vmatprep.subr.mxu0 0.0
  %3898 = vmatpush2.msra.mxu0 0.0
  %3899 = vmatprep.subr.mxu0 0.0
  %3900 = vmatpush2.msra.mxu0 0.0
  %3901 = vmatprep.subr.mxu0 0.0
  %3902 = vmatpush2.msra.mxu0 0.0
  %3903 = vmatprep.subr.mxu0 0.0
  %3904 = vmatpush2.msra.mxu0 0.0
  %3905 = vmatprep.subr.mxu0 0.0
  %3906 = vmatpush2.msra.mxu0 0.0
  %3907 = vmatprep.subr.mxu0 0.0
  %3908 = vmatpush2.msra.mxu0 0.0
  %3909 = vmatprep.subr.mxu0 0.0
  %3910 = vmatpush2.msra.mxu0 0.0
  %3911 = vmatprep.mubr.f32.mxu0 0.0
  %3912 = vmatmul.mubr.f32.gmra.mxu0 %v3843
  %v3913 = vpop.f32.mrf.mxu0
  %v3914 = vadd.f32 0.0, %v3913
  %v3915 = vpop.f32.mrf.mxu0
  %3916 = vmatprep.mubr.f32.mxu0 0.0
  %3917 = vmatmul.mubr.f32.gmra.mxu0 %v3845
  %v3918 = vpop.f32.mrf.mxu0
  %v3919 = vadd.f32 0.0, %v3918
  %v3920 = vpop.f32.mrf.mxu0
  %3921 = vdwg.mxu0
  %v3922 = vadd.f32 %v3832, %v3914
  %v3923 = vadd.f32 %v3837, %v3919
  %v3924 = vadd.f32 %v3922, %v925
  %v3925 = vadd.f32 %v3923, %v925
  %v3926 = vmax.f32 %v3924, 0.0
  %v3927 = vmax.f32 %v3925, 0.0
  %v3930 = vrot.slane %v3926, 1
  %v3931 = vrot.slane %v3927, 1
  %v3932 = vsel %vm225, %v3930, %v3931
  %v3935 = vmax.f32 %v3926, %v3932
  %v3936 = vmax.f32 %v3927, %v3931
  %v3938 = vsel %vm947, %v3936, 0
  %3940 = vmatprep.subr.mxu0 0.0
  %3941 = vmatpush1.msra.mxu0 0.0
  %3942 = vmatprep.subr.mxu0 0.0
  %3943 = vmatpush1.msra.mxu0 0.0
  %3944 = vmatprep.subr.mxu0 0.0
  %3945 = vmatpush1.msra.mxu0 0.0
  %3946 = vmatprep.subr.mxu0 0.0
  %3947 = vmatpush1.msra.mxu0 0.0
  %3948 = vmatprep.subr.mxu0 0.0
  %3949 = vmatpush1.msra.mxu0 0.0
  %3950 = vmatprep.subr.mxu0 0.0
  %3951 = vmatpush1.msra.mxu0 0.0
  %3952 = vmatprep.subr.mxu0 0.0
  %3953 = vmatpush1.msra.mxu0 0.0
  %3954 = vmatprep.subr.mxu0 0.0
  %3955 = vmatpush1.msra.mxu0 0.0
  %3956 = vmatprep.subr.mxu0 0.0
  %3957 = vmatpush1.msra.mxu0 0.0
  %3958 = vmatprep.subr.mxu0 0.0
  %3959 = vmatpush1.msra.mxu0 0.0
  %3960 = vmatprep.subr.mxu0 0.0
  %3961 = vmatpush1.msra.mxu0 0.0
  %3962 = vmatprep.subr.mxu0 0.0
  %3963 = vmatpush1.msra.mxu0 0.0
  %3964 = vmatprep.subr.mxu0 0.0
  %3965 = vmatpush1.msra.mxu0 0.0
  %3966 = vmatprep.subr.mxu0 0.0
  %3967 = vmatpush1.msra.mxu0 0.0
  %3968 = vmatprep.subr.mxu0 0.0
  %3969 = vmatpush1.msra.mxu0 %v3938
  %3970 = vmatprep.subr.mxu0 0.0
  %3971 = vmatpush1.msra.mxu0 %v3935
  %3972 = vmatprep.subr.mxu0 0.0
  %3973 = vmatpush2.msra.mxu0 0.0
  %3974 = vmatprep.subr.mxu0 0.0
  %3975 = vmatpush2.msra.mxu0 0.0
  %3976 = vmatprep.subr.mxu0 0.0
  %3977 = vmatpush2.msra.mxu0 0.0
  %3978 = vmatprep.subr.mxu0 0.0
  %3979 = vmatpush2.msra.mxu0 0.0
  %3980 = vmatprep.subr.mxu0 0.0
  %3981 = vmatpush2.msra.mxu0 0.0
  %3982 = vmatprep.subr.mxu0 0.0
  %3983 = vmatpush2.msra.mxu0 0.0
  %3984 = vmatprep.subr.mxu0 0.0
  %3985 = vmatpush2.msra.mxu0 0.0
  %3986 = vmatprep.subr.mxu0 0.0
  %3987 = vmatpush2.msra.mxu0 0.0
  %3988 = vmatprep.subr.mxu0 0.0
  %3989 = vmatpush2.msra.mxu0 0.0
  %3990 = vmatprep.subr.mxu0 0.0
  %3991 = vmatpush2.msra.mxu0 0.0
  %3992 = vmatprep.subr.mxu0 0.0
  %3993 = vmatpush2.msra.mxu0 0.0
  %3994 = vmatprep.subr.mxu0 0.0
  %3995 = vmatpush2.msra.mxu0 0.0
  %3996 = vmatprep.subr.mxu0 0.0
  %3997 = vmatpush2.msra.mxu0 0.0
  %3998 = vmatprep.subr.mxu0 0.0
  %3999 = vmatpush2.msra.mxu0 0.0
  %4000 = vmatprep.subr.mxu0 0.0
  %4001 = vmatpush2.msra.mxu0 0.0
  %4002 = vmatprep.subr.mxu0 0.0
  %4003 = vmatpush2.msra.mxu0 0.0
  %4004 = vmatprep.mubr.f32.mxu0 0.0
  %4005 = vmatmul.mubr.f32.gmra.mxu0 %v942
  %v4006 = vpop.f32.mrf.mxu0
  %v4007 = vadd.f32 0.0, %v4006
  %v4008 = vpop.f32.mrf.mxu0
  %4009 = vmatprep.mubr.f32.mxu0 0.0
  %4010 = vmatmul.mubr.f32.gmra.mxu0 %v945
  %v4011 = vpop.f32.mrf.mxu0
  %v4012 = vadd.f32 0.0, %v4011
  %v4013 = vpop.f32.mrf.mxu0
  %4014 = vdwg.mxu0
  %4017 = vrot.lane.b32.xlu0 %v4007, 120
  %v4018 = vpop.permute.xlu0 %4017
  %4019 = vrot.lane.b32.xlu0 %v4012, 120
  %v4020 = vpop.permute.xlu0 %4019
  %v4023 = vmax.f32 %v4007, %v4018
  %v4024 = vmax.f32 %v4012, %v4020
  %v4026 = vrot.slane %v4023, 1
  %v4027 = vsel %vm1038, %v4026, 0
  %4029 = vmatprep.subr.mxu0 0.0
  %4030 = vmatpush1.msra.mxu0 0.0
  %4031 = vmatprep.subr.mxu0 0.0
  %4032 = vmatpush1.msra.mxu0 0.0
  %4033 = vmatprep.subr.mxu0 0.0
  %4034 = vmatpush1.msra.mxu0 0.0
  %4035 = vmatprep.subr.mxu0 0.0
  %4036 = vmatpush1.msra.mxu0 %v136
  %4037 = vmatprep.subr.mxu0 0.0
  %4038 = vmatpush1.msra.mxu0 %v135
  %4039 = vmatprep.subr.mxu0 0.0
  %4040 = vmatpush1.msra.mxu0 %v134
  %4041 = vmatprep.subr.mxu0 0.0
  %4042 = vmatpush1.msra.mxu0 %v133
  %4043 = vmatprep.subr.mxu0 0.0
  %4044 = vmatpush1.msra.mxu0 %v132
  %4045 = vmatprep.subr.mxu0 0.0
  %4046 = vmatpush1.msra.mxu0 %v131
  %4047 = vmatprep.subr.mxu0 0.0
  %4048 = vmatpush1.msra.mxu0 %v130
  %4049 = vmatprep.subr.mxu0 0.0
  %4050 = vmatpush1.msra.mxu0 %v129
  %4051 = vmatprep.subr.mxu0 0.0
  %4052 = vmatpush1.msra.mxu0 %v128
  %4053 = vmatprep.subr.mxu0 0.0
  %4054 = vmatpush1.msra.mxu0 %v127
  %4055 = vmatprep.subr.mxu0 0.0
  %4056 = vmatpush1.msra.mxu0 %v126
  %4057 = vmatprep.subr.mxu0 0.0
  %4058 = vmatpush1.msra.mxu0 %v125
  %4059 = vmatprep.subr.mxu0 0.0
  %4060 = vmatpush1.msra.mxu0 %v124
  %4061 = vmatprep.subr.mxu0 0.0
  %4062 = vmatpush2.msra.mxu0 0.0
  %4063 = vmatprep.subr.mxu0 0.0
  %4064 = vmatpush2.msra.mxu0 0.0
  %4065 = vmatprep.subr.mxu0 0.0
  %4066 = vmatpush2.msra.mxu0 0.0
  %4067 = vmatprep.subr.mxu0 0.0
  %4068 = vmatpush2.msra.mxu0 0.0
  %4069 = vmatprep.subr.mxu0 0.0
  %4070 = vmatpush2.msra.mxu0 0.0
  %4071 = vmatprep.subr.mxu0 0.0
  %4072 = vmatpush2.msra.mxu0 0.0
  %4073 = vmatprep.subr.mxu0 0.0
  %4074 = vmatpush2.msra.mxu0 0.0
  %4075 = vmatprep.subr.mxu0 0.0
  %4076 = vmatpush2.msra.mxu0 0.0
  %4077 = vmatprep.subr.mxu0 0.0
  %4078 = vmatpush2.msra.mxu0 0.0
  %4079 = vmatprep.subr.mxu0 0.0
  %4080 = vmatpush2.msra.mxu0 0.0
  %4081 = vmatprep.subr.mxu0 0.0
  %4082 = vmatpush2.msra.mxu0 0.0
  %4083 = vmatprep.subr.mxu0 0.0
  %4084 = vmatpush2.msra.mxu0 0.0
  %4085 = vmatprep.subr.mxu0 0.0
  %4086 = vmatpush2.msra.mxu0 0.0
  %4087 = vmatprep.subr.mxu0 0.0
  %4088 = vmatpush2.msra.mxu0 0.0
  %4089 = vmatprep.subr.mxu0 0.0
  %4090 = vmatpush2.msra.mxu0 0.0
  %4091 = vmatprep.subr.mxu0 0.0
  %4092 = vmatpush2.msra.mxu0 0.0
  %4093 = vmatprep.mubr.f32.mxu0 0.0
  %4094 = vmatmul.mubr.f32.gmra.mxu0 %v4027
  %v4095 = vpop.f32.mrf.mxu0
  %v4096 = vadd.f32 0.0, %v4095
  %v4097 = vpop.f32.mrf.mxu0
  %4098 = vdwg.mxu0
  %v4099 = vsel %vm1038, %v4023, 0
  %4101 = vmatprep.subr.mxu0 0.0
  %4102 = vmatpush1.msra.mxu0 0.0
  %4103 = vmatprep.subr.mxu0 0.0
  %4104 = vmatpush1.msra.mxu0 0.0
  %4105 = vmatprep.subr.mxu0 0.0
  %4106 = vmatpush1.msra.mxu0 0.0
  %4107 = vmatprep.subr.mxu0 0.0
  %4108 = vmatpush1.msra.mxu0 %v122
  %4109 = vmatprep.subr.mxu0 0.0
  %4110 = vmatpush1.msra.mxu0 %v121
  %4111 = vmatprep.subr.mxu0 0.0
  %4112 = vmatpush1.msra.mxu0 %v120
  %4113 = vmatprep.subr.mxu0 0.0
  %4114 = vmatpush1.msra.mxu0 %v119
  %4115 = vmatprep.subr.mxu0 0.0
  %4116 = vmatpush1.msra.mxu0 %v118
  %4117 = vmatprep.subr.mxu0 0.0
  %4118 = vmatpush1.msra.mxu0 %v117
  %4119 = vmatprep.subr.mxu0 0.0
  %4120 = vmatpush1.msra.mxu0 %v116
  %4121 = vmatprep.subr.mxu0 0.0
  %4122 = vmatpush1.msra.mxu0 %v115
  %4123 = vmatprep.subr.mxu0 0.0
  %4124 = vmatpush1.msra.mxu0 %v114
  %4125 = vmatprep.subr.mxu0 0.0
  %4126 = vmatpush1.msra.mxu0 %v113
  %4127 = vmatprep.subr.mxu0 0.0
  %4128 = vmatpush1.msra.mxu0 %v112
  %4129 = vmatprep.subr.mxu0 0.0
  %4130 = vmatpush1.msra.mxu0 %v111
  %4131 = vmatprep.subr.mxu0 0.0
  %4132 = vmatpush1.msra.mxu0 %v110
  %4133 = vmatprep.subr.mxu0 0.0
  %4134 = vmatpush2.msra.mxu0 0.0
  %4135 = vmatprep.subr.mxu0 0.0
  %4136 = vmatpush2.msra.mxu0 0.0
  %4137 = vmatprep.subr.mxu0 0.0
  %4138 = vmatpush2.msra.mxu0 0.0
  %4139 = vmatprep.subr.mxu0 0.0
  %4140 = vmatpush2.msra.mxu0 0.0
  %4141 = vmatprep.subr.mxu0 0.0
  %4142 = vmatpush2.msra.mxu0 0.0
  %4143 = vmatprep.subr.mxu0 0.0
  %4144 = vmatpush2.msra.mxu0 0.0
  %4145 = vmatprep.subr.mxu0 0.0
  %4146 = vmatpush2.msra.mxu0 0.0
  %4147 = vmatprep.subr.mxu0 0.0
  %4148 = vmatpush2.msra.mxu0 0.0
  %4149 = vmatprep.subr.mxu0 0.0
  %4150 = vmatpush2.msra.mxu0 0.0
  %4151 = vmatprep.subr.mxu0 0.0
  %4152 = vmatpush2.msra.mxu0 0.0
  %4153 = vmatprep.subr.mxu0 0.0
  %4154 = vmatpush2.msra.mxu0 0.0
  %4155 = vmatprep.subr.mxu0 0.0
  %4156 = vmatpush2.msra.mxu0 0.0
  %4157 = vmatprep.subr.mxu0 0.0
  %4158 = vmatpush2.msra.mxu0 0.0
  %4159 = vmatprep.subr.mxu0 0.0
  %4160 = vmatpush2.msra.mxu0 0.0
  %4161 = vmatprep.subr.mxu0 0.0
  %4162 = vmatpush2.msra.mxu0 0.0
  %4163 = vmatprep.subr.mxu0 0.0
  %4164 = vmatpush2.msra.mxu0 0.0
  %4165 = vmatprep.mubr.f32.mxu0 0.0
  %4166 = vmatmul.mubr.f32.gmra.mxu0 %v4099
  %v4167 = vpop.f32.mrf.mxu0
  %v4168 = vadd.f32 %v4096, %v4167
  %v4169 = vpop.f32.mrf.mxu0
  %4170 = vdwg.mxu0
  %v4172 = vrot.slane %v4023, 2
  %v4173 = vrot.slane %v4024, 2
  %v4174 = vsel %vm427, %v4172, %v4173
  %v4175 = vsel %vm1038, %v4174, 0
  %4177 = vmatprep.subr.mxu0 0.0
  %4178 = vmatpush1.msra.mxu0 0.0
  %4179 = vmatprep.subr.mxu0 0.0
  %4180 = vmatpush1.msra.mxu0 0.0
  %4181 = vmatprep.subr.mxu0 0.0
  %4182 = vmatpush1.msra.mxu0 0.0
  %4183 = vmatprep.subr.mxu0 0.0
  %4184 = vmatpush1.msra.mxu0 %v150
  %4185 = vmatprep.subr.mxu0 0.0
  %4186 = vmatpush1.msra.mxu0 %v149
  %4187 = vmatprep.subr.mxu0 0.0
  %4188 = vmatpush1.msra.mxu0 %v148
  %4189 = vmatprep.subr.mxu0 0.0
  %4190 = vmatpush1.msra.mxu0 %v147
  %4191 = vmatprep.subr.mxu0 0.0
  %4192 = vmatpush1.msra.mxu0 %v146
  %4193 = vmatprep.subr.mxu0 0.0
  %4194 = vmatpush1.msra.mxu0 %v145
  %4195 = vmatprep.subr.mxu0 0.0
  %4196 = vmatpush1.msra.mxu0 %v144
  %4197 = vmatprep.subr.mxu0 0.0
  %4198 = vmatpush1.msra.mxu0 %v143
  %4199 = vmatprep.subr.mxu0 0.0
  %4200 = vmatpush1.msra.mxu0 %v142
  %4201 = vmatprep.subr.mxu0 0.0
  %4202 = vmatpush1.msra.mxu0 %v141
  %4203 = vmatprep.subr.mxu0 0.0
  %4204 = vmatpush1.msra.mxu0 %v140
  %4205 = vmatprep.subr.mxu0 0.0
  %4206 = vmatpush1.msra.mxu0 %v139
  %4207 = vmatprep.subr.mxu0 0.0
  %4208 = vmatpush1.msra.mxu0 %v138
  %4209 = vmatprep.subr.mxu0 0.0
  %4210 = vmatpush2.msra.mxu0 0.0
  %4211 = vmatprep.subr.mxu0 0.0
  %4212 = vmatpush2.msra.mxu0 0.0
  %4213 = vmatprep.subr.mxu0 0.0
  %4214 = vmatpush2.msra.mxu0 0.0
  %4215 = vmatprep.subr.mxu0 0.0
  %4216 = vmatpush2.msra.mxu0 0.0
  %4217 = vmatprep.subr.mxu0 0.0
  %4218 = vmatpush2.msra.mxu0 0.0
  %4219 = vmatprep.subr.mxu0 0.0
  %4220 = vmatpush2.msra.mxu0 0.0
  %4221 = vmatprep.subr.mxu0 0.0
  %4222 = vmatpush2.msra.mxu0 0.0
  %4223 = vmatprep.subr.mxu0 0.0
  %4224 = vmatpush2.msra.mxu0 0.0
  %4225 = vmatprep.subr.mxu0 0.0
  %4226 = vmatpush2.msra.mxu0 0.0
  %4227 = vmatprep.subr.mxu0 0.0
  %4228 = vmatpush2.msra.mxu0 0.0
  %4229 = vmatprep.subr.mxu0 0.0
  %4230 = vmatpush2.msra.mxu0 0.0
  %4231 = vmatprep.subr.mxu0 0.0
  %4232 = vmatpush2.msra.mxu0 0.0
  %4233 = vmatprep.subr.mxu0 0.0
  %4234 = vmatpush2.msra.mxu0 0.0
  %4235 = vmatprep.subr.mxu0 0.0
  %4236 = vmatpush2.msra.mxu0 0.0
  %4237 = vmatprep.subr.mxu0 0.0
  %4238 = vmatpush2.msra.mxu0 0.0
  %4239 = vmatprep.subr.mxu0 0.0
  %4240 = vmatpush2.msra.mxu0 0.0
  %4241 = vmatprep.mubr.f32.mxu0 0.0
  %4242 = vmatmul.mubr.f32.gmra.mxu0 %v4175
  %v4243 = vpop.f32.mrf.mxu0
  %v4244 = vadd.f32 0.0, %v4243
  %v4245 = vpop.f32.mrf.mxu0
  %4246 = vdwg.mxu0
  %v4247 = vadd.f32 %v4168, %v4244
  %v4248 = vadd.f32 %v4247, %v1264
  %v4249 = vmax.f32 %v4248, 0.0
  %s4250 = scalar_lea.vmem %s0, 128
  %v4251 = vld [vmem:[%s4250] sm:$0xff]
  %v4252 = vld [vmem:[%s4250 + $0x8] sm:$0xff]
  %v4253 = vld [vmem:[%s4250 + $0x10] sm:$0xff]
  %v4254 = vld [vmem:[%s4250 + $0x18] sm:$0x3f]
  %v4259 = vrot.slane %v4251, 1
  %v4260 = vrot.slane %v4252, 1
  %v4261 = vsel %vm225, %v4259, %v4260
  %v4262 = vrot.slane %v4253, 1
  %v4263 = vsel %vm225, %v4260, %v4262
  %v4264 = vrot.slane %v4254, 1
  %v4265 = vsel %vm225, %v4262, %v4264
  %v4266 = vsel %vm233, %v4261, 0
  %v4268 = vsel %vm233, %v4263, 0
  %v4270 = vsel %vm233, %v4265, 0
  %v4272 = vsel %vm233, %v4264, 0
  %4274 = vmatprep.subr.mxu0 0.0
  %4275 = vmatpush1.msra.mxu0 0.0
  %4276 = vmatprep.subr.mxu0 0.0
  %4277 = vmatpush1.msra.mxu0 0.0
  %4278 = vmatprep.subr.mxu0 0.0
  %4279 = vmatpush1.msra.mxu0 0.0
  %4280 = vmatprep.subr.mxu0 0.0
  %4281 = vmatpush1.msra.mxu0 0.0
  %4282 = vmatprep.subr.mxu0 0.0
  %4283 = vmatpush1.msra.mxu0 0.0
  %4284 = vmatprep.subr.mxu0 0.0
  %4285 = vmatpush1.msra.mxu0 0.0
  %4286 = vmatprep.subr.mxu0 0.0
  %4287 = vmatpush1.msra.mxu0 0.0
  %4288 = vmatprep.subr.mxu0 0.0
  %4289 = vmatpush1.msra.mxu0 0.0
  %4290 = vmatprep.subr.mxu0 0.0
  %4291 = vmatpush1.msra.mxu0 0.0
  %4292 = vmatprep.subr.mxu0 0.0
  %4293 = vmatpush1.msra.mxu0 0.0
  %4294 = vmatprep.subr.mxu0 0.0
  %4295 = vmatpush1.msra.mxu0 0.0
  %4296 = vmatprep.subr.mxu0 0.0
  %4297 = vmatpush1.msra.mxu0 0.0
  %4298 = vmatprep.subr.mxu0 0.0
  %4299 = vmatpush1.msra.mxu0 %v244
  %4300 = vmatprep.subr.mxu0 0.0
  %4301 = vmatpush1.msra.mxu0 %v57
  %4302 = vmatprep.subr.mxu0 0.0
  %4303 = vmatpush1.msra.mxu0 %v56
  %4304 = vmatprep.subr.mxu0 0.0
  %4305 = vmatpush1.msra.mxu0 %v55
  %4306 = vmatprep.subr.mxu0 0.0
  %4307 = vmatpush2.msra.mxu0 0.0
  %4308 = vmatprep.subr.mxu0 0.0
  %4309 = vmatpush2.msra.mxu0 0.0
  %4310 = vmatprep.subr.mxu0 0.0
  %4311 = vmatpush2.msra.mxu0 0.0
  %4312 = vmatprep.subr.mxu0 0.0
  %4313 = vmatpush2.msra.mxu0 0.0
  %4314 = vmatprep.subr.mxu0 0.0
  %4315 = vmatpush2.msra.mxu0 0.0
  %4316 = vmatprep.subr.mxu0 0.0
  %4317 = vmatpush2.msra.mxu0 0.0
  %4318 = vmatprep.subr.mxu0 0.0
  %4319 = vmatpush2.msra.mxu0 0.0
  %4320 = vmatprep.subr.mxu0 0.0
  %4321 = vmatpush2.msra.mxu0 0.0
  %4322 = vmatprep.subr.mxu0 0.0
  %4323 = vmatpush2.msra.mxu0 0.0
  %4324 = vmatprep.subr.mxu0 0.0
  %4325 = vmatpush2.msra.mxu0 0.0
  %4326 = vmatprep.subr.mxu0 0.0
  %4327 = vmatpush2.msra.mxu0 0.0
  %4328 = vmatprep.subr.mxu0 0.0
  %4329 = vmatpush2.msra.mxu0 0.0
  %4330 = vmatprep.subr.mxu0 0.0
  %4331 = vmatpush2.msra.mxu0 0.0
  %4332 = vmatprep.subr.mxu0 0.0
  %4333 = vmatpush2.msra.mxu0 0.0
  %4334 = vmatprep.subr.mxu0 0.0
  %4335 = vmatpush2.msra.mxu0 0.0
  %4336 = vmatprep.subr.mxu0 0.0
  %4337 = vmatpush2.msra.mxu0 0.0
  %4338 = vmatprep.mubr.f32.mxu0 0.0
  %4339 = vmatmul.mubr.f32.gmra.mxu0 %v4266
  %v4340 = vpop.f32.mrf.mxu0
  %v4341 = vadd.f32 0.0, %v4340
  %v4342 = vpop.f32.mrf.mxu0
  %4343 = vmatprep.mubr.f32.mxu0 0.0
  %4344 = vmatmul.mubr.f32.gmra.mxu0 %v4268
  %v4345 = vpop.f32.mrf.mxu0
  %v4346 = vadd.f32 0.0, %v4345
  %v4347 = vpop.f32.mrf.mxu0
  %4348 = vmatprep.mubr.f32.mxu0 0.0
  %4349 = vmatmul.mubr.f32.gmra.mxu0 %v4270
  %v4350 = vpop.f32.mrf.mxu0
  %v4351 = vadd.f32 0.0, %v4350
  %v4352 = vpop.f32.mrf.mxu0
  %4353 = vmatprep.mubr.f32.mxu0 0.0
  %4354 = vmatmul.mubr.f32.gmra.mxu0 %v4272
  %v4355 = vpop.f32.mrf.mxu0
  %v4356 = vadd.f32 0.0, %v4355
  %v4357 = vpop.f32.mrf.mxu0
  %4358 = vdwg.mxu0
  %v4359 = vsel %vm233, %v4251, 0
  %v4361 = vsel %vm233, %v4252, 0
  %v4363 = vsel %vm233, %v4253, 0
  %v4365 = vsel %vm233, %v4254, 0
  %4367 = vmatprep.subr.mxu0 0.0
  %4368 = vmatpush1.msra.mxu0 0.0
  %4369 = vmatprep.subr.mxu0 0.0
  %4370 = vmatpush1.msra.mxu0 0.0
  %4371 = vmatprep.subr.mxu0 0.0
  %4372 = vmatpush1.msra.mxu0 0.0
  %4373 = vmatprep.subr.mxu0 0.0
  %4374 = vmatpush1.msra.mxu0 0.0
  %4375 = vmatprep.subr.mxu0 0.0
  %4376 = vmatpush1.msra.mxu0 0.0
  %4377 = vmatprep.subr.mxu0 0.0
  %4378 = vmatpush1.msra.mxu0 0.0
  %4379 = vmatprep.subr.mxu0 0.0
  %4380 = vmatpush1.msra.mxu0 0.0
  %4381 = vmatprep.subr.mxu0 0.0
  %4382 = vmatpush1.msra.mxu0 0.0
  %4383 = vmatprep.subr.mxu0 0.0
  %4384 = vmatpush1.msra.mxu0 0.0
  %4385 = vmatprep.subr.mxu0 0.0
  %4386 = vmatpush1.msra.mxu0 0.0
  %4387 = vmatprep.subr.mxu0 0.0
  %4388 = vmatpush1.msra.mxu0 0.0
  %4389 = vmatprep.subr.mxu0 0.0
  %4390 = vmatpush1.msra.mxu0 0.0
  %4391 = vmatprep.subr.mxu0 0.0
  %4392 = vmatpush1.msra.mxu0 %v340
  %4393 = vmatprep.subr.mxu0 0.0
  %4394 = vmatpush1.msra.mxu0 %v52
  %4395 = vmatprep.subr.mxu0 0.0
  %4396 = vmatpush1.msra.mxu0 %v51
  %4397 = vmatprep.subr.mxu0 0.0
  %4398 = vmatpush1.msra.mxu0 %v50
  %4399 = vmatprep.subr.mxu0 0.0
  %4400 = vmatpush2.msra.mxu0 0.0
  %4401 = vmatprep.subr.mxu0 0.0
  %4402 = vmatpush2.msra.mxu0 0.0
  %4403 = vmatprep.subr.mxu0 0.0
  %4404 = vmatpush2.msra.mxu0 0.0
  %4405 = vmatprep.subr.mxu0 0.0
  %4406 = vmatpush2.msra.mxu0 0.0
  %4407 = vmatprep.subr.mxu0 0.0
  %4408 = vmatpush2.msra.mxu0 0.0
  %4409 = vmatprep.subr.mxu0 0.0
  %4410 = vmatpush2.msra.mxu0 0.0
  %4411 = vmatprep.subr.mxu0 0.0
  %4412 = vmatpush2.msra.mxu0 0.0
  %4413 = vmatprep.subr.mxu0 0.0
  %4414 = vmatpush2.msra.mxu0 0.0
  %4415 = vmatprep.subr.mxu0 0.0
  %4416 = vmatpush2.msra.mxu0 0.0
  %4417 = vmatprep.subr.mxu0 0.0
  %4418 = vmatpush2.msra.mxu0 0.0
  %4419 = vmatprep.subr.mxu0 0.0
  %4420 = vmatpush2.msra.mxu0 0.0
  %4421 = vmatprep.subr.mxu0 0.0
  %4422 = vmatpush2.msra.mxu0 0.0
  %4423 = vmatprep.subr.mxu0 0.0
  %4424 = vmatpush2.msra.mxu0 0.0
  %4425 = vmatprep.subr.mxu0 0.0
  %4426 = vmatpush2.msra.mxu0 0.0
  %4427 = vmatprep.subr.mxu0 0.0
  %4428 = vmatpush2.msra.mxu0 0.0
  %4429 = vmatprep.subr.mxu0 0.0
  %4430 = vmatpush2.msra.mxu0 0.0
  %4431 = vmatprep.mubr.f32.mxu0 0.0
  %4432 = vmatmul.mubr.f32.gmra.mxu0 %v4359
  %v4433 = vpop.f32.mrf.mxu0
  %v4434 = vadd.f32 %v4341, %v4433
  %v4435 = vpop.f32.mrf.mxu0
  %4436 = vmatprep.mubr.f32.mxu0 0.0
  %4437 = vmatmul.mubr.f32.gmra.mxu0 %v4361
  %v4438 = vpop.f32.mrf.mxu0
  %v4439 = vadd.f32 %v4346, %v4438
  %v4440 = vpop.f32.mrf.mxu0
  %4441 = vmatprep.mubr.f32.mxu0 0.0
  %4442 = vmatmul.mubr.f32.gmra.mxu0 %v4363
  %v4443 = vpop.f32.mrf.mxu0
  %v4444 = vadd.f32 %v4351, %v4443
  %v4445 = vpop.f32.mrf.mxu0
  %4446 = vmatprep.mubr.f32.mxu0 0.0
  %4447 = vmatmul.mubr.f32.gmra.mxu0 %v4365
  %v4448 = vpop.f32.mrf.mxu0
  %v4449 = vadd.f32 %v4356, %v4448
  %v4450 = vpop.f32.mrf.mxu0
  %4451 = vdwg.mxu0
  %v4452 = vrot.slane %v4251, 2
  %v4453 = vrot.slane %v4252, 2
  %v4454 = vsel %vm427, %v4452, %v4453
  %v4455 = vrot.slane %v4253, 2
  %v4456 = vsel %vm427, %v4453, %v4455
  %v4457 = vrot.slane %v4254, 2
  %v4458 = vsel %vm427, %v4455, %v4457
  %v4459 = vsel %vm233, %v4454, 0
  %v4461 = vsel %vm233, %v4456, 0
  %v4463 = vsel %vm233, %v4458, 0
  %v4465 = vsel %vm233, %v4457, 0
  %4467 = vmatprep.subr.mxu0 0.0
  %4468 = vmatpush1.msra.mxu0 0.0
  %4469 = vmatprep.subr.mxu0 0.0
  %4470 = vmatpush1.msra.mxu0 0.0
  %4471 = vmatprep.subr.mxu0 0.0
  %4472 = vmatpush1.msra.mxu0 0.0
  %4473 = vmatprep.subr.mxu0 0.0
  %4474 = vmatpush1.msra.mxu0 0.0
  %4475 = vmatprep.subr.mxu0 0.0
  %4476 = vmatpush1.msra.mxu0 0.0
  %4477 = vmatprep.subr.mxu0 0.0
  %4478 = vmatpush1.msra.mxu0 0.0
  %4479 = vmatprep.subr.mxu0 0.0
  %4480 = vmatpush1.msra.mxu0 0.0
  %4481 = vmatprep.subr.mxu0 0.0
  %4482 = vmatpush1.msra.mxu0 0.0
  %4483 = vmatprep.subr.mxu0 0.0
  %4484 = vmatpush1.msra.mxu0 0.0
  %4485 = vmatprep.subr.mxu0 0.0
  %4486 = vmatpush1.msra.mxu0 0.0
  %4487 = vmatprep.subr.mxu0 0.0
  %4488 = vmatpush1.msra.mxu0 0.0
  %4489 = vmatprep.subr.mxu0 0.0
  %4490 = vmatpush1.msra.mxu0 0.0
  %4491 = vmatprep.subr.mxu0 0.0
  %4492 = vmatpush1.msra.mxu0 %v444
  %4493 = vmatprep.subr.mxu0 0.0
  %4494 = vmatpush1.msra.mxu0 %v62
  %4495 = vmatprep.subr.mxu0 0.0
  %4496 = vmatpush1.msra.mxu0 %v61
  %4497 = vmatprep.subr.mxu0 0.0
  %4498 = vmatpush1.msra.mxu0 %v60
  %4499 = vmatprep.subr.mxu0 0.0
  %4500 = vmatpush2.msra.mxu0 0.0
  %4501 = vmatprep.subr.mxu0 0.0
  %4502 = vmatpush2.msra.mxu0 0.0
  %4503 = vmatprep.subr.mxu0 0.0
  %4504 = vmatpush2.msra.mxu0 0.0
  %4505 = vmatprep.subr.mxu0 0.0
  %4506 = vmatpush2.msra.mxu0 0.0
  %4507 = vmatprep.subr.mxu0 0.0
  %4508 = vmatpush2.msra.mxu0 0.0
  %4509 = vmatprep.subr.mxu0 0.0
  %4510 = vmatpush2.msra.mxu0 0.0
  %4511 = vmatprep.subr.mxu0 0.0
  %4512 = vmatpush2.msra.mxu0 0.0
  %4513 = vmatprep.subr.mxu0 0.0
  %4514 = vmatpush2.msra.mxu0 0.0
  %4515 = vmatprep.subr.mxu0 0.0
  %4516 = vmatpush2.msra.mxu0 0.0
  %4517 = vmatprep.subr.mxu0 0.0
  %4518 = vmatpush2.msra.mxu0 0.0
  %4519 = vmatprep.subr.mxu0 0.0
  %4520 = vmatpush2.msra.mxu0 0.0
  %4521 = vmatprep.subr.mxu0 0.0
  %4522 = vmatpush2.msra.mxu0 0.0
  %4523 = vmatprep.subr.mxu0 0.0
  %4524 = vmatpush2.msra.mxu0 0.0
  %4525 = vmatprep.subr.mxu0 0.0
  %4526 = vmatpush2.msra.mxu0 0.0
  %4527 = vmatprep.subr.mxu0 0.0
  %4528 = vmatpush2.msra.mxu0 0.0
  %4529 = vmatprep.subr.mxu0 0.0
  %4530 = vmatpush2.msra.mxu0 0.0
  %4531 = vmatprep.mubr.f32.mxu0 0.0
  %4532 = vmatmul.mubr.f32.gmra.mxu0 %v4459
  %v4533 = vpop.f32.mrf.mxu0
  %v4534 = vadd.f32 0.0, %v4533
  %v4535 = vpop.f32.mrf.mxu0
  %4536 = vmatprep.mubr.f32.mxu0 0.0
  %4537 = vmatmul.mubr.f32.gmra.mxu0 %v4461
  %v4538 = vpop.f32.mrf.mxu0
  %v4539 = vadd.f32 0.0, %v4538
  %v4540 = vpop.f32.mrf.mxu0
  %4541 = vmatprep.mubr.f32.mxu0 0.0
  %4542 = vmatmul.mubr.f32.gmra.mxu0 %v4463
  %v4543 = vpop.f32.mrf.mxu0
  %v4544 = vadd.f32 0.0, %v4543
  %v4545 = vpop.f32.mrf.mxu0
  %4546 = vmatprep.mubr.f32.mxu0 0.0
  %4547 = vmatmul.mubr.f32.gmra.mxu0 %v4465
  %v4548 = vpop.f32.mrf.mxu0
  %v4549 = vadd.f32 0.0, %v4548
  %v4550 = vpop.f32.mrf.mxu0
  %4551 = vdwg.mxu0
  %v4552 = vadd.f32 %v4434, %v4534
  %v4553 = vadd.f32 %v4439, %v4539
  %v4554 = vadd.f32 %v4444, %v4544
  %v4555 = vadd.f32 %v4449, %v4549
  %v4556 = vadd.f32 %v4552, %v539
  %v4557 = vadd.f32 %v4553, %v539
  %v4558 = vadd.f32 %v4554, %v539
  %v4559 = vadd.f32 %v4555, %v539
  %v4560 = vmax.f32 %v4556, 0.0
  %v4561 = vmax.f32 %v4557, 0.0
  %v4562 = vmax.f32 %v4558, 0.0
  %v4563 = vmax.f32 %v4559, 0.0
  %v4568 = vrot.slane %v4560, 1
  %v4569 = vrot.slane %v4561, 1
  %v4570 = vsel %vm225, %v4568, %v4569
  %v4571 = vrot.slane %v4562, 1
  %v4572 = vsel %vm225, %v4569, %v4571
  %v4573 = vrot.slane %v4563, 1
  %v4574 = vsel %vm225, %v4571, %v4573
  %v4579 = vmax.f32 %v4560, %v4570
  %v4580 = vmax.f32 %v4561, %v4572
  %v4581 = vmax.f32 %v4562, %v4574
  %v4582 = vmax.f32 %v4563, %v4573
  %v4584 = vsel %vm575, %v4582, 0
  %4586 = vmatprep.subr.mxu0 0.0
  %4587 = vmatpush1.msra.mxu0 0.0
  %4588 = vmatprep.subr.mxu0 0.0
  %4589 = vmatpush1.msra.mxu0 0.0
  %4590 = vmatprep.subr.mxu0 0.0
  %4591 = vmatpush1.msra.mxu0 0.0
  %4592 = vmatprep.subr.mxu0 0.0
  %4593 = vmatpush1.msra.mxu0 0.0
  %4594 = vmatprep.subr.mxu0 0.0
  %4595 = vmatpush1.msra.mxu0 0.0
  %4596 = vmatprep.subr.mxu0 0.0
  %4597 = vmatpush1.msra.mxu0 0.0
  %4598 = vmatprep.subr.mxu0 0.0
  %4599 = vmatpush1.msra.mxu0 0.0
  %4600 = vmatprep.subr.mxu0 0.0
  %4601 = vmatpush1.msra.mxu0 0.0
  %4602 = vmatprep.subr.mxu0 0.0
  %4603 = vmatpush1.msra.mxu0 0.0
  %4604 = vmatprep.subr.mxu0 0.0
  %4605 = vmatpush1.msra.mxu0 0.0
  %4606 = vmatprep.subr.mxu0 0.0
  %4607 = vmatpush1.msra.mxu0 0.0
  %4608 = vmatprep.subr.mxu0 0.0
  %4609 = vmatpush1.msra.mxu0 0.0
  %4610 = vmatprep.subr.mxu0 0.0
  %4611 = vmatpush1.msra.mxu0 %v4584
  %4612 = vmatprep.subr.mxu0 0.0
  %4613 = vmatpush1.msra.mxu0 %v4581
  %4614 = vmatprep.subr.mxu0 0.0
  %4615 = vmatpush1.msra.mxu0 %v4580
  %4616 = vmatprep.subr.mxu0 0.0
  %4617 = vmatpush1.msra.mxu0 %v4579
  %4618 = vmatprep.subr.mxu0 0.0
  %4619 = vmatpush2.msra.mxu0 0.0
  %4620 = vmatprep.subr.mxu0 0.0
  %4621 = vmatpush2.msra.mxu0 0.0
  %4622 = vmatprep.subr.mxu0 0.0
  %4623 = vmatpush2.msra.mxu0 0.0
  %4624 = vmatprep.subr.mxu0 0.0
  %4625 = vmatpush2.msra.mxu0 0.0
  %4626 = vmatprep.subr.mxu0 0.0
  %4627 = vmatpush2.msra.mxu0 0.0
  %4628 = vmatprep.subr.mxu0 0.0
  %4629 = vmatpush2.msra.mxu0 0.0
  %4630 = vmatprep.subr.mxu0 0.0
  %4631 = vmatpush2.msra.mxu0 0.0
  %4632 = vmatprep.subr.mxu0 0.0
  %4633 = vmatpush2.msra.mxu0 0.0
  %4634 = vmatprep.subr.mxu0 0.0
  %4635 = vmatpush2.msra.mxu0 0.0
  %4636 = vmatprep.subr.mxu0 0.0
  %4637 = vmatpush2.msra.mxu0 0.0
  %4638 = vmatprep.subr.mxu0 0.0
  %4639 = vmatpush2.msra.mxu0 0.0
  %4640 = vmatprep.subr.mxu0 0.0
  %4641 = vmatpush2.msra.mxu0 0.0
  %4642 = vmatprep.subr.mxu0 0.0
  %4643 = vmatpush2.msra.mxu0 0.0
  %4644 = vmatprep.subr.mxu0 0.0
  %4645 = vmatpush2.msra.mxu0 0.0
  %4646 = vmatprep.subr.mxu0 0.0
  %4647 = vmatpush2.msra.mxu0 0.0
  %4648 = vmatprep.subr.mxu0 0.0
  %4649 = vmatpush2.msra.mxu0 0.0
  %4650 = vmatprep.mubr.f32.mxu0 0.0
  %4651 = vmatmul.mubr.f32.gmra.mxu0 %v570
  %v4652 = vpop.f32.mrf.mxu0
  %v4653 = vadd.f32 0.0, %v4652
  %v4654 = vpop.f32.mrf.mxu0
  %4655 = vmatprep.mubr.f32.mxu0 0.0
  %4656 = vmatmul.mubr.f32.gmra.mxu0 %v573
  %v4657 = vpop.f32.mrf.mxu0
  %v4658 = vadd.f32 0.0, %v4657
  %v4659 = vpop.f32.mrf.mxu0
  %4660 = vdwg.mxu0
  %4663 = vrot.lane.b32.xlu0 %v4653, 124
  %v4664 = vpop.permute.xlu0 %4663
  %4665 = vrot.lane.b32.xlu0 %v4658, 124
  %v4666 = vpop.permute.xlu0 %4665
  %v4669 = vmax.f32 %v4653, %v4664
  %v4670 = vmax.f32 %v4658, %v4666
  %v4673 = vrot.slane %v4669, 1
  %v4674 = vrot.slane %v4670, 1
  %v4675 = vsel %vm225, %v4673, %v4674
  %v4676 = vsel %vm669, %v4675, 0
  %v4678 = vsel %vm669, %v4674, 0
  %4680 = vmatprep.subr.mxu0 0.0
  %4681 = vmatpush1.msra.mxu0 0.0
  %4682 = vmatprep.subr.mxu0 0.0
  %4683 = vmatpush1.msra.mxu0 0.0
  %4684 = vmatprep.subr.mxu0 0.0
  %4685 = vmatpush1.msra.mxu0 %v675
  %4686 = vmatprep.subr.mxu0 0.0
  %4687 = vmatpush1.msra.mxu0 %v92
  %4688 = vmatprep.subr.mxu0 0.0
  %4689 = vmatpush1.msra.mxu0 %v91
  %4690 = vmatprep.subr.mxu0 0.0
  %4691 = vmatpush1.msra.mxu0 %v90
  %4692 = vmatprep.subr.mxu0 0.0
  %4693 = vmatpush1.msra.mxu0 %v89
  %4694 = vmatprep.subr.mxu0 0.0
  %4695 = vmatpush1.msra.mxu0 %v88
  %4696 = vmatprep.subr.mxu0 0.0
  %4697 = vmatpush1.msra.mxu0 %v87
  %4698 = vmatprep.subr.mxu0 0.0
  %4699 = vmatpush1.msra.mxu0 %v86
  %4700 = vmatprep.subr.mxu0 0.0
  %4701 = vmatpush1.msra.mxu0 %v85
  %4702 = vmatprep.subr.mxu0 0.0
  %4703 = vmatpush1.msra.mxu0 %v84
  %4704 = vmatprep.subr.mxu0 0.0
  %4705 = vmatpush1.msra.mxu0 %v83
  %4706 = vmatprep.subr.mxu0 0.0
  %4707 = vmatpush1.msra.mxu0 %v82
  %4708 = vmatprep.subr.mxu0 0.0
  %4709 = vmatpush1.msra.mxu0 %v81
  %4710 = vmatprep.subr.mxu0 0.0
  %4711 = vmatpush1.msra.mxu0 %v80
  %4712 = vmatprep.subr.mxu0 0.0
  %4713 = vmatpush2.msra.mxu0 0.0
  %4714 = vmatprep.subr.mxu0 0.0
  %4715 = vmatpush2.msra.mxu0 0.0
  %4716 = vmatprep.subr.mxu0 0.0
  %4717 = vmatpush2.msra.mxu0 0.0
  %4718 = vmatprep.subr.mxu0 0.0
  %4719 = vmatpush2.msra.mxu0 0.0
  %4720 = vmatprep.subr.mxu0 0.0
  %4721 = vmatpush2.msra.mxu0 0.0
  %4722 = vmatprep.subr.mxu0 0.0
  %4723 = vmatpush2.msra.mxu0 0.0
  %4724 = vmatprep.subr.mxu0 0.0
  %4725 = vmatpush2.msra.mxu0 0.0
  %4726 = vmatprep.subr.mxu0 0.0
  %4727 = vmatpush2.msra.mxu0 0.0
  %4728 = vmatprep.subr.mxu0 0.0
  %4729 = vmatpush2.msra.mxu0 0.0
  %4730 = vmatprep.subr.mxu0 0.0
  %4731 = vmatpush2.msra.mxu0 0.0
  %4732 = vmatprep.subr.mxu0 0.0
  %4733 = vmatpush2.msra.mxu0 0.0
  %4734 = vmatprep.subr.mxu0 0.0
  %4735 = vmatpush2.msra.mxu0 0.0
  %4736 = vmatprep.subr.mxu0 0.0
  %4737 = vmatpush2.msra.mxu0 0.0
  %4738 = vmatprep.subr.mxu0 0.0
  %4739 = vmatpush2.msra.mxu0 0.0
  %4740 = vmatprep.subr.mxu0 0.0
  %4741 = vmatpush2.msra.mxu0 0.0
  %4742 = vmatprep.subr.mxu0 0.0
  %4743 = vmatpush2.msra.mxu0 0.0
  %4744 = vmatprep.mubr.f32.mxu0 0.0
  %4745 = vmatmul.mubr.f32.gmra.mxu0 %v4676
  %v4746 = vpop.f32.mrf.mxu0
  %v4747 = vadd.f32 0.0, %v4746
  %v4748 = vpop.f32.mrf.mxu0
  %4749 = vmatprep.mubr.f32.mxu0 0.0
  %4750 = vmatmul.mubr.f32.gmra.mxu0 %v4678
  %v4751 = vpop.f32.mrf.mxu0
  %v4752 = vadd.f32 0.0, %v4751
  %v4753 = vpop.f32.mrf.mxu0
  %4754 = vdwg.mxu0
  %v4755 = vsel %vm669, %v4669, 0
  %v4757 = vsel %vm669, %v4670, 0
  %4759 = vmatprep.subr.mxu0 0.0
  %4760 = vmatpush1.msra.mxu0 0.0
  %4761 = vmatprep.subr.mxu0 0.0
  %4762 = vmatpush1.msra.mxu0 0.0
  %4763 = vmatprep.subr.mxu0 0.0
  %4764 = vmatpush1.msra.mxu0 %v757
  %4765 = vmatprep.subr.mxu0 0.0
  %4766 = vmatpush1.msra.mxu0 %v77
  %4767 = vmatprep.subr.mxu0 0.0
  %4768 = vmatpush1.msra.mxu0 %v76
  %4769 = vmatprep.subr.mxu0 0.0
  %4770 = vmatpush1.msra.mxu0 %v75
  %4771 = vmatprep.subr.mxu0 0.0
  %4772 = vmatpush1.msra.mxu0 %v74
  %4773 = vmatprep.subr.mxu0 0.0
  %4774 = vmatpush1.msra.mxu0 %v73
  %4775 = vmatprep.subr.mxu0 0.0
  %4776 = vmatpush1.msra.mxu0 %v72
  %4777 = vmatprep.subr.mxu0 0.0
  %4778 = vmatpush1.msra.mxu0 %v71
  %4779 = vmatprep.subr.mxu0 0.0
  %4780 = vmatpush1.msra.mxu0 %v70
  %4781 = vmatprep.subr.mxu0 0.0
  %4782 = vmatpush1.msra.mxu0 %v69
  %4783 = vmatprep.subr.mxu0 0.0
  %4784 = vmatpush1.msra.mxu0 %v68
  %4785 = vmatprep.subr.mxu0 0.0
  %4786 = vmatpush1.msra.mxu0 %v67
  %4787 = vmatprep.subr.mxu0 0.0
  %4788 = vmatpush1.msra.mxu0 %v66
  %4789 = vmatprep.subr.mxu0 0.0
  %4790 = vmatpush1.msra.mxu0 %v65
  %4791 = vmatprep.subr.mxu0 0.0
  %4792 = vmatpush2.msra.mxu0 0.0
  %4793 = vmatprep.subr.mxu0 0.0
  %4794 = vmatpush2.msra.mxu0 0.0
  %4795 = vmatprep.subr.mxu0 0.0
  %4796 = vmatpush2.msra.mxu0 0.0
  %4797 = vmatprep.subr.mxu0 0.0
  %4798 = vmatpush2.msra.mxu0 0.0
  %4799 = vmatprep.subr.mxu0 0.0
  %4800 = vmatpush2.msra.mxu0 0.0
  %4801 = vmatprep.subr.mxu0 0.0
  %4802 = vmatpush2.msra.mxu0 0.0
  %4803 = vmatprep.subr.mxu0 0.0
  %4804 = vmatpush2.msra.mxu0 0.0
  %4805 = vmatprep.subr.mxu0 0.0
  %4806 = vmatpush2.msra.mxu0 0.0
  %4807 = vmatprep.subr.mxu0 0.0
  %4808 = vmatpush2.msra.mxu0 0.0
  %4809 = vmatprep.subr.mxu0 0.0
  %4810 = vmatpush2.msra.mxu0 0.0
  %4811 = vmatprep.subr.mxu0 0.0
  %4812 = vmatpush2.msra.mxu0 0.0
  %4813 = vmatprep.subr.mxu0 0.0
  %4814 = vmatpush2.msra.mxu0 0.0
  %4815 = vmatprep.subr.mxu0 0.0
  %4816 = vmatpush2.msra.mxu0 0.0
  %4817 = vmatprep.subr.mxu0 0.0
  %4818 = vmatpush2.msra.mxu0 0.0
  %4819 = vmatprep.subr.mxu0 0.0
  %4820 = vmatpush2.msra.mxu0 0.0
  %4821 = vmatprep.subr.mxu0 0.0
  %4822 = vmatpush2.msra.mxu0 0.0
  %4823 = vmatprep.mubr.f32.mxu0 0.0
  %4824 = vmatmul.mubr.f32.gmra.mxu0 %v4755
  %v4825 = vpop.f32.mrf.mxu0
  %v4826 = vadd.f32 %v4747, %v4825
  %v4827 = vpop.f32.mrf.mxu0
  %4828 = vmatprep.mubr.f32.mxu0 0.0
  %4829 = vmatmul.mubr.f32.gmra.mxu0 %v4757
  %v4830 = vpop.f32.mrf.mxu0
  %v4831 = vadd.f32 %v4752, %v4830
  %v4832 = vpop.f32.mrf.mxu0
  %4833 = vdwg.mxu0
  %v4834 = vrot.slane %v4669, 2
  %v4835 = vrot.slane %v4670, 2
  %v4836 = vsel %vm427, %v4834, %v4835
  %v4837 = vsel %vm669, %v4836, 0
  %v4839 = vsel %vm669, %v4835, 0
  %4841 = vmatprep.subr.mxu0 0.0
  %4842 = vmatpush1.msra.mxu0 0.0
  %4843 = vmatprep.subr.mxu0 0.0
  %4844 = vmatpush1.msra.mxu0 0.0
  %4845 = vmatprep.subr.mxu0 0.0
  %4846 = vmatpush1.msra.mxu0 %v842
  %4847 = vmatprep.subr.mxu0 0.0
  %4848 = vmatpush1.msra.mxu0 %v107
  %4849 = vmatprep.subr.mxu0 0.0
  %4850 = vmatpush1.msra.mxu0 %v106
  %4851 = vmatprep.subr.mxu0 0.0
  %4852 = vmatpush1.msra.mxu0 %v105
  %4853 = vmatprep.subr.mxu0 0.0
  %4854 = vmatpush1.msra.mxu0 %v104
  %4855 = vmatprep.subr.mxu0 0.0
  %4856 = vmatpush1.msra.mxu0 %v103
  %4857 = vmatprep.subr.mxu0 0.0
  %4858 = vmatpush1.msra.mxu0 %v102
  %4859 = vmatprep.subr.mxu0 0.0
  %4860 = vmatpush1.msra.mxu0 %v101
  %4861 = vmatprep.subr.mxu0 0.0
  %4862 = vmatpush1.msra.mxu0 %v100
  %4863 = vmatprep.subr.mxu0 0.0
  %4864 = vmatpush1.msra.mxu0 %v99
  %4865 = vmatprep.subr.mxu0 0.0
  %4866 = vmatpush1.msra.mxu0 %v98
  %4867 = vmatprep.subr.mxu0 0.0
  %4868 = vmatpush1.msra.mxu0 %v97
  %4869 = vmatprep.subr.mxu0 0.0
  %4870 = vmatpush1.msra.mxu0 %v96
  %4871 = vmatprep.subr.mxu0 0.0
  %4872 = vmatpush1.msra.mxu0 %v95
  %4873 = vmatprep.subr.mxu0 0.0
  %4874 = vmatpush2.msra.mxu0 0.0
  %4875 = vmatprep.subr.mxu0 0.0
  %4876 = vmatpush2.msra.mxu0 0.0
  %4877 = vmatprep.subr.mxu0 0.0
  %4878 = vmatpush2.msra.mxu0 0.0
  %4879 = vmatprep.subr.mxu0 0.0
  %4880 = vmatpush2.msra.mxu0 0.0
  %4881 = vmatprep.subr.mxu0 0.0
  %4882 = vmatpush2.msra.mxu0 0.0
  %4883 = vmatprep.subr.mxu0 0.0
  %4884 = vmatpush2.msra.mxu0 0.0
  %4885 = vmatprep.subr.mxu0 0.0
  %4886 = vmatpush2.msra.mxu0 0.0
  %4887 = vmatprep.subr.mxu0 0.0
  %4888 = vmatpush2.msra.mxu0 0.0
  %4889 = vmatprep.subr.mxu0 0.0
  %4890 = vmatpush2.msra.mxu0 0.0
  %4891 = vmatprep.subr.mxu0 0.0
  %4892 = vmatpush2.msra.mxu0 0.0
  %4893 = vmatprep.subr.mxu0 0.0
  %4894 = vmatpush2.msra.mxu0 0.0
  %4895 = vmatprep.subr.mxu0 0.0
  %4896 = vmatpush2.msra.mxu0 0.0
  %4897 = vmatprep.subr.mxu0 0.0
  %4898 = vmatpush2.msra.mxu0 0.0
  %4899 = vmatprep.subr.mxu0 0.0
  %4900 = vmatpush2.msra.mxu0 0.0
  %4901 = vmatprep.subr.mxu0 0.0
  %4902 = vmatpush2.msra.mxu0 0.0
  %4903 = vmatprep.subr.mxu0 0.0
  %4904 = vmatpush2.msra.mxu0 0.0
  %4905 = vmatprep.mubr.f32.mxu0 0.0
  %4906 = vmatmul.mubr.f32.gmra.mxu0 %v4837
  %v4907 = vpop.f32.mrf.mxu0
  %v4908 = vadd.f32 0.0, %v4907
  %v4909 = vpop.f32.mrf.mxu0
  %4910 = vmatprep.mubr.f32.mxu0 0.0
  %4911 = vmatmul.mubr.f32.gmra.mxu0 %v4839
  %v4912 = vpop.f32.mrf.mxu0
  %v4913 = vadd.f32 0.0, %v4912
  %v4914 = vpop.f32.mrf.mxu0
  %4915 = vdwg.mxu0
  %v4916 = vadd.f32 %v4826, %v4908
  %v4917 = vadd.f32 %v4831, %v4913
  %v4918 = vadd.f32 %v4916, %v925
  %v4919 = vadd.f32 %v4917, %v925
  %v4920 = vmax.f32 %v4918, 0.0
  %v4921 = vmax.f32 %v4919, 0.0
  %v4924 = vrot.slane %v4920, 1
  %v4925 = vrot.slane %v4921, 1
  %v4926 = vsel %vm225, %v4924, %v4925
  %v4929 = vmax.f32 %v4920, %v4926
  %v4930 = vmax.f32 %v4921, %v4925
  %v4932 = vsel %vm947, %v4930, 0
  %4934 = vmatprep.subr.mxu0 0.0
  %4935 = vmatpush1.msra.mxu0 0.0
  %4936 = vmatprep.subr.mxu0 0.0
  %4937 = vmatpush1.msra.mxu0 0.0
  %4938 = vmatprep.subr.mxu0 0.0
  %4939 = vmatpush1.msra.mxu0 0.0
  %4940 = vmatprep.subr.mxu0 0.0
  %4941 = vmatpush1.msra.mxu0 0.0
  %4942 = vmatprep.subr.mxu0 0.0
  %4943 = vmatpush1.msra.mxu0 0.0
  %4944 = vmatprep.subr.mxu0 0.0
  %4945 = vmatpush1.msra.mxu0 0.0
  %4946 = vmatprep.subr.mxu0 0.0
  %4947 = vmatpush1.msra.mxu0 0.0
  %4948 = vmatprep.subr.mxu0 0.0
  %4949 = vmatpush1.msra.mxu0 0.0
  %4950 = vmatprep.subr.mxu0 0.0
  %4951 = vmatpush1.msra.mxu0 0.0
  %4952 = vmatprep.subr.mxu0 0.0
  %4953 = vmatpush1.msra.mxu0 0.0
  %4954 = vmatprep.subr.mxu0 0.0
  %4955 = vmatpush1.msra.mxu0 0.0
  %4956 = vmatprep.subr.mxu0 0.0
  %4957 = vmatpush1.msra.mxu0 0.0
  %4958 = vmatprep.subr.mxu0 0.0
  %4959 = vmatpush1.msra.mxu0 0.0
  %4960 = vmatprep.subr.mxu0 0.0
  %4961 = vmatpush1.msra.mxu0 0.0
  %4962 = vmatprep.subr.mxu0 0.0
  %4963 = vmatpush1.msra.mxu0 %v4932
  %4964 = vmatprep.subr.mxu0 0.0
  %4965 = vmatpush1.msra.mxu0 %v4929
  %4966 = vmatprep.subr.mxu0 0.0
  %4967 = vmatpush2.msra.mxu0 0.0
  %4968 = vmatprep.subr.mxu0 0.0
  %4969 = vmatpush2.msra.mxu0 0.0
  %4970 = vmatprep.subr.mxu0 0.0
  %4971 = vmatpush2.msra.mxu0 0.0
  %4972 = vmatprep.subr.mxu0 0.0
  %4973 = vmatpush2.msra.mxu0 0.0
  %4974 = vmatprep.subr.mxu0 0.0
  %4975 = vmatpush2.msra.mxu0 0.0
  %4976 = vmatprep.subr.mxu0 0.0
  %4977 = vmatpush2.msra.mxu0 0.0
  %4978 = vmatprep.subr.mxu0 0.0
  %4979 = vmatpush2.msra.mxu0 0.0
  %4980 = vmatprep.subr.mxu0 0.0
  %4981 = vmatpush2.msra.mxu0 0.0
  %4982 = vmatprep.subr.mxu0 0.0
  %4983 = vmatpush2.msra.mxu0 0.0
  %4984 = vmatprep.subr.mxu0 0.0
  %4985 = vmatpush2.msra.mxu0 0.0
  %4986 = vmatprep.subr.mxu0 0.0
  %4987 = vmatpush2.msra.mxu0 0.0
  %4988 = vmatprep.subr.mxu0 0.0
  %4989 = vmatpush2.msra.mxu0 0.0
  %4990 = vmatprep.subr.mxu0 0.0
  %4991 = vmatpush2.msra.mxu0 0.0
  %4992 = vmatprep.subr.mxu0 0.0
  %4993 = vmatpush2.msra.mxu0 0.0
  %4994 = vmatprep.subr.mxu0 0.0
  %4995 = vmatpush2.msra.mxu0 0.0
  %4996 = vmatprep.subr.mxu0 0.0
  %4997 = vmatpush2.msra.mxu0 0.0
  %4998 = vmatprep.mubr.f32.mxu0 0.0
  %4999 = vmatmul.mubr.f32.gmra.mxu0 %v942
  %v5000 = vpop.f32.mrf.mxu0
  %v5001 = vadd.f32 0.0, %v5000
  %v5002 = vpop.f32.mrf.mxu0
  %5003 = vmatprep.mubr.f32.mxu0 0.0
  %5004 = vmatmul.mubr.f32.gmra.mxu0 %v945
  %v5005 = vpop.f32.mrf.mxu0
  %v5006 = vadd.f32 0.0, %v5005
  %v5007 = vpop.f32.mrf.mxu0
  %5008 = vdwg.mxu0
  %5011 = vrot.lane.b32.xlu0 %v5001, 120
  %v5012 = vpop.permute.xlu0 %5011
  %5013 = vrot.lane.b32.xlu0 %v5006, 120
  %v5014 = vpop.permute.xlu0 %5013
  %v5017 = vmax.f32 %v5001, %v5012
  %v5018 = vmax.f32 %v5006, %v5014
  %v5020 = vrot.slane %v5017, 1
  %v5021 = vsel %vm1038, %v5020, 0
  %5023 = vmatprep.subr.mxu0 0.0
  %5024 = vmatpush1.msra.mxu0 0.0
  %5025 = vmatprep.subr.mxu0 0.0
  %5026 = vmatpush1.msra.mxu0 0.0
  %5027 = vmatprep.subr.mxu0 0.0
  %5028 = vmatpush1.msra.mxu0 0.0
  %5029 = vmatprep.subr.mxu0 0.0
  %5030 = vmatpush1.msra.mxu0 %v136
  %5031 = vmatprep.subr.mxu0 0.0
  %5032 = vmatpush1.msra.mxu0 %v135
  %5033 = vmatprep.subr.mxu0 0.0
  %5034 = vmatpush1.msra.mxu0 %v134
  %5035 = vmatprep.subr.mxu0 0.0
  %5036 = vmatpush1.msra.mxu0 %v133
  %5037 = vmatprep.subr.mxu0 0.0
  %5038 = vmatpush1.msra.mxu0 %v132
  %5039 = vmatprep.subr.mxu0 0.0
  %5040 = vmatpush1.msra.mxu0 %v131
  %5041 = vmatprep.subr.mxu0 0.0
  %5042 = vmatpush1.msra.mxu0 %v130
  %5043 = vmatprep.subr.mxu0 0.0
  %5044 = vmatpush1.msra.mxu0 %v129
  %5045 = vmatprep.subr.mxu0 0.0
  %5046 = vmatpush1.msra.mxu0 %v128
  %5047 = vmatprep.subr.mxu0 0.0
  %5048 = vmatpush1.msra.mxu0 %v127
  %5049 = vmatprep.subr.mxu0 0.0
  %5050 = vmatpush1.msra.mxu0 %v126
  %5051 = vmatprep.subr.mxu0 0.0
  %5052 = vmatpush1.msra.mxu0 %v125
  %5053 = vmatprep.subr.mxu0 0.0
  %5054 = vmatpush1.msra.mxu0 %v124
  %5055 = vmatprep.subr.mxu0 0.0
  %5056 = vmatpush2.msra.mxu0 0.0
  %5057 = vmatprep.subr.mxu0 0.0
  %5058 = vmatpush2.msra.mxu0 0.0
  %5059 = vmatprep.subr.mxu0 0.0
  %5060 = vmatpush2.msra.mxu0 0.0
  %5061 = vmatprep.subr.mxu0 0.0
  %5062 = vmatpush2.msra.mxu0 0.0
  %5063 = vmatprep.subr.mxu0 0.0
  %5064 = vmatpush2.msra.mxu0 0.0
  %5065 = vmatprep.subr.mxu0 0.0
  %5066 = vmatpush2.msra.mxu0 0.0
  %5067 = vmatprep.subr.mxu0 0.0
  %5068 = vmatpush2.msra.mxu0 0.0
  %5069 = vmatprep.subr.mxu0 0.0
  %5070 = vmatpush2.msra.mxu0 0.0
  %5071 = vmatprep.subr.mxu0 0.0
  %5072 = vmatpush2.msra.mxu0 0.0
  %5073 = vmatprep.subr.mxu0 0.0
  %5074 = vmatpush2.msra.mxu0 0.0
  %5075 = vmatprep.subr.mxu0 0.0
  %5076 = vmatpush2.msra.mxu0 0.0
  %5077 = vmatprep.subr.mxu0 0.0
  %5078 = vmatpush2.msra.mxu0 0.0
  %5079 = vmatprep.subr.mxu0 0.0
  %5080 = vmatpush2.msra.mxu0 0.0
  %5081 = vmatprep.subr.mxu0 0.0
  %5082 = vmatpush2.msra.mxu0 0.0
  %5083 = vmatprep.subr.mxu0 0.0
  %5084 = vmatpush2.msra.mxu0 0.0
  %5085 = vmatprep.subr.mxu0 0.0
  %5086 = vmatpush2.msra.mxu0 0.0
  %5087 = vmatprep.mubr.f32.mxu0 0.0
  %5088 = vmatmul.mubr.f32.gmra.mxu0 %v5021
  %v5089 = vpop.f32.mrf.mxu0
  %v5090 = vadd.f32 0.0, %v5089
  %v5091 = vpop.f32.mrf.mxu0
  %5092 = vdwg.mxu0
  %v5093 = vsel %vm1038, %v5017, 0
  %5095 = vmatprep.subr.mxu0 0.0
  %5096 = vmatpush1.msra.mxu0 0.0
  %5097 = vmatprep.subr.mxu0 0.0
  %5098 = vmatpush1.msra.mxu0 0.0
  %5099 = vmatprep.subr.mxu0 0.0
  %5100 = vmatpush1.msra.mxu0 0.0
  %5101 = vmatprep.subr.mxu0 0.0
  %5102 = vmatpush1.msra.mxu0 %v122
  %5103 = vmatprep.subr.mxu0 0.0
  %5104 = vmatpush1.msra.mxu0 %v121
  %5105 = vmatprep.subr.mxu0 0.0
  %5106 = vmatpush1.msra.mxu0 %v120
  %5107 = vmatprep.subr.mxu0 0.0
  %5108 = vmatpush1.msra.mxu0 %v119
  %5109 = vmatprep.subr.mxu0 0.0
  %5110 = vmatpush1.msra.mxu0 %v118
  %5111 = vmatprep.subr.mxu0 0.0
  %5112 = vmatpush1.msra.mxu0 %v117
  %5113 = vmatprep.subr.mxu0 0.0
  %5114 = vmatpush1.msra.mxu0 %v116
  %5115 = vmatprep.subr.mxu0 0.0
  %5116 = vmatpush1.msra.mxu0 %v115
  %5117 = vmatprep.subr.mxu0 0.0
  %5118 = vmatpush1.msra.mxu0 %v114
  %5119 = vmatprep.subr.mxu0 0.0
  %5120 = vmatpush1.msra.mxu0 %v113
  %5121 = vmatprep.subr.mxu0 0.0
  %5122 = vmatpush1.msra.mxu0 %v112
  %5123 = vmatprep.subr.mxu0 0.0
  %5124 = vmatpush1.msra.mxu0 %v111
  %5125 = vmatprep.subr.mxu0 0.0
  %5126 = vmatpush1.msra.mxu0 %v110
  %5127 = vmatprep.subr.mxu0 0.0
  %5128 = vmatpush2.msra.mxu0 0.0
  %5129 = vmatprep.subr.mxu0 0.0
  %5130 = vmatpush2.msra.mxu0 0.0
  %5131 = vmatprep.subr.mxu0 0.0
  %5132 = vmatpush2.msra.mxu0 0.0
  %5133 = vmatprep.subr.mxu0 0.0
  %5134 = vmatpush2.msra.mxu0 0.0
  %5135 = vmatprep.subr.mxu0 0.0
  %5136 = vmatpush2.msra.mxu0 0.0
  %5137 = vmatprep.subr.mxu0 0.0
  %5138 = vmatpush2.msra.mxu0 0.0
  %5139 = vmatprep.subr.mxu0 0.0
  %5140 = vmatpush2.msra.mxu0 0.0
  %5141 = vmatprep.subr.mxu0 0.0
  %5142 = vmatpush2.msra.mxu0 0.0
  %5143 = vmatprep.subr.mxu0 0.0
  %5144 = vmatpush2.msra.mxu0 0.0
  %5145 = vmatprep.subr.mxu0 0.0
  %5146 = vmatpush2.msra.mxu0 0.0
  %5147 = vmatprep.subr.mxu0 0.0
  %5148 = vmatpush2.msra.mxu0 0.0
  %5149 = vmatprep.subr.mxu0 0.0
  %5150 = vmatpush2.msra.mxu0 0.0
  %5151 = vmatprep.subr.mxu0 0.0
  %5152 = vmatpush2.msra.mxu0 0.0
  %5153 = vmatprep.subr.mxu0 0.0
  %5154 = vmatpush2.msra.mxu0 0.0
  %5155 = vmatprep.subr.mxu0 0.0
  %5156 = vmatpush2.msra.mxu0 0.0
  %5157 = vmatprep.subr.mxu0 0.0
  %5158 = vmatpush2.msra.mxu0 0.0
  %5159 = vmatprep.mubr.f32.mxu0 0.0
  %5160 = vmatmul.mubr.f32.gmra.mxu0 %v5093
  %v5161 = vpop.f32.mrf.mxu0
  %v5162 = vadd.f32 %v5090, %v5161
  %v5163 = vpop.f32.mrf.mxu0
  %5164 = vdwg.mxu0
  %v5166 = vrot.slane %v5017, 2
  %v5167 = vrot.slane %v5018, 2
  %v5168 = vsel %vm427, %v5166, %v5167
  %v5169 = vsel %vm1038, %v5168, 0
  %5171 = vmatprep.subr.mxu0 0.0
  %5172 = vmatpush1.msra.mxu0 0.0
  %5173 = vmatprep.subr.mxu0 0.0
  %5174 = vmatpush1.msra.mxu0 0.0
  %5175 = vmatprep.subr.mxu0 0.0
  %5176 = vmatpush1.msra.mxu0 0.0
  %5177 = vmatprep.subr.mxu0 0.0
  %5178 = vmatpush1.msra.mxu0 %v150
  %5179 = vmatprep.subr.mxu0 0.0
  %5180 = vmatpush1.msra.mxu0 %v149
  %5181 = vmatprep.subr.mxu0 0.0
  %5182 = vmatpush1.msra.mxu0 %v148
  %5183 = vmatprep.subr.mxu0 0.0
  %5184 = vmatpush1.msra.mxu0 %v147
  %5185 = vmatprep.subr.mxu0 0.0
  %5186 = vmatpush1.msra.mxu0 %v146
  %5187 = vmatprep.subr.mxu0 0.0
  %5188 = vmatpush1.msra.mxu0 %v145
  %5189 = vmatprep.subr.mxu0 0.0
  %5190 = vmatpush1.msra.mxu0 %v144
  %5191 = vmatprep.subr.mxu0 0.0
  %5192 = vmatpush1.msra.mxu0 %v143
  %5193 = vmatprep.subr.mxu0 0.0
  %5194 = vmatpush1.msra.mxu0 %v142
  %5195 = vmatprep.subr.mxu0 0.0
  %5196 = vmatpush1.msra.mxu0 %v141
  %5197 = vmatprep.subr.mxu0 0.0
  %5198 = vmatpush1.msra.mxu0 %v140
  %5199 = vmatprep.subr.mxu0 0.0
  %5200 = vmatpush1.msra.mxu0 %v139
  %5201 = vmatprep.subr.mxu0 0.0
  %5202 = vmatpush1.msra.mxu0 %v138
  %5203 = vmatprep.subr.mxu0 0.0
  %5204 = vmatpush2.msra.mxu0 0.0
  %5205 = vmatprep.subr.mxu0 0.0
  %5206 = vmatpush2.msra.mxu0 0.0
  %5207 = vmatprep.subr.mxu0 0.0
  %5208 = vmatpush2.msra.mxu0 0.0
  %5209 = vmatprep.subr.mxu0 0.0
  %5210 = vmatpush2.msra.mxu0 0.0
  %5211 = vmatprep.subr.mxu0 0.0
  %5212 = vmatpush2.msra.mxu0 0.0
  %5213 = vmatprep.subr.mxu0 0.0
  %5214 = vmatpush2.msra.mxu0 0.0
  %5215 = vmatprep.subr.mxu0 0.0
  %5216 = vmatpush2.msra.mxu0 0.0
  %5217 = vmatprep.subr.mxu0 0.0
  %5218 = vmatpush2.msra.mxu0 0.0
  %5219 = vmatprep.subr.mxu0 0.0
  %5220 = vmatpush2.msra.mxu0 0.0
  %5221 = vmatprep.subr.mxu0 0.0
  %5222 = vmatpush2.msra.mxu0 0.0
  %5223 = vmatprep.subr.mxu0 0.0
  %5224 = vmatpush2.msra.mxu0 0.0
  %5225 = vmatprep.subr.mxu0 0.0
  %5226 = vmatpush2.msra.mxu0 0.0
  %5227 = vmatprep.subr.mxu0 0.0
  %5228 = vmatpush2.msra.mxu0 0.0
  %5229 = vmatprep.subr.mxu0 0.0
  %5230 = vmatpush2.msra.mxu0 0.0
  %5231 = vmatprep.subr.mxu0 0.0
  %5232 = vmatpush2.msra.mxu0 0.0
  %5233 = vmatprep.subr.mxu0 0.0
  %5234 = vmatpush2.msra.mxu0 0.0
  %5235 = vmatprep.mubr.f32.mxu0 0.0
  %5236 = vmatmul.mubr.f32.gmra.mxu0 %v5169
  %v5237 = vpop.f32.mrf.mxu0
  %v5238 = vadd.f32 0.0, %v5237
  %v5239 = vpop.f32.mrf.mxu0
  %5240 = vdwg.mxu0
  %v5241 = vadd.f32 %v5162, %v5238
  %v5242 = vadd.f32 %v5241, %v1264
  %v5243 = vmax.f32 %v5242, 0.0
  %s5244 = scalar_lea.vmem %s0, 160
  %v5245 = vld [vmem:[%s5244] sm:$0xff]
  %v5246 = vld [vmem:[%s5244 + $0x8] sm:$0xff]
  %v5247 = vld [vmem:[%s5244 + $0x10] sm:$0xff]
  %v5248 = vld [vmem:[%s5244 + $0x18] sm:$0x3f]
  %v5253 = vrot.slane %v5245, 1
  %v5254 = vrot.slane %v5246, 1
  %v5255 = vsel %vm225, %v5253, %v5254
  %v5256 = vrot.slane %v5247, 1
  %v5257 = vsel %vm225, %v5254, %v5256
  %v5258 = vrot.slane %v5248, 1
  %v5259 = vsel %vm225, %v5256, %v5258
  %v5260 = vsel %vm233, %v5255, 0
  %v5262 = vsel %vm233, %v5257, 0
  %v5264 = vsel %vm233, %v5259, 0
  %v5266 = vsel %vm233, %v5258, 0
  %5268 = vmatprep.subr.mxu0 0.0
  %5269 = vmatpush1.msra.mxu0 0.0
  %5270 = vmatprep.subr.mxu0 0.0
  %5271 = vmatpush1.msra.mxu0 0.0
  %5272 = vmatprep.subr.mxu0 0.0
  %5273 = vmatpush1.msra.mxu0 0.0
  %5274 = vmatprep.subr.mxu0 0.0
  %5275 = vmatpush1.msra.mxu0 0.0
  %5276 = vmatprep.subr.mxu0 0.0
  %5277 = vmatpush1.msra.mxu0 0.0
  %5278 = vmatprep.subr.mxu0 0.0
  %5279 = vmatpush1.msra.mxu0 0.0
  %5280 = vmatprep.subr.mxu0 0.0
  %5281 = vmatpush1.msra.mxu0 0.0
  %5282 = vmatprep.subr.mxu0 0.0
  %5283 = vmatpush1.msra.mxu0 0.0
  %5284 = vmatprep.subr.mxu0 0.0
  %5285 = vmatpush1.msra.mxu0 0.0
  %5286 = vmatprep.subr.mxu0 0.0
  %5287 = vmatpush1.msra.mxu0 0.0
  %5288 = vmatprep.subr.mxu0 0.0
  %5289 = vmatpush1.msra.mxu0 0.0
  %5290 = vmatprep.subr.mxu0 0.0
  %5291 = vmatpush1.msra.mxu0 0.0
  %5292 = vmatprep.subr.mxu0 0.0
  %5293 = vmatpush1.msra.mxu0 %v244
  %5294 = vmatprep.subr.mxu0 0.0
  %5295 = vmatpush1.msra.mxu0 %v57
  %5296 = vmatprep.subr.mxu0 0.0
  %5297 = vmatpush1.msra.mxu0 %v56
  %5298 = vmatprep.subr.mxu0 0.0
  %5299 = vmatpush1.msra.mxu0 %v55
  %5300 = vmatprep.subr.mxu0 0.0
  %5301 = vmatpush2.msra.mxu0 0.0
  %5302 = vmatprep.subr.mxu0 0.0
  %5303 = vmatpush2.msra.mxu0 0.0
  %5304 = vmatprep.subr.mxu0 0.0
  %5305 = vmatpush2.msra.mxu0 0.0
  %5306 = vmatprep.subr.mxu0 0.0
  %5307 = vmatpush2.msra.mxu0 0.0
  %5308 = vmatprep.subr.mxu0 0.0
  %5309 = vmatpush2.msra.mxu0 0.0
  %5310 = vmatprep.subr.mxu0 0.0
  %5311 = vmatpush2.msra.mxu0 0.0
  %5312 = vmatprep.subr.mxu0 0.0
  %5313 = vmatpush2.msra.mxu0 0.0
  %5314 = vmatprep.subr.mxu0 0.0
  %5315 = vmatpush2.msra.mxu0 0.0
  %5316 = vmatprep.subr.mxu0 0.0
  %5317 = vmatpush2.msra.mxu0 0.0
  %5318 = vmatprep.subr.mxu0 0.0
  %5319 = vmatpush2.msra.mxu0 0.0
  %5320 = vmatprep.subr.mxu0 0.0
  %5321 = vmatpush2.msra.mxu0 0.0
  %5322 = vmatprep.subr.mxu0 0.0
  %5323 = vmatpush2.msra.mxu0 0.0
  %5324 = vmatprep.subr.mxu0 0.0
  %5325 = vmatpush2.msra.mxu0 0.0
  %5326 = vmatprep.subr.mxu0 0.0
  %5327 = vmatpush2.msra.mxu0 0.0
  %5328 = vmatprep.subr.mxu0 0.0
  %5329 = vmatpush2.msra.mxu0 0.0
  %5330 = vmatprep.subr.mxu0 0.0
  %5331 = vmatpush2.msra.mxu0 0.0
  %5332 = vmatprep.mubr.f32.mxu0 0.0
  %5333 = vmatmul.mubr.f32.gmra.mxu0 %v5260
  %v5334 = vpop.f32.mrf.mxu0
  %v5335 = vadd.f32 0.0, %v5334
  %v5336 = vpop.f32.mrf.mxu0
  %5337 = vmatprep.mubr.f32.mxu0 0.0
  %5338 = vmatmul.mubr.f32.gmra.mxu0 %v5262
  %v5339 = vpop.f32.mrf.mxu0
  %v5340 = vadd.f32 0.0, %v5339
  %v5341 = vpop.f32.mrf.mxu0
  %5342 = vmatprep.mubr.f32.mxu0 0.0
  %5343 = vmatmul.mubr.f32.gmra.mxu0 %v5264
  %v5344 = vpop.f32.mrf.mxu0
  %v5345 = vadd.f32 0.0, %v5344
  %v5346 = vpop.f32.mrf.mxu0
  %5347 = vmatprep.mubr.f32.mxu0 0.0
  %5348 = vmatmul.mubr.f32.gmra.mxu0 %v5266
  %v5349 = vpop.f32.mrf.mxu0
  %v5350 = vadd.f32 0.0, %v5349
  %v5351 = vpop.f32.mrf.mxu0
  %5352 = vdwg.mxu0
  %v5353 = vsel %vm233, %v5245, 0
  %v5355 = vsel %vm233, %v5246, 0
  %v5357 = vsel %vm233, %v5247, 0
  %v5359 = vsel %vm233, %v5248, 0
  %5361 = vmatprep.subr.mxu0 0.0
  %5362 = vmatpush1.msra.mxu0 0.0
  %5363 = vmatprep.subr.mxu0 0.0
  %5364 = vmatpush1.msra.mxu0 0.0
  %5365 = vmatprep.subr.mxu0 0.0
  %5366 = vmatpush1.msra.mxu0 0.0
  %5367 = vmatprep.subr.mxu0 0.0
  %5368 = vmatpush1.msra.mxu0 0.0
  %5369 = vmatprep.subr.mxu0 0.0
  %5370 = vmatpush1.msra.mxu0 0.0
  %5371 = vmatprep.subr.mxu0 0.0
  %5372 = vmatpush1.msra.mxu0 0.0
  %5373 = vmatprep.subr.mxu0 0.0
  %5374 = vmatpush1.msra.mxu0 0.0
  %5375 = vmatprep.subr.mxu0 0.0
  %5376 = vmatpush1.msra.mxu0 0.0
  %5377 = vmatprep.subr.mxu0 0.0
  %5378 = vmatpush1.msra.mxu0 0.0
  %5379 = vmatprep.subr.mxu0 0.0
  %5380 = vmatpush1.msra.mxu0 0.0
  %5381 = vmatprep.subr.mxu0 0.0
  %5382 = vmatpush1.msra.mxu0 0.0
  %5383 = vmatprep.subr.mxu0 0.0
  %5384 = vmatpush1.msra.mxu0 0.0
  %5385 = vmatprep.subr.mxu0 0.0
  %5386 = vmatpush1.msra.mxu0 %v340
  %5387 = vmatprep.subr.mxu0 0.0
  %5388 = vmatpush1.msra.mxu0 %v52
  %5389 = vmatprep.subr.mxu0 0.0
  %5390 = vmatpush1.msra.mxu0 %v51
  %5391 = vmatprep.subr.mxu0 0.0
  %5392 = vmatpush1.msra.mxu0 %v50
  %5393 = vmatprep.subr.mxu0 0.0
  %5394 = vmatpush2.msra.mxu0 0.0
  %5395 = vmatprep.subr.mxu0 0.0
  %5396 = vmatpush2.msra.mxu0 0.0
  %5397 = vmatprep.subr.mxu0 0.0
  %5398 = vmatpush2.msra.mxu0 0.0
  %5399 = vmatprep.subr.mxu0 0.0
  %5400 = vmatpush2.msra.mxu0 0.0
  %5401 = vmatprep.subr.mxu0 0.0
  %5402 = vmatpush2.msra.mxu0 0.0
  %5403 = vmatprep.subr.mxu0 0.0
  %5404 = vmatpush2.msra.mxu0 0.0
  %5405 = vmatprep.subr.mxu0 0.0
  %5406 = vmatpush2.msra.mxu0 0.0
  %5407 = vmatprep.subr.mxu0 0.0
  %5408 = vmatpush2.msra.mxu0 0.0
  %5409 = vmatprep.subr.mxu0 0.0
  %5410 = vmatpush2.msra.mxu0 0.0
  %5411 = vmatprep.subr.mxu0 0.0
  %5412 = vmatpush2.msra.mxu0 0.0
  %5413 = vmatprep.subr.mxu0 0.0
  %5414 = vmatpush2.msra.mxu0 0.0
  %5415 = vmatprep.subr.mxu0 0.0
  %5416 = vmatpush2.msra.mxu0 0.0
  %5417 = vmatprep.subr.mxu0 0.0
  %5418 = vmatpush2.msra.mxu0 0.0
  %5419 = vmatprep.subr.mxu0 0.0
  %5420 = vmatpush2.msra.mxu0 0.0
  %5421 = vmatprep.subr.mxu0 0.0
  %5422 = vmatpush2.msra.mxu0 0.0
  %5423 = vmatprep.subr.mxu0 0.0
  %5424 = vmatpush2.msra.mxu0 0.0
  %5425 = vmatprep.mubr.f32.mxu0 0.0
  %5426 = vmatmul.mubr.f32.gmra.mxu0 %v5353
  %v5427 = vpop.f32.mrf.mxu0
  %v5428 = vadd.f32 %v5335, %v5427
  %v5429 = vpop.f32.mrf.mxu0
  %5430 = vmatprep.mubr.f32.mxu0 0.0
  %5431 = vmatmul.mubr.f32.gmra.mxu0 %v5355
  %v5432 = vpop.f32.mrf.mxu0
  %v5433 = vadd.f32 %v5340, %v5432
  %v5434 = vpop.f32.mrf.mxu0
  %5435 = vmatprep.mubr.f32.mxu0 0.0
  %5436 = vmatmul.mubr.f32.gmra.mxu0 %v5357
  %v5437 = vpop.f32.mrf.mxu0
  %v5438 = vadd.f32 %v5345, %v5437
  %v5439 = vpop.f32.mrf.mxu0
  %5440 = vmatprep.mubr.f32.mxu0 0.0
  %5441 = vmatmul.mubr.f32.gmra.mxu0 %v5359
  %v5442 = vpop.f32.mrf.mxu0
  %v5443 = vadd.f32 %v5350, %v5442
  %v5444 = vpop.f32.mrf.mxu0
  %5445 = vdwg.mxu0
  %v5446 = vrot.slane %v5245, 2
  %v5447 = vrot.slane %v5246, 2
  %v5448 = vsel %vm427, %v5446, %v5447
  %v5449 = vrot.slane %v5247, 2
  %v5450 = vsel %vm427, %v5447, %v5449
  %v5451 = vrot.slane %v5248, 2
  %v5452 = vsel %vm427, %v5449, %v5451
  %v5453 = vsel %vm233, %v5448, 0
  %v5455 = vsel %vm233, %v5450, 0
  %v5457 = vsel %vm233, %v5452, 0
  %v5459 = vsel %vm233, %v5451, 0
  %5461 = vmatprep.subr.mxu0 0.0
  %5462 = vmatpush1.msra.mxu0 0.0
  %5463 = vmatprep.subr.mxu0 0.0
  %5464 = vmatpush1.msra.mxu0 0.0
  %5465 = vmatprep.subr.mxu0 0.0
  %5466 = vmatpush1.msra.mxu0 0.0
  %5467 = vmatprep.subr.mxu0 0.0
  %5468 = vmatpush1.msra.mxu0 0.0
  %5469 = vmatprep.subr.mxu0 0.0
  %5470 = vmatpush1.msra.mxu0 0.0
  %5471 = vmatprep.subr.mxu0 0.0
  %5472 = vmatpush1.msra.mxu0 0.0
  %5473 = vmatprep.subr.mxu0 0.0
  %5474 = vmatpush1.msra.mxu0 0.0
  %5475 = vmatprep.subr.mxu0 0.0
  %5476 = vmatpush1.msra.mxu0 0.0
  %5477 = vmatprep.subr.mxu0 0.0
  %5478 = vmatpush1.msra.mxu0 0.0
  %5479 = vmatprep.subr.mxu0 0.0
  %5480 = vmatpush1.msra.mxu0 0.0
  %5481 = vmatprep.subr.mxu0 0.0
  %5482 = vmatpush1.msra.mxu0 0.0
  %5483 = vmatprep.subr.mxu0 0.0
  %5484 = vmatpush1.msra.mxu0 0.0
  %5485 = vmatprep.subr.mxu0 0.0
  %5486 = vmatpush1.msra.mxu0 %v444
  %5487 = vmatprep.subr.mxu0 0.0
  %5488 = vmatpush1.msra.mxu0 %v62
  %5489 = vmatprep.subr.mxu0 0.0
  %5490 = vmatpush1.msra.mxu0 %v61
  %5491 = vmatprep.subr.mxu0 0.0
  %5492 = vmatpush1.msra.mxu0 %v60
  %5493 = vmatprep.subr.mxu0 0.0
  %5494 = vmatpush2.msra.mxu0 0.0
  %5495 = vmatprep.subr.mxu0 0.0
  %5496 = vmatpush2.msra.mxu0 0.0
  %5497 = vmatprep.subr.mxu0 0.0
  %5498 = vmatpush2.msra.mxu0 0.0
  %5499 = vmatprep.subr.mxu0 0.0
  %5500 = vmatpush2.msra.mxu0 0.0
  %5501 = vmatprep.subr.mxu0 0.0
  %5502 = vmatpush2.msra.mxu0 0.0
  %5503 = vmatprep.subr.mxu0 0.0
  %5504 = vmatpush2.msra.mxu0 0.0
  %5505 = vmatprep.subr.mxu0 0.0
  %5506 = vmatpush2.msra.mxu0 0.0
  %5507 = vmatprep.subr.mxu0 0.0
  %5508 = vmatpush2.msra.mxu0 0.0
  %5509 = vmatprep.subr.mxu0 0.0
  %5510 = vmatpush2.msra.mxu0 0.0
  %5511 = vmatprep.subr.mxu0 0.0
  %5512 = vmatpush2.msra.mxu0 0.0
  %5513 = vmatprep.subr.mxu0 0.0
  %5514 = vmatpush2.msra.mxu0 0.0
  %5515 = vmatprep.subr.mxu0 0.0
  %5516 = vmatpush2.msra.mxu0 0.0
  %5517 = vmatprep.subr.mxu0 0.0
  %5518 = vmatpush2.msra.mxu0 0.0
  %5519 = vmatprep.subr.mxu0 0.0
  %5520 = vmatpush2.msra.mxu0 0.0
  %5521 = vmatprep.subr.mxu0 0.0
  %5522 = vmatpush2.msra.mxu0 0.0
  %5523 = vmatprep.subr.mxu0 0.0
  %5524 = vmatpush2.msra.mxu0 0.0
  %5525 = vmatprep.mubr.f32.mxu0 0.0
  %5526 = vmatmul.mubr.f32.gmra.mxu0 %v5453
  %v5527 = vpop.f32.mrf.mxu0
  %v5528 = vadd.f32 0.0, %v5527
  %v5529 = vpop.f32.mrf.mxu0
  %5530 = vmatprep.mubr.f32.mxu0 0.0
  %5531 = vmatmul.mubr.f32.gmra.mxu0 %v5455
  %v5532 = vpop.f32.mrf.mxu0
  %v5533 = vadd.f32 0.0, %v5532
  %v5534 = vpop.f32.mrf.mxu0
  %5535 = vmatprep.mubr.f32.mxu0 0.0
  %5536 = vmatmul.mubr.f32.gmra.mxu0 %v5457
  %v5537 = vpop.f32.mrf.mxu0
  %v5538 = vadd.f32 0.0, %v5537
  %v5539 = vpop.f32.mrf.mxu0
  %5540 = vmatprep.mubr.f32.mxu0 0.0
  %5541 = vmatmul.mubr.f32.gmra.mxu0 %v5459
  %v5542 = vpop.f32.mrf.mxu0
  %v5543 = vadd.f32 0.0, %v5542
  %v5544 = vpop.f32.mrf.mxu0
  %5545 = vdwg.mxu0
  %v5546 = vadd.f32 %v5428, %v5528
  %v5547 = vadd.f32 %v5433, %v5533
  %v5548 = vadd.f32 %v5438, %v5538
  %v5549 = vadd.f32 %v5443, %v5543
  %v5550 = vadd.f32 %v5546, %v539
  %v5551 = vadd.f32 %v5547, %v539
  %v5552 = vadd.f32 %v5548, %v539
  %v5553 = vadd.f32 %v5549, %v539
  %v5554 = vmax.f32 %v5550, 0.0
  %v5555 = vmax.f32 %v5551, 0.0
  %v5556 = vmax.f32 %v5552, 0.0
  %v5557 = vmax.f32 %v5553, 0.0
  %v5562 = vrot.slane %v5554, 1
  %v5563 = vrot.slane %v5555, 1
  %v5564 = vsel %vm225, %v5562, %v5563
  %v5565 = vrot.slane %v5556, 1
  %v5566 = vsel %vm225, %v5563, %v5565
  %v5567 = vrot.slane %v5557, 1
  %v5568 = vsel %vm225, %v5565, %v5567
  %v5573 = vmax.f32 %v5554, %v5564
  %v5574 = vmax.f32 %v5555, %v5566
  %v5575 = vmax.f32 %v5556, %v5568
  %v5576 = vmax.f32 %v5557, %v5567
  %v5578 = vsel %vm575, %v5576, 0
  %5580 = vmatprep.subr.mxu0 0.0
  %5581 = vmatpush1.msra.mxu0 0.0
  %5582 = vmatprep.subr.mxu0 0.0
  %5583 = vmatpush1.msra.mxu0 0.0
  %5584 = vmatprep.subr.mxu0 0.0
  %5585 = vmatpush1.msra.mxu0 0.0
  %5586 = vmatprep.subr.mxu0 0.0
  %5587 = vmatpush1.msra.mxu0 0.0
  %5588 = vmatprep.subr.mxu0 0.0
  %5589 = vmatpush1.msra.mxu0 0.0
  %5590 = vmatprep.subr.mxu0 0.0
  %5591 = vmatpush1.msra.mxu0 0.0
  %5592 = vmatprep.subr.mxu0 0.0
  %5593 = vmatpush1.msra.mxu0 0.0
  %5594 = vmatprep.subr.mxu0 0.0
  %5595 = vmatpush1.msra.mxu0 0.0
  %5596 = vmatprep.subr.mxu0 0.0
  %5597 = vmatpush1.msra.mxu0 0.0
  %5598 = vmatprep.subr.mxu0 0.0
  %5599 = vmatpush1.msra.mxu0 0.0
  %5600 = vmatprep.subr.mxu0 0.0
  %5601 = vmatpush1.msra.mxu0 0.0
  %5602 = vmatprep.subr.mxu0 0.0
  %5603 = vmatpush1.msra.mxu0 0.0
  %5604 = vmatprep.subr.mxu0 0.0
  %5605 = vmatpush1.msra.mxu0 %v5578
  %5606 = vmatprep.subr.mxu0 0.0
  %5607 = vmatpush1.msra.mxu0 %v5575
  %5608 = vmatprep.subr.mxu0 0.0
  %5609 = vmatpush1.msra.mxu0 %v5574
  %5610 = vmatprep.subr.mxu0 0.0
  %5611 = vmatpush1.msra.mxu0 %v5573
  %5612 = vmatprep.subr.mxu0 0.0
  %5613 = vmatpush2.msra.mxu0 0.0
  %5614 = vmatprep.subr.mxu0 0.0
  %5615 = vmatpush2.msra.mxu0 0.0
  %5616 = vmatprep.subr.mxu0 0.0
  %5617 = vmatpush2.msra.mxu0 0.0
  %5618 = vmatprep.subr.mxu0 0.0
  %5619 = vmatpush2.msra.mxu0 0.0
  %5620 = vmatprep.subr.mxu0 0.0
  %5621 = vmatpush2.msra.mxu0 0.0
  %5622 = vmatprep.subr.mxu0 0.0
  %5623 = vmatpush2.msra.mxu0 0.0
  %5624 = vmatprep.subr.mxu0 0.0
  %5625 = vmatpush2.msra.mxu0 0.0
  %5626 = vmatprep.subr.mxu0 0.0
  %5627 = vmatpush2.msra.mxu0 0.0
  %5628 = vmatprep.subr.mxu0 0.0
  %5629 = vmatpush2.msra.mxu0 0.0
  %5630 = vmatprep.subr.mxu0 0.0
  %5631 = vmatpush2.msra.mxu0 0.0
  %5632 = vmatprep.subr.mxu0 0.0
  %5633 = vmatpush2.msra.mxu0 0.0
  %5634 = vmatprep.subr.mxu0 0.0
  %5635 = vmatpush2.msra.mxu0 0.0
  %5636 = vmatprep.subr.mxu0 0.0
  %5637 = vmatpush2.msra.mxu0 0.0
  %5638 = vmatprep.subr.mxu0 0.0
  %5639 = vmatpush2.msra.mxu0 0.0
  %5640 = vmatprep.subr.mxu0 0.0
  %5641 = vmatpush2.msra.mxu0 0.0
  %5642 = vmatprep.subr.mxu0 0.0
  %5643 = vmatpush2.msra.mxu0 0.0
  %5644 = vmatprep.mubr.f32.mxu0 0.0
  %5645 = vmatmul.mubr.f32.gmra.mxu0 %v570
  %v5646 = vpop.f32.mrf.mxu0
  %v5647 = vadd.f32 0.0, %v5646
  %v5648 = vpop.f32.mrf.mxu0
  %5649 = vmatprep.mubr.f32.mxu0 0.0
  %5650 = vmatmul.mubr.f32.gmra.mxu0 %v573
  %v5651 = vpop.f32.mrf.mxu0
  %v5652 = vadd.f32 0.0, %v5651
  %v5653 = vpop.f32.mrf.mxu0
  %5654 = vdwg.mxu0
  %5657 = vrot.lane.b32.xlu0 %v5647, 124
  %v5658 = vpop.permute.xlu0 %5657
  %5659 = vrot.lane.b32.xlu0 %v5652, 124
  %v5660 = vpop.permute.xlu0 %5659
  %v5663 = vmax.f32 %v5647, %v5658
  %v5664 = vmax.f32 %v5652, %v5660
  %v5667 = vrot.slane %v5663, 1
  %v5668 = vrot.slane %v5664, 1
  %v5669 = vsel %vm225, %v5667, %v5668
  %v5670 = vsel %vm669, %v5669, 0
  %v5672 = vsel %vm669, %v5668, 0
  %5674 = vmatprep.subr.mxu0 0.0
  %5675 = vmatpush1.msra.mxu0 0.0
  %5676 = vmatprep.subr.mxu0 0.0
  %5677 = vmatpush1.msra.mxu0 0.0
  %5678 = vmatprep.subr.mxu0 0.0
  %5679 = vmatpush1.msra.mxu0 %v675
  %5680 = vmatprep.subr.mxu0 0.0
  %5681 = vmatpush1.msra.mxu0 %v92
  %5682 = vmatprep.subr.mxu0 0.0
  %5683 = vmatpush1.msra.mxu0 %v91
  %5684 = vmatprep.subr.mxu0 0.0
  %5685 = vmatpush1.msra.mxu0 %v90
  %5686 = vmatprep.subr.mxu0 0.0
  %5687 = vmatpush1.msra.mxu0 %v89
  %5688 = vmatprep.subr.mxu0 0.0
  %5689 = vmatpush1.msra.mxu0 %v88
  %5690 = vmatprep.subr.mxu0 0.0
  %5691 = vmatpush1.msra.mxu0 %v87
  %5692 = vmatprep.subr.mxu0 0.0
  %5693 = vmatpush1.msra.mxu0 %v86
  %5694 = vmatprep.subr.mxu0 0.0
  %5695 = vmatpush1.msra.mxu0 %v85
  %5696 = vmatprep.subr.mxu0 0.0
  %5697 = vmatpush1.msra.mxu0 %v84
  %5698 = vmatprep.subr.mxu0 0.0
  %5699 = vmatpush1.msra.mxu0 %v83
  %5700 = vmatprep.subr.mxu0 0.0
  %5701 = vmatpush1.msra.mxu0 %v82
  %5702 = vmatprep.subr.mxu0 0.0
  %5703 = vmatpush1.msra.mxu0 %v81
  %5704 = vmatprep.subr.mxu0 0.0
  %5705 = vmatpush1.msra.mxu0 %v80
  %5706 = vmatprep.subr.mxu0 0.0
  %5707 = vmatpush2.msra.mxu0 0.0
  %5708 = vmatprep.subr.mxu0 0.0
  %5709 = vmatpush2.msra.mxu0 0.0
  %5710 = vmatprep.subr.mxu0 0.0
  %5711 = vmatpush2.msra.mxu0 0.0
  %5712 = vmatprep.subr.mxu0 0.0
  %5713 = vmatpush2.msra.mxu0 0.0
  %5714 = vmatprep.subr.mxu0 0.0
  %5715 = vmatpush2.msra.mxu0 0.0
  %5716 = vmatprep.subr.mxu0 0.0
  %5717 = vmatpush2.msra.mxu0 0.0
  %5718 = vmatprep.subr.mxu0 0.0
  %5719 = vmatpush2.msra.mxu0 0.0
  %5720 = vmatprep.subr.mxu0 0.0
  %5721 = vmatpush2.msra.mxu0 0.0
  %5722 = vmatprep.subr.mxu0 0.0
  %5723 = vmatpush2.msra.mxu0 0.0
  %5724 = vmatprep.subr.mxu0 0.0
  %5725 = vmatpush2.msra.mxu0 0.0
  %5726 = vmatprep.subr.mxu0 0.0
  %5727 = vmatpush2.msra.mxu0 0.0
  %5728 = vmatprep.subr.mxu0 0.0
  %5729 = vmatpush2.msra.mxu0 0.0
  %5730 = vmatprep.subr.mxu0 0.0
  %5731 = vmatpush2.msra.mxu0 0.0
  %5732 = vmatprep.subr.mxu0 0.0
  %5733 = vmatpush2.msra.mxu0 0.0
  %5734 = vmatprep.subr.mxu0 0.0
  %5735 = vmatpush2.msra.mxu0 0.0
  %5736 = vmatprep.subr.mxu0 0.0
  %5737 = vmatpush2.msra.mxu0 0.0
  %5738 = vmatprep.mubr.f32.mxu0 0.0
  %5739 = vmatmul.mubr.f32.gmra.mxu0 %v5670
  %v5740 = vpop.f32.mrf.mxu0
  %v5741 = vadd.f32 0.0, %v5740
  %v5742 = vpop.f32.mrf.mxu0
  %5743 = vmatprep.mubr.f32.mxu0 0.0
  %5744 = vmatmul.mubr.f32.gmra.mxu0 %v5672
  %v5745 = vpop.f32.mrf.mxu0
  %v5746 = vadd.f32 0.0, %v5745
  %v5747 = vpop.f32.mrf.mxu0
  %5748 = vdwg.mxu0
  %v5749 = vsel %vm669, %v5663, 0
  %v5751 = vsel %vm669, %v5664, 0
  %5753 = vmatprep.subr.mxu0 0.0
  %5754 = vmatpush1.msra.mxu0 0.0
  %5755 = vmatprep.subr.mxu0 0.0
  %5756 = vmatpush1.msra.mxu0 0.0
  %5757 = vmatprep.subr.mxu0 0.0
  %5758 = vmatpush1.msra.mxu0 %v757
  %5759 = vmatprep.subr.mxu0 0.0
  %5760 = vmatpush1.msra.mxu0 %v77
  %5761 = vmatprep.subr.mxu0 0.0
  %5762 = vmatpush1.msra.mxu0 %v76
  %5763 = vmatprep.subr.mxu0 0.0
  %5764 = vmatpush1.msra.mxu0 %v75
  %5765 = vmatprep.subr.mxu0 0.0
  %5766 = vmatpush1.msra.mxu0 %v74
  %5767 = vmatprep.subr.mxu0 0.0
  %5768 = vmatpush1.msra.mxu0 %v73
  %5769 = vmatprep.subr.mxu0 0.0
  %5770 = vmatpush1.msra.mxu0 %v72
  %5771 = vmatprep.subr.mxu0 0.0
  %5772 = vmatpush1.msra.mxu0 %v71
  %5773 = vmatprep.subr.mxu0 0.0
  %5774 = vmatpush1.msra.mxu0 %v70
  %5775 = vmatprep.subr.mxu0 0.0
  %5776 = vmatpush1.msra.mxu0 %v69
  %5777 = vmatprep.subr.mxu0 0.0
  %5778 = vmatpush1.msra.mxu0 %v68
  %5779 = vmatprep.subr.mxu0 0.0
  %5780 = vmatpush1.msra.mxu0 %v67
  %5781 = vmatprep.subr.mxu0 0.0
  %5782 = vmatpush1.msra.mxu0 %v66
  %5783 = vmatprep.subr.mxu0 0.0
  %5784 = vmatpush1.msra.mxu0 %v65
  %5785 = vmatprep.subr.mxu0 0.0
  %5786 = vmatpush2.msra.mxu0 0.0
  %5787 = vmatprep.subr.mxu0 0.0
  %5788 = vmatpush2.msra.mxu0 0.0
  %5789 = vmatprep.subr.mxu0 0.0
  %5790 = vmatpush2.msra.mxu0 0.0
  %5791 = vmatprep.subr.mxu0 0.0
  %5792 = vmatpush2.msra.mxu0 0.0
  %5793 = vmatprep.subr.mxu0 0.0
  %5794 = vmatpush2.msra.mxu0 0.0
  %5795 = vmatprep.subr.mxu0 0.0
  %5796 = vmatpush2.msra.mxu0 0.0
  %5797 = vmatprep.subr.mxu0 0.0
  %5798 = vmatpush2.msra.mxu0 0.0
  %5799 = vmatprep.subr.mxu0 0.0
  %5800 = vmatpush2.msra.mxu0 0.0
  %5801 = vmatprep.subr.mxu0 0.0
  %5802 = vmatpush2.msra.mxu0 0.0
  %5803 = vmatprep.subr.mxu0 0.0
  %5804 = vmatpush2.msra.mxu0 0.0
  %5805 = vmatprep.subr.mxu0 0.0
  %5806 = vmatpush2.msra.mxu0 0.0
  %5807 = vmatprep.subr.mxu0 0.0
  %5808 = vmatpush2.msra.mxu0 0.0
  %5809 = vmatprep.subr.mxu0 0.0
  %5810 = vmatpush2.msra.mxu0 0.0
  %5811 = vmatprep.subr.mxu0 0.0
  %5812 = vmatpush2.msra.mxu0 0.0
  %5813 = vmatprep.subr.mxu0 0.0
  %5814 = vmatpush2.msra.mxu0 0.0
  %5815 = vmatprep.subr.mxu0 0.0
  %5816 = vmatpush2.msra.mxu0 0.0
  %5817 = vmatprep.mubr.f32.mxu0 0.0
  %5818 = vmatmul.mubr.f32.gmra.mxu0 %v5749
  %v5819 = vpop.f32.mrf.mxu0
  %v5820 = vadd.f32 %v5741, %v5819
  %v5821 = vpop.f32.mrf.mxu0
  %5822 = vmatprep.mubr.f32.mxu0 0.0
  %5823 = vmatmul.mubr.f32.gmra.mxu0 %v5751
  %v5824 = vpop.f32.mrf.mxu0
  %v5825 = vadd.f32 %v5746, %v5824
  %v5826 = vpop.f32.mrf.mxu0
  %5827 = vdwg.mxu0
  %v5828 = vrot.slane %v5663, 2
  %v5829 = vrot.slane %v5664, 2
  %v5830 = vsel %vm427, %v5828, %v5829
  %v5831 = vsel %vm669, %v5830, 0
  %v5833 = vsel %vm669, %v5829, 0
  %5835 = vmatprep.subr.mxu0 0.0
  %5836 = vmatpush1.msra.mxu0 0.0
  %5837 = vmatprep.subr.mxu0 0.0
  %5838 = vmatpush1.msra.mxu0 0.0
  %5839 = vmatprep.subr.mxu0 0.0
  %5840 = vmatpush1.msra.mxu0 %v842
  %5841 = vmatprep.subr.mxu0 0.0
  %5842 = vmatpush1.msra.mxu0 %v107
  %5843 = vmatprep.subr.mxu0 0.0
  %5844 = vmatpush1.msra.mxu0 %v106
  %5845 = vmatprep.subr.mxu0 0.0
  %5846 = vmatpush1.msra.mxu0 %v105
  %5847 = vmatprep.subr.mxu0 0.0
  %5848 = vmatpush1.msra.mxu0 %v104
  %5849 = vmatprep.subr.mxu0 0.0
  %5850 = vmatpush1.msra.mxu0 %v103
  %5851 = vmatprep.subr.mxu0 0.0
  %5852 = vmatpush1.msra.mxu0 %v102
  %5853 = vmatprep.subr.mxu0 0.0
  %5854 = vmatpush1.msra.mxu0 %v101
  %5855 = vmatprep.subr.mxu0 0.0
  %5856 = vmatpush1.msra.mxu0 %v100
  %5857 = vmatprep.subr.mxu0 0.0
  %5858 = vmatpush1.msra.mxu0 %v99
  %5859 = vmatprep.subr.mxu0 0.0
  %5860 = vmatpush1.msra.mxu0 %v98
  %5861 = vmatprep.subr.mxu0 0.0
  %5862 = vmatpush1.msra.mxu0 %v97
  %5863 = vmatprep.subr.mxu0 0.0
  %5864 = vmatpush1.msra.mxu0 %v96
  %5865 = vmatprep.subr.mxu0 0.0
  %5866 = vmatpush1.msra.mxu0 %v95
  %5867 = vmatprep.subr.mxu0 0.0
  %5868 = vmatpush2.msra.mxu0 0.0
  %5869 = vmatprep.subr.mxu0 0.0
  %5870 = vmatpush2.msra.mxu0 0.0
  %5871 = vmatprep.subr.mxu0 0.0
  %5872 = vmatpush2.msra.mxu0 0.0
  %5873 = vmatprep.subr.mxu0 0.0
  %5874 = vmatpush2.msra.mxu0 0.0
  %5875 = vmatprep.subr.mxu0 0.0
  %5876 = vmatpush2.msra.mxu0 0.0
  %5877 = vmatprep.subr.mxu0 0.0
  %5878 = vmatpush2.msra.mxu0 0.0
  %5879 = vmatprep.subr.mxu0 0.0
  %5880 = vmatpush2.msra.mxu0 0.0
  %5881 = vmatprep.subr.mxu0 0.0
  %5882 = vmatpush2.msra.mxu0 0.0
  %5883 = vmatprep.subr.mxu0 0.0
  %5884 = vmatpush2.msra.mxu0 0.0
  %5885 = vmatprep.subr.mxu0 0.0
  %5886 = vmatpush2.msra.mxu0 0.0
  %5887 = vmatprep.subr.mxu0 0.0
  %5888 = vmatpush2.msra.mxu0 0.0
  %5889 = vmatprep.subr.mxu0 0.0
  %5890 = vmatpush2.msra.mxu0 0.0
  %5891 = vmatprep.subr.mxu0 0.0
  %5892 = vmatpush2.msra.mxu0 0.0
  %5893 = vmatprep.subr.mxu0 0.0
  %5894 = vmatpush2.msra.mxu0 0.0
  %5895 = vmatprep.subr.mxu0 0.0
  %5896 = vmatpush2.msra.mxu0 0.0
  %5897 = vmatprep.subr.mxu0 0.0
  %5898 = vmatpush2.msra.mxu0 0.0
  %5899 = vmatprep.mubr.f32.mxu0 0.0
  %5900 = vmatmul.mubr.f32.gmra.mxu0 %v5831
  %v5901 = vpop.f32.mrf.mxu0
  %v5902 = vadd.f32 0.0, %v5901
  %v5903 = vpop.f32.mrf.mxu0
  %5904 = vmatprep.mubr.f32.mxu0 0.0
  %5905 = vmatmul.mubr.f32.gmra.mxu0 %v5833
  %v5906 = vpop.f32.mrf.mxu0
  %v5907 = vadd.f32 0.0, %v5906
  %v5908 = vpop.f32.mrf.mxu0
  %5909 = vdwg.mxu0
  %v5910 = vadd.f32 %v5820, %v5902
  %v5911 = vadd.f32 %v5825, %v5907
  %v5912 = vadd.f32 %v5910, %v925
  %v5913 = vadd.f32 %v5911, %v925
  %v5914 = vmax.f32 %v5912, 0.0
  %v5915 = vmax.f32 %v5913, 0.0
  %v5918 = vrot.slane %v5914, 1
  %v5919 = vrot.slane %v5915, 1
  %v5920 = vsel %vm225, %v5918, %v5919
  %v5923 = vmax.f32 %v5914, %v5920
  %v5924 = vmax.f32 %v5915, %v5919
  %v5926 = vsel %vm947, %v5924, 0
  %5928 = vmatprep.subr.mxu0 0.0
  %5929 = vmatpush1.msra.mxu0 0.0
  %5930 = vmatprep.subr.mxu0 0.0
  %5931 = vmatpush1.msra.mxu0 0.0
  %5932 = vmatprep.subr.mxu0 0.0
  %5933 = vmatpush1.msra.mxu0 0.0
  %5934 = vmatprep.subr.mxu0 0.0
  %5935 = vmatpush1.msra.mxu0 0.0
  %5936 = vmatprep.subr.mxu0 0.0
  %5937 = vmatpush1.msra.mxu0 0.0
  %5938 = vmatprep.subr.mxu0 0.0
  %5939 = vmatpush1.msra.mxu0 0.0
  %5940 = vmatprep.subr.mxu0 0.0
  %5941 = vmatpush1.msra.mxu0 0.0
  %5942 = vmatprep.subr.mxu0 0.0
  %5943 = vmatpush1.msra.mxu0 0.0
  %5944 = vmatprep.subr.mxu0 0.0
  %5945 = vmatpush1.msra.mxu0 0.0
  %5946 = vmatprep.subr.mxu0 0.0
  %5947 = vmatpush1.msra.mxu0 0.0
  %5948 = vmatprep.subr.mxu0 0.0
  %5949 = vmatpush1.msra.mxu0 0.0
  %5950 = vmatprep.subr.mxu0 0.0
  %5951 = vmatpush1.msra.mxu0 0.0
  %5952 = vmatprep.subr.mxu0 0.0
  %5953 = vmatpush1.msra.mxu0 0.0
  %5954 = vmatprep.subr.mxu0 0.0
  %5955 = vmatpush1.msra.mxu0 0.0
  %5956 = vmatprep.subr.mxu0 0.0
  %5957 = vmatpush1.msra.mxu0 %v5926
  %5958 = vmatprep.subr.mxu0 0.0
  %5959 = vmatpush1.msra.mxu0 %v5923
  %5960 = vmatprep.subr.mxu0 0.0
  %5961 = vmatpush2.msra.mxu0 0.0
  %5962 = vmatprep.subr.mxu0 0.0
  %5963 = vmatpush2.msra.mxu0 0.0
  %5964 = vmatprep.subr.mxu0 0.0
  %5965 = vmatpush2.msra.mxu0 0.0
  %5966 = vmatprep.subr.mxu0 0.0
  %5967 = vmatpush2.msra.mxu0 0.0
  %5968 = vmatprep.subr.mxu0 0.0
  %5969 = vmatpush2.msra.mxu0 0.0
  %5970 = vmatprep.subr.mxu0 0.0
  %5971 = vmatpush2.msra.mxu0 0.0
  %5972 = vmatprep.subr.mxu0 0.0
  %5973 = vmatpush2.msra.mxu0 0.0
  %5974 = vmatprep.subr.mxu0 0.0
  %5975 = vmatpush2.msra.mxu0 0.0
  %5976 = vmatprep.subr.mxu0 0.0
  %5977 = vmatpush2.msra.mxu0 0.0
  %5978 = vmatprep.subr.mxu0 0.0
  %5979 = vmatpush2.msra.mxu0 0.0
  %5980 = vmatprep.subr.mxu0 0.0
  %5981 = vmatpush2.msra.mxu0 0.0
  %5982 = vmatprep.subr.mxu0 0.0
  %5983 = vmatpush2.msra.mxu0 0.0
  %5984 = vmatprep.subr.mxu0 0.0
  %5985 = vmatpush2.msra.mxu0 0.0
  %5986 = vmatprep.subr.mxu0 0.0
  %5987 = vmatpush2.msra.mxu0 0.0
  %5988 = vmatprep.subr.mxu0 0.0
  %5989 = vmatpush2.msra.mxu0 0.0
  %5990 = vmatprep.subr.mxu0 0.0
  %5991 = vmatpush2.msra.mxu0 0.0
  %5992 = vmatprep.mubr.f32.mxu0 0.0
  %5993 = vmatmul.mubr.f32.gmra.mxu0 %v942
  %v5994 = vpop.f32.mrf.mxu0
  %v5995 = vadd.f32 0.0, %v5994
  %v5996 = vpop.f32.mrf.mxu0
  %5997 = vmatprep.mubr.f32.mxu0 0.0
  %5998 = vmatmul.mubr.f32.gmra.mxu0 %v945
  %v5999 = vpop.f32.mrf.mxu0
  %v6000 = vadd.f32 0.0, %v5999
  %v6001 = vpop.f32.mrf.mxu0
  %6002 = vdwg.mxu0
  %6005 = vrot.lane.b32.xlu0 %v5995, 120
  %v6006 = vpop.permute.xlu0 %6005
  %6007 = vrot.lane.b32.xlu0 %v6000, 120
  %v6008 = vpop.permute.xlu0 %6007
  %v6011 = vmax.f32 %v5995, %v6006
  %v6012 = vmax.f32 %v6000, %v6008
  %v6014 = vrot.slane %v6011, 1
  %v6015 = vsel %vm1038, %v6014, 0
  %6017 = vmatprep.subr.mxu0 0.0
  %6018 = vmatpush1.msra.mxu0 0.0
  %6019 = vmatprep.subr.mxu0 0.0
  %6020 = vmatpush1.msra.mxu0 0.0
  %6021 = vmatprep.subr.mxu0 0.0
  %6022 = vmatpush1.msra.mxu0 0.0
  %6023 = vmatprep.subr.mxu0 0.0
  %6024 = vmatpush1.msra.mxu0 %v136
  %6025 = vmatprep.subr.mxu0 0.0
  %6026 = vmatpush1.msra.mxu0 %v135
  %6027 = vmatprep.subr.mxu0 0.0
  %6028 = vmatpush1.msra.mxu0 %v134
  %6029 = vmatprep.subr.mxu0 0.0
  %6030 = vmatpush1.msra.mxu0 %v133
  %6031 = vmatprep.subr.mxu0 0.0
  %6032 = vmatpush1.msra.mxu0 %v132
  %6033 = vmatprep.subr.mxu0 0.0
  %6034 = vmatpush1.msra.mxu0 %v131
  %6035 = vmatprep.subr.mxu0 0.0
  %6036 = vmatpush1.msra.mxu0 %v130
  %6037 = vmatprep.subr.mxu0 0.0
  %6038 = vmatpush1.msra.mxu0 %v129
  %6039 = vmatprep.subr.mxu0 0.0
  %6040 = vmatpush1.msra.mxu0 %v128
  %6041 = vmatprep.subr.mxu0 0.0
  %6042 = vmatpush1.msra.mxu0 %v127
  %6043 = vmatprep.subr.mxu0 0.0
  %6044 = vmatpush1.msra.mxu0 %v126
  %6045 = vmatprep.subr.mxu0 0.0
  %6046 = vmatpush1.msra.mxu0 %v125
  %6047 = vmatprep.subr.mxu0 0.0
  %6048 = vmatpush1.msra.mxu0 %v124
  %6049 = vmatprep.subr.mxu0 0.0
  %6050 = vmatpush2.msra.mxu0 0.0
  %6051 = vmatprep.subr.mxu0 0.0
  %6052 = vmatpush2.msra.mxu0 0.0
  %6053 = vmatprep.subr.mxu0 0.0
  %6054 = vmatpush2.msra.mxu0 0.0
  %6055 = vmatprep.subr.mxu0 0.0
  %6056 = vmatpush2.msra.mxu0 0.0
  %6057 = vmatprep.subr.mxu0 0.0
  %6058 = vmatpush2.msra.mxu0 0.0
  %6059 = vmatprep.subr.mxu0 0.0
  %6060 = vmatpush2.msra.mxu0 0.0
  %6061 = vmatprep.subr.mxu0 0.0
  %6062 = vmatpush2.msra.mxu0 0.0
  %6063 = vmatprep.subr.mxu0 0.0
  %6064 = vmatpush2.msra.mxu0 0.0
  %6065 = vmatprep.subr.mxu0 0.0
  %6066 = vmatpush2.msra.mxu0 0.0
  %6067 = vmatprep.subr.mxu0 0.0
  %6068 = vmatpush2.msra.mxu0 0.0
  %6069 = vmatprep.subr.mxu0 0.0
  %6070 = vmatpush2.msra.mxu0 0.0
  %6071 = vmatprep.subr.mxu0 0.0
  %6072 = vmatpush2.msra.mxu0 0.0
  %6073 = vmatprep.subr.mxu0 0.0
  %6074 = vmatpush2.msra.mxu0 0.0
  %6075 = vmatprep.subr.mxu0 0.0
  %6076 = vmatpush2.msra.mxu0 0.0
  %6077 = vmatprep.subr.mxu0 0.0
  %6078 = vmatpush2.msra.mxu0 0.0
  %6079 = vmatprep.subr.mxu0 0.0
  %6080 = vmatpush2.msra.mxu0 0.0
  %6081 = vmatprep.mubr.f32.mxu0 0.0
  %6082 = vmatmul.mubr.f32.gmra.mxu0 %v6015
  %v6083 = vpop.f32.mrf.mxu0
  %v6084 = vadd.f32 0.0, %v6083
  %v6085 = vpop.f32.mrf.mxu0
  %6086 = vdwg.mxu0
  %v6087 = vsel %vm1038, %v6011, 0
  %6089 = vmatprep.subr.mxu0 0.0
  %6090 = vmatpush1.msra.mxu0 0.0
  %6091 = vmatprep.subr.mxu0 0.0
  %6092 = vmatpush1.msra.mxu0 0.0
  %6093 = vmatprep.subr.mxu0 0.0
  %6094 = vmatpush1.msra.mxu0 0.0
  %6095 = vmatprep.subr.mxu0 0.0
  %6096 = vmatpush1.msra.mxu0 %v122
  %6097 = vmatprep.subr.mxu0 0.0
  %6098 = vmatpush1.msra.mxu0 %v121
  %6099 = vmatprep.subr.mxu0 0.0
  %6100 = vmatpush1.msra.mxu0 %v120
  %6101 = vmatprep.subr.mxu0 0.0
  %6102 = vmatpush1.msra.mxu0 %v119
  %6103 = vmatprep.subr.mxu0 0.0
  %6104 = vmatpush1.msra.mxu0 %v118
  %6105 = vmatprep.subr.mxu0 0.0
  %6106 = vmatpush1.msra.mxu0 %v117
  %6107 = vmatprep.subr.mxu0 0.0
  %6108 = vmatpush1.msra.mxu0 %v116
  %6109 = vmatprep.subr.mxu0 0.0
  %6110 = vmatpush1.msra.mxu0 %v115
  %6111 = vmatprep.subr.mxu0 0.0
  %6112 = vmatpush1.msra.mxu0 %v114
  %6113 = vmatprep.subr.mxu0 0.0
  %6114 = vmatpush1.msra.mxu0 %v113
  %6115 = vmatprep.subr.mxu0 0.0
  %6116 = vmatpush1.msra.mxu0 %v112
  %6117 = vmatprep.subr.mxu0 0.0
  %6118 = vmatpush1.msra.mxu0 %v111
  %6119 = vmatprep.subr.mxu0 0.0
  %6120 = vmatpush1.msra.mxu0 %v110
  %6121 = vmatprep.subr.mxu0 0.0
  %6122 = vmatpush2.msra.mxu0 0.0
  %6123 = vmatprep.subr.mxu0 0.0
  %6124 = vmatpush2.msra.mxu0 0.0
  %6125 = vmatprep.subr.mxu0 0.0
  %6126 = vmatpush2.msra.mxu0 0.0
  %6127 = vmatprep.subr.mxu0 0.0
  %6128 = vmatpush2.msra.mxu0 0.0
  %6129 = vmatprep.subr.mxu0 0.0
  %6130 = vmatpush2.msra.mxu0 0.0
  %6131 = vmatprep.subr.mxu0 0.0
  %6132 = vmatpush2.msra.mxu0 0.0
  %6133 = vmatprep.subr.mxu0 0.0
  %6134 = vmatpush2.msra.mxu0 0.0
  %6135 = vmatprep.subr.mxu0 0.0
  %6136 = vmatpush2.msra.mxu0 0.0
  %6137 = vmatprep.subr.mxu0 0.0
  %6138 = vmatpush2.msra.mxu0 0.0
  %6139 = vmatprep.subr.mxu0 0.0
  %6140 = vmatpush2.msra.mxu0 0.0
  %6141 = vmatprep.subr.mxu0 0.0
  %6142 = vmatpush2.msra.mxu0 0.0
  %6143 = vmatprep.subr.mxu0 0.0
  %6144 = vmatpush2.msra.mxu0 0.0
  %6145 = vmatprep.subr.mxu0 0.0
  %6146 = vmatpush2.msra.mxu0 0.0
  %6147 = vmatprep.subr.mxu0 0.0
  %6148 = vmatpush2.msra.mxu0 0.0
  %6149 = vmatprep.subr.mxu0 0.0
  %6150 = vmatpush2.msra.mxu0 0.0
  %6151 = vmatprep.subr.mxu0 0.0
  %6152 = vmatpush2.msra.mxu0 0.0
  %6153 = vmatprep.mubr.f32.mxu0 0.0
  %6154 = vmatmul.mubr.f32.gmra.mxu0 %v6087
  %v6155 = vpop.f32.mrf.mxu0
  %v6156 = vadd.f32 %v6084, %v6155
  %v6157 = vpop.f32.mrf.mxu0
  %6158 = vdwg.mxu0
  %v6160 = vrot.slane %v6011, 2
  %v6161 = vrot.slane %v6012, 2
  %v6162 = vsel %vm427, %v6160, %v6161
  %v6163 = vsel %vm1038, %v6162, 0
  %6165 = vmatprep.subr.mxu0 0.0
  %6166 = vmatpush1.msra.mxu0 0.0
  %6167 = vmatprep.subr.mxu0 0.0
  %6168 = vmatpush1.msra.mxu0 0.0
  %6169 = vmatprep.subr.mxu0 0.0
  %6170 = vmatpush1.msra.mxu0 0.0
  %6171 = vmatprep.subr.mxu0 0.0
  %6172 = vmatpush1.msra.mxu0 %v150
  %6173 = vmatprep.subr.mxu0 0.0
  %6174 = vmatpush1.msra.mxu0 %v149
  %6175 = vmatprep.subr.mxu0 0.0
  %6176 = vmatpush1.msra.mxu0 %v148
  %6177 = vmatprep.subr.mxu0 0.0
  %6178 = vmatpush1.msra.mxu0 %v147
  %6179 = vmatprep.subr.mxu0 0.0
  %6180 = vmatpush1.msra.mxu0 %v146
  %6181 = vmatprep.subr.mxu0 0.0
  %6182 = vmatpush1.msra.mxu0 %v145
  %6183 = vmatprep.subr.mxu0 0.0
  %6184 = vmatpush1.msra.mxu0 %v144
  %6185 = vmatprep.subr.mxu0 0.0
  %6186 = vmatpush1.msra.mxu0 %v143
  %6187 = vmatprep.subr.mxu0 0.0
  %6188 = vmatpush1.msra.mxu0 %v142
  %6189 = vmatprep.subr.mxu0 0.0
  %6190 = vmatpush1.msra.mxu0 %v141
  %6191 = vmatprep.subr.mxu0 0.0
  %6192 = vmatpush1.msra.mxu0 %v140
  %6193 = vmatprep.subr.mxu0 0.0
  %6194 = vmatpush1.msra.mxu0 %v139
  %6195 = vmatprep.subr.mxu0 0.0
  %6196 = vmatpush1.msra.mxu0 %v138
  %6197 = vmatprep.subr.mxu0 0.0
  %6198 = vmatpush2.msra.mxu0 0.0
  %6199 = vmatprep.subr.mxu0 0.0
  %6200 = vmatpush2.msra.mxu0 0.0
  %6201 = vmatprep.subr.mxu0 0.0
  %6202 = vmatpush2.msra.mxu0 0.0
  %6203 = vmatprep.subr.mxu0 0.0
  %6204 = vmatpush2.msra.mxu0 0.0
  %6205 = vmatprep.subr.mxu0 0.0
  %6206 = vmatpush2.msra.mxu0 0.0
  %6207 = vmatprep.subr.mxu0 0.0
  %6208 = vmatpush2.msra.mxu0 0.0
  %6209 = vmatprep.subr.mxu0 0.0
  %6210 = vmatpush2.msra.mxu0 0.0
  %6211 = vmatprep.subr.mxu0 0.0
  %6212 = vmatpush2.msra.mxu0 0.0
  %6213 = vmatprep.subr.mxu0 0.0
  %6214 = vmatpush2.msra.mxu0 0.0
  %6215 = vmatprep.subr.mxu0 0.0
  %6216 = vmatpush2.msra.mxu0 0.0
  %6217 = vmatprep.subr.mxu0 0.0
  %6218 = vmatpush2.msra.mxu0 0.0
  %6219 = vmatprep.subr.mxu0 0.0
  %6220 = vmatpush2.msra.mxu0 0.0
  %6221 = vmatprep.subr.mxu0 0.0
  %6222 = vmatpush2.msra.mxu0 0.0
  %6223 = vmatprep.subr.mxu0 0.0
  %6224 = vmatpush2.msra.mxu0 0.0
  %6225 = vmatprep.subr.mxu0 0.0
  %6226 = vmatpush2.msra.mxu0 0.0
  %6227 = vmatprep.subr.mxu0 0.0
  %6228 = vmatpush2.msra.mxu0 0.0
  %6229 = vmatprep.mubr.f32.mxu0 0.0
  %6230 = vmatmul.mubr.f32.gmra.mxu0 %v6163
  %v6231 = vpop.f32.mrf.mxu0
  %v6232 = vadd.f32 0.0, %v6231
  %v6233 = vpop.f32.mrf.mxu0
  %6234 = vdwg.mxu0
  %v6235 = vadd.f32 %v6156, %v6232
  %v6236 = vadd.f32 %v6235, %v1264
  %v6237 = vmax.f32 %v6236, 0.0
  %s6238 = scalar_lea.vmem %s0, 192
  %v6239 = vld [vmem:[%s6238] sm:$0xff]
  %v6240 = vld [vmem:[%s6238 + $0x8] sm:$0xff]
  %v6241 = vld [vmem:[%s6238 + $0x10] sm:$0xff]
  %v6242 = vld [vmem:[%s6238 + $0x18] sm:$0x3f]
  %v6247 = vrot.slane %v6239, 1
  %v6248 = vrot.slane %v6240, 1
  %v6249 = vsel %vm225, %v6247, %v6248
  %v6250 = vrot.slane %v6241, 1
  %v6251 = vsel %vm225, %v6248, %v6250
  %v6252 = vrot.slane %v6242, 1
  %v6253 = vsel %vm225, %v6250, %v6252
  %v6254 = vsel %vm233, %v6249, 0
  %v6256 = vsel %vm233, %v6251, 0
  %v6258 = vsel %vm233, %v6253, 0
  %v6260 = vsel %vm233, %v6252, 0
  %6262 = vmatprep.subr.mxu0 0.0
  %6263 = vmatpush1.msra.mxu0 0.0
  %6264 = vmatprep.subr.mxu0 0.0
  %6265 = vmatpush1.msra.mxu0 0.0
  %6266 = vmatprep.subr.mxu0 0.0
  %6267 = vmatpush1.msra.mxu0 0.0
  %6268 = vmatprep.subr.mxu0 0.0
  %6269 = vmatpush1.msra.mxu0 0.0
  %6270 = vmatprep.subr.mxu0 0.0
  %6271 = vmatpush1.msra.mxu0 0.0
  %6272 = vmatprep.subr.mxu0 0.0
  %6273 = vmatpush1.msra.mxu0 0.0
  %6274 = vmatprep.subr.mxu0 0.0
  %6275 = vmatpush1.msra.mxu0 0.0
  %6276 = vmatprep.subr.mxu0 0.0
  %6277 = vmatpush1.msra.mxu0 0.0
  %6278 = vmatprep.subr.mxu0 0.0
  %6279 = vmatpush1.msra.mxu0 0.0
  %6280 = vmatprep.subr.mxu0 0.0
  %6281 = vmatpush1.msra.mxu0 0.0
  %6282 = vmatprep.subr.mxu0 0.0
  %6283 = vmatpush1.msra.mxu0 0.0
  %6284 = vmatprep.subr.mxu0 0.0
  %6285 = vmatpush1.msra.mxu0 0.0
  %6286 = vmatprep.subr.mxu0 0.0
  %6287 = vmatpush1.msra.mxu0 %v244
  %6288 = vmatprep.subr.mxu0 0.0
  %6289 = vmatpush1.msra.mxu0 %v57
  %6290 = vmatprep.subr.mxu0 0.0
  %6291 = vmatpush1.msra.mxu0 %v56
  %6292 = vmatprep.subr.mxu0 0.0
  %6293 = vmatpush1.msra.mxu0 %v55
  %6294 = vmatprep.subr.mxu0 0.0
  %6295 = vmatpush2.msra.mxu0 0.0
  %6296 = vmatprep.subr.mxu0 0.0
  %6297 = vmatpush2.msra.mxu0 0.0
  %6298 = vmatprep.subr.mxu0 0.0
  %6299 = vmatpush2.msra.mxu0 0.0
  %6300 = vmatprep.subr.mxu0 0.0
  %6301 = vmatpush2.msra.mxu0 0.0
  %6302 = vmatprep.subr.mxu0 0.0
  %6303 = vmatpush2.msra.mxu0 0.0
  %6304 = vmatprep.subr.mxu0 0.0
  %6305 = vmatpush2.msra.mxu0 0.0
  %6306 = vmatprep.subr.mxu0 0.0
  %6307 = vmatpush2.msra.mxu0 0.0
  %6308 = vmatprep.subr.mxu0 0.0
  %6309 = vmatpush2.msra.mxu0 0.0
  %6310 = vmatprep.subr.mxu0 0.0
  %6311 = vmatpush2.msra.mxu0 0.0
  %6312 = vmatprep.subr.mxu0 0.0
  %6313 = vmatpush2.msra.mxu0 0.0
  %6314 = vmatprep.subr.mxu0 0.0
  %6315 = vmatpush2.msra.mxu0 0.0
  %6316 = vmatprep.subr.mxu0 0.0
  %6317 = vmatpush2.msra.mxu0 0.0
  %6318 = vmatprep.subr.mxu0 0.0
  %6319 = vmatpush2.msra.mxu0 0.0
  %6320 = vmatprep.subr.mxu0 0.0
  %6321 = vmatpush2.msra.mxu0 0.0
  %6322 = vmatprep.subr.mxu0 0.0
  %6323 = vmatpush2.msra.mxu0 0.0
  %6324 = vmatprep.subr.mxu0 0.0
  %6325 = vmatpush2.msra.mxu0 0.0
  %6326 = vmatprep.mubr.f32.mxu0 0.0
  %6327 = vmatmul.mubr.f32.gmra.mxu0 %v6254
  %v6328 = vpop.f32.mrf.mxu0
  %v6329 = vadd.f32 0.0, %v6328
  %v6330 = vpop.f32.mrf.mxu0
  %6331 = vmatprep.mubr.f32.mxu0 0.0
  %6332 = vmatmul.mubr.f32.gmra.mxu0 %v6256
  %v6333 = vpop.f32.mrf.mxu0
  %v6334 = vadd.f32 0.0, %v6333
  %v6335 = vpop.f32.mrf.mxu0
  %6336 = vmatprep.mubr.f32.mxu0 0.0
  %6337 = vmatmul.mubr.f32.gmra.mxu0 %v6258
  %v6338 = vpop.f32.mrf.mxu0
  %v6339 = vadd.f32 0.0, %v6338
  %v6340 = vpop.f32.mrf.mxu0
  %6341 = vmatprep.mubr.f32.mxu0 0.0
  %6342 = vmatmul.mubr.f32.gmra.mxu0 %v6260
  %v6343 = vpop.f32.mrf.mxu0
  %v6344 = vadd.f32 0.0, %v6343
  %v6345 = vpop.f32.mrf.mxu0
  %6346 = vdwg.mxu0
  %v6347 = vsel %vm233, %v6239, 0
  %v6349 = vsel %vm233, %v6240, 0
  %v6351 = vsel %vm233, %v6241, 0
  %v6353 = vsel %vm233, %v6242, 0
  %6355 = vmatprep.subr.mxu0 0.0
  %6356 = vmatpush1.msra.mxu0 0.0
  %6357 = vmatprep.subr.mxu0 0.0
  %6358 = vmatpush1.msra.mxu0 0.0
  %6359 = vmatprep.subr.mxu0 0.0
  %6360 = vmatpush1.msra.mxu0 0.0
  %6361 = vmatprep.subr.mxu0 0.0
  %6362 = vmatpush1.msra.mxu0 0.0
  %6363 = vmatprep.subr.mxu0 0.0
  %6364 = vmatpush1.msra.mxu0 0.0
  %6365 = vmatprep.subr.mxu0 0.0
  %6366 = vmatpush1.msra.mxu0 0.0
  %6367 = vmatprep.subr.mxu0 0.0
  %6368 = vmatpush1.msra.mxu0 0.0
  %6369 = vmatprep.subr.mxu0 0.0
  %6370 = vmatpush1.msra.mxu0 0.0
  %6371 = vmatprep.subr.mxu0 0.0
  %6372 = vmatpush1.msra.mxu0 0.0
  %6373 = vmatprep.subr.mxu0 0.0
  %6374 = vmatpush1.msra.mxu0 0.0
  %6375 = vmatprep.subr.mxu0 0.0
  %6376 = vmatpush1.msra.mxu0 0.0
  %6377 = vmatprep.subr.mxu0 0.0
  %6378 = vmatpush1.msra.mxu0 0.0
  %6379 = vmatprep.subr.mxu0 0.0
  %6380 = vmatpush1.msra.mxu0 %v340
  %6381 = vmatprep.subr.mxu0 0.0
  %6382 = vmatpush1.msra.mxu0 %v52
  %6383 = vmatprep.subr.mxu0 0.0
  %6384 = vmatpush1.msra.mxu0 %v51
  %6385 = vmatprep.subr.mxu0 0.0
  %6386 = vmatpush1.msra.mxu0 %v50
  %6387 = vmatprep.subr.mxu0 0.0
  %6388 = vmatpush2.msra.mxu0 0.0
  %6389 = vmatprep.subr.mxu0 0.0
  %6390 = vmatpush2.msra.mxu0 0.0
  %6391 = vmatprep.subr.mxu0 0.0
  %6392 = vmatpush2.msra.mxu0 0.0
  %6393 = vmatprep.subr.mxu0 0.0
  %6394 = vmatpush2.msra.mxu0 0.0
  %6395 = vmatprep.subr.mxu0 0.0
  %6396 = vmatpush2.msra.mxu0 0.0
  %6397 = vmatprep.subr.mxu0 0.0
  %6398 = vmatpush2.msra.mxu0 0.0
  %6399 = vmatprep.subr.mxu0 0.0
  %6400 = vmatpush2.msra.mxu0 0.0
  %6401 = vmatprep.subr.mxu0 0.0
  %6402 = vmatpush2.msra.mxu0 0.0
  %6403 = vmatprep.subr.mxu0 0.0
  %6404 = vmatpush2.msra.mxu0 0.0
  %6405 = vmatprep.subr.mxu0 0.0
  %6406 = vmatpush2.msra.mxu0 0.0
  %6407 = vmatprep.subr.mxu0 0.0
  %6408 = vmatpush2.msra.mxu0 0.0
  %6409 = vmatprep.subr.mxu0 0.0
  %6410 = vmatpush2.msra.mxu0 0.0
  %6411 = vmatprep.subr.mxu0 0.0
  %6412 = vmatpush2.msra.mxu0 0.0
  %6413 = vmatprep.subr.mxu0 0.0
  %6414 = vmatpush2.msra.mxu0 0.0
  %6415 = vmatprep.subr.mxu0 0.0
  %6416 = vmatpush2.msra.mxu0 0.0
  %6417 = vmatprep.subr.mxu0 0.0
  %6418 = vmatpush2.msra.mxu0 0.0
  %6419 = vmatprep.mubr.f32.mxu0 0.0
  %6420 = vmatmul.mubr.f32.gmra.mxu0 %v6347
  %v6421 = vpop.f32.mrf.mxu0
  %v6422 = vadd.f32 %v6329, %v6421
  %v6423 = vpop.f32.mrf.mxu0
  %6424 = vmatprep.mubr.f32.mxu0 0.0
  %6425 = vmatmul.mubr.f32.gmra.mxu0 %v6349
  %v6426 = vpop.f32.mrf.mxu0
  %v6427 = vadd.f32 %v6334, %v6426
  %v6428 = vpop.f32.mrf.mxu0
  %6429 = vmatprep.mubr.f32.mxu0 0.0
  %6430 = vmatmul.mubr.f32.gmra.mxu0 %v6351
  %v6431 = vpop.f32.mrf.mxu0
  %v6432 = vadd.f32 %v6339, %v6431
  %v6433 = vpop.f32.mrf.mxu0
  %6434 = vmatprep.mubr.f32.mxu0 0.0
  %6435 = vmatmul.mubr.f32.gmra.mxu0 %v6353
  %v6436 = vpop.f32.mrf.mxu0
  %v6437 = vadd.f32 %v6344, %v6436
  %v6438 = vpop.f32.mrf.mxu0
  %6439 = vdwg.mxu0
  %v6440 = vrot.slane %v6239, 2
  %v6441 = vrot.slane %v6240, 2
  %v6442 = vsel %vm427, %v6440, %v6441
  %v6443 = vrot.slane %v6241, 2
  %v6444 = vsel %vm427, %v6441, %v6443
  %v6445 = vrot.slane %v6242, 2
  %v6446 = vsel %vm427, %v6443, %v6445
  %v6447 = vsel %vm233, %v6442, 0
  %v6449 = vsel %vm233, %v6444, 0
  %v6451 = vsel %vm233, %v6446, 0
  %v6453 = vsel %vm233, %v6445, 0
  %6455 = vmatprep.subr.mxu0 0.0
  %6456 = vmatpush1.msra.mxu0 0.0
  %6457 = vmatprep.subr.mxu0 0.0
  %6458 = vmatpush1.msra.mxu0 0.0
  %6459 = vmatprep.subr.mxu0 0.0
  %6460 = vmatpush1.msra.mxu0 0.0
  %6461 = vmatprep.subr.mxu0 0.0
  %6462 = vmatpush1.msra.mxu0 0.0
  %6463 = vmatprep.subr.mxu0 0.0
  %6464 = vmatpush1.msra.mxu0 0.0
  %6465 = vmatprep.subr.mxu0 0.0
  %6466 = vmatpush1.msra.mxu0 0.0
  %6467 = vmatprep.subr.mxu0 0.0
  %6468 = vmatpush1.msra.mxu0 0.0
  %6469 = vmatprep.subr.mxu0 0.0
  %6470 = vmatpush1.msra.mxu0 0.0
  %6471 = vmatprep.subr.mxu0 0.0
  %6472 = vmatpush1.msra.mxu0 0.0
  %6473 = vmatprep.subr.mxu0 0.0
  %6474 = vmatpush1.msra.mxu0 0.0
  %6475 = vmatprep.subr.mxu0 0.0
  %6476 = vmatpush1.msra.mxu0 0.0
  %6477 = vmatprep.subr.mxu0 0.0
  %6478 = vmatpush1.msra.mxu0 0.0
  %6479 = vmatprep.subr.mxu0 0.0
  %6480 = vmatpush1.msra.mxu0 %v444
  %6481 = vmatprep.subr.mxu0 0.0
  %6482 = vmatpush1.msra.mxu0 %v62
  %6483 = vmatprep.subr.mxu0 0.0
  %6484 = vmatpush1.msra.mxu0 %v61
  %6485 = vmatprep.subr.mxu0 0.0
  %6486 = vmatpush1.msra.mxu0 %v60
  %6487 = vmatprep.subr.mxu0 0.0
  %6488 = vmatpush2.msra.mxu0 0.0
  %6489 = vmatprep.subr.mxu0 0.0
  %6490 = vmatpush2.msra.mxu0 0.0
  %6491 = vmatprep.subr.mxu0 0.0
  %6492 = vmatpush2.msra.mxu0 0.0
  %6493 = vmatprep.subr.mxu0 0.0
  %6494 = vmatpush2.msra.mxu0 0.0
  %6495 = vmatprep.subr.mxu0 0.0
  %6496 = vmatpush2.msra.mxu0 0.0
  %6497 = vmatprep.subr.mxu0 0.0
  %6498 = vmatpush2.msra.mxu0 0.0
  %6499 = vmatprep.subr.mxu0 0.0
  %6500 = vmatpush2.msra.mxu0 0.0
  %6501 = vmatprep.subr.mxu0 0.0
  %6502 = vmatpush2.msra.mxu0 0.0
  %6503 = vmatprep.subr.mxu0 0.0
  %6504 = vmatpush2.msra.mxu0 0.0
  %6505 = vmatprep.subr.mxu0 0.0
  %6506 = vmatpush2.msra.mxu0 0.0
  %6507 = vmatprep.subr.mxu0 0.0
  %6508 = vmatpush2.msra.mxu0 0.0
  %6509 = vmatprep.subr.mxu0 0.0
  %6510 = vmatpush2.msra.mxu0 0.0
  %6511 = vmatprep.subr.mxu0 0.0
  %6512 = vmatpush2.msra.mxu0 0.0
  %6513 = vmatprep.subr.mxu0 0.0
  %6514 = vmatpush2.msra.mxu0 0.0
  %6515 = vmatprep.subr.mxu0 0.0
  %6516 = vmatpush2.msra.mxu0 0.0
  %6517 = vmatprep.subr.mxu0 0.0
  %6518 = vmatpush2.msra.mxu0 0.0
  %6519 = vmatprep.mubr.f32.mxu0 0.0
  %6520 = vmatmul.mubr.f32.gmra.mxu0 %v6447
  %v6521 = vpop.f32.mrf.mxu0
  %v6522 = vadd.f32 0.0, %v6521
  %v6523 = vpop.f32.mrf.mxu0
  %6524 = vmatprep.mubr.f32.mxu0 0.0
  %6525 = vmatmul.mubr.f32.gmra.mxu0 %v6449
  %v6526 = vpop.f32.mrf.mxu0
  %v6527 = vadd.f32 0.0, %v6526
  %v6528 = vpop.f32.mrf.mxu0
  %6529 = vmatprep.mubr.f32.mxu0 0.0
  %6530 = vmatmul.mubr.f32.gmra.mxu0 %v6451
  %v6531 = vpop.f32.mrf.mxu0
  %v6532 = vadd.f32 0.0, %v6531
  %v6533 = vpop.f32.mrf.mxu0
  %6534 = vmatprep.mubr.f32.mxu0 0.0
  %6535 = vmatmul.mubr.f32.gmra.mxu0 %v6453
  %v6536 = vpop.f32.mrf.mxu0
  %v6537 = vadd.f32 0.0, %v6536
  %v6538 = vpop.f32.mrf.mxu0
  %6539 = vdwg.mxu0
  %v6540 = vadd.f32 %v6422, %v6522
  %v6541 = vadd.f32 %v6427, %v6527
  %v6542 = vadd.f32 %v6432, %v6532
  %v6543 = vadd.f32 %v6437, %v6537
  %v6544 = vadd.f32 %v6540, %v539
  %v6545 = vadd.f32 %v6541, %v539
  %v6546 = vadd.f32 %v6542, %v539
  %v6547 = vadd.f32 %v6543, %v539
  %v6548 = vmax.f32 %v6544, 0.0
  %v6549 = vmax.f32 %v6545, 0.0
  %v6550 = vmax.f32 %v6546, 0.0
  %v6551 = vmax.f32 %v6547, 0.0
  %v6556 = vrot.slane %v6548, 1
  %v6557 = vrot.slane %v6549, 1
  %v6558 = vsel %vm225, %v6556, %v6557
  %v6559 = vrot.slane %v6550, 1
  %v6560 = vsel %vm225, %v6557, %v6559
  %v6561 = vrot.slane %v6551, 1
  %v6562 = vsel %vm225, %v6559, %v6561
  %v6567 = vmax.f32 %v6548, %v6558
  %v6568 = vmax.f32 %v6549, %v6560
  %v6569 = vmax.f32 %v6550, %v6562
  %v6570 = vmax.f32 %v6551, %v6561
  %v6572 = vsel %vm575, %v6570, 0
  %6574 = vmatprep.subr.mxu0 0.0
  %6575 = vmatpush1.msra.mxu0 0.0
  %6576 = vmatprep.subr.mxu0 0.0
  %6577 = vmatpush1.msra.mxu0 0.0
  %6578 = vmatprep.subr.mxu0 0.0
  %6579 = vmatpush1.msra.mxu0 0.0
  %6580 = vmatprep.subr.mxu0 0.0
  %6581 = vmatpush1.msra.mxu0 0.0
  %6582 = vmatprep.subr.mxu0 0.0
  %6583 = vmatpush1.msra.mxu0 0.0
  %6584 = vmatprep.subr.mxu0 0.0
  %6585 = vmatpush1.msra.mxu0 0.0
  %6586 = vmatprep.subr.mxu0 0.0
  %6587 = vmatpush1.msra.mxu0 0.0
  %6588 = vmatprep.subr.mxu0 0.0
  %6589 = vmatpush1.msra.mxu0 0.0
  %6590 = vmatprep.subr.mxu0 0.0
  %6591 = vmatpush1.msra.mxu0 0.0
  %6592 = vmatprep.subr.mxu0 0.0
  %6593 = vmatpush1.msra.mxu0 0.0
  %6594 = vmatprep.subr.mxu0 0.0
  %6595 = vmatpush1.msra.mxu0 0.0
  %6596 = vmatprep.subr.mxu0 0.0
  %6597 = vmatpush1.msra.mxu0 0.0
  %6598 = vmatprep.subr.mxu0 0.0
  %6599 = vmatpush1.msra.mxu0 %v6572
  %6600 = vmatprep.subr.mxu0 0.0
  %6601 = vmatpush1.msra.mxu0 %v6569
  %6602 = vmatprep.subr.mxu0 0.0
  %6603 = vmatpush1.msra.mxu0 %v6568
  %6604 = vmatprep.subr.mxu0 0.0
  %6605 = vmatpush1.msra.mxu0 %v6567
  %6606 = vmatprep.subr.mxu0 0.0
  %6607 = vmatpush2.msra.mxu0 0.0
  %6608 = vmatprep.subr.mxu0 0.0
  %6609 = vmatpush2.msra.mxu0 0.0
  %6610 = vmatprep.subr.mxu0 0.0
  %6611 = vmatpush2.msra.mxu0 0.0
  %6612 = vmatprep.subr.mxu0 0.0
  %6613 = vmatpush2.msra.mxu0 0.0
  %6614 = vmatprep.subr.mxu0 0.0
  %6615 = vmatpush2.msra.mxu0 0.0
  %6616 = vmatprep.subr.mxu0 0.0
  %6617 = vmatpush2.msra.mxu0 0.0
  %6618 = vmatprep.subr.mxu0 0.0
  %6619 = vmatpush2.msra.mxu0 0.0
  %6620 = vmatprep.subr.mxu0 0.0
  %6621 = vmatpush2.msra.mxu0 0.0
  %6622 = vmatprep.subr.mxu0 0.0
  %6623 = vmatpush2.msra.mxu0 0.0
  %6624 = vmatprep.subr.mxu0 0.0
  %6625 = vmatpush2.msra.mxu0 0.0
  %6626 = vmatprep.subr.mxu0 0.0
  %6627 = vmatpush2.msra.mxu0 0.0
  %6628 = vmatprep.subr.mxu0 0.0
  %6629 = vmatpush2.msra.mxu0 0.0
  %6630 = vmatprep.subr.mxu0 0.0
  %6631 = vmatpush2.msra.mxu0 0.0
  %6632 = vmatprep.subr.mxu0 0.0
  %6633 = vmatpush2.msra.mxu0 0.0
  %6634 = vmatprep.subr.mxu0 0.0
  %6635 = vmatpush2.msra.mxu0 0.0
  %6636 = vmatprep.subr.mxu0 0.0
  %6637 = vmatpush2.msra.mxu0 0.0
  %6638 = vmatprep.mubr.f32.mxu0 0.0
  %6639 = vmatmul.mubr.f32.gmra.mxu0 %v570
  %v6640 = vpop.f32.mrf.mxu0
  %v6641 = vadd.f32 0.0, %v6640
  %v6642 = vpop.f32.mrf.mxu0
  %6643 = vmatprep.mubr.f32.mxu0 0.0
  %6644 = vmatmul.mubr.f32.gmra.mxu0 %v573
  %v6645 = vpop.f32.mrf.mxu0
  %v6646 = vadd.f32 0.0, %v6645
  %v6647 = vpop.f32.mrf.mxu0
  %6648 = vdwg.mxu0
  %6651 = vrot.lane.b32.xlu0 %v6641, 124
  %v6652 = vpop.permute.xlu0 %6651
  %6653 = vrot.lane.b32.xlu0 %v6646, 124
  %v6654 = vpop.permute.xlu0 %6653
  %v6657 = vmax.f32 %v6641, %v6652
  %v6658 = vmax.f32 %v6646, %v6654
  %v6661 = vrot.slane %v6657, 1
  %v6662 = vrot.slane %v6658, 1
  %v6663 = vsel %vm225, %v6661, %v6662
  %v6664 = vsel %vm669, %v6663, 0
  %v6666 = vsel %vm669, %v6662, 0
  %6668 = vmatprep.subr.mxu0 0.0
  %6669 = vmatpush1.msra.mxu0 0.0
  %6670 = vmatprep.subr.mxu0 0.0
  %6671 = vmatpush1.msra.mxu0 0.0
  %6672 = vmatprep.subr.mxu0 0.0
  %6673 = vmatpush1.msra.mxu0 %v675
  %6674 = vmatprep.subr.mxu0 0.0
  %6675 = vmatpush1.msra.mxu0 %v92
  %6676 = vmatprep.subr.mxu0 0.0
  %6677 = vmatpush1.msra.mxu0 %v91
  %6678 = vmatprep.subr.mxu0 0.0
  %6679 = vmatpush1.msra.mxu0 %v90
  %6680 = vmatprep.subr.mxu0 0.0
  %6681 = vmatpush1.msra.mxu0 %v89
  %6682 = vmatprep.subr.mxu0 0.0
  %6683 = vmatpush1.msra.mxu0 %v88
  %6684 = vmatprep.subr.mxu0 0.0
  %6685 = vmatpush1.msra.mxu0 %v87
  %6686 = vmatprep.subr.mxu0 0.0
  %6687 = vmatpush1.msra.mxu0 %v86
  %6688 = vmatprep.subr.mxu0 0.0
  %6689 = vmatpush1.msra.mxu0 %v85
  %6690 = vmatprep.subr.mxu0 0.0
  %6691 = vmatpush1.msra.mxu0 %v84
  %6692 = vmatprep.subr.mxu0 0.0
  %6693 = vmatpush1.msra.mxu0 %v83
  %6694 = vmatprep.subr.mxu0 0.0
  %6695 = vmatpush1.msra.mxu0 %v82
  %6696 = vmatprep.subr.mxu0 0.0
  %6697 = vmatpush1.msra.mxu0 %v81
  %6698 = vmatprep.subr.mxu0 0.0
  %6699 = vmatpush1.msra.mxu0 %v80
  %6700 = vmatprep.subr.mxu0 0.0
  %6701 = vmatpush2.msra.mxu0 0.0
  %6702 = vmatprep.subr.mxu0 0.0
  %6703 = vmatpush2.msra.mxu0 0.0
  %6704 = vmatprep.subr.mxu0 0.0
  %6705 = vmatpush2.msra.mxu0 0.0
  %6706 = vmatprep.subr.mxu0 0.0
  %6707 = vmatpush2.msra.mxu0 0.0
  %6708 = vmatprep.subr.mxu0 0.0
  %6709 = vmatpush2.msra.mxu0 0.0
  %6710 = vmatprep.subr.mxu0 0.0
  %6711 = vmatpush2.msra.mxu0 0.0
  %6712 = vmatprep.subr.mxu0 0.0
  %6713 = vmatpush2.msra.mxu0 0.0
  %6714 = vmatprep.subr.mxu0 0.0
  %6715 = vmatpush2.msra.mxu0 0.0
  %6716 = vmatprep.subr.mxu0 0.0
  %6717 = vmatpush2.msra.mxu0 0.0
  %6718 = vmatprep.subr.mxu0 0.0
  %6719 = vmatpush2.msra.mxu0 0.0
  %6720 = vmatprep.subr.mxu0 0.0
  %6721 = vmatpush2.msra.mxu0 0.0
  %6722 = vmatprep.subr.mxu0 0.0
  %6723 = vmatpush2.msra.mxu0 0.0
  %6724 = vmatprep.subr.mxu0 0.0
  %6725 = vmatpush2.msra.mxu0 0.0
  %6726 = vmatprep.subr.mxu0 0.0
  %6727 = vmatpush2.msra.mxu0 0.0
  %6728 = vmatprep.subr.mxu0 0.0
  %6729 = vmatpush2.msra.mxu0 0.0
  %6730 = vmatprep.subr.mxu0 0.0
  %6731 = vmatpush2.msra.mxu0 0.0
  %6732 = vmatprep.mubr.f32.mxu0 0.0
  %6733 = vmatmul.mubr.f32.gmra.mxu0 %v6664
  %v6734 = vpop.f32.mrf.mxu0
  %v6735 = vadd.f32 0.0, %v6734
  %v6736 = vpop.f32.mrf.mxu0
  %6737 = vmatprep.mubr.f32.mxu0 0.0
  %6738 = vmatmul.mubr.f32.gmra.mxu0 %v6666
  %v6739 = vpop.f32.mrf.mxu0
  %v6740 = vadd.f32 0.0, %v6739
  %v6741 = vpop.f32.mrf.mxu0
  %6742 = vdwg.mxu0
  %v6743 = vsel %vm669, %v6657, 0
  %v6745 = vsel %vm669, %v6658, 0
  %6747 = vmatprep.subr.mxu0 0.0
  %6748 = vmatpush1.msra.mxu0 0.0
  %6749 = vmatprep.subr.mxu0 0.0
  %6750 = vmatpush1.msra.mxu0 0.0
  %6751 = vmatprep.subr.mxu0 0.0
  %6752 = vmatpush1.msra.mxu0 %v757
  %6753 = vmatprep.subr.mxu0 0.0
  %6754 = vmatpush1.msra.mxu0 %v77
  %6755 = vmatprep.subr.mxu0 0.0
  %6756 = vmatpush1.msra.mxu0 %v76
  %6757 = vmatprep.subr.mxu0 0.0
  %6758 = vmatpush1.msra.mxu0 %v75
  %6759 = vmatprep.subr.mxu0 0.0
  %6760 = vmatpush1.msra.mxu0 %v74
  %6761 = vmatprep.subr.mxu0 0.0
  %6762 = vmatpush1.msra.mxu0 %v73
  %6763 = vmatprep.subr.mxu0 0.0
  %6764 = vmatpush1.msra.mxu0 %v72
  %6765 = vmatprep.subr.mxu0 0.0
  %6766 = vmatpush1.msra.mxu0 %v71
  %6767 = vmatprep.subr.mxu0 0.0
  %6768 = vmatpush1.msra.mxu0 %v70
  %6769 = vmatprep.subr.mxu0 0.0
  %6770 = vmatpush1.msra.mxu0 %v69
  %6771 = vmatprep.subr.mxu0 0.0
  %6772 = vmatpush1.msra.mxu0 %v68
  %6773 = vmatprep.subr.mxu0 0.0
  %6774 = vmatpush1.msra.mxu0 %v67
  %6775 = vmatprep.subr.mxu0 0.0
  %6776 = vmatpush1.msra.mxu0 %v66
  %6777 = vmatprep.subr.mxu0 0.0
  %6778 = vmatpush1.msra.mxu0 %v65
  %6779 = vmatprep.subr.mxu0 0.0
  %6780 = vmatpush2.msra.mxu0 0.0
  %6781 = vmatprep.subr.mxu0 0.0
  %6782 = vmatpush2.msra.mxu0 0.0
  %6783 = vmatprep.subr.mxu0 0.0
  %6784 = vmatpush2.msra.mxu0 0.0
  %6785 = vmatprep.subr.mxu0 0.0
  %6786 = vmatpush2.msra.mxu0 0.0
  %6787 = vmatprep.subr.mxu0 0.0
  %6788 = vmatpush2.msra.mxu0 0.0
  %6789 = vmatprep.subr.mxu0 0.0
  %6790 = vmatpush2.msra.mxu0 0.0
  %6791 = vmatprep.subr.mxu0 0.0
  %6792 = vmatpush2.msra.mxu0 0.0
  %6793 = vmatprep.subr.mxu0 0.0
  %6794 = vmatpush2.msra.mxu0 0.0
  %6795 = vmatprep.subr.mxu0 0.0
  %6796 = vmatpush2.msra.mxu0 0.0
  %6797 = vmatprep.subr.mxu0 0.0
  %6798 = vmatpush2.msra.mxu0 0.0
  %6799 = vmatprep.subr.mxu0 0.0
  %6800 = vmatpush2.msra.mxu0 0.0
  %6801 = vmatprep.subr.mxu0 0.0
  %6802 = vmatpush2.msra.mxu0 0.0
  %6803 = vmatprep.subr.mxu0 0.0
  %6804 = vmatpush2.msra.mxu0 0.0
  %6805 = vmatprep.subr.mxu0 0.0
  %6806 = vmatpush2.msra.mxu0 0.0
  %6807 = vmatprep.subr.mxu0 0.0
  %6808 = vmatpush2.msra.mxu0 0.0
  %6809 = vmatprep.subr.mxu0 0.0
  %6810 = vmatpush2.msra.mxu0 0.0
  %6811 = vmatprep.mubr.f32.mxu0 0.0
  %6812 = vmatmul.mubr.f32.gmra.mxu0 %v6743
  %v6813 = vpop.f32.mrf.mxu0
  %v6814 = vadd.f32 %v6735, %v6813
  %v6815 = vpop.f32.mrf.mxu0
  %6816 = vmatprep.mubr.f32.mxu0 0.0
  %6817 = vmatmul.mubr.f32.gmra.mxu0 %v6745
  %v6818 = vpop.f32.mrf.mxu0
  %v6819 = vadd.f32 %v6740, %v6818
  %v6820 = vpop.f32.mrf.mxu0
  %6821 = vdwg.mxu0
  %v6822 = vrot.slane %v6657, 2
  %v6823 = vrot.slane %v6658, 2
  %v6824 = vsel %vm427, %v6822, %v6823
  %v6825 = vsel %vm669, %v6824, 0
  %v6827 = vsel %vm669, %v6823, 0
  %6829 = vmatprep.subr.mxu0 0.0
  %6830 = vmatpush1.msra.mxu0 0.0
  %6831 = vmatprep.subr.mxu0 0.0
  %6832 = vmatpush1.msra.mxu0 0.0
  %6833 = vmatprep.subr.mxu0 0.0
  %6834 = vmatpush1.msra.mxu0 %v842
  %6835 = vmatprep.subr.mxu0 0.0
  %6836 = vmatpush1.msra.mxu0 %v107
  %6837 = vmatprep.subr.mxu0 0.0
  %6838 = vmatpush1.msra.mxu0 %v106
  %6839 = vmatprep.subr.mxu0 0.0
  %6840 = vmatpush1.msra.mxu0 %v105
  %6841 = vmatprep.subr.mxu0 0.0
  %6842 = vmatpush1.msra.mxu0 %v104
  %6843 = vmatprep.subr.mxu0 0.0
  %6844 = vmatpush1.msra.mxu0 %v103
  %6845 = vmatprep.subr.mxu0 0.0
  %6846 = vmatpush1.msra.mxu0 %v102
  %6847 = vmatprep.subr.mxu0 0.0
  %6848 = vmatpush1.msra.mxu0 %v101
  %6849 = vmatprep.subr.mxu0 0.0
  %6850 = vmatpush1.msra.mxu0 %v100
  %6851 = vmatprep.subr.mxu0 0.0
  %6852 = vmatpush1.msra.mxu0 %v99
  %6853 = vmatprep.subr.mxu0 0.0
  %6854 = vmatpush1.msra.mxu0 %v98
  %6855 = vmatprep.subr.mxu0 0.0
  %6856 = vmatpush1.msra.mxu0 %v97
  %6857 = vmatprep.subr.mxu0 0.0
  %6858 = vmatpush1.msra.mxu0 %v96
  %6859 = vmatprep.subr.mxu0 0.0
  %6860 = vmatpush1.msra.mxu0 %v95
  %6861 = vmatprep.subr.mxu0 0.0
  %6862 = vmatpush2.msra.mxu0 0.0
  %6863 = vmatprep.subr.mxu0 0.0
  %6864 = vmatpush2.msra.mxu0 0.0
  %6865 = vmatprep.subr.mxu0 0.0
  %6866 = vmatpush2.msra.mxu0 0.0
  %6867 = vmatprep.subr.mxu0 0.0
  %6868 = vmatpush2.msra.mxu0 0.0
  %6869 = vmatprep.subr.mxu0 0.0
  %6870 = vmatpush2.msra.mxu0 0.0
  %6871 = vmatprep.subr.mxu0 0.0
  %6872 = vmatpush2.msra.mxu0 0.0
  %6873 = vmatprep.subr.mxu0 0.0
  %6874 = vmatpush2.msra.mxu0 0.0
  %6875 = vmatprep.subr.mxu0 0.0
  %6876 = vmatpush2.msra.mxu0 0.0
  %6877 = vmatprep.subr.mxu0 0.0
  %6878 = vmatpush2.msra.mxu0 0.0
  %6879 = vmatprep.subr.mxu0 0.0
  %6880 = vmatpush2.msra.mxu0 0.0
  %6881 = vmatprep.subr.mxu0 0.0
  %6882 = vmatpush2.msra.mxu0 0.0
  %6883 = vmatprep.subr.mxu0 0.0
  %6884 = vmatpush2.msra.mxu0 0.0
  %6885 = vmatprep.subr.mxu0 0.0
  %6886 = vmatpush2.msra.mxu0 0.0
  %6887 = vmatprep.subr.mxu0 0.0
  %6888 = vmatpush2.msra.mxu0 0.0
  %6889 = vmatprep.subr.mxu0 0.0
  %6890 = vmatpush2.msra.mxu0 0.0
  %6891 = vmatprep.subr.mxu0 0.0
  %6892 = vmatpush2.msra.mxu0 0.0
  %6893 = vmatprep.mubr.f32.mxu0 0.0
  %6894 = vmatmul.mubr.f32.gmra.mxu0 %v6825
  %v6895 = vpop.f32.mrf.mxu0
  %v6896 = vadd.f32 0.0, %v6895
  %v6897 = vpop.f32.mrf.mxu0
  %6898 = vmatprep.mubr.f32.mxu0 0.0
  %6899 = vmatmul.mubr.f32.gmra.mxu0 %v6827
  %v6900 = vpop.f32.mrf.mxu0
  %v6901 = vadd.f32 0.0, %v6900
  %v6902 = vpop.f32.mrf.mxu0
  %6903 = vdwg.mxu0
  %v6904 = vadd.f32 %v6814, %v6896
  %v6905 = vadd.f32 %v6819, %v6901
  %v6906 = vadd.f32 %v6904, %v925
  %v6907 = vadd.f32 %v6905, %v925
  %v6908 = vmax.f32 %v6906, 0.0
  %v6909 = vmax.f32 %v6907, 0.0
  %v6912 = vrot.slane %v6908, 1
  %v6913 = vrot.slane %v6909, 1
  %v6914 = vsel %vm225, %v6912, %v6913
  %v6917 = vmax.f32 %v6908, %v6914
  %v6918 = vmax.f32 %v6909, %v6913
  %v6920 = vsel %vm947, %v6918, 0
  %6922 = vmatprep.subr.mxu0 0.0
  %6923 = vmatpush1.msra.mxu0 0.0
  %6924 = vmatprep.subr.mxu0 0.0
  %6925 = vmatpush1.msra.mxu0 0.0
  %6926 = vmatprep.subr.mxu0 0.0
  %6927 = vmatpush1.msra.mxu0 0.0
  %6928 = vmatprep.subr.mxu0 0.0
  %6929 = vmatpush1.msra.mxu0 0.0
  %6930 = vmatprep.subr.mxu0 0.0
  %6931 = vmatpush1.msra.mxu0 0.0
  %6932 = vmatprep.subr.mxu0 0.0
  %6933 = vmatpush1.msra.mxu0 0.0
  %6934 = vmatprep.subr.mxu0 0.0
  %6935 = vmatpush1.msra.mxu0 0.0
  %6936 = vmatprep.subr.mxu0 0.0
  %6937 = vmatpush1.msra.mxu0 0.0
  %6938 = vmatprep.subr.mxu0 0.0
  %6939 = vmatpush1.msra.mxu0 0.0
  %6940 = vmatprep.subr.mxu0 0.0
  %6941 = vmatpush1.msra.mxu0 0.0
  %6942 = vmatprep.subr.mxu0 0.0
  %6943 = vmatpush1.msra.mxu0 0.0
  %6944 = vmatprep.subr.mxu0 0.0
  %6945 = vmatpush1.msra.mxu0 0.0
  %6946 = vmatprep.subr.mxu0 0.0
  %6947 = vmatpush1.msra.mxu0 0.0
  %6948 = vmatprep.subr.mxu0 0.0
  %6949 = vmatpush1.msra.mxu0 0.0
  %6950 = vmatprep.subr.mxu0 0.0
  %6951 = vmatpush1.msra.mxu0 %v6920
  %6952 = vmatprep.subr.mxu0 0.0
  %6953 = vmatpush1.msra.mxu0 %v6917
  %6954 = vmatprep.subr.mxu0 0.0
  %6955 = vmatpush2.msra.mxu0 0.0
  %6956 = vmatprep.subr.mxu0 0.0
  %6957 = vmatpush2.msra.mxu0 0.0
  %6958 = vmatprep.subr.mxu0 0.0
  %6959 = vmatpush2.msra.mxu0 0.0
  %6960 = vmatprep.subr.mxu0 0.0
  %6961 = vmatpush2.msra.mxu0 0.0
  %6962 = vmatprep.subr.mxu0 0.0
  %6963 = vmatpush2.msra.mxu0 0.0
  %6964 = vmatprep.subr.mxu0 0.0
  %6965 = vmatpush2.msra.mxu0 0.0
  %6966 = vmatprep.subr.mxu0 0.0
  %6967 = vmatpush2.msra.mxu0 0.0
  %6968 = vmatprep.subr.mxu0 0.0
  %6969 = vmatpush2.msra.mxu0 0.0
  %6970 = vmatprep.subr.mxu0 0.0
  %6971 = vmatpush2.msra.mxu0 0.0
  %6972 = vmatprep.subr.mxu0 0.0
  %6973 = vmatpush2.msra.mxu0 0.0
  %6974 = vmatprep.subr.mxu0 0.0
  %6975 = vmatpush2.msra.mxu0 0.0
  %6976 = vmatprep.subr.mxu0 0.0
  %6977 = vmatpush2.msra.mxu0 0.0
  %6978 = vmatprep.subr.mxu0 0.0
  %6979 = vmatpush2.msra.mxu0 0.0
  %6980 = vmatprep.subr.mxu0 0.0
  %6981 = vmatpush2.msra.mxu0 0.0
  %6982 = vmatprep.subr.mxu0 0.0
  %6983 = vmatpush2.msra.mxu0 0.0
  %6984 = vmatprep.subr.mxu0 0.0
  %6985 = vmatpush2.msra.mxu0 0.0
  %6986 = vmatprep.mubr.f32.mxu0 0.0
  %6987 = vmatmul.mubr.f32.gmra.mxu0 %v942
  %v6988 = vpop.f32.mrf.mxu0
  %v6989 = vadd.f32 0.0, %v6988
  %v6990 = vpop.f32.mrf.mxu0
  %6991 = vmatprep.mubr.f32.mxu0 0.0
  %6992 = vmatmul.mubr.f32.gmra.mxu0 %v945
  %v6993 = vpop.f32.mrf.mxu0
  %v6994 = vadd.f32 0.0, %v6993
  %v6995 = vpop.f32.mrf.mxu0
  %6996 = vdwg.mxu0
  %6999 = vrot.lane.b32.xlu0 %v6989, 120
  %v7000 = vpop.permute.xlu0 %6999
  %7001 = vrot.lane.b32.xlu0 %v6994, 120
  %v7002 = vpop.permute.xlu0 %7001
  %v7005 = vmax.f32 %v6989, %v7000
  %v7006 = vmax.f32 %v6994, %v7002
  %v7008 = vrot.slane %v7005, 1
  %v7009 = vsel %vm1038, %v7008, 0
  %7011 = vmatprep.subr.mxu0 0.0
  %7012 = vmatpush1.msra.mxu0 0.0
  %7013 = vmatprep.subr.mxu0 0.0
  %7014 = vmatpush1.msra.mxu0 0.0
  %7015 = vmatprep.subr.mxu0 0.0
  %7016 = vmatpush1.msra.mxu0 0.0
  %7017 = vmatprep.subr.mxu0 0.0
  %7018 = vmatpush1.msra.mxu0 %v136
  %7019 = vmatprep.subr.mxu0 0.0
  %7020 = vmatpush1.msra.mxu0 %v135
  %7021 = vmatprep.subr.mxu0 0.0
  %7022 = vmatpush1.msra.mxu0 %v134
  %7023 = vmatprep.subr.mxu0 0.0
  %7024 = vmatpush1.msra.mxu0 %v133
  %7025 = vmatprep.subr.mxu0 0.0
  %7026 = vmatpush1.msra.mxu0 %v132
  %7027 = vmatprep.subr.mxu0 0.0
  %7028 = vmatpush1.msra.mxu0 %v131
  %7029 = vmatprep.subr.mxu0 0.0
  %7030 = vmatpush1.msra.mxu0 %v130
  %7031 = vmatprep.subr.mxu0 0.0
  %7032 = vmatpush1.msra.mxu0 %v129
  %7033 = vmatprep.subr.mxu0 0.0
  %7034 = vmatpush1.msra.mxu0 %v128
  %7035 = vmatprep.subr.mxu0 0.0
  %7036 = vmatpush1.msra.mxu0 %v127
  %7037 = vmatprep.subr.mxu0 0.0
  %7038 = vmatpush1.msra.mxu0 %v126
  %7039 = vmatprep.subr.mxu0 0.0
  %7040 = vmatpush1.msra.mxu0 %v125
  %7041 = vmatprep.subr.mxu0 0.0
  %7042 = vmatpush1.msra.mxu0 %v124
  %7043 = vmatprep.subr.mxu0 0.0
  %7044 = vmatpush2.msra.mxu0 0.0
  %7045 = vmatprep.subr.mxu0 0.0
  %7046 = vmatpush2.msra.mxu0 0.0
  %7047 = vmatprep.subr.mxu0 0.0
  %7048 = vmatpush2.msra.mxu0 0.0
  %7049 = vmatprep.subr.mxu0 0.0
  %7050 = vmatpush2.msra.mxu0 0.0
  %7051 = vmatprep.subr.mxu0 0.0
  %7052 = vmatpush2.msra.mxu0 0.0
  %7053 = vmatprep.subr.mxu0 0.0
  %7054 = vmatpush2.msra.mxu0 0.0
  %7055 = vmatprep.subr.mxu0 0.0
  %7056 = vmatpush2.msra.mxu0 0.0
  %7057 = vmatprep.subr.mxu0 0.0
  %7058 = vmatpush2.msra.mxu0 0.0
  %7059 = vmatprep.subr.mxu0 0.0
  %7060 = vmatpush2.msra.mxu0 0.0
  %7061 = vmatprep.subr.mxu0 0.0
  %7062 = vmatpush2.msra.mxu0 0.0
  %7063 = vmatprep.subr.mxu0 0.0
  %7064 = vmatpush2.msra.mxu0 0.0
  %7065 = vmatprep.subr.mxu0 0.0
  %7066 = vmatpush2.msra.mxu0 0.0
  %7067 = vmatprep.subr.mxu0 0.0
  %7068 = vmatpush2.msra.mxu0 0.0
  %7069 = vmatprep.subr.mxu0 0.0
  %7070 = vmatpush2.msra.mxu0 0.0
  %7071 = vmatprep.subr.mxu0 0.0
  %7072 = vmatpush2.msra.mxu0 0.0
  %7073 = vmatprep.subr.mxu0 0.0
  %7074 = vmatpush2.msra.mxu0 0.0
  %7075 = vmatprep.mubr.f32.mxu0 0.0
  %7076 = vmatmul.mubr.f32.gmra.mxu0 %v7009
  %v7077 = vpop.f32.mrf.mxu0
  %v7078 = vadd.f32 0.0, %v7077
  %v7079 = vpop.f32.mrf.mxu0
  %7080 = vdwg.mxu0
  %v7081 = vsel %vm1038, %v7005, 0
  %7083 = vmatprep.subr.mxu0 0.0
  %7084 = vmatpush1.msra.mxu0 0.0
  %7085 = vmatprep.subr.mxu0 0.0
  %7086 = vmatpush1.msra.mxu0 0.0
  %7087 = vmatprep.subr.mxu0 0.0
  %7088 = vmatpush1.msra.mxu0 0.0
  %7089 = vmatprep.subr.mxu0 0.0
  %7090 = vmatpush1.msra.mxu0 %v122
  %7091 = vmatprep.subr.mxu0 0.0
  %7092 = vmatpush1.msra.mxu0 %v121
  %7093 = vmatprep.subr.mxu0 0.0
  %7094 = vmatpush1.msra.mxu0 %v120
  %7095 = vmatprep.subr.mxu0 0.0
  %7096 = vmatpush1.msra.mxu0 %v119
  %7097 = vmatprep.subr.mxu0 0.0
  %7098 = vmatpush1.msra.mxu0 %v118
  %7099 = vmatprep.subr.mxu0 0.0
  %7100 = vmatpush1.msra.mxu0 %v117
  %7101 = vmatprep.subr.mxu0 0.0
  %7102 = vmatpush1.msra.mxu0 %v116
  %7103 = vmatprep.subr.mxu0 0.0
  %7104 = vmatpush1.msra.mxu0 %v115
  %7105 = vmatprep.subr.mxu0 0.0
  %7106 = vmatpush1.msra.mxu0 %v114
  %7107 = vmatprep.subr.mxu0 0.0
  %7108 = vmatpush1.msra.mxu0 %v113
  %7109 = vmatprep.subr.mxu0 0.0
  %7110 = vmatpush1.msra.mxu0 %v112
  %7111 = vmatprep.subr.mxu0 0.0
  %7112 = vmatpush1.msra.mxu0 %v111
  %7113 = vmatprep.subr.mxu0 0.0
  %7114 = vmatpush1.msra.mxu0 %v110
  %7115 = vmatprep.subr.mxu0 0.0
  %7116 = vmatpush2.msra.mxu0 0.0
  %7117 = vmatprep.subr.mxu0 0.0
  %7118 = vmatpush2.msra.mxu0 0.0
  %7119 = vmatprep.subr.mxu0 0.0
  %7120 = vmatpush2.msra.mxu0 0.0
  %7121 = vmatprep.subr.mxu0 0.0
  %7122 = vmatpush2.msra.mxu0 0.0
  %7123 = vmatprep.subr.mxu0 0.0
  %7124 = vmatpush2.msra.mxu0 0.0
  %7125 = vmatprep.subr.mxu0 0.0
  %7126 = vmatpush2.msra.mxu0 0.0
  %7127 = vmatprep.subr.mxu0 0.0
  %7128 = vmatpush2.msra.mxu0 0.0
  %7129 = vmatprep.subr.mxu0 0.0
  %7130 = vmatpush2.msra.mxu0 0.0
  %7131 = vmatprep.subr.mxu0 0.0
  %7132 = vmatpush2.msra.mxu0 0.0
  %7133 = vmatprep.subr.mxu0 0.0
  %7134 = vmatpush2.msra.mxu0 0.0
  %7135 = vmatprep.subr.mxu0 0.0
  %7136 = vmatpush2.msra.mxu0 0.0
  %7137 = vmatprep.subr.mxu0 0.0
  %7138 = vmatpush2.msra.mxu0 0.0
  %7139 = vmatprep.subr.mxu0 0.0
  %7140 = vmatpush2.msra.mxu0 0.0
  %7141 = vmatprep.subr.mxu0 0.0
  %7142 = vmatpush2.msra.mxu0 0.0
  %7143 = vmatprep.subr.mxu0 0.0
  %7144 = vmatpush2.msra.mxu0 0.0
  %7145 = vmatprep.subr.mxu0 0.0
  %7146 = vmatpush2.msra.mxu0 0.0
  %7147 = vmatprep.mubr.f32.mxu0 0.0
  %7148 = vmatmul.mubr.f32.gmra.mxu0 %v7081
  %v7149 = vpop.f32.mrf.mxu0
  %v7150 = vadd.f32 %v7078, %v7149
  %v7151 = vpop.f32.mrf.mxu0
  %7152 = vdwg.mxu0
  %v7154 = vrot.slane %v7005, 2
  %v7155 = vrot.slane %v7006, 2
  %v7156 = vsel %vm427, %v7154, %v7155
  %v7157 = vsel %vm1038, %v7156, 0
  %7159 = vmatprep.subr.mxu0 0.0
  %7160 = vmatpush1.msra.mxu0 0.0
  %7161 = vmatprep.subr.mxu0 0.0
  %7162 = vmatpush1.msra.mxu0 0.0
  %7163 = vmatprep.subr.mxu0 0.0
  %7164 = vmatpush1.msra.mxu0 0.0
  %7165 = vmatprep.subr.mxu0 0.0
  %7166 = vmatpush1.msra.mxu0 %v150
  %7167 = vmatprep.subr.mxu0 0.0
  %7168 = vmatpush1.msra.mxu0 %v149
  %7169 = vmatprep.subr.mxu0 0.0
  %7170 = vmatpush1.msra.mxu0 %v148
  %7171 = vmatprep.subr.mxu0 0.0
  %7172 = vmatpush1.msra.mxu0 %v147
  %7173 = vmatprep.subr.mxu0 0.0
  %7174 = vmatpush1.msra.mxu0 %v146
  %7175 = vmatprep.subr.mxu0 0.0
  %7176 = vmatpush1.msra.mxu0 %v145
  %7177 = vmatprep.subr.mxu0 0.0
  %7178 = vmatpush1.msra.mxu0 %v144
  %7179 = vmatprep.subr.mxu0 0.0
  %7180 = vmatpush1.msra.mxu0 %v143
  %7181 = vmatprep.subr.mxu0 0.0
  %7182 = vmatpush1.msra.mxu0 %v142
  %7183 = vmatprep.subr.mxu0 0.0
  %7184 = vmatpush1.msra.mxu0 %v141
  %7185 = vmatprep.subr.mxu0 0.0
  %7186 = vmatpush1.msra.mxu0 %v140
  %7187 = vmatprep.subr.mxu0 0.0
  %7188 = vmatpush1.msra.mxu0 %v139
  %7189 = vmatprep.subr.mxu0 0.0
  %7190 = vmatpush1.msra.mxu0 %v138
  %7191 = vmatprep.subr.mxu0 0.0
  %7192 = vmatpush2.msra.mxu0 0.0
  %7193 = vmatprep.subr.mxu0 0.0
  %7194 = vmatpush2.msra.mxu0 0.0
  %7195 = vmatprep.subr.mxu0 0.0
  %7196 = vmatpush2.msra.mxu0 0.0
  %7197 = vmatprep.subr.mxu0 0.0
  %7198 = vmatpush2.msra.mxu0 0.0
  %7199 = vmatprep.subr.mxu0 0.0
  %7200 = vmatpush2.msra.mxu0 0.0
  %7201 = vmatprep.subr.mxu0 0.0
  %7202 = vmatpush2.msra.mxu0 0.0
  %7203 = vmatprep.subr.mxu0 0.0
  %7204 = vmatpush2.msra.mxu0 0.0
  %7205 = vmatprep.subr.mxu0 0.0
  %7206 = vmatpush2.msra.mxu0 0.0
  %7207 = vmatprep.subr.mxu0 0.0
  %7208 = vmatpush2.msra.mxu0 0.0
  %7209 = vmatprep.subr.mxu0 0.0
  %7210 = vmatpush2.msra.mxu0 0.0
  %7211 = vmatprep.subr.mxu0 0.0
  %7212 = vmatpush2.msra.mxu0 0.0
  %7213 = vmatprep.subr.mxu0 0.0
  %7214 = vmatpush2.msra.mxu0 0.0
  %7215 = vmatprep.subr.mxu0 0.0
  %7216 = vmatpush2.msra.mxu0 0.0
  %7217 = vmatprep.subr.mxu0 0.0
  %7218 = vmatpush2.msra.mxu0 0.0
  %7219 = vmatprep.subr.mxu0 0.0
  %7220 = vmatpush2.msra.mxu0 0.0
  %7221 = vmatprep.subr.mxu0 0.0
  %7222 = vmatpush2.msra.mxu0 0.0
  %7223 = vmatprep.mubr.f32.mxu0 0.0
  %7224 = vmatmul.mubr.f32.gmra.mxu0 %v7157
  %v7225 = vpop.f32.mrf.mxu0
  %v7226 = vadd.f32 0.0, %v7225
  %v7227 = vpop.f32.mrf.mxu0
  %7228 = vdwg.mxu0
  %v7229 = vadd.f32 %v7150, %v7226
  %v7230 = vadd.f32 %v7229, %v1264
  %v7231 = vmax.f32 %v7230, 0.0
  %s7232 = scalar_lea.vmem %s0, 224
  %v7233 = vld [vmem:[%s7232] sm:$0xff]
  %v7234 = vld [vmem:[%s7232 + $0x8] sm:$0xff]
  %v7235 = vld [vmem:[%s7232 + $0x10] sm:$0xff]
  %v7236 = vld [vmem:[%s7232 + $0x18] sm:$0x3f]
  %v7241 = vrot.slane %v7233, 1
  %v7242 = vrot.slane %v7234, 1
  %v7243 = vsel %vm225, %v7241, %v7242
  %v7244 = vrot.slane %v7235, 1
  %v7245 = vsel %vm225, %v7242, %v7244
  %v7246 = vrot.slane %v7236, 1
  %v7247 = vsel %vm225, %v7244, %v7246
  %v7248 = vsel %vm233, %v7243, 0
  %v7250 = vsel %vm233, %v7245, 0
  %v7252 = vsel %vm233, %v7247, 0
  %v7254 = vsel %vm233, %v7246, 0
  %7256 = vmatprep.subr.mxu0 0.0
  %7257 = vmatpush1.msra.mxu0 0.0
  %7258 = vmatprep.subr.mxu0 0.0
  %7259 = vmatpush1.msra.mxu0 0.0
  %7260 = vmatprep.subr.mxu0 0.0
  %7261 = vmatpush1.msra.mxu0 0.0
  %7262 = vmatprep.subr.mxu0 0.0
  %7263 = vmatpush1.msra.mxu0 0.0
  %7264 = vmatprep.subr.mxu0 0.0
  %7265 = vmatpush1.msra.mxu0 0.0
  %7266 = vmatprep.subr.mxu0 0.0
  %7267 = vmatpush1.msra.mxu0 0.0
  %7268 = vmatprep.subr.mxu0 0.0
  %7269 = vmatpush1.msra.mxu0 0.0
  %7270 = vmatprep.subr.mxu0 0.0
  %7271 = vmatpush1.msra.mxu0 0.0
  %7272 = vmatprep.subr.mxu0 0.0
  %7273 = vmatpush1.msra.mxu0 0.0
  %7274 = vmatprep.subr.mxu0 0.0
  %7275 = vmatpush1.msra.mxu0 0.0
  %7276 = vmatprep.subr.mxu0 0.0
  %7277 = vmatpush1.msra.mxu0 0.0
  %7278 = vmatprep.subr.mxu0 0.0
  %7279 = vmatpush1.msra.mxu0 0.0
  %7280 = vmatprep.subr.mxu0 0.0
  %7281 = vmatpush1.msra.mxu0 %v244
  %7282 = vmatprep.subr.mxu0 0.0
  %7283 = vmatpush1.msra.mxu0 %v57
  %7284 = vmatprep.subr.mxu0 0.0
  %7285 = vmatpush1.msra.mxu0 %v56
  %7286 = vmatprep.subr.mxu0 0.0
  %7287 = vmatpush1.msra.mxu0 %v55
  %7288 = vmatprep.subr.mxu0 0.0
  %7289 = vmatpush2.msra.mxu0 0.0
  %7290 = vmatprep.subr.mxu0 0.0
  %7291 = vmatpush2.msra.mxu0 0.0
  %7292 = vmatprep.subr.mxu0 0.0
  %7293 = vmatpush2.msra.mxu0 0.0
  %7294 = vmatprep.subr.mxu0 0.0
  %7295 = vmatpush2.msra.mxu0 0.0
  %7296 = vmatprep.subr.mxu0 0.0
  %7297 = vmatpush2.msra.mxu0 0.0
  %7298 = vmatprep.subr.mxu0 0.0
  %7299 = vmatpush2.msra.mxu0 0.0
  %7300 = vmatprep.subr.mxu0 0.0
  %7301 = vmatpush2.msra.mxu0 0.0
  %7302 = vmatprep.subr.mxu0 0.0
  %7303 = vmatpush2.msra.mxu0 0.0
  %7304 = vmatprep.subr.mxu0 0.0
  %7305 = vmatpush2.msra.mxu0 0.0
  %7306 = vmatprep.subr.mxu0 0.0
  %7307 = vmatpush2.msra.mxu0 0.0
  %7308 = vmatprep.subr.mxu0 0.0
  %7309 = vmatpush2.msra.mxu0 0.0
  %7310 = vmatprep.subr.mxu0 0.0
  %7311 = vmatpush2.msra.mxu0 0.0
  %7312 = vmatprep.subr.mxu0 0.0
  %7313 = vmatpush2.msra.mxu0 0.0
  %7314 = vmatprep.subr.mxu0 0.0
  %7315 = vmatpush2.msra.mxu0 0.0
  %7316 = vmatprep.subr.mxu0 0.0
  %7317 = vmatpush2.msra.mxu0 0.0
  %7318 = vmatprep.subr.mxu0 0.0
  %7319 = vmatpush2.msra.mxu0 0.0
  %7320 = vmatprep.mubr.f32.mxu0 0.0
  %7321 = vmatmul.mubr.f32.gmra.mxu0 %v7248
  %v7322 = vpop.f32.mrf.mxu0
  %v7323 = vadd.f32 0.0, %v7322
  %v7324 = vpop.f32.mrf.mxu0
  %7325 = vmatprep.mubr.f32.mxu0 0.0
  %7326 = vmatmul.mubr.f32.gmra.mxu0 %v7250
  %v7327 = vpop.f32.mrf.mxu0
  %v7328 = vadd.f32 0.0, %v7327
  %v7329 = vpop.f32.mrf.mxu0
  %7330 = vmatprep.mubr.f32.mxu0 0.0
  %7331 = vmatmul.mubr.f32.gmra.mxu0 %v7252
  %v7332 = vpop.f32.mrf.mxu0
  %v7333 = vadd.f32 0.0, %v7332
  %v7334 = vpop.f32.mrf.mxu0
  %7335 = vmatprep.mubr.f32.mxu0 0.0
  %7336 = vmatmul.mubr.f32.gmra.mxu0 %v7254
  %v7337 = vpop.f32.mrf.mxu0
  %v7338 = vadd.f32 0.0, %v7337
  %v7339 = vpop.f32.mrf.mxu0
  %7340 = vdwg.mxu0
  %v7341 = vsel %vm233, %v7233, 0
  %v7343 = vsel %vm233, %v7234, 0
  %v7345 = vsel %vm233, %v7235, 0
  %v7347 = vsel %vm233, %v7236, 0
  %7349 = vmatprep.subr.mxu0 0.0
  %7350 = vmatpush1.msra.mxu0 0.0
  %7351 = vmatprep.subr.mxu0 0.0
  %7352 = vmatpush1.msra.mxu0 0.0
  %7353 = vmatprep.subr.mxu0 0.0
  %7354 = vmatpush1.msra.mxu0 0.0
  %7355 = vmatprep.subr.mxu0 0.0
  %7356 = vmatpush1.msra.mxu0 0.0
  %7357 = vmatprep.subr.mxu0 0.0
  %7358 = vmatpush1.msra.mxu0 0.0
  %7359 = vmatprep.subr.mxu0 0.0
  %7360 = vmatpush1.msra.mxu0 0.0
  %7361 = vmatprep.subr.mxu0 0.0
  %7362 = vmatpush1.msra.mxu0 0.0
  %7363 = vmatprep.subr.mxu0 0.0
  %7364 = vmatpush1.msra.mxu0 0.0
  %7365 = vmatprep.subr.mxu0 0.0
  %7366 = vmatpush1.msra.mxu0 0.0
  %7367 = vmatprep.subr.mxu0 0.0
  %7368 = vmatpush1.msra.mxu0 0.0
  %7369 = vmatprep.subr.mxu0 0.0
  %7370 = vmatpush1.msra.mxu0 0.0
  %7371 = vmatprep.subr.mxu0 0.0
  %7372 = vmatpush1.msra.mxu0 0.0
  %7373 = vmatprep.subr.mxu0 0.0
  %7374 = vmatpush1.msra.mxu0 %v340
  %7375 = vmatprep.subr.mxu0 0.0
  %7376 = vmatpush1.msra.mxu0 %v52
  %7377 = vmatprep.subr.mxu0 0.0
  %7378 = vmatpush1.msra.mxu0 %v51
  %7379 = vmatprep.subr.mxu0 0.0
  %7380 = vmatpush1.msra.mxu0 %v50
  %7381 = vmatprep.subr.mxu0 0.0
  %7382 = vmatpush2.msra.mxu0 0.0
  %7383 = vmatprep.subr.mxu0 0.0
  %7384 = vmatpush2.msra.mxu0 0.0
  %7385 = vmatprep.subr.mxu0 0.0
  %7386 = vmatpush2.msra.mxu0 0.0
  %7387 = vmatprep.subr.mxu0 0.0
  %7388 = vmatpush2.msra.mxu0 0.0
  %7389 = vmatprep.subr.mxu0 0.0
  %7390 = vmatpush2.msra.mxu0 0.0
  %7391 = vmatprep.subr.mxu0 0.0
  %7392 = vmatpush2.msra.mxu0 0.0
  %7393 = vmatprep.subr.mxu0 0.0
  %7394 = vmatpush2.msra.mxu0 0.0
  %7395 = vmatprep.subr.mxu0 0.0
  %7396 = vmatpush2.msra.mxu0 0.0
  %7397 = vmatprep.subr.mxu0 0.0
  %7398 = vmatpush2.msra.mxu0 0.0
  %7399 = vmatprep.subr.mxu0 0.0
  %7400 = vmatpush2.msra.mxu0 0.0
  %7401 = vmatprep.subr.mxu0 0.0
  %7402 = vmatpush2.msra.mxu0 0.0
  %7403 = vmatprep.subr.mxu0 0.0
  %7404 = vmatpush2.msra.mxu0 0.0
  %7405 = vmatprep.subr.mxu0 0.0
  %7406 = vmatpush2.msra.mxu0 0.0
  %7407 = vmatprep.subr.mxu0 0.0
  %7408 = vmatpush2.msra.mxu0 0.0
  %7409 = vmatprep.subr.mxu0 0.0
  %7410 = vmatpush2.msra.mxu0 0.0
  %7411 = vmatprep.subr.mxu0 0.0
  %7412 = vmatpush2.msra.mxu0 0.0
  %7413 = vmatprep.mubr.f32.mxu0 0.0
  %7414 = vmatmul.mubr.f32.gmra.mxu0 %v7341
  %v7415 = vpop.f32.mrf.mxu0
  %v7416 = vadd.f32 %v7323, %v7415
  %v7417 = vpop.f32.mrf.mxu0
  %7418 = vmatprep.mubr.f32.mxu0 0.0
  %7419 = vmatmul.mubr.f32.gmra.mxu0 %v7343
  %v7420 = vpop.f32.mrf.mxu0
  %v7421 = vadd.f32 %v7328, %v7420
  %v7422 = vpop.f32.mrf.mxu0
  %7423 = vmatprep.mubr.f32.mxu0 0.0
  %7424 = vmatmul.mubr.f32.gmra.mxu0 %v7345
  %v7425 = vpop.f32.mrf.mxu0
  %v7426 = vadd.f32 %v7333, %v7425
  %v7427 = vpop.f32.mrf.mxu0
  %7428 = vmatprep.mubr.f32.mxu0 0.0
  %7429 = vmatmul.mubr.f32.gmra.mxu0 %v7347
  %v7430 = vpop.f32.mrf.mxu0
  %v7431 = vadd.f32 %v7338, %v7430
  %v7432 = vpop.f32.mrf.mxu0
  %7433 = vdwg.mxu0
  %v7434 = vrot.slane %v7233, 2
  %v7435 = vrot.slane %v7234, 2
  %v7436 = vsel %vm427, %v7434, %v7435
  %v7437 = vrot.slane %v7235, 2
  %v7438 = vsel %vm427, %v7435, %v7437
  %v7439 = vrot.slane %v7236, 2
  %v7440 = vsel %vm427, %v7437, %v7439
  %v7441 = vsel %vm233, %v7436, 0
  %v7443 = vsel %vm233, %v7438, 0
  %v7445 = vsel %vm233, %v7440, 0
  %v7447 = vsel %vm233, %v7439, 0
  %7449 = vmatprep.subr.mxu0 0.0
  %7450 = vmatpush1.msra.mxu0 0.0
  %7451 = vmatprep.subr.mxu0 0.0
  %7452 = vmatpush1.msra.mxu0 0.0
  %7453 = vmatprep.subr.mxu0 0.0
  %7454 = vmatpush1.msra.mxu0 0.0
  %7455 = vmatprep.subr.mxu0 0.0
  %7456 = vmatpush1.msra.mxu0 0.0
  %7457 = vmatprep.subr.mxu0 0.0
  %7458 = vmatpush1.msra.mxu0 0.0
  %7459 = vmatprep.subr.mxu0 0.0
  %7460 = vmatpush1.msra.mxu0 0.0
  %7461 = vmatprep.subr.mxu0 0.0
  %7462 = vmatpush1.msra.mxu0 0.0
  %7463 = vmatprep.subr.mxu0 0.0
  %7464 = vmatpush1.msra.mxu0 0.0
  %7465 = vmatprep.subr.mxu0 0.0
  %7466 = vmatpush1.msra.mxu0 0.0
  %7467 = vmatprep.subr.mxu0 0.0
  %7468 = vmatpush1.msra.mxu0 0.0
  %7469 = vmatprep.subr.mxu0 0.0
  %7470 = vmatpush1.msra.mxu0 0.0
  %7471 = vmatprep.subr.mxu0 0.0
  %7472 = vmatpush1.msra.mxu0 0.0
  %7473 = vmatprep.subr.mxu0 0.0
  %7474 = vmatpush1.msra.mxu0 %v444
  %7475 = vmatprep.subr.mxu0 0.0
  %7476 = vmatpush1.msra.mxu0 %v62
  %7477 = vmatprep.subr.mxu0 0.0
  %7478 = vmatpush1.msra.mxu0 %v61
  %7479 = vmatprep.subr.mxu0 0.0
  %7480 = vmatpush1.msra.mxu0 %v60
  %7481 = vmatprep.subr.mxu0 0.0
  %7482 = vmatpush2.msra.mxu0 0.0
  %7483 = vmatprep.subr.mxu0 0.0
  %7484 = vmatpush2.msra.mxu0 0.0
  %7485 = vmatprep.subr.mxu0 0.0
  %7486 = vmatpush2.msra.mxu0 0.0
  %7487 = vmatprep.subr.mxu0 0.0
  %7488 = vmatpush2.msra.mxu0 0.0
  %7489 = vmatprep.subr.mxu0 0.0
  %7490 = vmatpush2.msra.mxu0 0.0
  %7491 = vmatprep.subr.mxu0 0.0
  %7492 = vmatpush2.msra.mxu0 0.0
  %7493 = vmatprep.subr.mxu0 0.0
  %7494 = vmatpush2.msra.mxu0 0.0
  %7495 = vmatprep.subr.mxu0 0.0
  %7496 = vmatpush2.msra.mxu0 0.0
  %7497 = vmatprep.subr.mxu0 0.0
  %7498 = vmatpush2.msra.mxu0 0.0
  %7499 = vmatprep.subr.mxu0 0.0
  %7500 = vmatpush2.msra.mxu0 0.0
  %7501 = vmatprep.subr.mxu0 0.0
  %7502 = vmatpush2.msra.mxu0 0.0
  %7503 = vmatprep.subr.mxu0 0.0
  %7504 = vmatpush2.msra.mxu0 0.0
  %7505 = vmatprep.subr.mxu0 0.0
  %7506 = vmatpush2.msra.mxu0 0.0
  %7507 = vmatprep.subr.mxu0 0.0
  %7508 = vmatpush2.msra.mxu0 0.0
  %7509 = vmatprep.subr.mxu0 0.0
  %7510 = vmatpush2.msra.mxu0 0.0
  %7511 = vmatprep.subr.mxu0 0.0
  %7512 = vmatpush2.msra.mxu0 0.0
  %7513 = vmatprep.mubr.f32.mxu0 0.0
  %7514 = vmatmul.mubr.f32.gmra.mxu0 %v7441
  %v7515 = vpop.f32.mrf.mxu0
  %v7516 = vadd.f32 0.0, %v7515
  %v7517 = vpop.f32.mrf.mxu0
  %7518 = vmatprep.mubr.f32.mxu0 0.0
  %7519 = vmatmul.mubr.f32.gmra.mxu0 %v7443
  %v7520 = vpop.f32.mrf.mxu0
  %v7521 = vadd.f32 0.0, %v7520
  %v7522 = vpop.f32.mrf.mxu0
  %7523 = vmatprep.mubr.f32.mxu0 0.0
  %7524 = vmatmul.mubr.f32.gmra.mxu0 %v7445
  %v7525 = vpop.f32.mrf.mxu0
  %v7526 = vadd.f32 0.0, %v7525
  %v7527 = vpop.f32.mrf.mxu0
  %7528 = vmatprep.mubr.f32.mxu0 0.0
  %7529 = vmatmul.mubr.f32.gmra.mxu0 %v7447
  %v7530 = vpop.f32.mrf.mxu0
  %v7531 = vadd.f32 0.0, %v7530
  %v7532 = vpop.f32.mrf.mxu0
  %7533 = vdwg.mxu0
  %v7534 = vadd.f32 %v7416, %v7516
  %v7535 = vadd.f32 %v7421, %v7521
  %v7536 = vadd.f32 %v7426, %v7526
  %v7537 = vadd.f32 %v7431, %v7531
  %v7538 = vadd.f32 %v7534, %v539
  %v7539 = vadd.f32 %v7535, %v539
  %v7540 = vadd.f32 %v7536, %v539
  %v7541 = vadd.f32 %v7537, %v539
  %v7542 = vmax.f32 %v7538, 0.0
  %v7543 = vmax.f32 %v7539, 0.0
  %v7544 = vmax.f32 %v7540, 0.0
  %v7545 = vmax.f32 %v7541, 0.0
  %v7550 = vrot.slane %v7542, 1
  %v7551 = vrot.slane %v7543, 1
  %v7552 = vsel %vm225, %v7550, %v7551
  %v7553 = vrot.slane %v7544, 1
  %v7554 = vsel %vm225, %v7551, %v7553
  %v7555 = vrot.slane %v7545, 1
  %v7556 = vsel %vm225, %v7553, %v7555
  %v7561 = vmax.f32 %v7542, %v7552
  %v7562 = vmax.f32 %v7543, %v7554
  %v7563 = vmax.f32 %v7544, %v7556
  %v7564 = vmax.f32 %v7545, %v7555
  %v7566 = vsel %vm575, %v7564, 0
  %7568 = vmatprep.subr.mxu0 0.0
  %7569 = vmatpush1.msra.mxu0 0.0
  %7570 = vmatprep.subr.mxu0 0.0
  %7571 = vmatpush1.msra.mxu0 0.0
  %7572 = vmatprep.subr.mxu0 0.0
  %7573 = vmatpush1.msra.mxu0 0.0
  %7574 = vmatprep.subr.mxu0 0.0
  %7575 = vmatpush1.msra.mxu0 0.0
  %7576 = vmatprep.subr.mxu0 0.0
  %7577 = vmatpush1.msra.mxu0 0.0
  %7578 = vmatprep.subr.mxu0 0.0
  %7579 = vmatpush1.msra.mxu0 0.0
  %7580 = vmatprep.subr.mxu0 0.0
  %7581 = vmatpush1.msra.mxu0 0.0
  %7582 = vmatprep.subr.mxu0 0.0
  %7583 = vmatpush1.msra.mxu0 0.0
  %7584 = vmatprep.subr.mxu0 0.0
  %7585 = vmatpush1.msra.mxu0 0.0
  %7586 = vmatprep.subr.mxu0 0.0
  %7587 = vmatpush1.msra.mxu0 0.0
  %7588 = vmatprep.subr.mxu0 0.0
  %7589 = vmatpush1.msra.mxu0 0.0
  %7590 = vmatprep.subr.mxu0 0.0
  %7591 = vmatpush1.msra.mxu0 0.0
  %7592 = vmatprep.subr.mxu0 0.0
  %7593 = vmatpush1.msra.mxu0 %v7566
  %7594 = vmatprep.subr.mxu0 0.0
  %7595 = vmatpush1.msra.mxu0 %v7563
  %7596 = vmatprep.subr.mxu0 0.0
  %7597 = vmatpush1.msra.mxu0 %v7562
  %7598 = vmatprep.subr.mxu0 0.0
  %7599 = vmatpush1.msra.mxu0 %v7561
  %7600 = vmatprep.subr.mxu0 0.0
  %7601 = vmatpush2.msra.mxu0 0.0
  %7602 = vmatprep.subr.mxu0 0.0
  %7603 = vmatpush2.msra.mxu0 0.0
  %7604 = vmatprep.subr.mxu0 0.0
  %7605 = vmatpush2.msra.mxu0 0.0
  %7606 = vmatprep.subr.mxu0 0.0
  %7607 = vmatpush2.msra.mxu0 0.0
  %7608 = vmatprep.subr.mxu0 0.0
  %7609 = vmatpush2.msra.mxu0 0.0
  %7610 = vmatprep.subr.mxu0 0.0
  %7611 = vmatpush2.msra.mxu0 0.0
  %7612 = vmatprep.subr.mxu0 0.0
  %7613 = vmatpush2.msra.mxu0 0.0
  %7614 = vmatprep.subr.mxu0 0.0
  %7615 = vmatpush2.msra.mxu0 0.0
  %7616 = vmatprep.subr.mxu0 0.0
  %7617 = vmatpush2.msra.mxu0 0.0
  %7618 = vmatprep.subr.mxu0 0.0
  %7619 = vmatpush2.msra.mxu0 0.0
  %7620 = vmatprep.subr.mxu0 0.0
  %7621 = vmatpush2.msra.mxu0 0.0
  %7622 = vmatprep.subr.mxu0 0.0
  %7623 = vmatpush2.msra.mxu0 0.0
  %7624 = vmatprep.subr.mxu0 0.0
  %7625 = vmatpush2.msra.mxu0 0.0
  %7626 = vmatprep.subr.mxu0 0.0
  %7627 = vmatpush2.msra.mxu0 0.0
  %7628 = vmatprep.subr.mxu0 0.0
  %7629 = vmatpush2.msra.mxu0 0.0
  %7630 = vmatprep.subr.mxu0 0.0
  %7631 = vmatpush2.msra.mxu0 0.0
  %7632 = vmatprep.mubr.f32.mxu0 0.0
  %7633 = vmatmul.mubr.f32.gmra.mxu0 %v570
  %v7634 = vpop.f32.mrf.mxu0
  %v7635 = vadd.f32 0.0, %v7634
  %v7636 = vpop.f32.mrf.mxu0
  %7637 = vmatprep.mubr.f32.mxu0 0.0
  %7638 = vmatmul.mubr.f32.gmra.mxu0 %v573
  %v7639 = vpop.f32.mrf.mxu0
  %v7640 = vadd.f32 0.0, %v7639
  %v7641 = vpop.f32.mrf.mxu0
  %7642 = vdwg.mxu0
  %7645 = vrot.lane.b32.xlu0 %v7635, 124
  %v7646 = vpop.permute.xlu0 %7645
  %7647 = vrot.lane.b32.xlu0 %v7640, 124
  %v7648 = vpop.permute.xlu0 %7647
  %v7651 = vmax.f32 %v7635, %v7646
  %v7652 = vmax.f32 %v7640, %v7648
  %v7655 = vrot.slane %v7651, 1
  %v7656 = vrot.slane %v7652, 1
  %v7657 = vsel %vm225, %v7655, %v7656
  %v7658 = vsel %vm669, %v7657, 0
  %v7660 = vsel %vm669, %v7656, 0
  %7662 = vmatprep.subr.mxu0 0.0
  %7663 = vmatpush1.msra.mxu0 0.0
  %7664 = vmatprep.subr.mxu0 0.0
  %7665 = vmatpush1.msra.mxu0 0.0
  %7666 = vmatprep.subr.mxu0 0.0
  %7667 = vmatpush1.msra.mxu0 %v675
  %7668 = vmatprep.subr.mxu0 0.0
  %7669 = vmatpush1.msra.mxu0 %v92
  %7670 = vmatprep.subr.mxu0 0.0
  %7671 = vmatpush1.msra.mxu0 %v91
  %7672 = vmatprep.subr.mxu0 0.0
  %7673 = vmatpush1.msra.mxu0 %v90
  %7674 = vmatprep.subr.mxu0 0.0
  %7675 = vmatpush1.msra.mxu0 %v89
  %7676 = vmatprep.subr.mxu0 0.0
  %7677 = vmatpush1.msra.mxu0 %v88
  %7678 = vmatprep.subr.mxu0 0.0
  %7679 = vmatpush1.msra.mxu0 %v87
  %7680 = vmatprep.subr.mxu0 0.0
  %7681 = vmatpush1.msra.mxu0 %v86
  %7682 = vmatprep.subr.mxu0 0.0
  %7683 = vmatpush1.msra.mxu0 %v85
  %7684 = vmatprep.subr.mxu0 0.0
  %7685 = vmatpush1.msra.mxu0 %v84
  %7686 = vmatprep.subr.mxu0 0.0
  %7687 = vmatpush1.msra.mxu0 %v83
  %7688 = vmatprep.subr.mxu0 0.0
  %7689 = vmatpush1.msra.mxu0 %v82
  %7690 = vmatprep.subr.mxu0 0.0
  %7691 = vmatpush1.msra.mxu0 %v81
  %7692 = vmatprep.subr.mxu0 0.0
  %7693 = vmatpush1.msra.mxu0 %v80
  %7694 = vmatprep.subr.mxu0 0.0
  %7695 = vmatpush2.msra.mxu0 0.0
  %7696 = vmatprep.subr.mxu0 0.0
  %7697 = vmatpush2.msra.mxu0 0.0
  %7698 = vmatprep.subr.mxu0 0.0
  %7699 = vmatpush2.msra.mxu0 0.0
  %7700 = vmatprep.subr.mxu0 0.0
  %7701 = vmatpush2.msra.mxu0 0.0
  %7702 = vmatprep.subr.mxu0 0.0
  %7703 = vmatpush2.msra.mxu0 0.0
  %7704 = vmatprep.subr.mxu0 0.0
  %7705 = vmatpush2.msra.mxu0 0.0
  %7706 = vmatprep.subr.mxu0 0.0
  %7707 = vmatpush2.msra.mxu0 0.0
  %7708 = vmatprep.subr.mxu0 0.0
  %7709 = vmatpush2.msra.mxu0 0.0
  %7710 = vmatprep.subr.mxu0 0.0
  %7711 = vmatpush2.msra.mxu0 0.0
  %7712 = vmatprep.subr.mxu0 0.0
  %7713 = vmatpush2.msra.mxu0 0.0
  %7714 = vmatprep.subr.mxu0 0.0
  %7715 = vmatpush2.msra.mxu0 0.0
  %7716 = vmatprep.subr.mxu0 0.0
  %7717 = vmatpush2.msra.mxu0 0.0
  %7718 = vmatprep.subr.mxu0 0.0
  %7719 = vmatpush2.msra.mxu0 0.0
  %7720 = vmatprep.subr.mxu0 0.0
  %7721 = vmatpush2.msra.mxu0 0.0
  %7722 = vmatprep.subr.mxu0 0.0
  %7723 = vmatpush2.msra.mxu0 0.0
  %7724 = vmatprep.subr.mxu0 0.0
  %7725 = vmatpush2.msra.mxu0 0.0
  %7726 = vmatprep.mubr.f32.mxu0 0.0
  %7727 = vmatmul.mubr.f32.gmra.mxu0 %v7658
  %v7728 = vpop.f32.mrf.mxu0
  %v7729 = vadd.f32 0.0, %v7728
  %v7730 = vpop.f32.mrf.mxu0
  %7731 = vmatprep.mubr.f32.mxu0 0.0
  %7732 = vmatmul.mubr.f32.gmra.mxu0 %v7660
  %v7733 = vpop.f32.mrf.mxu0
  %v7734 = vadd.f32 0.0, %v7733
  %v7735 = vpop.f32.mrf.mxu0
  %7736 = vdwg.mxu0
  %v7737 = vsel %vm669, %v7651, 0
  %v7739 = vsel %vm669, %v7652, 0
  %7741 = vmatprep.subr.mxu0 0.0
  %7742 = vmatpush1.msra.mxu0 0.0
  %7743 = vmatprep.subr.mxu0 0.0
  %7744 = vmatpush1.msra.mxu0 0.0
  %7745 = vmatprep.subr.mxu0 0.0
  %7746 = vmatpush1.msra.mxu0 %v757
  %7747 = vmatprep.subr.mxu0 0.0
  %7748 = vmatpush1.msra.mxu0 %v77
  %7749 = vmatprep.subr.mxu0 0.0
  %7750 = vmatpush1.msra.mxu0 %v76
  %7751 = vmatprep.subr.mxu0 0.0
  %7752 = vmatpush1.msra.mxu0 %v75
  %7753 = vmatprep.subr.mxu0 0.0
  %7754 = vmatpush1.msra.mxu0 %v74
  %7755 = vmatprep.subr.mxu0 0.0
  %7756 = vmatpush1.msra.mxu0 %v73
  %7757 = vmatprep.subr.mxu0 0.0
  %7758 = vmatpush1.msra.mxu0 %v72
  %7759 = vmatprep.subr.mxu0 0.0
  %7760 = vmatpush1.msra.mxu0 %v71
  %7761 = vmatprep.subr.mxu0 0.0
  %7762 = vmatpush1.msra.mxu0 %v70
  %7763 = vmatprep.subr.mxu0 0.0
  %7764 = vmatpush1.msra.mxu0 %v69
  %7765 = vmatprep.subr.mxu0 0.0
  %7766 = vmatpush1.msra.mxu0 %v68
  %7767 = vmatprep.subr.mxu0 0.0
  %7768 = vmatpush1.msra.mxu0 %v67
  %7769 = vmatprep.subr.mxu0 0.0
  %7770 = vmatpush1.msra.mxu0 %v66
  %7771 = vmatprep.subr.mxu0 0.0
  %7772 = vmatpush1.msra.mxu0 %v65
  %7773 = vmatprep.subr.mxu0 0.0
  %7774 = vmatpush2.msra.mxu0 0.0
  %7775 = vmatprep.subr.mxu0 0.0
  %7776 = vmatpush2.msra.mxu0 0.0
  %7777 = vmatprep.subr.mxu0 0.0
  %7778 = vmatpush2.msra.mxu0 0.0
  %7779 = vmatprep.subr.mxu0 0.0
  %7780 = vmatpush2.msra.mxu0 0.0
  %7781 = vmatprep.subr.mxu0 0.0
  %7782 = vmatpush2.msra.mxu0 0.0
  %7783 = vmatprep.subr.mxu0 0.0
  %7784 = vmatpush2.msra.mxu0 0.0
  %7785 = vmatprep.subr.mxu0 0.0
  %7786 = vmatpush2.msra.mxu0 0.0
  %7787 = vmatprep.subr.mxu0 0.0
  %7788 = vmatpush2.msra.mxu0 0.0
  %7789 = vmatprep.subr.mxu0 0.0
  %7790 = vmatpush2.msra.mxu0 0.0
  %7791 = vmatprep.subr.mxu0 0.0
  %7792 = vmatpush2.msra.mxu0 0.0
  %7793 = vmatprep.subr.mxu0 0.0
  %7794 = vmatpush2.msra.mxu0 0.0
  %7795 = vmatprep.subr.mxu0 0.0
  %7796 = vmatpush2.msra.mxu0 0.0
  %7797 = vmatprep.subr.mxu0 0.0
  %7798 = vmatpush2.msra.mxu0 0.0
  %7799 = vmatprep.subr.mxu0 0.0
  %7800 = vmatpush2.msra.mxu0 0.0
  %7801 = vmatprep.subr.mxu0 0.0
  %7802 = vmatpush2.msra.mxu0 0.0
  %7803 = vmatprep.subr.mxu0 0.0
  %7804 = vmatpush2.msra.mxu0 0.0
  %7805 = vmatprep.mubr.f32.mxu0 0.0
  %7806 = vmatmul.mubr.f32.gmra.mxu0 %v7737
  %v7807 = vpop.f32.mrf.mxu0
  %v7808 = vadd.f32 %v7729, %v7807
  %v7809 = vpop.f32.mrf.mxu0
  %7810 = vmatprep.mubr.f32.mxu0 0.0
  %7811 = vmatmul.mubr.f32.gmra.mxu0 %v7739
  %v7812 = vpop.f32.mrf.mxu0
  %v7813 = vadd.f32 %v7734, %v7812
  %v7814 = vpop.f32.mrf.mxu0
  %7815 = vdwg.mxu0
  %v7816 = vrot.slane %v7651, 2
  %v7817 = vrot.slane %v7652, 2
  %v7818 = vsel %vm427, %v7816, %v7817
  %v7819 = vsel %vm669, %v7818, 0
  %v7821 = vsel %vm669, %v7817, 0
  %7823 = vmatprep.subr.mxu0 0.0
  %7824 = vmatpush1.msra.mxu0 0.0
  %7825 = vmatprep.subr.mxu0 0.0
  %7826 = vmatpush1.msra.mxu0 0.0
  %7827 = vmatprep.subr.mxu0 0.0
  %7828 = vmatpush1.msra.mxu0 %v842
  %7829 = vmatprep.subr.mxu0 0.0
  %7830 = vmatpush1.msra.mxu0 %v107
  %7831 = vmatprep.subr.mxu0 0.0
  %7832 = vmatpush1.msra.mxu0 %v106
  %7833 = vmatprep.subr.mxu0 0.0
  %7834 = vmatpush1.msra.mxu0 %v105
  %7835 = vmatprep.subr.mxu0 0.0
  %7836 = vmatpush1.msra.mxu0 %v104
  %7837 = vmatprep.subr.mxu0 0.0
  %7838 = vmatpush1.msra.mxu0 %v103
  %7839 = vmatprep.subr.mxu0 0.0
  %7840 = vmatpush1.msra.mxu0 %v102
  %7841 = vmatprep.subr.mxu0 0.0
  %7842 = vmatpush1.msra.mxu0 %v101
  %7843 = vmatprep.subr.mxu0 0.0
  %7844 = vmatpush1.msra.mxu0 %v100
  %7845 = vmatprep.subr.mxu0 0.0
  %7846 = vmatpush1.msra.mxu0 %v99
  %7847 = vmatprep.subr.mxu0 0.0
  %7848 = vmatpush1.msra.mxu0 %v98
  %7849 = vmatprep.subr.mxu0 0.0
  %7850 = vmatpush1.msra.mxu0 %v97
  %7851 = vmatprep.subr.mxu0 0.0
  %7852 = vmatpush1.msra.mxu0 %v96
  %7853 = vmatprep.subr.mxu0 0.0
  %7854 = vmatpush1.msra.mxu0 %v95
  %7855 = vmatprep.subr.mxu0 0.0
  %7856 = vmatpush2.msra.mxu0 0.0
  %7857 = vmatprep.subr.mxu0 0.0
  %7858 = vmatpush2.msra.mxu0 0.0
  %7859 = vmatprep.subr.mxu0 0.0
  %7860 = vmatpush2.msra.mxu0 0.0
  %7861 = vmatprep.subr.mxu0 0.0
  %7862 = vmatpush2.msra.mxu0 0.0
  %7863 = vmatprep.subr.mxu0 0.0
  %7864 = vmatpush2.msra.mxu0 0.0
  %7865 = vmatprep.subr.mxu0 0.0
  %7866 = vmatpush2.msra.mxu0 0.0
  %7867 = vmatprep.subr.mxu0 0.0
  %7868 = vmatpush2.msra.mxu0 0.0
  %7869 = vmatprep.subr.mxu0 0.0
  %7870 = vmatpush2.msra.mxu0 0.0
  %7871 = vmatprep.subr.mxu0 0.0
  %7872 = vmatpush2.msra.mxu0 0.0
  %7873 = vmatprep.subr.mxu0 0.0
  %7874 = vmatpush2.msra.mxu0 0.0
  %7875 = vmatprep.subr.mxu0 0.0
  %7876 = vmatpush2.msra.mxu0 0.0
  %7877 = vmatprep.subr.mxu0 0.0
  %7878 = vmatpush2.msra.mxu0 0.0
  %7879 = vmatprep.subr.mxu0 0.0
  %7880 = vmatpush2.msra.mxu0 0.0
  %7881 = vmatprep.subr.mxu0 0.0
  %7882 = vmatpush2.msra.mxu0 0.0
  %7883 = vmatprep.subr.mxu0 0.0
  %7884 = vmatpush2.msra.mxu0 0.0
  %7885 = vmatprep.subr.mxu0 0.0
  %7886 = vmatpush2.msra.mxu0 0.0
  %7887 = vmatprep.mubr.f32.mxu0 0.0
  %7888 = vmatmul.mubr.f32.gmra.mxu0 %v7819
  %v7889 = vpop.f32.mrf.mxu0
  %v7890 = vadd.f32 0.0, %v7889
  %v7891 = vpop.f32.mrf.mxu0
  %7892 = vmatprep.mubr.f32.mxu0 0.0
  %7893 = vmatmul.mubr.f32.gmra.mxu0 %v7821
  %v7894 = vpop.f32.mrf.mxu0
  %v7895 = vadd.f32 0.0, %v7894
  %v7896 = vpop.f32.mrf.mxu0
  %7897 = vdwg.mxu0
  %v7898 = vadd.f32 %v7808, %v7890
  %v7899 = vadd.f32 %v7813, %v7895
  %v7900 = vadd.f32 %v7898, %v925
  %v7901 = vadd.f32 %v7899, %v925
  %v7902 = vmax.f32 %v7900, 0.0
  %v7903 = vmax.f32 %v7901, 0.0
  %v7906 = vrot.slane %v7902, 1
  %v7907 = vrot.slane %v7903, 1
  %v7908 = vsel %vm225, %v7906, %v7907
  %v7911 = vmax.f32 %v7902, %v7908
  %v7912 = vmax.f32 %v7903, %v7907
  %v7914 = vsel %vm947, %v7912, 0
  %7916 = vmatprep.subr.mxu0 0.0
  %7917 = vmatpush1.msra.mxu0 0.0
  %7918 = vmatprep.subr.mxu0 0.0
  %7919 = vmatpush1.msra.mxu0 0.0
  %7920 = vmatprep.subr.mxu0 0.0
  %7921 = vmatpush1.msra.mxu0 0.0
  %7922 = vmatprep.subr.mxu0 0.0
  %7923 = vmatpush1.msra.mxu0 0.0
  %7924 = vmatprep.subr.mxu0 0.0
  %7925 = vmatpush1.msra.mxu0 0.0
  %7926 = vmatprep.subr.mxu0 0.0
  %7927 = vmatpush1.msra.mxu0 0.0
  %7928 = vmatprep.subr.mxu0 0.0
  %7929 = vmatpush1.msra.mxu0 0.0
  %7930 = vmatprep.subr.mxu0 0.0
  %7931 = vmatpush1.msra.mxu0 0.0
  %7932 = vmatprep.subr.mxu0 0.0
  %7933 = vmatpush1.msra.mxu0 0.0
  %7934 = vmatprep.subr.mxu0 0.0
  %7935 = vmatpush1.msra.mxu0 0.0
  %7936 = vmatprep.subr.mxu0 0.0
  %7937 = vmatpush1.msra.mxu0 0.0
  %7938 = vmatprep.subr.mxu0 0.0
  %7939 = vmatpush1.msra.mxu0 0.0
  %7940 = vmatprep.subr.mxu0 0.0
  %7941 = vmatpush1.msra.mxu0 0.0
  %7942 = vmatprep.subr.mxu0 0.0
  %7943 = vmatpush1.msra.mxu0 0.0
  %7944 = vmatprep.subr.mxu0 0.0
  %7945 = vmatpush1.msra.mxu0 %v7914
  %7946 = vmatprep.subr.mxu0 0.0
  %7947 = vmatpush1.msra.mxu0 %v7911
  %7948 = vmatprep.subr.mxu0 0.0
  %7949 = vmatpush2.msra.mxu0 0.0
  %7950 = vmatprep.subr.mxu0 0.0
  %7951 = vmatpush2.msra.mxu0 0.0
  %7952 = vmatprep.subr.mxu0 0.0
  %7953 = vmatpush2.msra.mxu0 0.0
  %7954 = vmatprep.subr.mxu0 0.0
  %7955 = vmatpush2.msra.mxu0 0.0
  %7956 = vmatprep.subr.mxu0 0.0
  %7957 = vmatpush2.msra.mxu0 0.0
  %7958 = vmatprep.subr.mxu0 0.0
  %7959 = vmatpush2.msra.mxu0 0.0
  %7960 = vmatprep.subr.mxu0 0.0
  %7961 = vmatpush2.msra.mxu0 0.0
  %7962 = vmatprep.subr.mxu0 0.0
  %7963 = vmatpush2.msra.mxu0 0.0
  %7964 = vmatprep.subr.mxu0 0.0
  %7965 = vmatpush2.msra.mxu0 0.0
  %7966 = vmatprep.subr.mxu0 0.0
  %7967 = vmatpush2.msra.mxu0 0.0
  %7968 = vmatprep.subr.mxu0 0.0
  %7969 = vmatpush2.msra.mxu0 0.0
  %7970 = vmatprep.subr.mxu0 0.0
  %7971 = vmatpush2.msra.mxu0 0.0
  %7972 = vmatprep.subr.mxu0 0.0
  %7973 = vmatpush2.msra.mxu0 0.0
  %7974 = vmatprep.subr.mxu0 0.0
  %7975 = vmatpush2.msra.mxu0 0.0
  %7976 = vmatprep.subr.mxu0 0.0
  %7977 = vmatpush2.msra.mxu0 0.0
  %7978 = vmatprep.subr.mxu0 0.0
  %7979 = vmatpush2.msra.mxu0 0.0
  %7980 = vmatprep.mubr.f32.mxu0 0.0
  %7981 = vmatmul.mubr.f32.gmra.mxu0 %v942
  %v7982 = vpop.f32.mrf.mxu0
  %v7983 = vadd.f32 0.0, %v7982
  %v7984 = vpop.f32.mrf.mxu0
  %7985 = vmatprep.mubr.f32.mxu0 0.0
  %7986 = vmatmul.mubr.f32.gmra.mxu0 %v945
  %v7987 = vpop.f32.mrf.mxu0
  %v7988 = vadd.f32 0.0, %v7987
  %v7989 = vpop.f32.mrf.mxu0
  %7990 = vdwg.mxu0
  %7993 = vrot.lane.b32.xlu0 %v7983, 120
  %v7994 = vpop.permute.xlu0 %7993
  %7995 = vrot.lane.b32.xlu0 %v7988, 120
  %v7996 = vpop.permute.xlu0 %7995
  %v7999 = vmax.f32 %v7983, %v7994
  %v8000 = vmax.f32 %v7988, %v7996
  %v8002 = vrot.slane %v7999, 1
  %v8003 = vsel %vm1038, %v8002, 0
  %8005 = vmatprep.subr.mxu0 0.0
  %8006 = vmatpush1.msra.mxu0 0.0
  %8007 = vmatprep.subr.mxu0 0.0
  %8008 = vmatpush1.msra.mxu0 0.0
  %8009 = vmatprep.subr.mxu0 0.0
  %8010 = vmatpush1.msra.mxu0 0.0
  %8011 = vmatprep.subr.mxu0 0.0
  %8012 = vmatpush1.msra.mxu0 %v136
  %8013 = vmatprep.subr.mxu0 0.0
  %8014 = vmatpush1.msra.mxu0 %v135
  %8015 = vmatprep.subr.mxu0 0.0
  %8016 = vmatpush1.msra.mxu0 %v134
  %8017 = vmatprep.subr.mxu0 0.0
  %8018 = vmatpush1.msra.mxu0 %v133
  %8019 = vmatprep.subr.mxu0 0.0
  %8020 = vmatpush1.msra.mxu0 %v132
  %8021 = vmatprep.subr.mxu0 0.0
  %8022 = vmatpush1.msra.mxu0 %v131
  %8023 = vmatprep.subr.mxu0 0.0
  %8024 = vmatpush1.msra.mxu0 %v130
  %8025 = vmatprep.subr.mxu0 0.0
  %8026 = vmatpush1.msra.mxu0 %v129
  %8027 = vmatprep.subr.mxu0 0.0
  %8028 = vmatpush1.msra.mxu0 %v128
  %8029 = vmatprep.subr.mxu0 0.0
  %8030 = vmatpush1.msra.mxu0 %v127
  %8031 = vmatprep.subr.mxu0 0.0
  %8032 = vmatpush1.msra.mxu0 %v126
  %8033 = vmatprep.subr.mxu0 0.0
  %8034 = vmatpush1.msra.mxu0 %v125
  %8035 = vmatprep.subr.mxu0 0.0
  %8036 = vmatpush1.msra.mxu0 %v124
  %8037 = vmatprep.subr.mxu0 0.0
  %8038 = vmatpush2.msra.mxu0 0.0
  %8039 = vmatprep.subr.mxu0 0.0
  %8040 = vmatpush2.msra.mxu0 0.0
  %8041 = vmatprep.subr.mxu0 0.0
  %8042 = vmatpush2.msra.mxu0 0.0
  %8043 = vmatprep.subr.mxu0 0.0
  %8044 = vmatpush2.msra.mxu0 0.0
  %8045 = vmatprep.subr.mxu0 0.0
  %8046 = vmatpush2.msra.mxu0 0.0
  %8047 = vmatprep.subr.mxu0 0.0
  %8048 = vmatpush2.msra.mxu0 0.0
  %8049 = vmatprep.subr.mxu0 0.0
  %8050 = vmatpush2.msra.mxu0 0.0
  %8051 = vmatprep.subr.mxu0 0.0
  %8052 = vmatpush2.msra.mxu0 0.0
  %8053 = vmatprep.subr.mxu0 0.0
  %8054 = vmatpush2.msra.mxu0 0.0
  %8055 = vmatprep.subr.mxu0 0.0
  %8056 = vmatpush2.msra.mxu0 0.0
  %8057 = vmatprep.subr.mxu0 0.0
  %8058 = vmatpush2.msra.mxu0 0.0
  %8059 = vmatprep.subr.mxu0 0.0
  %8060 = vmatpush2.msra.mxu0 0.0
  %8061 = vmatprep.subr.mxu0 0.0
  %8062 = vmatpush2.msra.mxu0 0.0
  %8063 = vmatprep.subr.mxu0 0.0
  %8064 = vmatpush2.msra.mxu0 0.0
  %8065 = vmatprep.subr.mxu0 0.0
  %8066 = vmatpush2.msra.mxu0 0.0
  %8067 = vmatprep.subr.mxu0 0.0
  %8068 = vmatpush2.msra.mxu0 0.0
  %8069 = vmatprep.mubr.f32.mxu0 0.0
  %8070 = vmatmul.mubr.f32.gmra.mxu0 %v8003
  %v8071 = vpop.f32.mrf.mxu0
  %v8072 = vadd.f32 0.0, %v8071
  %v8073 = vpop.f32.mrf.mxu0
  %8074 = vdwg.mxu0
  %v8075 = vsel %vm1038, %v7999, 0
  %8077 = vmatprep.subr.mxu0 0.0
  %8078 = vmatpush1.msra.mxu0 0.0
  %8079 = vmatprep.subr.mxu0 0.0
  %8080 = vmatpush1.msra.mxu0 0.0
  %8081 = vmatprep.subr.mxu0 0.0
  %8082 = vmatpush1.msra.mxu0 0.0
  %8083 = vmatprep.subr.mxu0 0.0
  %8084 = vmatpush1.msra.mxu0 %v122
  %8085 = vmatprep.subr.mxu0 0.0
  %8086 = vmatpush1.msra.mxu0 %v121
  %8087 = vmatprep.subr.mxu0 0.0
  %8088 = vmatpush1.msra.mxu0 %v120
  %8089 = vmatprep.subr.mxu0 0.0
  %8090 = vmatpush1.msra.mxu0 %v119
  %8091 = vmatprep.subr.mxu0 0.0
  %8092 = vmatpush1.msra.mxu0 %v118
  %8093 = vmatprep.subr.mxu0 0.0
  %8094 = vmatpush1.msra.mxu0 %v117
  %8095 = vmatprep.subr.mxu0 0.0
  %8096 = vmatpush1.msra.mxu0 %v116
  %8097 = vmatprep.subr.mxu0 0.0
  %8098 = vmatpush1.msra.mxu0 %v115
  %8099 = vmatprep.subr.mxu0 0.0
  %8100 = vmatpush1.msra.mxu0 %v114
  %8101 = vmatprep.subr.mxu0 0.0
  %8102 = vmatpush1.msra.mxu0 %v113
  %8103 = vmatprep.subr.mxu0 0.0
  %8104 = vmatpush1.msra.mxu0 %v112
  %8105 = vmatprep.subr.mxu0 0.0
  %8106 = vmatpush1.msra.mxu0 %v111
  %8107 = vmatprep.subr.mxu0 0.0
  %8108 = vmatpush1.msra.mxu0 %v110
  %8109 = vmatprep.subr.mxu0 0.0
  %8110 = vmatpush2.msra.mxu0 0.0
  %8111 = vmatprep.subr.mxu0 0.0
  %8112 = vmatpush2.msra.mxu0 0.0
  %8113 = vmatprep.subr.mxu0 0.0
  %8114 = vmatpush2.msra.mxu0 0.0
  %8115 = vmatprep.subr.mxu0 0.0
  %8116 = vmatpush2.msra.mxu0 0.0
  %8117 = vmatprep.subr.mxu0 0.0
  %8118 = vmatpush2.msra.mxu0 0.0
  %8119 = vmatprep.subr.mxu0 0.0
  %8120 = vmatpush2.msra.mxu0 0.0
  %8121 = vmatprep.subr.mxu0 0.0
  %8122 = vmatpush2.msra.mxu0 0.0
  %8123 = vmatprep.subr.mxu0 0.0
  %8124 = vmatpush2.msra.mxu0 0.0
  %8125 = vmatprep.subr.mxu0 0.0
  %8126 = vmatpush2.msra.mxu0 0.0
  %8127 = vmatprep.subr.mxu0 0.0
  %8128 = vmatpush2.msra.mxu0 0.0
  %8129 = vmatprep.subr.mxu0 0.0
  %8130 = vmatpush2.msra.mxu0 0.0
  %8131 = vmatprep.subr.mxu0 0.0
  %8132 = vmatpush2.msra.mxu0 0.0
  %8133 = vmatprep.subr.mxu0 0.0
  %8134 = vmatpush2.msra.mxu0 0.0
  %8135 = vmatprep.subr.mxu0 0.0
  %8136 = vmatpush2.msra.mxu0 0.0
  %8137 = vmatprep.subr.mxu0 0.0
  %8138 = vmatpush2.msra.mxu0 0.0
  %8139 = vmatprep.subr.mxu0 0.0
  %8140 = vmatpush2.msra.mxu0 0.0
  %8141 = vmatprep.mubr.f32.mxu0 0.0
  %8142 = vmatmul.mubr.f32.gmra.mxu0 %v8075
  %v8143 = vpop.f32.mrf.mxu0
  %v8144 = vadd.f32 %v8072, %v8143
  %v8145 = vpop.f32.mrf.mxu0
  %8146 = vdwg.mxu0
  %v8148 = vrot.slane %v7999, 2
  %v8149 = vrot.slane %v8000, 2
  %v8150 = vsel %vm427, %v8148, %v8149
  %v8151 = vsel %vm1038, %v8150, 0
  %8153 = vmatprep.subr.mxu0 0.0
  %8154 = vmatpush1.msra.mxu0 0.0
  %8155 = vmatprep.subr.mxu0 0.0
  %8156 = vmatpush1.msra.mxu0 0.0
  %8157 = vmatprep.subr.mxu0 0.0
  %8158 = vmatpush1.msra.mxu0 0.0
  %8159 = vmatprep.subr.mxu0 0.0
  %8160 = vmatpush1.msra.mxu0 %v150
  %8161 = vmatprep.subr.mxu0 0.0
  %8162 = vmatpush1.msra.mxu0 %v149
  %8163 = vmatprep.subr.mxu0 0.0
  %8164 = vmatpush1.msra.mxu0 %v148
  %8165 = vmatprep.subr.mxu0 0.0
  %8166 = vmatpush1.msra.mxu0 %v147
  %8167 = vmatprep.subr.mxu0 0.0
  %8168 = vmatpush1.msra.mxu0 %v146
  %8169 = vmatprep.subr.mxu0 0.0
  %8170 = vmatpush1.msra.mxu0 %v145
  %8171 = vmatprep.subr.mxu0 0.0
  %8172 = vmatpush1.msra.mxu0 %v144
  %8173 = vmatprep.subr.mxu0 0.0
  %8174 = vmatpush1.msra.mxu0 %v143
  %8175 = vmatprep.subr.mxu0 0.0
  %8176 = vmatpush1.msra.mxu0 %v142
  %8177 = vmatprep.subr.mxu0 0.0
  %8178 = vmatpush1.msra.mxu0 %v141
  %8179 = vmatprep.subr.mxu0 0.0
  %8180 = vmatpush1.msra.mxu0 %v140
  %8181 = vmatprep.subr.mxu0 0.0
  %8182 = vmatpush1.msra.mxu0 %v139
  %8183 = vmatprep.subr.mxu0 0.0
  %8184 = vmatpush1.msra.mxu0 %v138
  %8185 = vmatprep.subr.mxu0 0.0
  %8186 = vmatpush2.msra.mxu0 0.0
  %8187 = vmatprep.subr.mxu0 0.0
  %8188 = vmatpush2.msra.mxu0 0.0
  %8189 = vmatprep.subr.mxu0 0.0
  %8190 = vmatpush2.msra.mxu0 0.0
  %8191 = vmatprep.subr.mxu0 0.0
  %8192 = vmatpush2.msra.mxu0 0.0
  %8193 = vmatprep.subr.mxu0 0.0
  %8194 = vmatpush2.msra.mxu0 0.0
  %8195 = vmatprep.subr.mxu0 0.0
  %8196 = vmatpush2.msra.mxu0 0.0
  %8197 = vmatprep.subr.mxu0 0.0
  %8198 = vmatpush2.msra.mxu0 0.0
  %8199 = vmatprep.subr.mxu0 0.0
  %8200 = vmatpush2.msra.mxu0 0.0
  %8201 = vmatprep.subr.mxu0 0.0
  %8202 = vmatpush2.msra.mxu0 0.0
  %8203 = vmatprep.subr.mxu0 0.0
  %8204 = vmatpush2.msra.mxu0 0.0
  %8205 = vmatprep.subr.mxu0 0.0
  %8206 = vmatpush2.msra.mxu0 0.0
  %8207 = vmatprep.subr.mxu0 0.0
  %8208 = vmatpush2.msra.mxu0 0.0
  %8209 = vmatprep.subr.mxu0 0.0
  %8210 = vmatpush2.msra.mxu0 0.0
  %8211 = vmatprep.subr.mxu0 0.0
  %8212 = vmatpush2.msra.mxu0 0.0
  %8213 = vmatprep.subr.mxu0 0.0
  %8214 = vmatpush2.msra.mxu0 0.0
  %8215 = vmatprep.subr.mxu0 0.0
  %8216 = vmatpush2.msra.mxu0 0.0
  %8217 = vmatprep.mubr.f32.mxu0 0.0
  %8218 = vmatmul.mubr.f32.gmra.mxu0 %v8151
  %v8219 = vpop.f32.mrf.mxu0
  %v8220 = vadd.f32 0.0, %v8219
  %v8221 = vpop.f32.mrf.mxu0
  %8222 = vdwg.mxu0
  %v8223 = vadd.f32 %v8144, %v8220
  %v8224 = vadd.f32 %v8223, %v1264
  %v8225 = vmax.f32 %v8224, 0.0
  %v8227 = vrot.slane %v2261, 7
  %v8230 = vrot.slane %v3255, 6
  %v8233 = vrot.slane %v4249, 5
  %v8236 = vrot.slane %v5243, 4
  %v8239 = vrot.slane %v6237, 3
  %v8242 = vrot.slane %v7231, 2
  %v8245 = vrot.slane %v8225, 1
  %vm8247 = vcmask 1040384
  %v8248 = vsel %vm8247, %v1267, %v8227
  %vm8249 = vcmask 1041408
  %v8250 = vsel %vm8249, %v8248, %v8230
  %v8251 = vsel %vm575, %v8250, %v8233
  %v8252 = vsel %vm242, %v8251, %v8236
  %v8253 = vsel %vm947, %v8252, %v8239
  %v8254 = vsel %vm427, %v8253, %v8242
  %v8255 = vsel %vm225, %v8254, %v8245
  %v8257 = vrot.slane %v1267, 2
  %v8259 = vrot.slane %v2261, 1
  %v8261 = vrot.slane %v4249, 7
  %v8263 = vrot.slane %v5243, 6
  %v8265 = vrot.slane %v6237, 5
  %v8267 = vrot.slane %v7231, 4
  %v8269 = vrot.slane %v8225, 3
  %v8271 = vsel %vm8247, %v8257, %v8259
  %v8272 = vsel %vm8249, %v8271, %v3255
  %v8273 = vsel %vm575, %v8272, %v8261
  %v8274 = vsel %vm242, %v8273, %v8263
  %v8275 = vsel %vm947, %v8274, %v8265
  %v8276 = vsel %vm427, %v8275, %v8267
  %v8277 = vsel %vm225, %v8276, %v8269
  %v8278 = vrot.slane %v1267, 4
  %v8280 = vrot.slane %v2261, 3
  %v8282 = vrot.slane %v3255, 2
  %v8284 = vrot.slane %v4249, 1
  %v8286 = vrot.slane %v6237, 7
  %v8288 = vrot.slane %v7231, 6
  %v8290 = vrot.slane %v8225, 5
  %v8292 = vsel %vm8247, %v8278, %v8280
  %v8293 = vsel %vm8249, %v8292, %v8282
  %v8294 = vsel %vm575, %v8293, %v8284
  %v8295 = vsel %vm242, %v8294, %v5243
  %v8296 = vsel %vm947, %v8295, %v8286
  %v8297 = vsel %vm427, %v8296, %v8288
  %v8298 = vsel %vm225, %v8297, %v8290
  %v8299 = vrot.slane %v1267, 6
  %v8301 = vrot.slane %v2261, 5
  %v8303 = vrot.slane %v3255, 4
  %v8305 = vrot.slane %v4249, 3
  %v8307 = vrot.slane %v5243, 2
  %v8309 = vrot.slane %v6237, 1
  %v8311 = vrot.slane %v8225, 7
  %v8313 = vsel %vm8247, %v8299, %v8301
  %v8314 = vsel %vm8249, %v8313, %v8303
  %v8315 = vsel %vm575, %v8314, %v8305
  %v8316 = vsel %vm242, %v8315, %v8307
  %v8317 = vsel %vm947, %v8316, %v8309
  %v8318 = vsel %vm427, %v8317, %v7231
  %v8319 = vsel %vm225, %v8318, %v8311
  %vm8320 = vcmask 916480
  %v8322 = vsel %vm8320, %v8277, 0
  %8324 = vmatprep.subr.mxu0 0.0
  %8325 = vmatpush1.msra.mxu0 0.0
  %8326 = vmatprep.subr.mxu0 0.0
  %8327 = vmatpush1.msra.mxu0 0.0
  %8328 = vmatprep.subr.mxu0 0.0
  %8329 = vmatpush1.msra.mxu0 %v184
  %8330 = vmatprep.subr.mxu0 0.0
  %8331 = vmatpush1.msra.mxu0 %v183
  %8332 = vmatprep.subr.mxu0 0.0
  %8333 = vmatpush1.msra.mxu0 %v182
  %8334 = vmatprep.subr.mxu0 0.0
  %8335 = vmatpush1.msra.mxu0 %v181
  %8336 = vmatprep.subr.mxu0 0.0
  %8337 = vmatpush1.msra.mxu0 %v180
  %8338 = vmatprep.subr.mxu0 0.0
  %8339 = vmatpush1.msra.mxu0 %v179
  %8340 = vmatprep.subr.mxu0 0.0
  %8341 = vmatpush1.msra.mxu0 %v178
  %8342 = vmatprep.subr.mxu0 0.0
  %8343 = vmatpush1.msra.mxu0 %v177
  %8344 = vmatprep.subr.mxu0 0.0
  %8345 = vmatpush1.msra.mxu0 %v176
  %8346 = vmatprep.subr.mxu0 0.0
  %8347 = vmatpush1.msra.mxu0 %v175
  %8348 = vmatprep.subr.mxu0 0.0
  %8349 = vmatpush1.msra.mxu0 %v174
  %8350 = vmatprep.subr.mxu0 0.0
  %8351 = vmatpush1.msra.mxu0 %v173
  %8352 = vmatprep.subr.mxu0 0.0
  %8353 = vmatpush1.msra.mxu0 %v172
  %8354 = vmatprep.subr.mxu0 0.0
  %8355 = vmatpush1.msra.mxu0 %v171
  %8356 = vmatprep.subr.mxu0 0.0
  %8357 = vmatpush2.msra.mxu0 0.0
  %8358 = vmatprep.subr.mxu0 0.0
  %8359 = vmatpush2.msra.mxu0 0.0
  %8360 = vmatprep.subr.mxu0 0.0
  %8361 = vmatpush2.msra.mxu0 0.0
  %8362 = vmatprep.subr.mxu0 0.0
  %8363 = vmatpush2.msra.mxu0 0.0
  %8364 = vmatprep.subr.mxu0 0.0
  %8365 = vmatpush2.msra.mxu0 0.0
  %8366 = vmatprep.subr.mxu0 0.0
  %8367 = vmatpush2.msra.mxu0 0.0
  %8368 = vmatprep.subr.mxu0 0.0
  %8369 = vmatpush2.msra.mxu0 0.0
  %8370 = vmatprep.subr.mxu0 0.0
  %8371 = vmatpush2.msra.mxu0 0.0
  %8372 = vmatprep.subr.mxu0 0.0
  %8373 = vmatpush2.msra.mxu0 0.0
  %8374 = vmatprep.subr.mxu0 0.0
  %8375 = vmatpush2.msra.mxu0 0.0
  %8376 = vmatprep.subr.mxu0 0.0
  %8377 = vmatpush2.msra.mxu0 0.0
  %8378 = vmatprep.subr.mxu0 0.0
  %8379 = vmatpush2.msra.mxu0 0.0
  %8380 = vmatprep.subr.mxu0 0.0
  %8381 = vmatpush2.msra.mxu0 0.0
  %8382 = vmatprep.subr.mxu0 0.0
  %8383 = vmatpush2.msra.mxu0 0.0
  %8384 = vmatprep.subr.mxu0 0.0
  %8385 = vmatpush2.msra.mxu0 0.0
  %8386 = vmatprep.subr.mxu0 0.0
  %8387 = vmatpush2.msra.mxu0 0.0
  %8388 = vmatprep.mubr.f32.mxu0 0.0
  %8389 = vmatmul.mubr.f32.gmra.mxu0 %v8322
  %v8390 = vpop.f32.mrf.mxu0
  %v8391 = vadd.f32 0.0, %v8390
  %v8392 = vpop.f32.mrf.mxu0
  %8393 = vdwg.mxu0
  %v8395 = vsel %vm8320, %v8255, 0
  %8397 = vmatprep.subr.mxu0 0.0
  %8398 = vmatpush1.msra.mxu0 0.0
  %8399 = vmatprep.subr.mxu0 0.0
  %8400 = vmatpush1.msra.mxu0 0.0
  %8401 = vmatprep.subr.mxu0 0.0
  %8402 = vmatpush1.msra.mxu0 %v169
  %8403 = vmatprep.subr.mxu0 0.0
  %8404 = vmatpush1.msra.mxu0 %v168
  %8405 = vmatprep.subr.mxu0 0.0
  %8406 = vmatpush1.msra.mxu0 %v167
  %8407 = vmatprep.subr.mxu0 0.0
  %8408 = vmatpush1.msra.mxu0 %v166
  %8409 = vmatprep.subr.mxu0 0.0
  %8410 = vmatpush1.msra.mxu0 %v165
  %8411 = vmatprep.subr.mxu0 0.0
  %8412 = vmatpush1.msra.mxu0 %v164
  %8413 = vmatprep.subr.mxu0 0.0
  %8414 = vmatpush1.msra.mxu0 %v163
  %8415 = vmatprep.subr.mxu0 0.0
  %8416 = vmatpush1.msra.mxu0 %v162
  %8417 = vmatprep.subr.mxu0 0.0
  %8418 = vmatpush1.msra.mxu0 %v161
  %8419 = vmatprep.subr.mxu0 0.0
  %8420 = vmatpush1.msra.mxu0 %v160
  %8421 = vmatprep.subr.mxu0 0.0
  %8422 = vmatpush1.msra.mxu0 %v159
  %8423 = vmatprep.subr.mxu0 0.0
  %8424 = vmatpush1.msra.mxu0 %v158
  %8425 = vmatprep.subr.mxu0 0.0
  %8426 = vmatpush1.msra.mxu0 %v157
  %8427 = vmatprep.subr.mxu0 0.0
  %8428 = vmatpush1.msra.mxu0 %v156
  %8429 = vmatprep.subr.mxu0 0.0
  %8430 = vmatpush2.msra.mxu0 0.0
  %8431 = vmatprep.subr.mxu0 0.0
  %8432 = vmatpush2.msra.mxu0 0.0
  %8433 = vmatprep.subr.mxu0 0.0
  %8434 = vmatpush2.msra.mxu0 0.0
  %8435 = vmatprep.subr.mxu0 0.0
  %8436 = vmatpush2.msra.mxu0 0.0
  %8437 = vmatprep.subr.mxu0 0.0
  %8438 = vmatpush2.msra.mxu0 0.0
  %8439 = vmatprep.subr.mxu0 0.0
  %8440 = vmatpush2.msra.mxu0 0.0
  %8441 = vmatprep.subr.mxu0 0.0
  %8442 = vmatpush2.msra.mxu0 0.0
  %8443 = vmatprep.subr.mxu0 0.0
  %8444 = vmatpush2.msra.mxu0 0.0
  %8445 = vmatprep.subr.mxu0 0.0
  %8446 = vmatpush2.msra.mxu0 0.0
  %8447 = vmatprep.subr.mxu0 0.0
  %8448 = vmatpush2.msra.mxu0 0.0
  %8449 = vmatprep.subr.mxu0 0.0
  %8450 = vmatpush2.msra.mxu0 0.0
  %8451 = vmatprep.subr.mxu0 0.0
  %8452 = vmatpush2.msra.mxu0 0.0
  %8453 = vmatprep.subr.mxu0 0.0
  %8454 = vmatpush2.msra.mxu0 0.0
  %8455 = vmatprep.subr.mxu0 0.0
  %8456 = vmatpush2.msra.mxu0 0.0
  %8457 = vmatprep.subr.mxu0 0.0
  %8458 = vmatpush2.msra.mxu0 0.0
  %8459 = vmatprep.subr.mxu0 0.0
  %8460 = vmatpush2.msra.mxu0 0.0
  %8461 = vmatprep.mubr.f32.mxu0 0.0
  %8462 = vmatmul.mubr.f32.gmra.mxu0 %v8395
  %v8463 = vpop.f32.mrf.mxu0
  %v8464 = vadd.f32 %v8391, %v8463
  %v8465 = vpop.f32.mrf.mxu0
  %8466 = vdwg.mxu0
  %v8468 = vsel %vm8320, %v8298, 0
  %8470 = vmatprep.subr.mxu0 0.0
  %8471 = vmatpush1.msra.mxu0 0.0
  %8472 = vmatprep.subr.mxu0 0.0
  %8473 = vmatpush1.msra.mxu0 0.0
  %8474 = vmatprep.subr.mxu0 0.0
  %8475 = vmatpush1.msra.mxu0 %v199
  %8476 = vmatprep.subr.mxu0 0.0
  %8477 = vmatpush1.msra.mxu0 %v198
  %8478 = vmatprep.subr.mxu0 0.0
  %8479 = vmatpush1.msra.mxu0 %v197
  %8480 = vmatprep.subr.mxu0 0.0
  %8481 = vmatpush1.msra.mxu0 %v196
  %8482 = vmatprep.subr.mxu0 0.0
  %8483 = vmatpush1.msra.mxu0 %v195
  %8484 = vmatprep.subr.mxu0 0.0
  %8485 = vmatpush1.msra.mxu0 %v194
  %8486 = vmatprep.subr.mxu0 0.0
  %8487 = vmatpush1.msra.mxu0 %v193
  %8488 = vmatprep.subr.mxu0 0.0
  %8489 = vmatpush1.msra.mxu0 %v192
  %8490 = vmatprep.subr.mxu0 0.0
  %8491 = vmatpush1.msra.mxu0 %v191
  %8492 = vmatprep.subr.mxu0 0.0
  %8493 = vmatpush1.msra.mxu0 %v190
  %8494 = vmatprep.subr.mxu0 0.0
  %8495 = vmatpush1.msra.mxu0 %v189
  %8496 = vmatprep.subr.mxu0 0.0
  %8497 = vmatpush1.msra.mxu0 %v188
  %8498 = vmatprep.subr.mxu0 0.0
  %8499 = vmatpush1.msra.mxu0 %v187
  %8500 = vmatprep.subr.mxu0 0.0
  %8501 = vmatpush1.msra.mxu0 %v186
  %8502 = vmatprep.subr.mxu0 0.0
  %8503 = vmatpush2.msra.mxu0 0.0
  %8504 = vmatprep.subr.mxu0 0.0
  %8505 = vmatpush2.msra.mxu0 0.0
  %8506 = vmatprep.subr.mxu0 0.0
  %8507 = vmatpush2.msra.mxu0 0.0
  %8508 = vmatprep.subr.mxu0 0.0
  %8509 = vmatpush2.msra.mxu0 0.0
  %8510 = vmatprep.subr.mxu0 0.0
  %8511 = vmatpush2.msra.mxu0 0.0
  %8512 = vmatprep.subr.mxu0 0.0
  %8513 = vmatpush2.msra.mxu0 0.0
  %8514 = vmatprep.subr.mxu0 0.0
  %8515 = vmatpush2.msra.mxu0 0.0
  %8516 = vmatprep.subr.mxu0 0.0
  %8517 = vmatpush2.msra.mxu0 0.0
  %8518 = vmatprep.subr.mxu0 0.0
  %8519 = vmatpush2.msra.mxu0 0.0
  %8520 = vmatprep.subr.mxu0 0.0
  %8521 = vmatpush2.msra.mxu0 0.0
  %8522 = vmatprep.subr.mxu0 0.0
  %8523 = vmatpush2.msra.mxu0 0.0
  %8524 = vmatprep.subr.mxu0 0.0
  %8525 = vmatpush2.msra.mxu0 0.0
  %8526 = vmatprep.subr.mxu0 0.0
  %8527 = vmatpush2.msra.mxu0 0.0
  %8528 = vmatprep.subr.mxu0 0.0
  %8529 = vmatpush2.msra.mxu0 0.0
  %8530 = vmatprep.subr.mxu0 0.0
  %8531 = vmatpush2.msra.mxu0 0.0
  %8532 = vmatprep.subr.mxu0 0.0
  %8533 = vmatpush2.msra.mxu0 0.0
  %8534 = vmatprep.mubr.f32.mxu0 0.0
  %8535 = vmatmul.mubr.f32.gmra.mxu0 %v8468
  %v8536 = vpop.f32.mrf.mxu0
  %v8537 = vadd.f32 0.0, %v8536
  %v8538 = vpop.f32.mrf.mxu0
  %8539 = vdwg.mxu0
  %v8540 = vadd.f32 %v8464, %v8537
  %v8541 = vld [vmem:[%s8] sm:$0x1]
  %v8543 = vlaneseq
  %v8544 = vshrl.u32 %v8543, 7
  %v8545 = vsub.s32 0, %v8544
  %v8546 = vrot.slane %v8541, %v8545
  %v8548 = vadd.f32 %v8540, %v8546
  %v8549 = vmax.f32 %v8548, 0.0
  %8550 = vmatprep.subr.mxu0 0.0
  %8551 = vmatpush1.msra.mxu0 0.0
  %8552 = vmatprep.subr.mxu0 0.0
  %8553 = vmatpush1.msra.mxu0 0.0
  %8554 = vmatprep.subr.mxu0 0.0
  %8555 = vmatpush1.msra.mxu0 %v184
  %8556 = vmatprep.subr.mxu0 0.0
  %8557 = vmatpush1.msra.mxu0 %v183
  %8558 = vmatprep.subr.mxu0 0.0
  %8559 = vmatpush1.msra.mxu0 %v182
  %8560 = vmatprep.subr.mxu0 0.0
  %8561 = vmatpush1.msra.mxu0 %v181
  %8562 = vmatprep.subr.mxu0 0.0
  %8563 = vmatpush1.msra.mxu0 %v180
  %8564 = vmatprep.subr.mxu0 0.0
  %8565 = vmatpush1.msra.mxu0 %v179
  %8566 = vmatprep.subr.mxu0 0.0
  %8567 = vmatpush1.msra.mxu0 %v178
  %8568 = vmatprep.subr.mxu0 0.0
  %8569 = vmatpush1.msra.mxu0 %v177
  %8570 = vmatprep.subr.mxu0 0.0
  %8571 = vmatpush1.msra.mxu0 %v176
  %8572 = vmatprep.subr.mxu0 0.0
  %8573 = vmatpush1.msra.mxu0 %v175
  %8574 = vmatprep.subr.mxu0 0.0
  %8575 = vmatpush1.msra.mxu0 %v174
  %8576 = vmatprep.subr.mxu0 0.0
  %8577 = vmatpush1.msra.mxu0 %v173
  %8578 = vmatprep.subr.mxu0 0.0
  %8579 = vmatpush1.msra.mxu0 %v172
  %8580 = vmatprep.subr.mxu0 0.0
  %8581 = vmatpush1.msra.mxu0 %v171
  %8582 = vmatprep.subr.mxu0 0.0
  %8583 = vmatpush2.msra.mxu0 0.0
  %8584 = vmatprep.subr.mxu0 0.0
  %8585 = vmatpush2.msra.mxu0 0.0
  %8586 = vmatprep.subr.mxu0 0.0
  %8587 = vmatpush2.msra.mxu0 0.0
  %8588 = vmatprep.subr.mxu0 0.0
  %8589 = vmatpush2.msra.mxu0 0.0
  %8590 = vmatprep.subr.mxu0 0.0
  %8591 = vmatpush2.msra.mxu0 0.0
  %8592 = vmatprep.subr.mxu0 0.0
  %8593 = vmatpush2.msra.mxu0 0.0
  %8594 = vmatprep.subr.mxu0 0.0
  %8595 = vmatpush2.msra.mxu0 0.0
  %8596 = vmatprep.subr.mxu0 0.0
  %8597 = vmatpush2.msra.mxu0 0.0
  %8598 = vmatprep.subr.mxu0 0.0
  %8599 = vmatpush2.msra.mxu0 0.0
  %8600 = vmatprep.subr.mxu0 0.0
  %8601 = vmatpush2.msra.mxu0 0.0
  %8602 = vmatprep.subr.mxu0 0.0
  %8603 = vmatpush2.msra.mxu0 0.0
  %8604 = vmatprep.subr.mxu0 0.0
  %8605 = vmatpush2.msra.mxu0 0.0
  %8606 = vmatprep.subr.mxu0 0.0
  %8607 = vmatpush2.msra.mxu0 0.0
  %8608 = vmatprep.subr.mxu0 0.0
  %8609 = vmatpush2.msra.mxu0 0.0
  %8610 = vmatprep.subr.mxu0 0.0
  %8611 = vmatpush2.msra.mxu0 0.0
  %8612 = vmatprep.subr.mxu0 0.0
  %8613 = vmatpush2.msra.mxu0 0.0
  %8614 = vmatprep.mubr.f32.mxu0 0.0
  %8615 = vmatmul.mubr.f32.gmra.mxu0 %v8468
  %v8616 = vpop.f32.mrf.mxu0
  %v8617 = vadd.f32 0.0, %v8616
  %v8618 = vpop.f32.mrf.mxu0
  %8619 = vdwg.mxu0
  %8620 = vmatprep.subr.mxu0 0.0
  %8621 = vmatpush1.msra.mxu0 0.0
  %8622 = vmatprep.subr.mxu0 0.0
  %8623 = vmatpush1.msra.mxu0 0.0
  %8624 = vmatprep.subr.mxu0 0.0
  %8625 = vmatpush1.msra.mxu0 %v169
  %8626 = vmatprep.subr.mxu0 0.0
  %8627 = vmatpush1.msra.mxu0 %v168
  %8628 = vmatprep.subr.mxu0 0.0
  %8629 = vmatpush1.msra.mxu0 %v167
  %8630 = vmatprep.subr.mxu0 0.0
  %8631 = vmatpush1.msra.mxu0 %v166
  %8632 = vmatprep.subr.mxu0 0.0
  %8633 = vmatpush1.msra.mxu0 %v165
  %8634 = vmatprep.subr.mxu0 0.0
  %8635 = vmatpush1.msra.mxu0 %v164
  %8636 = vmatprep.subr.mxu0 0.0
  %8637 = vmatpush1.msra.mxu0 %v163
  %8638 = vmatprep.subr.mxu0 0.0
  %8639 = vmatpush1.msra.mxu0 %v162
  %8640 = vmatprep.subr.mxu0 0.0
  %8641 = vmatpush1.msra.mxu0 %v161
  %8642 = vmatprep.subr.mxu0 0.0
  %8643 = vmatpush1.msra.mxu0 %v160
  %8644 = vmatprep.subr.mxu0 0.0
  %8645 = vmatpush1.msra.mxu0 %v159
  %8646 = vmatprep.subr.mxu0 0.0
  %8647 = vmatpush1.msra.mxu0 %v158
  %8648 = vmatprep.subr.mxu0 0.0
  %8649 = vmatpush1.msra.mxu0 %v157
  %8650 = vmatprep.subr.mxu0 0.0
  %8651 = vmatpush1.msra.mxu0 %v156
  %8652 = vmatprep.subr.mxu0 0.0
  %8653 = vmatpush2.msra.mxu0 0.0
  %8654 = vmatprep.subr.mxu0 0.0
  %8655 = vmatpush2.msra.mxu0 0.0
  %8656 = vmatprep.subr.mxu0 0.0
  %8657 = vmatpush2.msra.mxu0 0.0
  %8658 = vmatprep.subr.mxu0 0.0
  %8659 = vmatpush2.msra.mxu0 0.0
  %8660 = vmatprep.subr.mxu0 0.0
  %8661 = vmatpush2.msra.mxu0 0.0
  %8662 = vmatprep.subr.mxu0 0.0
  %8663 = vmatpush2.msra.mxu0 0.0
  %8664 = vmatprep.subr.mxu0 0.0
  %8665 = vmatpush2.msra.mxu0 0.0
  %8666 = vmatprep.subr.mxu0 0.0
  %8667 = vmatpush2.msra.mxu0 0.0
  %8668 = vmatprep.subr.mxu0 0.0
  %8669 = vmatpush2.msra.mxu0 0.0
  %8670 = vmatprep.subr.mxu0 0.0
  %8671 = vmatpush2.msra.mxu0 0.0
  %8672 = vmatprep.subr.mxu0 0.0
  %8673 = vmatpush2.msra.mxu0 0.0
  %8674 = vmatprep.subr.mxu0 0.0
  %8675 = vmatpush2.msra.mxu0 0.0
  %8676 = vmatprep.subr.mxu0 0.0
  %8677 = vmatpush2.msra.mxu0 0.0
  %8678 = vmatprep.subr.mxu0 0.0
  %8679 = vmatpush2.msra.mxu0 0.0
  %8680 = vmatprep.subr.mxu0 0.0
  %8681 = vmatpush2.msra.mxu0 0.0
  %8682 = vmatprep.subr.mxu0 0.0
  %8683 = vmatpush2.msra.mxu0 0.0
  %8684 = vmatprep.mubr.f32.mxu0 0.0
  %8685 = vmatmul.mubr.f32.gmra.mxu0 %v8322
  %v8686 = vpop.f32.mrf.mxu0
  %v8687 = vadd.f32 %v8617, %v8686
  %v8688 = vpop.f32.mrf.mxu0
  %8689 = vdwg.mxu0
  %v8691 = vsel %vm8320, %v8319, 0
  %8693 = vmatprep.subr.mxu0 0.0
  %8694 = vmatpush1.msra.mxu0 0.0
  %8695 = vmatprep.subr.mxu0 0.0
  %8696 = vmatpush1.msra.mxu0 0.0
  %8697 = vmatprep.subr.mxu0 0.0
  %8698 = vmatpush1.msra.mxu0 %v199
  %8699 = vmatprep.subr.mxu0 0.0
  %8700 = vmatpush1.msra.mxu0 %v198
  %8701 = vmatprep.subr.mxu0 0.0
  %8702 = vmatpush1.msra.mxu0 %v197
  %8703 = vmatprep.subr.mxu0 0.0
  %8704 = vmatpush1.msra.mxu0 %v196
  %8705 = vmatprep.subr.mxu0 0.0
  %8706 = vmatpush1.msra.mxu0 %v195
  %8707 = vmatprep.subr.mxu0 0.0
  %8708 = vmatpush1.msra.mxu0 %v194
  %8709 = vmatprep.subr.mxu0 0.0
  %8710 = vmatpush1.msra.mxu0 %v193
  %8711 = vmatprep.subr.mxu0 0.0
  %8712 = vmatpush1.msra.mxu0 %v192
  %8713 = vmatprep.subr.mxu0 0.0
  %8714 = vmatpush1.msra.mxu0 %v191
  %8715 = vmatprep.subr.mxu0 0.0
  %8716 = vmatpush1.msra.mxu0 %v190
  %8717 = vmatprep.subr.mxu0 0.0
  %8718 = vmatpush1.msra.mxu0 %v189
  %8719 = vmatprep.subr.mxu0 0.0
  %8720 = vmatpush1.msra.mxu0 %v188
  %8721 = vmatprep.subr.mxu0 0.0
  %8722 = vmatpush1.msra.mxu0 %v187
  %8723 = vmatprep.subr.mxu0 0.0
  %8724 = vmatpush1.msra.mxu0 %v186
  %8725 = vmatprep.subr.mxu0 0.0
  %8726 = vmatpush2.msra.mxu0 0.0
  %8727 = vmatprep.subr.mxu0 0.0
  %8728 = vmatpush2.msra.mxu0 0.0
  %8729 = vmatprep.subr.mxu0 0.0
  %8730 = vmatpush2.msra.mxu0 0.0
  %8731 = vmatprep.subr.mxu0 0.0
  %8732 = vmatpush2.msra.mxu0 0.0
  %8733 = vmatprep.subr.mxu0 0.0
  %8734 = vmatpush2.msra.mxu0 0.0
  %8735 = vmatprep.subr.mxu0 0.0
  %8736 = vmatpush2.msra.mxu0 0.0
  %8737 = vmatprep.subr.mxu0 0.0
  %8738 = vmatpush2.msra.mxu0 0.0
  %8739 = vmatprep.subr.mxu0 0.0
  %8740 = vmatpush2.msra.mxu0 0.0
  %8741 = vmatprep.subr.mxu0 0.0
  %8742 = vmatpush2.msra.mxu0 0.0
  %8743 = vmatprep.subr.mxu0 0.0
  %8744 = vmatpush2.msra.mxu0 0.0
  %8745 = vmatprep.subr.mxu0 0.0
  %8746 = vmatpush2.msra.mxu0 0.0
  %8747 = vmatprep.subr.mxu0 0.0
  %8748 = vmatpush2.msra.mxu0 0.0
  %8749 = vmatprep.subr.mxu0 0.0
  %8750 = vmatpush2.msra.mxu0 0.0
  %8751 = vmatprep.subr.mxu0 0.0
  %8752 = vmatpush2.msra.mxu0 0.0
  %8753 = vmatprep.subr.mxu0 0.0
  %8754 = vmatpush2.msra.mxu0 0.0
  %8755 = vmatprep.subr.mxu0 0.0
  %8756 = vmatpush2.msra.mxu0 0.0
  %8757 = vmatprep.mubr.f32.mxu0 0.0
  %8758 = vmatmul.mubr.f32.gmra.mxu0 %v8691
  %v8759 = vpop.f32.mrf.mxu0
  %v8760 = vadd.f32 0.0, %v8759
  %v8761 = vpop.f32.mrf.mxu0
  %8762 = vdwg.mxu0
  %v8763 = vadd.f32 %v8687, %v8760
  %v8764 = vadd.f32 %v8763, %v8546
  %v8765 = vmax.f32 %v8764, 0.0
  %vm8766 = vcmask 523264
  %v8768 = vsel %vm8766, %v8765, 0
  %8770 = vmatprep.subr.mxu0 0.0
  %8771 = vmatpush1.msra.mxu0 0.0
  %8772 = vmatprep.subr.mxu0 0.0
  %8773 = vmatpush1.msra.mxu0 0.0
  %8774 = vmatprep.subr.mxu0 0.0
  %8775 = vmatpush1.msra.mxu0 0.0
  %8776 = vmatprep.subr.mxu0 0.0
  %8777 = vmatpush1.msra.mxu0 0.0
  %8778 = vmatprep.subr.mxu0 0.0
  %8779 = vmatpush1.msra.mxu0 0.0
  %8780 = vmatprep.subr.mxu0 0.0
  %8781 = vmatpush1.msra.mxu0 0.0
  %8782 = vmatprep.subr.mxu0 0.0
  %8783 = vmatpush1.msra.mxu0 0.0
  %8784 = vmatprep.subr.mxu0 0.0
  %8785 = vmatpush1.msra.mxu0 0.0
  %8786 = vmatprep.subr.mxu0 0.0
  %8787 = vmatpush1.msra.mxu0 %v216
  %8788 = vmatprep.subr.mxu0 0.0
  %8789 = vmatpush1.msra.mxu0 %v215
  %8790 = vmatprep.subr.mxu0 0.0
  %8791 = vmatpush1.msra.mxu0 %v214
  %8792 = vmatprep.subr.mxu0 0.0
  %8793 = vmatpush1.msra.mxu0 %v213
  %8794 = vmatprep.subr.mxu0 0.0
  %8795 = vmatpush1.msra.mxu0 %v212
  %8796 = vmatprep.subr.mxu0 0.0
  %8797 = vmatpush1.msra.mxu0 %v211
  %8798 = vmatprep.subr.mxu0 0.0
  %8799 = vmatpush1.msra.mxu0 %v210
  %8800 = vmatprep.subr.mxu0 0.0
  %8801 = vmatpush1.msra.mxu0 %v209
  %8802 = vmatprep.subr.mxu0 0.0
  %8803 = vmatpush2.msra.mxu0 0.0
  %8804 = vmatprep.subr.mxu0 0.0
  %8805 = vmatpush2.msra.mxu0 0.0
  %8806 = vmatprep.subr.mxu0 0.0
  %8807 = vmatpush2.msra.mxu0 0.0
  %8808 = vmatprep.subr.mxu0 0.0
  %8809 = vmatpush2.msra.mxu0 0.0
  %8810 = vmatprep.subr.mxu0 0.0
  %8811 = vmatpush2.msra.mxu0 0.0
  %8812 = vmatprep.subr.mxu0 0.0
  %8813 = vmatpush2.msra.mxu0 0.0
  %8814 = vmatprep.subr.mxu0 0.0
  %8815 = vmatpush2.msra.mxu0 0.0
  %8816 = vmatprep.subr.mxu0 0.0
  %8817 = vmatpush2.msra.mxu0 0.0
  %8818 = vmatprep.subr.mxu0 0.0
  %8819 = vmatpush2.msra.mxu0 0.0
  %8820 = vmatprep.subr.mxu0 0.0
  %8821 = vmatpush2.msra.mxu0 0.0
  %8822 = vmatprep.subr.mxu0 0.0
  %8823 = vmatpush2.msra.mxu0 0.0
  %8824 = vmatprep.subr.mxu0 0.0
  %8825 = vmatpush2.msra.mxu0 0.0
  %8826 = vmatprep.subr.mxu0 0.0
  %8827 = vmatpush2.msra.mxu0 0.0
  %8828 = vmatprep.subr.mxu0 0.0
  %8829 = vmatpush2.msra.mxu0 0.0
  %8830 = vmatprep.subr.mxu0 0.0
  %8831 = vmatpush2.msra.mxu0 0.0
  %8832 = vmatprep.subr.mxu0 0.0
  %8833 = vmatpush2.msra.mxu0 0.0
  %8834 = vmatprep.mubr.f32.mxu0 0.0
  %8835 = vmatmul.mubr.f32.gmra.mxu0 %v8768
  %v8836 = vpop.f32.mrf.mxu0
  %v8837 = vadd.f32 0.0, %v8836
  %v8838 = vpop.f32.mrf.mxu0
  %8839 = vdwg.mxu0
  %v8841 = vsel %vm8766, %v8549, 0
  %8843 = vmatprep.subr.mxu0 0.0
  %8844 = vmatpush1.msra.mxu0 0.0
  %8845 = vmatprep.subr.mxu0 0.0
  %8846 = vmatpush1.msra.mxu0 0.0
  %8847 = vmatprep.subr.mxu0 0.0
  %8848 = vmatpush1.msra.mxu0 0.0
  %8849 = vmatprep.subr.mxu0 0.0
  %8850 = vmatpush1.msra.mxu0 0.0
  %8851 = vmatprep.subr.mxu0 0.0
  %8852 = vmatpush1.msra.mxu0 0.0
  %8853 = vmatprep.subr.mxu0 0.0
  %8854 = vmatpush1.msra.mxu0 0.0
  %8855 = vmatprep.subr.mxu0 0.0
  %8856 = vmatpush1.msra.mxu0 0.0
  %8857 = vmatprep.subr.mxu0 0.0
  %8858 = vmatpush1.msra.mxu0 0.0
  %8859 = vmatprep.subr.mxu0 0.0
  %8860 = vmatpush1.msra.mxu0 %v207
  %8861 = vmatprep.subr.mxu0 0.0
  %8862 = vmatpush1.msra.mxu0 %v206
  %8863 = vmatprep.subr.mxu0 0.0
  %8864 = vmatpush1.msra.mxu0 %v205
  %8865 = vmatprep.subr.mxu0 0.0
  %8866 = vmatpush1.msra.mxu0 %v204
  %8867 = vmatprep.subr.mxu0 0.0
  %8868 = vmatpush1.msra.mxu0 %v203
  %8869 = vmatprep.subr.mxu0 0.0
  %8870 = vmatpush1.msra.mxu0 %v202
  %8871 = vmatprep.subr.mxu0 0.0
  %8872 = vmatpush1.msra.mxu0 %v201
  %8873 = vmatprep.subr.mxu0 0.0
  %8874 = vmatpush1.msra.mxu0 %v200
  %8875 = vmatprep.subr.mxu0 0.0
  %8876 = vmatpush2.msra.mxu0 0.0
  %8877 = vmatprep.subr.mxu0 0.0
  %8878 = vmatpush2.msra.mxu0 0.0
  %8879 = vmatprep.subr.mxu0 0.0
  %8880 = vmatpush2.msra.mxu0 0.0
  %8881 = vmatprep.subr.mxu0 0.0
  %8882 = vmatpush2.msra.mxu0 0.0
  %8883 = vmatprep.subr.mxu0 0.0
  %8884 = vmatpush2.msra.mxu0 0.0
  %8885 = vmatprep.subr.mxu0 0.0
  %8886 = vmatpush2.msra.mxu0 0.0
  %8887 = vmatprep.subr.mxu0 0.0
  %8888 = vmatpush2.msra.mxu0 0.0
  %8889 = vmatprep.subr.mxu0 0.0
  %8890 = vmatpush2.msra.mxu0 0.0
  %8891 = vmatprep.subr.mxu0 0.0
  %8892 = vmatpush2.msra.mxu0 0.0
  %8893 = vmatprep.subr.mxu0 0.0
  %8894 = vmatpush2.msra.mxu0 0.0
  %8895 = vmatprep.subr.mxu0 0.0
  %8896 = vmatpush2.msra.mxu0 0.0
  %8897 = vmatprep.subr.mxu0 0.0
  %8898 = vmatpush2.msra.mxu0 0.0
  %8899 = vmatprep.subr.mxu0 0.0
  %8900 = vmatpush2.msra.mxu0 0.0
  %8901 = vmatprep.subr.mxu0 0.0
  %8902 = vmatpush2.msra.mxu0 0.0
  %8903 = vmatprep.subr.mxu0 0.0
  %8904 = vmatpush2.msra.mxu0 0.0
  %8905 = vmatprep.subr.mxu0 0.0
  %8906 = vmatpush2.msra.mxu0 0.0
  %8907 = vmatprep.mubr.f32.mxu0 0.0
  %8908 = vmatmul.mubr.f32.gmra.mxu0 %v8841
  %v8909 = vpop.f32.mrf.mxu0
  %v8910 = vadd.f32 %v8837, %v8909
  %v8911 = vpop.f32.mrf.mxu0
  %8912 = vdwg.mxu0
  %v8913 = vld [vmem:[%s10] sm:$0x1]
  %v8915 = vlaneseq
  %v8916 = vshrl.u32 %v8915, 7
  %v8917 = vsub.s32 0, %v8916
  %v8918 = vrot.slane %v8913, %v8917
  %v8920 = vadd.f32 %v8910, %v8918
  %v8921 = vld [vmem:[%s11] sm:$0xff]
  %v8922 = vld [vmem:[%s11 + $0x8] sm:$0xff]
  %v8923 = vld [vmem:[%s11 + $0x10] sm:$0xff]
  %v8924 = vld [vmem:[%s11 + $0x18] sm:$0xff]
  %v8925 = vld [vmem:[%s12] sm:$0x1]
  %v8927 = vlaneseq
  %v8928 = vshrl.u32 %v8927, 7
  %v8929 = vsub.s32 0, %v8928
  %v8930 = vrot.slane %v8925, %v8929
  %vm8932 = vcmask 261120
  %v8934 = vsel %vm8932, %v8920, 0
  %8936 = vmatprep.subr.mxu0 0.0
  %8937 = vmatpush1.msra.mxu0 0.0
  %8938 = vmatprep.subr.mxu0 0.0
  %8939 = vmatpush1.msra.mxu0 0.0
  %8940 = vmatprep.subr.mxu0 0.0
  %8941 = vmatpush1.msra.mxu0 0.0
  %8942 = vmatprep.subr.mxu0 0.0
  %8943 = vmatpush1.msra.mxu0 0.0
  %8944 = vmatprep.subr.mxu0 0.0
  %8945 = vmatpush1.msra.mxu0 0.0
  %8946 = vmatprep.subr.mxu0 0.0
  %8947 = vmatpush1.msra.mxu0 0.0
  %8948 = vmatprep.subr.mxu0 0.0
  %8949 = vmatpush1.msra.mxu0 0.0
  %8950 = vmatprep.subr.mxu0 0.0
  %8951 = vmatpush1.msra.mxu0 0.0
  %8952 = vmatprep.subr.mxu0 0.0
  %8953 = vmatpush1.msra.mxu0 0.0
  %8954 = vmatprep.subr.mxu0 0.0
  %8955 = vmatpush1.msra.mxu0 0.0
  %8956 = vmatprep.subr.mxu0 0.0
  %8957 = vmatpush1.msra.mxu0 0.0
  %8958 = vmatprep.subr.mxu0 0.0
  %8959 = vmatpush1.msra.mxu0 0.0
  %8960 = vmatprep.subr.mxu0 0.0
  %8961 = vmatpush1.msra.mxu0 %v8924
  %8962 = vmatprep.subr.mxu0 0.0
  %8963 = vmatpush1.msra.mxu0 %v8923
  %8964 = vmatprep.subr.mxu0 0.0
  %8965 = vmatpush1.msra.mxu0 %v8922
  %8966 = vmatprep.subr.mxu0 0.0
  %8967 = vmatpush1.msra.mxu0 %v8921
  %8968 = vmatprep.subr.mxu0 0.0
  %8969 = vmatpush2.msra.mxu0 0.0
  %8970 = vmatprep.subr.mxu0 0.0
  %8971 = vmatpush2.msra.mxu0 0.0
  %8972 = vmatprep.subr.mxu0 0.0
  %8973 = vmatpush2.msra.mxu0 0.0
  %8974 = vmatprep.subr.mxu0 0.0
  %8975 = vmatpush2.msra.mxu0 0.0
  %8976 = vmatprep.subr.mxu0 0.0
  %8977 = vmatpush2.msra.mxu0 0.0
  %8978 = vmatprep.subr.mxu0 0.0
  %8979 = vmatpush2.msra.mxu0 0.0
  %8980 = vmatprep.subr.mxu0 0.0
  %8981 = vmatpush2.msra.mxu0 0.0
  %8982 = vmatprep.subr.mxu0 0.0
  %8983 = vmatpush2.msra.mxu0 0.0
  %8984 = vmatprep.subr.mxu0 0.0
  %8985 = vmatpush2.msra.mxu0 0.0
  %8986 = vmatprep.subr.mxu0 0.0
  %8987 = vmatpush2.msra.mxu0 0.0
  %8988 = vmatprep.subr.mxu0 0.0
  %8989 = vmatpush2.msra.mxu0 0.0
  %8990 = vmatprep.subr.mxu0 0.0
  %8991 = vmatpush2.msra.mxu0 0.0
  %8992 = vmatprep.subr.mxu0 0.0
  %8993 = vmatpush2.msra.mxu0 0.0
  %8994 = vmatprep.subr.mxu0 0.0
  %8995 = vmatpush2.msra.mxu0 0.0
  %8996 = vmatprep.subr.mxu0 0.0
  %8997 = vmatpush2.msra.mxu0 0.0
  %8998 = vmatprep.subr.mxu0 0.0
  %8999 = vmatpush2.msra.mxu0 0.0
  %9000 = vmatprep.mubr.f32.mxu0 0.0
  %9001 = vmatmul.mubr.f32.gmra.mxu0 %v8934
  %v9002 = vpop.f32.mrf.mxu0
  %v9003 = vadd.f32 %v8930, %v9002
  %v9004 = vpop.f32.mrf.mxu0
  %9005 = vdwg.mxu0
  %vm9006 = vcmask 80896
  %9007 = vst.msk [vmem:[%s15] sm:$0xff] %vm9006, %v9003
  // Predicated region
  $region62: #{mnist_forward.1} parent=0 // pred_check
    _
  $region63: #{mnist_forward.1} parent=0 // pred_check_branch
    %9009 = sbr.rel (0) target = $region65
  $region64: #{mnist_forward.1} parent=0 // pred_region
    _
  $region65: #{mnist_forward.1} parent=0 // pred_fallthru
    _
  // Predicated region
  $region66: #{mnist_forward.1} parent=0 // pred_check
    _
  $region67: #{mnist_forward.1} parent=0 // pred_check_branch
    %9011 = sbr.rel (0) target = $region69
  $region68: #{mnist_forward.1} parent=0 // pred_region
    _
  $region69: #{mnist_forward.1} parent=0 // pred_fallthru
    _

</llo_original>
